<compile_context>
chip_gen: v5e
topology: v5e:2x2
jax: 0.10.0
libtpu: 0.0.40
codegen_flags: <defaults>
</compile_context>

<pallas_src>
import functools

import jax
import jax.numpy as jnp
from jax import lax
from jax.experimental import pallas as pl
from jax.experimental.pallas import tpu as pltpu

# --- small hyperparameters consistent with the module's structure ---
VOCAB = 65            # vocabulary_size
VOCAB_PAD = 128       # LM-head output padded to a full lane width
N_EMBD = 128          # no_of_embedding_dimensions (small)
N_HEAD = 4            # number_of_heads
HEAD_SIZE = N_EMBD // N_HEAD
N_LAYER = 2           # number_of_layers (small)
BLOCK_SIZE = 64       # block_size (max context, small)
B = 2
T = 64
LN_EPS = 1e-5         # torch nn.LayerNorm default


# ------------------------- fused kernel -------------------------

def _layernorm(x, g, b):
    mean = jnp.mean(x, axis=-1, keepdims=True)
    xc = x - mean
    var = jnp.mean(xc * xc, axis=-1, keepdims=True)
    return xc * lax.rsqrt(var + LN_EPS) * g + b


def _fused_forward_kernel(x_ref,
                          ln1g_ref, ln1b_ref,
                          wq_ref, wk_ref, wv_ref, wo_ref, bo_ref,
                          ln2g_ref, ln2b_ref,
                          w1_ref, b1_ref, w2_ref, b2_ref,
                          lnfg_ref, lnfb_ref, wlm_ref, blm_ref,
                          o_ref, *, n_layer, n_head, head_size, scale):
    # One batch element per grid step; everything below lives in vregs/VMEM.
    x = x_ref[0].astype(jnp.float32)                       # (T, C)
    t, c = x.shape

    row = lax.broadcasted_iota(jnp.int32, (t, t), 0)
    col = lax.broadcasted_iota(jnp.int32, (t, t), 1)
    causal = col <= row                                    # tril mask

    for l in range(n_layer):
        # ---- multi-head causal self-attention ----
        h = _layernorm(x, ln1g_ref[l], ln1b_ref[l])        # (T, C)
        # full-width projections -> full 128-wide MXU contractions
        q = jnp.dot(h, wq_ref[l], preferred_element_type=jnp.float32)
        k = jnp.dot(h, wk_ref[l], preferred_element_type=jnp.float32)
        v = jnp.dot(h, wv_ref[l], preferred_element_type=jnp.float32)

        proj = jnp.zeros((t, c), jnp.float32)
        for hh in range(n_head):
            sl = slice(hh * head_size, (hh + 1) * head_size)
            qh = q[:, sl]                                   # (T, hs)
            kh = k[:, sl]
            vh = v[:, sl]
            # scores = qh @ kh^T * scale  (scale = n_embd**-0.5, as in torch)
            s = lax.dot_general(qh, kh, (((1,), (1,)), ((), ())),
                                preferred_element_type=jnp.float32) * scale
            s = jnp.where(causal, s, -jnp.inf)
            s = s - jnp.max(s, axis=-1, keepdims=True)
            p = jnp.exp(s)
            p = p * pl.reciprocal(jnp.sum(p, axis=-1, keepdims=True), approx=True)
            oh = jnp.dot(p, vh, preferred_element_type=jnp.float32)   # (T, hs)
            # out-projection of the head-concat, folded per head:
            #   concat(oh) @ Wo == sum_h oh @ Wo[h*hs:(h+1)*hs, :]
            proj = proj + jnp.dot(oh, wo_ref[l, sl, :],
                                  preferred_element_type=jnp.float32)
        x = x + proj + bo_ref[l]                            # residual (+ proj bias)

        # ---- feed-forward: Linear(4x) -> ReLU -> Linear ----
        h2 = _layernorm(x, ln2g_ref[l], ln2b_ref[l])
        f = jnp.dot(h2, w1_ref[l], preferred_element_type=jnp.float32) + b1_ref[l]
        f = jnp.maximum(f, 0.0)
        f = jnp.dot(f, w2_ref[l], preferred_element_type=jnp.float32) + b2_ref[l]
        x = x + f                                           # residual

    # ---- final LN + LM head (padded to 128 lanes) ----
    xn = _layernorm(x, lnfg_ref[...], lnfb_ref[...])
    logits = jnp.dot(xn, wlm_ref[...],
                     preferred_element_type=jnp.float32) + blm_ref[...]
    o_ref[0] = logits.astype(o_ref.dtype)


# ------------------------- wrapper -------------------------

def bigram_lm_forward(params, idx):
    Bb, Tt = idx.shape
    C, Hd = N_EMBD, 4 * N_EMBD

    # embedding lookups are gather glue (kept in plain JAX)
    tok = jnp.take(params["tok_emb"], idx, axis=0)          # (B, T, C)
    x = tok + params["pos_emb"][:Tt][None, :, :]

    scale = float(N_EMBD) ** -0.5   # torch: weights *= C**-0.5 with C = n_embd
    stk = params["stacked"]

    kernel = functools.partial(_fused_forward_kernel,
                               n_layer=N_LAYER, n_head=N_HEAD,
                               head_size=HEAD_SIZE, scale=scale)

    def full(shape):
        return pl.BlockSpec(shape, lambda b: (0,) * len(shape))

    logits_pad = pl.pallas_call(
        kernel,
        out_shape=jax.ShapeDtypeStruct((Bb, Tt, VOCAB_PAD), jnp.float32),
        grid=(Bb,),
        in_specs=[
            pl.BlockSpec((1, Tt, C), lambda b: (b, 0, 0)),   # activations
            full((N_LAYER, 1, C)), full((N_LAYER, 1, C)),    # ln1 g/b
            full((N_LAYER, C, C)), full((N_LAYER, C, C)),    # wq, wk
            full((N_LAYER, C, C)), full((N_LAYER, C, C)),    # wv, wo
            full((N_LAYER, 1, C)),                           # bo
            full((N_LAYER, 1, C)), full((N_LAYER, 1, C)),    # ln2 g/b
            full((N_LAYER, C, Hd)), full((N_LAYER, 1, Hd)),  # w1, b1
            full((N_LAYER, Hd, C)), full((N_LAYER, 1, C)),   # w2, b2
            full((1, C)), full((1, C)),                      # final LN g/b
            full((C, VOCAB_PAD)), full((1, VOCAB_PAD)),      # LM head (padded)
        ],
        out_specs=pl.BlockSpec((1, Tt, VOCAB_PAD), lambda b: (b, 0, 0)),
        compiler_params=pltpu.CompilerParams(
            dimension_semantics=("parallel",),               # v7x: 1 batch / TC
            vmem_limit_bytes=32 * 1024 * 1024),
    )(x,
      stk["ln1_g"], stk["ln1_b"],
      stk["wq"], stk["wk"], stk["wv"], stk["wo"], stk["bo"],
      stk["ln2_g"], stk["ln2_b"],
      stk["w1"], stk["b1"], stk["w2"], stk["b2"],
      params["lnf_g"], params["lnf_b"],
      params["w_lm_pad"], params["b_lm_pad"])

    logits = logits_pad[:, :, :VOCAB]                        # drop lane padding
    # TODO(synk): cross-entropy loss path (targets != None) and multinomial
    # sampling in generate() are host/glue concerns, not kernel hot paths.
    return logits, None


# ------------------------- parameters -------------------------

def init_params(key):
    keys = iter(jax.random.split(key, 32))

    def nrm(shape, s=0.02):
        return (s * jax.random.normal(next(keys), shape)).astype(jnp.float32)

    ones = lambda *s: jnp.ones(s, jnp.float32)
    zeros = lambda *s: jnp.zeros(s, jnp.float32)

    stacked = dict(
        ln1_g=ones(N_LAYER, 1, N_EMBD), ln1_b=zeros(N_LAYER, 1, N_EMBD),
        wq=nrm((N_LAYER, N_EMBD, N_EMBD)),   # per-head (C, hs) weights stacked along
        wk=nrm((N_LAYER, N_EMBD, N_EMBD)),   # the output axis -> same concat order as
        wv=nrm((N_LAYER, N_EMBD, N_EMBD)),   # torch.cat([head(x)...], dim=-1)
        wo=nrm((N_LAYER, N_EMBD, N_EMBD)), bo=zeros(N_LAYER, 1, N_EMBD),
        ln2_g=ones(N_LAYER, 1, N_EMBD), ln2_b=zeros(N_LAYER, 1, N_EMBD),
        w1=nrm((N_LAYER, N_EMBD, 4 * N_EMBD)), b1=zeros(N_LAYER, 1, 4 * N_EMBD),
        w2=nrm((N_LAYER, 4 * N_EMBD, N_EMBD)), b2=zeros(N_LAYER, 1, N_EMBD),
    )
    w_lm = nrm((N_EMBD, VOCAB))
    w_lm_pad = jnp.zeros((N_EMBD, VOCAB_PAD), jnp.float32).at[:, :VOCAB].set(w_lm)
    b_lm_pad = jnp.zeros((1, VOCAB_PAD), jnp.float32)        # bias init = 0

    return dict(
        tok_emb=nrm((VOCAB, N_EMBD)),
        pos_emb=nrm((BLOCK_SIZE, N_EMBD)),
        lnf_g=ones(1, N_EMBD), lnf_b=zeros(1, N_EMBD),
        w_lm_pad=w_lm_pad, b_lm_pad=b_lm_pad,
        stacked=stacked,
    )


if __name__ == "__main__":
    root = jax.random.PRNGKey(0)
    pkey, ikey = jax.random.split(root)
    params = init_params(pkey)
    idx = jax.random.randint(ikey, (B, T), 0, VOCAB, dtype=jnp.int32)

    fwd = jax.jit(bigram_lm_forward)
    logits, loss = fwd(params, idx)
    logits = jax.block_until_ready(logits)
    assert logits.shape == (B, T, VOCAB) and logits.dtype == jnp.float32
    assert loss is None
    print("KERNEL_OK")
</pallas_src>

<mosaic_0001>
module attributes {stable_mosaic.version = 11 : i64} {
  func.func @_fused_forward_kernel(%arg0: i32, %arg1: memref<1x64x128xf32, #tpu.memory_space<vmem>>, %arg2: memref<2x1x128xf32, #tpu.memory_space<vmem>>, %arg3: memref<2x1x128xf32, #tpu.memory_space<vmem>>, %arg4: memref<2x128x128xf32, #tpu.memory_space<vmem>>, %arg5: memref<2x128x128xf32, #tpu.memory_space<vmem>>, %arg6: memref<2x128x128xf32, #tpu.memory_space<vmem>>, %arg7: memref<2x128x128xf32, #tpu.memory_space<vmem>>, %arg8: memref<2x1x128xf32, #tpu.memory_space<vmem>>, %arg9: memref<2x1x128xf32, #tpu.memory_space<vmem>>, %arg10: memref<2x1x128xf32, #tpu.memory_space<vmem>>, %arg11: memref<2x128x512xf32, #tpu.memory_space<vmem>>, %arg12: memref<2x1x512xf32, #tpu.memory_space<vmem>>, %arg13: memref<2x512x128xf32, #tpu.memory_space<vmem>>, %arg14: memref<2x1x128xf32, #tpu.memory_space<vmem>>, %arg15: memref<1x128xf32, #tpu.memory_space<vmem>>, %arg16: memref<1x128xf32, #tpu.memory_space<vmem>>, %arg17: memref<128x128xf32, #tpu.memory_space<vmem>>, %arg18: memref<1x128xf32, #tpu.memory_space<vmem>>, %arg19: memref<1x64x128xf32, #tpu.memory_space<vmem>>) attributes {dimension_semantics = [#tpu.dimension_semantics<parallel>], iteration_bounds = array<i64: 2>, scalar_prefetch = 0 : i64, scratch_operands = 0 : i64, tpu.core_type = #tpu.core_type<tc>, window_params = [{transform_indices = @transform_0, window_bounds = array<i64: 1, 64, 128>}, {pipeline_mode = #tpu.pipeline_mode<synchronous>, transform_indices = @transform_1, window_bounds = array<i64: 2, 1, 128>}, {pipeline_mode = #tpu.pipeline_mode<synchronous>, transform_indices = @transform_2, window_bounds = array<i64: 2, 1, 128>}, {pipeline_mode = #tpu.pipeline_mode<synchronous>, transform_indices = @transform_3, window_bounds = array<i64: 2, 128, 128>}, {pipeline_mode = #tpu.pipeline_mode<synchronous>, transform_indices = @transform_4, window_bounds = array<i64: 2, 128, 128>}, {pipeline_mode = #tpu.pipeline_mode<synchronous>, transform_indices = @transform_5, window_bounds = array<i64: 2, 128, 128>}, {pipeline_mode = #tpu.pipeline_mode<synchronous>, transform_indices = @transform_6, window_bounds = array<i64: 2, 128, 128>}, {pipeline_mode = #tpu.pipeline_mode<synchronous>, transform_indices = @transform_7, window_bounds = array<i64: 2, 1, 128>}, {pipeline_mode = #tpu.pipeline_mode<synchronous>, transform_indices = @transform_8, window_bounds = array<i64: 2, 1, 128>}, {pipeline_mode = #tpu.pipeline_mode<synchronous>, transform_indices = @transform_9, window_bounds = array<i64: 2, 1, 128>}, {pipeline_mode = #tpu.pipeline_mode<synchronous>, transform_indices = @transform_10, window_bounds = array<i64: 2, 128, 512>}, {pipeline_mode = #tpu.pipeline_mode<synchronous>, transform_indices = @transform_11, window_bounds = array<i64: 2, 1, 512>}, {pipeline_mode = #tpu.pipeline_mode<synchronous>, transform_indices = @transform_12, window_bounds = array<i64: 2, 512, 128>}, {pipeline_mode = #tpu.pipeline_mode<synchronous>, transform_indices = @transform_13, window_bounds = array<i64: 2, 1, 128>}, {pipeline_mode = #tpu.pipeline_mode<synchronous>, transform_indices = @transform_14, window_bounds = array<i64: 1, 128>}, {pipeline_mode = #tpu.pipeline_mode<synchronous>, transform_indices = @transform_15, window_bounds = array<i64: 1, 128>}, {pipeline_mode = #tpu.pipeline_mode<synchronous>, transform_indices = @transform_16, window_bounds = array<i64: 128, 128>}, {pipeline_mode = #tpu.pipeline_mode<synchronous>, transform_indices = @transform_17, window_bounds = array<i64: 1, 128>}, {transform_indices = @transform_18, window_bounds = array<i64: 1, 64, 128>}]} {
    %c0 = arith.constant 0 : index
    %c0_0 = arith.constant 0 : index
    %c0_1 = arith.constant 0 : index
    %0 = vector.load %arg1[%c0, %c0_0, %c0_1] : memref<1x64x128xf32, #tpu.memory_space<vmem>>, vector<1x64x128xf32>
    %1 = vector.shape_cast %0 : vector<1x64x128xf32> to vector<64x128xf32>
    %2 = tpu.iota {dimensions = array<i32: 0>} : vector<64x64xi32>
    %3 = tpu.iota {dimensions = array<i32: 1>} : vector<64x64xi32>
    %4 = arith.cmpi sle, %3, %2 : vector<64x64xi32>
    %c0_2 = arith.constant 0 : index
    %c0_3 = arith.constant 0 : index
    %c0_4 = arith.constant 0 : index
    %5 = vector.load %arg2[%c0_2, %c0_3, %c0_4] : memref<2x1x128xf32, #tpu.memory_space<vmem>>, vector<1x1x128xf32>
    %6 = vector.shape_cast %5 : vector<1x1x128xf32> to vector<1x128xf32>
    %c0_5 = arith.constant 0 : index
    %c0_6 = arith.constant 0 : index
    %c0_7 = arith.constant 0 : index
    %7 = vector.load %arg3[%c0_5, %c0_6, %c0_7] : memref<2x1x128xf32, #tpu.memory_space<vmem>>, vector<1x1x128xf32>
    %8 = vector.shape_cast %7 : vector<1x1x128xf32> to vector<1x128xf32>
    %cst = arith.constant dense<0.000000e+00> : vector<64xf32>
    %9 = vector.multi_reduction <add>, %1, %cst [1] : vector<64x128xf32> to vector<64xf32>
    %10 = vector.shape_cast %9 : vector<64xf32> to vector<64x1xf32>
    %cst_8 = arith.constant 1.280000e+02 : f32
    %11 = vector.broadcast %cst_8 : f32 to vector<64x1xf32>
    %12 = arith.divf %10, %11 : vector<64x1xf32>
    %13 = vector.broadcast %12 : vector<64x1xf32> to vector<64x128xf32>
    %14 = arith.subf %1, %13 : vector<64x128xf32>
    %15 = arith.mulf %14, %14 : vector<64x128xf32>
    %cst_9 = arith.constant dense<0.000000e+00> : vector<64xf32>
    %16 = vector.multi_reduction <add>, %15, %cst_9 [1] : vector<64x128xf32> to vector<64xf32>
    %17 = vector.shape_cast %16 : vector<64xf32> to vector<64x1xf32>
    %cst_10 = arith.constant 1.280000e+02 : f32
    %18 = vector.broadcast %cst_10 : f32 to vector<64x1xf32>
    %19 = arith.divf %17, %18 : vector<64x1xf32>
    %cst_11 = arith.constant 9.99999974E-6 : f32
    %20 = vector.broadcast %cst_11 : f32 to vector<64x1xf32>
    %21 = arith.addf %19, %20 : vector<64x1xf32>
    %22 = math.rsqrt %21 : vector<64x1xf32>
    %23 = vector.broadcast %22 : vector<64x1xf32> to vector<64x128xf32>
    %24 = arith.mulf %14, %23 : vector<64x128xf32>
    %25 = vector.broadcast %6 : vector<1x128xf32> to vector<64x128xf32>
    %26 = arith.mulf %24, %25 : vector<64x128xf32>
    %27 = vector.broadcast %8 : vector<1x128xf32> to vector<64x128xf32>
    %28 = arith.addf %26, %27 : vector<64x128xf32>
    %c0_12 = arith.constant 0 : index
    %c0_13 = arith.constant 0 : index
    %c0_14 = arith.constant 0 : index
    %29 = vector.load %arg4[%c0_12, %c0_13, %c0_14] : memref<2x128x128xf32, #tpu.memory_space<vmem>>, vector<1x128x128xf32>
    %30 = vector.shape_cast %29 : vector<1x128x128xf32> to vector<128x128xf32>
    %cst_15 = arith.constant dense<0.000000e+00> : vector<64x128xf32>
    %31 = tpu.matmul %28, %30, %cst_15 {dimension_numbers = #tpu.dot_dimension_numbers<[1], [0], [0], [1], [0, 0, 1, 1], [], []>} : vector<64x128xf32>, vector<128x128xf32>, vector<64x128xf32> -> vector<64x128xf32>
    %c0_16 = arith.constant 0 : index
    %c0_17 = arith.constant 0 : index
    %c0_18 = arith.constant 0 : index
    %32 = vector.load %arg5[%c0_16, %c0_17, %c0_18] : memref<2x128x128xf32, #tpu.memory_space<vmem>>, vector<1x128x128xf32>
    %33 = vector.shape_cast %32 : vector<1x128x128xf32> to vector<128x128xf32>
    %cst_19 = arith.constant dense<0.000000e+00> : vector<64x128xf32>
    %34 = tpu.matmul %28, %33, %cst_19 {dimension_numbers = #tpu.dot_dimension_numbers<[1], [0], [0], [1], [0, 0, 1, 1], [], []>} : vector<64x128xf32>, vector<128x128xf32>, vector<64x128xf32> -> vector<64x128xf32>
    %c0_20 = arith.constant 0 : index
    %c0_21 = arith.constant 0 : index
    %c0_22 = arith.constant 0 : index
    %35 = vector.load %arg6[%c0_20, %c0_21, %c0_22] : memref<2x128x128xf32, #tpu.memory_space<vmem>>, vector<1x128x128xf32>
    %36 = vector.shape_cast %35 : vector<1x128x128xf32> to vector<128x128xf32>
    %cst_23 = arith.constant dense<0.000000e+00> : vector<64x128xf32>
    %37 = tpu.matmul %28, %36, %cst_23 {dimension_numbers = #tpu.dot_dimension_numbers<[1], [0], [0], [1], [0, 0, 1, 1], [], []>} : vector<64x128xf32>, vector<128x128xf32>, vector<64x128xf32> -> vector<64x128xf32>
    %cst_24 = arith.constant 0.000000e+00 : f32
    %38 = vector.broadcast %cst_24 : f32 to vector<64x128xf32>
    %39 = vector.extract_strided_slice %31 {offsets = [0, 0], sizes = [64, 32], strides = [1, 1]} : vector<64x128xf32> to vector<64x32xf32>
    %40 = vector.extract_strided_slice %34 {offsets = [0, 0], sizes = [64, 32], strides = [1, 1]} : vector<64x128xf32> to vector<64x32xf32>
    %41 = vector.extract_strided_slice %37 {offsets = [0, 0], sizes = [64, 32], strides = [1, 1]} : vector<64x128xf32> to vector<64x32xf32>
    %cst_25 = arith.constant dense<0.000000e+00> : vector<64x64xf32>
    %42 = tpu.matmul %39, %40, %cst_25 {dimension_numbers = #tpu.dot_dimension_numbers<[1], [1], [0], [0], [0, 0, 1, 0], [], []>} : vector<64x32xf32>, vector<64x32xf32>, vector<64x64xf32> -> vector<64x64xf32>
    %cst_26 = arith.constant 0.0883883461 : f32
    %43 = vector.broadcast %cst_26 : f32 to vector<64x64xf32>
    %44 = arith.mulf %42, %43 : vector<64x64xf32>
    %cst_27 = arith.constant 0xFF800000 : f32
    %45 = vector.broadcast %cst_27 : f32 to vector<64x64xf32>
    %46 = arith.select %4, %44, %45 : vector<64x64xi1>, vector<64x64xf32>
    %cst_28 = arith.constant dense<0xFF800000> : vector<64xf32>
    %47 = vector.multi_reduction <maximumf>, %46, %cst_28 [1] : vector<64x64xf32> to vector<64xf32>
    %48 = vector.shape_cast %47 : vector<64xf32> to vector<64x1xf32>
    %49 = vector.broadcast %48 : vector<64x1xf32> to vector<64x64xf32>
    %50 = arith.subf %46, %49 : vector<64x64xf32>
    %51 = math.exp %50 : vector<64x64xf32>
    %cst_29 = arith.constant dense<0.000000e+00> : vector<64xf32>
    %52 = vector.multi_reduction <add>, %51, %cst_29 [1] : vector<64x64xf32> to vector<64xf32>
    %53 = vector.shape_cast %52 : vector<64xf32> to vector<64x1xf32>
    %54 = tpu.reciprocal %53 {approx = true} : vector<64x1xf32> -> vector<64x1xf32>
    %55 = vector.broadcast %54 : vector<64x1xf32> to vector<64x64xf32>
    %56 = arith.mulf %51, %55 : vector<64x64xf32>
    %cst_30 = arith.constant dense<0.000000e+00> : vector<64x32xf32>
    %57 = tpu.matmul %56, %41, %cst_30 {dimension_numbers = #tpu.dot_dimension_numbers<[1], [0], [0], [1], [0, 0, 1, 1], [], []>} : vector<64x64xf32>, vector<64x32xf32>, vector<64x32xf32> -> vector<64x32xf32>
    %c0_31 = arith.constant 0 : index
    %c0_32 = arith.constant 0 : index
    %c0_33 = arith.constant 0 : index
    %58 = vector.load %arg7[%c0_31, %c0_32, %c0_33] : memref<2x128x128xf32, #tpu.memory_space<vmem>>, vector<1x32x128xf32>
    %59 = vector.shape_cast %58 : vector<1x32x128xf32> to vector<32x128xf32>
    %cst_34 = arith.constant dense<0.000000e+00> : vector<64x128xf32>
    %60 = tpu.matmul %57, %59, %cst_34 {dimension_numbers = #tpu.dot_dimension_numbers<[1], [0], [0], [1], [0, 0, 1, 1], [], []>} : vector<64x32xf32>, vector<32x128xf32>, vector<64x128xf32> -> vector<64x128xf32>
    %61 = arith.addf %38, %60 : vector<64x128xf32>
    %62 = vector.extract_strided_slice %31 {offsets = [0, 32], sizes = [64, 32], strides = [1, 1]} : vector<64x128xf32> to vector<64x32xf32>
    %63 = vector.extract_strided_slice %34 {offsets = [0, 32], sizes = [64, 32], strides = [1, 1]} : vector<64x128xf32> to vector<64x32xf32>
    %64 = vector.extract_strided_slice %37 {offsets = [0, 32], sizes = [64, 32], strides = [1, 1]} : vector<64x128xf32> to vector<64x32xf32>
    %cst_35 = arith.constant dense<0.000000e+00> : vector<64x64xf32>
    %65 = tpu.matmul %62, %63, %cst_35 {dimension_numbers = #tpu.dot_dimension_numbers<[1], [1], [0], [0], [0, 0, 1, 0], [], []>} : vector<64x32xf32>, vector<64x32xf32>, vector<64x64xf32> -> vector<64x64xf32>
    %cst_36 = arith.constant 0.0883883461 : f32
    %66 = vector.broadcast %cst_36 : f32 to vector<64x64xf32>
    %67 = arith.mulf %65, %66 : vector<64x64xf32>
    %cst_37 = arith.constant 0xFF800000 : f32
    %68 = vector.broadcast %cst_37 : f32 to vector<64x64xf32>
    %69 = arith.select %4, %67, %68 : vector<64x64xi1>, vector<64x64xf32>
    %cst_38 = arith.constant dense<0xFF800000> : vector<64xf32>
    %70 = vector.multi_reduction <maximumf>, %69, %cst_38 [1] : vector<64x64xf32> to vector<64xf32>
    %71 = vector.shape_cast %70 : vector<64xf32> to vector<64x1xf32>
    %72 = vector.broadcast %71 : vector<64x1xf32> to vector<64x64xf32>
    %73 = arith.subf %69, %72 : vector<64x64xf32>
    %74 = math.exp %73 : vector<64x64xf32>
    %cst_39 = arith.constant dense<0.000000e+00> : vector<64xf32>
    %75 = vector.multi_reduction <add>, %74, %cst_39 [1] : vector<64x64xf32> to vector<64xf32>
    %76 = vector.shape_cast %75 : vector<64xf32> to vector<64x1xf32>
    %77 = tpu.reciprocal %76 {approx = true} : vector<64x1xf32> -> vector<64x1xf32>
    %78 = vector.broadcast %77 : vector<64x1xf32> to vector<64x64xf32>
    %79 = arith.mulf %74, %78 : vector<64x64xf32>
    %cst_40 = arith.constant dense<0.000000e+00> : vector<64x32xf32>
    %80 = tpu.matmul %79, %64, %cst_40 {dimension_numbers = #tpu.dot_dimension_numbers<[1], [0], [0], [1], [0, 0, 1, 1], [], []>} : vector<64x64xf32>, vector<64x32xf32>, vector<64x32xf32> -> vector<64x32xf32>
    %c0_41 = arith.constant 0 : index
    %c32 = arith.constant 32 : index
    %c0_42 = arith.constant 0 : index
    %81 = vector.load %arg7[%c0_41, %c32, %c0_42] : memref<2x128x128xf32, #tpu.memory_space<vmem>>, vector<1x32x128xf32>
    %82 = vector.shape_cast %81 : vector<1x32x128xf32> to vector<32x128xf32>
    %cst_43 = arith.constant dense<0.000000e+00> : vector<64x128xf32>
    %83 = tpu.matmul %80, %82, %cst_43 {dimension_numbers = #tpu.dot_dimension_numbers<[1], [0], [0], [1], [0, 0, 1, 1], [], []>} : vector<64x32xf32>, vector<32x128xf32>, vector<64x128xf32> -> vector<64x128xf32>
    %84 = arith.addf %61, %83 : vector<64x128xf32>
    %85 = vector.extract_strided_slice %31 {offsets = [0, 64], sizes = [64, 32], strides = [1, 1]} : vector<64x128xf32> to vector<64x32xf32>
    %86 = vector.extract_strided_slice %34 {offsets = [0, 64], sizes = [64, 32], strides = [1, 1]} : vector<64x128xf32> to vector<64x32xf32>
    %87 = vector.extract_strided_slice %37 {offsets = [0, 64], sizes = [64, 32], strides = [1, 1]} : vector<64x128xf32> to vector<64x32xf32>
    %cst_44 = arith.constant dense<0.000000e+00> : vector<64x64xf32>
    %88 = tpu.matmul %85, %86, %cst_44 {dimension_numbers = #tpu.dot_dimension_numbers<[1], [1], [0], [0], [0, 0, 1, 0], [], []>} : vector<64x32xf32>, vector<64x32xf32>, vector<64x64xf32> -> vector<64x64xf32>
    %cst_45 = arith.constant 0.0883883461 : f32
    %89 = vector.broadcast %cst_45 : f32 to vector<64x64xf32>
    %90 = arith.mulf %88, %89 : vector<64x64xf32>
    %cst_46 = arith.constant 0xFF800000 : f32
    %91 = vector.broadcast %cst_46 : f32 to vector<64x64xf32>
    %92 = arith.select %4, %90, %91 : vector<64x64xi1>, vector<64x64xf32>
    %cst_47 = arith.constant dense<0xFF800000> : vector<64xf32>
    %93 = vector.multi_reduction <maximumf>, %92, %cst_47 [1] : vector<64x64xf32> to vector<64xf32>
    %94 = vector.shape_cast %93 : vector<64xf32> to vector<64x1xf32>
    %95 = vector.broadcast %94 : vector<64x1xf32> to vector<64x64xf32>
    %96 = arith.subf %92, %95 : vector<64x64xf32>
    %97 = math.exp %96 : vector<64x64xf32>
    %cst_48 = arith.constant dense<0.000000e+00> : vector<64xf32>
    %98 = vector.multi_reduction <add>, %97, %cst_48 [1] : vector<64x64xf32> to vector<64xf32>
    %99 = vector.shape_cast %98 : vector<64xf32> to vector<64x1xf32>
    %100 = tpu.reciprocal %99 {approx = true} : vector<64x1xf32> -> vector<64x1xf32>
    %101 = vector.broadcast %100 : vector<64x1xf32> to vector<64x64xf32>
    %102 = arith.mulf %97, %101 : vector<64x64xf32>
    %cst_49 = arith.constant dense<0.000000e+00> : vector<64x32xf32>
    %103 = tpu.matmul %102, %87, %cst_49 {dimension_numbers = #tpu.dot_dimension_numbers<[1], [0], [0], [1], [0, 0, 1, 1], [], []>} : vector<64x64xf32>, vector<64x32xf32>, vector<64x32xf32> -> vector<64x32xf32>
    %c0_50 = arith.constant 0 : index
    %c64 = arith.constant 64 : index
    %c0_51 = arith.constant 0 : index
    %104 = vector.load %arg7[%c0_50, %c64, %c0_51] : memref<2x128x128xf32, #tpu.memory_space<vmem>>, vector<1x32x128xf32>
    %105 = vector.shape_cast %104 : vector<1x32x128xf32> to vector<32x128xf32>
    %cst_52 = arith.constant dense<0.000000e+00> : vector<64x128xf32>
    %106 = tpu.matmul %103, %105, %cst_52 {dimension_numbers = #tpu.dot_dimension_numbers<[1], [0], [0], [1], [0, 0, 1, 1], [], []>} : vector<64x32xf32>, vector<32x128xf32>, vector<64x128xf32> -> vector<64x128xf32>
    %107 = arith.addf %84, %106 : vector<64x128xf32>
    %108 = vector.extract_strided_slice %31 {offsets = [0, 96], sizes = [64, 32], strides = [1, 1]} : vector<64x128xf32> to vector<64x32xf32>
    %109 = vector.extract_strided_slice %34 {offsets = [0, 96], sizes = [64, 32], strides = [1, 1]} : vector<64x128xf32> to vector<64x32xf32>
    %110 = vector.extract_strided_slice %37 {offsets = [0, 96], sizes = [64, 32], strides = [1, 1]} : vector<64x128xf32> to vector<64x32xf32>
    %cst_53 = arith.constant dense<0.000000e+00> : vector<64x64xf32>
    %111 = tpu.matmul %108, %109, %cst_53 {dimension_numbers = #tpu.dot_dimension_numbers<[1], [1], [0], [0], [0, 0, 1, 0], [], []>} : vector<64x32xf32>, vector<64x32xf32>, vector<64x64xf32> -> vector<64x64xf32>
    %cst_54 = arith.constant 0.0883883461 : f32
    %112 = vector.broadcast %cst_54 : f32 to vector<64x64xf32>
    %113 = arith.mulf %111, %112 : vector<64x64xf32>
    %cst_55 = arith.constant 0xFF800000 : f32
    %114 = vector.broadcast %cst_55 : f32 to vector<64x64xf32>
    %115 = arith.select %4, %113, %114 : vector<64x64xi1>, vector<64x64xf32>
    %cst_56 = arith.constant dense<0xFF800000> : vector<64xf32>
    %116 = vector.multi_reduction <maximumf>, %115, %cst_56 [1] : vector<64x64xf32> to vector<64xf32>
    %117 = vector.shape_cast %116 : vector<64xf32> to vector<64x1xf32>
    %118 = vector.broadcast %117 : vector<64x1xf32> to vector<64x64xf32>
    %119 = arith.subf %115, %118 : vector<64x64xf32>
    %120 = math.exp %119 : vector<64x64xf32>
    %cst_57 = arith.constant dense<0.000000e+00> : vector<64xf32>
    %121 = vector.multi_reduction <add>, %120, %cst_57 [1] : vector<64x64xf32> to vector<64xf32>
    %122 = vector.shape_cast %121 : vector<64xf32> to vector<64x1xf32>
    %123 = tpu.reciprocal %122 {approx = true} : vector<64x1xf32> -> vector<64x1xf32>
    %124 = vector.broadcast %123 : vector<64x1xf32> to vector<64x64xf32>
    %125 = arith.mulf %120, %124 : vector<64x64xf32>
    %cst_58 = arith.constant dense<0.000000e+00> : vector<64x32xf32>
    %126 = tpu.matmul %125, %110, %cst_58 {dimension_numbers = #tpu.dot_dimension_numbers<[1], [0], [0], [1], [0, 0, 1, 1], [], []>} : vector<64x64xf32>, vector<64x32xf32>, vector<64x32xf32> -> vector<64x32xf32>
    %c0_59 = arith.constant 0 : index
    %c96 = arith.constant 96 : index
    %c0_60 = arith.constant 0 : index
    %127 = vector.load %arg7[%c0_59, %c96, %c0_60] : memref<2x128x128xf32, #tpu.memory_space<vmem>>, vector<1x32x128xf32>
    %128 = vector.shape_cast %127 : vector<1x32x128xf32> to vector<32x128xf32>
    %cst_61 = arith.constant dense<0.000000e+00> : vector<64x128xf32>
    %129 = tpu.matmul %126, %128, %cst_61 {dimension_numbers = #tpu.dot_dimension_numbers<[1], [0], [0], [1], [0, 0, 1, 1], [], []>} : vector<64x32xf32>, vector<32x128xf32>, vector<64x128xf32> -> vector<64x128xf32>
    %130 = arith.addf %107, %129 : vector<64x128xf32>
    %131 = arith.addf %1, %130 : vector<64x128xf32>
    %c0_62 = arith.constant 0 : index
    %c0_63 = arith.constant 0 : index
    %c0_64 = arith.constant 0 : index
    %132 = vector.load %arg8[%c0_62, %c0_63, %c0_64] : memref<2x1x128xf32, #tpu.memory_space<vmem>>, vector<1x1x128xf32>
    %133 = vector.shape_cast %132 : vector<1x1x128xf32> to vector<1x128xf32>
    %134 = vector.broadcast %133 : vector<1x128xf32> to vector<64x128xf32>
    %135 = arith.addf %131, %134 : vector<64x128xf32>
    %c0_65 = arith.constant 0 : index
    %c0_66 = arith.constant 0 : index
    %c0_67 = arith.constant 0 : index
    %136 = vector.load %arg9[%c0_65, %c0_66, %c0_67] : memref<2x1x128xf32, #tpu.memory_space<vmem>>, vector<1x1x128xf32>
    %137 = vector.shape_cast %136 : vector<1x1x128xf32> to vector<1x128xf32>
    %c0_68 = arith.constant 0 : index
    %c0_69 = arith.constant 0 : index
    %c0_70 = arith.constant 0 : index
    %138 = vector.load %arg10[%c0_68, %c0_69, %c0_70] : memref<2x1x128xf32, #tpu.memory_space<vmem>>, vector<1x1x128xf32>
    %139 = vector.shape_cast %138 : vector<1x1x128xf32> to vector<1x128xf32>
    %cst_71 = arith.constant dense<0.000000e+00> : vector<64xf32>
    %140 = vector.multi_reduction <add>, %135, %cst_71 [1] : vector<64x128xf32> to vector<64xf32>
    %141 = vector.shape_cast %140 : vector<64xf32> to vector<64x1xf32>
    %cst_72 = arith.constant 1.280000e+02 : f32
    %142 = vector.broadcast %cst_72 : f32 to vector<64x1xf32>
    %143 = arith.divf %141, %142 : vector<64x1xf32>
    %144 = vector.broadcast %143 : vector<64x1xf32> to vector<64x128xf32>
    %145 = arith.subf %135, %144 : vector<64x128xf32>
    %146 = arith.mulf %145, %145 : vector<64x128xf32>
    %cst_73 = arith.constant dense<0.000000e+00> : vector<64xf32>
    %147 = vector.multi_reduction <add>, %146, %cst_73 [1] : vector<64x128xf32> to vector<64xf32>
    %148 = vector.shape_cast %147 : vector<64xf32> to vector<64x1xf32>
    %cst_74 = arith.constant 1.280000e+02 : f32
    %149 = vector.broadcast %cst_74 : f32 to vector<64x1xf32>
    %150 = arith.divf %148, %149 : vector<64x1xf32>
    %cst_75 = arith.constant 9.99999974E-6 : f32
    %151 = vector.broadcast %cst_75 : f32 to vector<64x1xf32>
    %152 = arith.addf %150, %151 : vector<64x1xf32>
    %153 = math.rsqrt %152 : vector<64x1xf32>
    %154 = vector.broadcast %153 : vector<64x1xf32> to vector<64x128xf32>
    %155 = arith.mulf %145, %154 : vector<64x128xf32>
    %156 = vector.broadcast %137 : vector<1x128xf32> to vector<64x128xf32>
    %157 = arith.mulf %155, %156 : vector<64x128xf32>
    %158 = vector.broadcast %139 : vector<1x128xf32> to vector<64x128xf32>
    %159 = arith.addf %157, %158 : vector<64x128xf32>
    %c0_76 = arith.constant 0 : index
    %c0_77 = arith.constant 0 : index
    %c0_78 = arith.constant 0 : index
    %160 = vector.load %arg11[%c0_76, %c0_77, %c0_78] : memref<2x128x512xf32, #tpu.memory_space<vmem>>, vector<1x128x512xf32>
    %161 = vector.shape_cast %160 : vector<1x128x512xf32> to vector<128x512xf32>
    %cst_79 = arith.constant dense<0.000000e+00> : vector<64x512xf32>
    %162 = tpu.matmul %159, %161, %cst_79 {dimension_numbers = #tpu.dot_dimension_numbers<[1], [0], [0], [1], [0, 0, 1, 1], [], []>} : vector<64x128xf32>, vector<128x512xf32>, vector<64x512xf32> -> vector<64x512xf32>
    %c0_80 = arith.constant 0 : index
    %c0_81 = arith.constant 0 : index
    %c0_82 = arith.constant 0 : index
    %163 = vector.load %arg12[%c0_80, %c0_81, %c0_82] : memref<2x1x512xf32, #tpu.memory_space<vmem>>, vector<1x1x512xf32>
    %164 = vector.shape_cast %163 : vector<1x1x512xf32> to vector<1x512xf32>
    %165 = vector.broadcast %164 : vector<1x512xf32> to vector<64x512xf32>
    %166 = arith.addf %162, %165 : vector<64x512xf32>
    %cst_83 = arith.constant 0.000000e+00 : f32
    %167 = vector.broadcast %cst_83 : f32 to vector<64x512xf32>
    %168 = arith.maximumf %166, %167 : vector<64x512xf32>
    %c0_84 = arith.constant 0 : index
    %c0_85 = arith.constant 0 : index
    %c0_86 = arith.constant 0 : index
    %169 = vector.load %arg13[%c0_84, %c0_85, %c0_86] : memref<2x512x128xf32, #tpu.memory_space<vmem>>, vector<1x512x128xf32>
    %170 = vector.shape_cast %169 : vector<1x512x128xf32> to vector<512x128xf32>
    %cst_87 = arith.constant dense<0.000000e+00> : vector<64x128xf32>
    %171 = tpu.matmul %168, %170, %cst_87 {dimension_numbers = #tpu.dot_dimension_numbers<[1], [0], [0], [1], [0, 0, 1, 1], [], []>} : vector<64x512xf32>, vector<512x128xf32>, vector<64x128xf32> -> vector<64x128xf32>
    %c0_88 = arith.constant 0 : index
    %c0_89 = arith.constant 0 : index
    %c0_90 = arith.constant 0 : index
    %172 = vector.load %arg14[%c0_88, %c0_89, %c0_90] : memref<2x1x128xf32, #tpu.memory_space<vmem>>, vector<1x1x128xf32>
    %173 = vector.shape_cast %172 : vector<1x1x128xf32> to vector<1x128xf32>
    %174 = vector.broadcast %173 : vector<1x128xf32> to vector<64x128xf32>
    %175 = arith.addf %171, %174 : vector<64x128xf32>
    %176 = arith.addf %135, %175 : vector<64x128xf32>
    %c1 = arith.constant 1 : index
    %c0_91 = arith.constant 0 : index
    %c0_92 = arith.constant 0 : index
    %177 = vector.load %arg2[%c1, %c0_91, %c0_92] : memref<2x1x128xf32, #tpu.memory_space<vmem>>, vector<1x1x128xf32>
    %178 = vector.shape_cast %177 : vector<1x1x128xf32> to vector<1x128xf32>
    %c1_93 = arith.constant 1 : index
    %c0_94 = arith.constant 0 : index
    %c0_95 = arith.constant 0 : index
    %179 = vector.load %arg3[%c1_93, %c0_94, %c0_95] : memref<2x1x128xf32, #tpu.memory_space<vmem>>, vector<1x1x128xf32>
    %180 = vector.shape_cast %179 : vector<1x1x128xf32> to vector<1x128xf32>
    %cst_96 = arith.constant dense<0.000000e+00> : vector<64xf32>
    %181 = vector.multi_reduction <add>, %176, %cst_96 [1] : vector<64x128xf32> to vector<64xf32>
    %182 = vector.shape_cast %181 : vector<64xf32> to vector<64x1xf32>
    %cst_97 = arith.constant 1.280000e+02 : f32
    %183 = vector.broadcast %cst_97 : f32 to vector<64x1xf32>
    %184 = arith.divf %182, %183 : vector<64x1xf32>
    %185 = vector.broadcast %184 : vector<64x1xf32> to vector<64x128xf32>
    %186 = arith.subf %176, %185 : vector<64x128xf32>
    %187 = arith.mulf %186, %186 : vector<64x128xf32>
    %cst_98 = arith.constant dense<0.000000e+00> : vector<64xf32>
    %188 = vector.multi_reduction <add>, %187, %cst_98 [1] : vector<64x128xf32> to vector<64xf32>
    %189 = vector.shape_cast %188 : vector<64xf32> to vector<64x1xf32>
    %cst_99 = arith.constant 1.280000e+02 : f32
    %190 = vector.broadcast %cst_99 : f32 to vector<64x1xf32>
    %191 = arith.divf %189, %190 : vector<64x1xf32>
    %cst_100 = arith.constant 9.99999974E-6 : f32
    %192 = vector.broadcast %cst_100 : f32 to vector<64x1xf32>
    %193 = arith.addf %191, %192 : vector<64x1xf32>
    %194 = math.rsqrt %193 : vector<64x1xf32>
    %195 = vector.broadcast %194 : vector<64x1xf32> to vector<64x128xf32>
    %196 = arith.mulf %186, %195 : vector<64x128xf32>
    %197 = vector.broadcast %178 : vector<1x128xf32> to vector<64x128xf32>
    %198 = arith.mulf %196, %197 : vector<64x128xf32>
    %199 = vector.broadcast %180 : vector<1x128xf32> to vector<64x128xf32>
    %200 = arith.addf %198, %199 : vector<64x128xf32>
    %c1_101 = arith.constant 1 : index
    %c0_102 = arith.constant 0 : index
    %c0_103 = arith.constant 0 : index
    %201 = vector.load %arg4[%c1_101, %c0_102, %c0_103] : memref<2x128x128xf32, #tpu.memory_space<vmem>>, vector<1x128x128xf32>
    %202 = vector.shape_cast %201 : vector<1x128x128xf32> to vector<128x128xf32>
    %cst_104 = arith.constant dense<0.000000e+00> : vector<64x128xf32>
    %203 = tpu.matmul %200, %202, %cst_104 {dimension_numbers = #tpu.dot_dimension_numbers<[1], [0], [0], [1], [0, 0, 1, 1], [], []>} : vector<64x128xf32>, vector<128x128xf32>, vector<64x128xf32> -> vector<64x128xf32>
    %c1_105 = arith.constant 1 : index
    %c0_106 = arith.constant 0 : index
    %c0_107 = arith.constant 0 : index
    %204 = vector.load %arg5[%c1_105, %c0_106, %c0_107] : memref<2x128x128xf32, #tpu.memory_space<vmem>>, vector<1x128x128xf32>
    %205 = vector.shape_cast %204 : vector<1x128x128xf32> to vector<128x128xf32>
    %cst_108 = arith.constant dense<0.000000e+00> : vector<64x128xf32>
    %206 = tpu.matmul %200, %205, %cst_108 {dimension_numbers = #tpu.dot_dimension_numbers<[1], [0], [0], [1], [0, 0, 1, 1], [], []>} : vector<64x128xf32>, vector<128x128xf32>, vector<64x128xf32> -> vector<64x128xf32>
    %c1_109 = arith.constant 1 : index
    %c0_110 = arith.constant 0 : index
    %c0_111 = arith.constant 0 : index
    %207 = vector.load %arg6[%c1_109, %c0_110, %c0_111] : memref<2x128x128xf32, #tpu.memory_space<vmem>>, vector<1x128x128xf32>
    %208 = vector.shape_cast %207 : vector<1x128x128xf32> to vector<128x128xf32>
    %cst_112 = arith.constant dense<0.000000e+00> : vector<64x128xf32>
    %209 = tpu.matmul %200, %208, %cst_112 {dimension_numbers = #tpu.dot_dimension_numbers<[1], [0], [0], [1], [0, 0, 1, 1], [], []>} : vector<64x128xf32>, vector<128x128xf32>, vector<64x128xf32> -> vector<64x128xf32>
    %cst_113 = arith.constant 0.000000e+00 : f32
    %210 = vector.broadcast %cst_113 : f32 to vector<64x128xf32>
    %211 = vector.extract_strided_slice %203 {offsets = [0, 0], sizes = [64, 32], strides = [1, 1]} : vector<64x128xf32> to vector<64x32xf32>
    %212 = vector.extract_strided_slice %206 {offsets = [0, 0], sizes = [64, 32], strides = [1, 1]} : vector<64x128xf32> to vector<64x32xf32>
    %213 = vector.extract_strided_slice %209 {offsets = [0, 0], sizes = [64, 32], strides = [1, 1]} : vector<64x128xf32> to vector<64x32xf32>
    %cst_114 = arith.constant dense<0.000000e+00> : vector<64x64xf32>
    %214 = tpu.matmul %211, %212, %cst_114 {dimension_numbers = #tpu.dot_dimension_numbers<[1], [1], [0], [0], [0, 0, 1, 0], [], []>} : vector<64x32xf32>, vector<64x32xf32>, vector<64x64xf32> -> vector<64x64xf32>
    %cst_115 = arith.constant 0.0883883461 : f32
    %215 = vector.broadcast %cst_115 : f32 to vector<64x64xf32>
    %216 = arith.mulf %214, %215 : vector<64x64xf32>
    %cst_116 = arith.constant 0xFF800000 : f32
    %217 = vector.broadcast %cst_116 : f32 to vector<64x64xf32>
    %218 = arith.select %4, %216, %217 : vector<64x64xi1>, vector<64x64xf32>
    %cst_117 = arith.constant dense<0xFF800000> : vector<64xf32>
    %219 = vector.multi_reduction <maximumf>, %218, %cst_117 [1] : vector<64x64xf32> to vector<64xf32>
    %220 = vector.shape_cast %219 : vector<64xf32> to vector<64x1xf32>
    %221 = vector.broadcast %220 : vector<64x1xf32> to vector<64x64xf32>
    %222 = arith.subf %218, %221 : vector<64x64xf32>
    %223 = math.exp %222 : vector<64x64xf32>
    %cst_118 = arith.constant dense<0.000000e+00> : vector<64xf32>
    %224 = vector.multi_reduction <add>, %223, %cst_118 [1] : vector<64x64xf32> to vector<64xf32>
    %225 = vector.shape_cast %224 : vector<64xf32> to vector<64x1xf32>
    %226 = tpu.reciprocal %225 {approx = true} : vector<64x1xf32> -> vector<64x1xf32>
    %227 = vector.broadcast %226 : vector<64x1xf32> to vector<64x64xf32>
    %228 = arith.mulf %223, %227 : vector<64x64xf32>
    %cst_119 = arith.constant dense<0.000000e+00> : vector<64x32xf32>
    %229 = tpu.matmul %228, %213, %cst_119 {dimension_numbers = #tpu.dot_dimension_numbers<[1], [0], [0], [1], [0, 0, 1, 1], [], []>} : vector<64x64xf32>, vector<64x32xf32>, vector<64x32xf32> -> vector<64x32xf32>
    %c1_120 = arith.constant 1 : index
    %c0_121 = arith.constant 0 : index
    %c0_122 = arith.constant 0 : index
    %230 = vector.load %arg7[%c1_120, %c0_121, %c0_122] : memref<2x128x128xf32, #tpu.memory_space<vmem>>, vector<1x32x128xf32>
    %231 = vector.shape_cast %230 : vector<1x32x128xf32> to vector<32x128xf32>
    %cst_123 = arith.constant dense<0.000000e+00> : vector<64x128xf32>
    %232 = tpu.matmul %229, %231, %cst_123 {dimension_numbers = #tpu.dot_dimension_numbers<[1], [0], [0], [1], [0, 0, 1, 1], [], []>} : vector<64x32xf32>, vector<32x128xf32>, vector<64x128xf32> -> vector<64x128xf32>
    %233 = arith.addf %210, %232 : vector<64x128xf32>
    %234 = vector.extract_strided_slice %203 {offsets = [0, 32], sizes = [64, 32], strides = [1, 1]} : vector<64x128xf32> to vector<64x32xf32>
    %235 = vector.extract_strided_slice %206 {offsets = [0, 32], sizes = [64, 32], strides = [1, 1]} : vector<64x128xf32> to vector<64x32xf32>
    %236 = vector.extract_strided_slice %209 {offsets = [0, 32], sizes = [64, 32], strides = [1, 1]} : vector<64x128xf32> to vector<64x32xf32>
    %cst_124 = arith.constant dense<0.000000e+00> : vector<64x64xf32>
    %237 = tpu.matmul %234, %235, %cst_124 {dimension_numbers = #tpu.dot_dimension_numbers<[1], [1], [0], [0], [0, 0, 1, 0], [], []>} : vector<64x32xf32>, vector<64x32xf32>, vector<64x64xf32> -> vector<64x64xf32>
    %cst_125 = arith.constant 0.0883883461 : f32
    %238 = vector.broadcast %cst_125 : f32 to vector<64x64xf32>
    %239 = arith.mulf %237, %238 : vector<64x64xf32>
    %cst_126 = arith.constant 0xFF800000 : f32
    %240 = vector.broadcast %cst_126 : f32 to vector<64x64xf32>
    %241 = arith.select %4, %239, %240 : vector<64x64xi1>, vector<64x64xf32>
    %cst_127 = arith.constant dense<0xFF800000> : vector<64xf32>
    %242 = vector.multi_reduction <maximumf>, %241, %cst_127 [1] : vector<64x64xf32> to vector<64xf32>
    %243 = vector.shape_cast %242 : vector<64xf32> to vector<64x1xf32>
    %244 = vector.broadcast %243 : vector<64x1xf32> to vector<64x64xf32>
    %245 = arith.subf %241, %244 : vector<64x64xf32>
    %246 = math.exp %245 : vector<64x64xf32>
    %cst_128 = arith.constant dense<0.000000e+00> : vector<64xf32>
    %247 = vector.multi_reduction <add>, %246, %cst_128 [1] : vector<64x64xf32> to vector<64xf32>
    %248 = vector.shape_cast %247 : vector<64xf32> to vector<64x1xf32>
    %249 = tpu.reciprocal %248 {approx = true} : vector<64x1xf32> -> vector<64x1xf32>
    %250 = vector.broadcast %249 : vector<64x1xf32> to vector<64x64xf32>
    %251 = arith.mulf %246, %250 : vector<64x64xf32>
    %cst_129 = arith.constant dense<0.000000e+00> : vector<64x32xf32>
    %252 = tpu.matmul %251, %236, %cst_129 {dimension_numbers = #tpu.dot_dimension_numbers<[1], [0], [0], [1], [0, 0, 1, 1], [], []>} : vector<64x64xf32>, vector<64x32xf32>, vector<64x32xf32> -> vector<64x32xf32>
    %c1_130 = arith.constant 1 : index
    %c32_131 = arith.constant 32 : index
    %c0_132 = arith.constant 0 : index
    %253 = vector.load %arg7[%c1_130, %c32_131, %c0_132] : memref<2x128x128xf32, #tpu.memory_space<vmem>>, vector<1x32x128xf32>
    %254 = vector.shape_cast %253 : vector<1x32x128xf32> to vector<32x128xf32>
    %cst_133 = arith.constant dense<0.000000e+00> : vector<64x128xf32>
    %255 = tpu.matmul %252, %254, %cst_133 {dimension_numbers = #tpu.dot_dimension_numbers<[1], [0], [0], [1], [0, 0, 1, 1], [], []>} : vector<64x32xf32>, vector<32x128xf32>, vector<64x128xf32> -> vector<64x128xf32>
    %256 = arith.addf %233, %255 : vector<64x128xf32>
    %257 = vector.extract_strided_slice %203 {offsets = [0, 64], sizes = [64, 32], strides = [1, 1]} : vector<64x128xf32> to vector<64x32xf32>
    %258 = vector.extract_strided_slice %206 {offsets = [0, 64], sizes = [64, 32], strides = [1, 1]} : vector<64x128xf32> to vector<64x32xf32>
    %259 = vector.extract_strided_slice %209 {offsets = [0, 64], sizes = [64, 32], strides = [1, 1]} : vector<64x128xf32> to vector<64x32xf32>
    %cst_134 = arith.constant dense<0.000000e+00> : vector<64x64xf32>
    %260 = tpu.matmul %257, %258, %cst_134 {dimension_numbers = #tpu.dot_dimension_numbers<[1], [1], [0], [0], [0, 0, 1, 0], [], []>} : vector<64x32xf32>, vector<64x32xf32>, vector<64x64xf32> -> vector<64x64xf32>
    %cst_135 = arith.constant 0.0883883461 : f32
    %261 = vector.broadcast %cst_135 : f32 to vector<64x64xf32>
    %262 = arith.mulf %260, %261 : vector<64x64xf32>
    %cst_136 = arith.constant 0xFF800000 : f32
    %263 = vector.broadcast %cst_136 : f32 to vector<64x64xf32>
    %264 = arith.select %4, %262, %263 : vector<64x64xi1>, vector<64x64xf32>
    %cst_137 = arith.constant dense<0xFF800000> : vector<64xf32>
    %265 = vector.multi_reduction <maximumf>, %264, %cst_137 [1] : vector<64x64xf32> to vector<64xf32>
    %266 = vector.shape_cast %265 : vector<64xf32> to vector<64x1xf32>
    %267 = vector.broadcast %266 : vector<64x1xf32> to vector<64x64xf32>
    %268 = arith.subf %264, %267 : vector<64x64xf32>
    %269 = math.exp %268 : vector<64x64xf32>
    %cst_138 = arith.constant dense<0.000000e+00> : vector<64xf32>
    %270 = vector.multi_reduction <add>, %269, %cst_138 [1] : vector<64x64xf32> to vector<64xf32>
    %271 = vector.shape_cast %270 : vector<64xf32> to vector<64x1xf32>
    %272 = tpu.reciprocal %271 {approx = true} : vector<64x1xf32> -> vector<64x1xf32>
    %273 = vector.broadcast %272 : vector<64x1xf32> to vector<64x64xf32>
    %274 = arith.mulf %269, %273 : vector<64x64xf32>
    %cst_139 = arith.constant dense<0.000000e+00> : vector<64x32xf32>
    %275 = tpu.matmul %274, %259, %cst_139 {dimension_numbers = #tpu.dot_dimension_numbers<[1], [0], [0], [1], [0, 0, 1, 1], [], []>} : vector<64x64xf32>, vector<64x32xf32>, vector<64x32xf32> -> vector<64x32xf32>
    %c1_140 = arith.constant 1 : index
    %c64_141 = arith.constant 64 : index
    %c0_142 = arith.constant 0 : index
    %276 = vector.load %arg7[%c1_140, %c64_141, %c0_142] : memref<2x128x128xf32, #tpu.memory_space<vmem>>, vector<1x32x128xf32>
    %277 = vector.shape_cast %276 : vector<1x32x128xf32> to vector<32x128xf32>
    %cst_143 = arith.constant dense<0.000000e+00> : vector<64x128xf32>
    %278 = tpu.matmul %275, %277, %cst_143 {dimension_numbers = #tpu.dot_dimension_numbers<[1], [0], [0], [1], [0, 0, 1, 1], [], []>} : vector<64x32xf32>, vector<32x128xf32>, vector<64x128xf32> -> vector<64x128xf32>
    %279 = arith.addf %256, %278 : vector<64x128xf32>
    %280 = vector.extract_strided_slice %203 {offsets = [0, 96], sizes = [64, 32], strides = [1, 1]} : vector<64x128xf32> to vector<64x32xf32>
    %281 = vector.extract_strided_slice %206 {offsets = [0, 96], sizes = [64, 32], strides = [1, 1]} : vector<64x128xf32> to vector<64x32xf32>
    %282 = vector.extract_strided_slice %209 {offsets = [0, 96], sizes = [64, 32], strides = [1, 1]} : vector<64x128xf32> to vector<64x32xf32>
    %cst_144 = arith.constant dense<0.000000e+00> : vector<64x64xf32>
    %283 = tpu.matmul %280, %281, %cst_144 {dimension_numbers = #tpu.dot_dimension_numbers<[1], [1], [0], [0], [0, 0, 1, 0], [], []>} : vector<64x32xf32>, vector<64x32xf32>, vector<64x64xf32> -> vector<64x64xf32>
    %cst_145 = arith.constant 0.0883883461 : f32
    %284 = vector.broadcast %cst_145 : f32 to vector<64x64xf32>
    %285 = arith.mulf %283, %284 : vector<64x64xf32>
    %cst_146 = arith.constant 0xFF800000 : f32
    %286 = vector.broadcast %cst_146 : f32 to vector<64x64xf32>
    %287 = arith.select %4, %285, %286 : vector<64x64xi1>, vector<64x64xf32>
    %cst_147 = arith.constant dense<0xFF800000> : vector<64xf32>
    %288 = vector.multi_reduction <maximumf>, %287, %cst_147 [1] : vector<64x64xf32> to vector<64xf32>
    %289 = vector.shape_cast %288 : vector<64xf32> to vector<64x1xf32>
    %290 = vector.broadcast %289 : vector<64x1xf32> to vector<64x64xf32>
    %291 = arith.subf %287, %290 : vector<64x64xf32>
    %292 = math.exp %291 : vector<64x64xf32>
    %cst_148 = arith.constant dense<0.000000e+00> : vector<64xf32>
    %293 = vector.multi_reduction <add>, %292, %cst_148 [1] : vector<64x64xf32> to vector<64xf32>
    %294 = vector.shape_cast %293 : vector<64xf32> to vector<64x1xf32>
    %295 = tpu.reciprocal %294 {approx = true} : vector<64x1xf32> -> vector<64x1xf32>
    %296 = vector.broadcast %295 : vector<64x1xf32> to vector<64x64xf32>
    %297 = arith.mulf %292, %296 : vector<64x64xf32>
    %cst_149 = arith.constant dense<0.000000e+00> : vector<64x32xf32>
    %298 = tpu.matmul %297, %282, %cst_149 {dimension_numbers = #tpu.dot_dimension_numbers<[1], [0], [0], [1], [0, 0, 1, 1], [], []>} : vector<64x64xf32>, vector<64x32xf32>, vector<64x32xf32> -> vector<64x32xf32>
    %c1_150 = arith.constant 1 : index
    %c96_151 = arith.constant 96 : index
    %c0_152 = arith.constant 0 : index
    %299 = vector.load %arg7[%c1_150, %c96_151, %c0_152] : memref<2x128x128xf32, #tpu.memory_space<vmem>>, vector<1x32x128xf32>
    %300 = vector.shape_cast %299 : vector<1x32x128xf32> to vector<32x128xf32>
    %cst_153 = arith.constant dense<0.000000e+00> : vector<64x128xf32>
    %301 = tpu.matmul %298, %300, %cst_153 {dimension_numbers = #tpu.dot_dimension_numbers<[1], [0], [0], [1], [0, 0, 1, 1], [], []>} : vector<64x32xf32>, vector<32x128xf32>, vector<64x128xf32> -> vector<64x128xf32>
    %302 = arith.addf %279, %301 : vector<64x128xf32>
    %303 = arith.addf %176, %302 : vector<64x128xf32>
    %c1_154 = arith.constant 1 : index
    %c0_155 = arith.constant 0 : index
    %c0_156 = arith.constant 0 : index
    %304 = vector.load %arg8[%c1_154, %c0_155, %c0_156] : memref<2x1x128xf32, #tpu.memory_space<vmem>>, vector<1x1x128xf32>
    %305 = vector.shape_cast %304 : vector<1x1x128xf32> to vector<1x128xf32>
    %306 = vector.broadcast %305 : vector<1x128xf32> to vector<64x128xf32>
    %307 = arith.addf %303, %306 : vector<64x128xf32>
    %c1_157 = arith.constant 1 : index
    %c0_158 = arith.constant 0 : index
    %c0_159 = arith.constant 0 : index
    %308 = vector.load %arg9[%c1_157, %c0_158, %c0_159] : memref<2x1x128xf32, #tpu.memory_space<vmem>>, vector<1x1x128xf32>
    %309 = vector.shape_cast %308 : vector<1x1x128xf32> to vector<1x128xf32>
    %c1_160 = arith.constant 1 : index
    %c0_161 = arith.constant 0 : index
    %c0_162 = arith.constant 0 : index
    %310 = vector.load %arg10[%c1_160, %c0_161, %c0_162] : memref<2x1x128xf32, #tpu.memory_space<vmem>>, vector<1x1x128xf32>
    %311 = vector.shape_cast %310 : vector<1x1x128xf32> to vector<1x128xf32>
    %cst_163 = arith.constant dense<0.000000e+00> : vector<64xf32>
    %312 = vector.multi_reduction <add>, %307, %cst_163 [1] : vector<64x128xf32> to vector<64xf32>
    %313 = vector.shape_cast %312 : vector<64xf32> to vector<64x1xf32>
    %cst_164 = arith.constant 1.280000e+02 : f32
    %314 = vector.broadcast %cst_164 : f32 to vector<64x1xf32>
    %315 = arith.divf %313, %314 : vector<64x1xf32>
    %316 = vector.broadcast %315 : vector<64x1xf32> to vector<64x128xf32>
    %317 = arith.subf %307, %316 : vector<64x128xf32>
    %318 = arith.mulf %317, %317 : vector<64x128xf32>
    %cst_165 = arith.constant dense<0.000000e+00> : vector<64xf32>
    %319 = vector.multi_reduction <add>, %318, %cst_165 [1] : vector<64x128xf32> to vector<64xf32>
    %320 = vector.shape_cast %319 : vector<64xf32> to vector<64x1xf32>
    %cst_166 = arith.constant 1.280000e+02 : f32
    %321 = vector.broadcast %cst_166 : f32 to vector<64x1xf32>
    %322 = arith.divf %320, %321 : vector<64x1xf32>
    %cst_167 = arith.constant 9.99999974E-6 : f32
    %323 = vector.broadcast %cst_167 : f32 to vector<64x1xf32>
    %324 = arith.addf %322, %323 : vector<64x1xf32>
    %325 = math.rsqrt %324 : vector<64x1xf32>
    %326 = vector.broadcast %325 : vector<64x1xf32> to vector<64x128xf32>
    %327 = arith.mulf %317, %326 : vector<64x128xf32>
    %328 = vector.broadcast %309 : vector<1x128xf32> to vector<64x128xf32>
    %329 = arith.mulf %327, %328 : vector<64x128xf32>
    %330 = vector.broadcast %311 : vector<1x128xf32> to vector<64x128xf32>
    %331 = arith.addf %329, %330 : vector<64x128xf32>
    %c1_168 = arith.constant 1 : index
    %c0_169 = arith.constant 0 : index
    %c0_170 = arith.constant 0 : index
    %332 = vector.load %arg11[%c1_168, %c0_169, %c0_170] : memref<2x128x512xf32, #tpu.memory_space<vmem>>, vector<1x128x512xf32>
    %333 = vector.shape_cast %332 : vector<1x128x512xf32> to vector<128x512xf32>
    %cst_171 = arith.constant dense<0.000000e+00> : vector<64x512xf32>
    %334 = tpu.matmul %331, %333, %cst_171 {dimension_numbers = #tpu.dot_dimension_numbers<[1], [0], [0], [1], [0, 0, 1, 1], [], []>} : vector<64x128xf32>, vector<128x512xf32>, vector<64x512xf32> -> vector<64x512xf32>
    %c1_172 = arith.constant 1 : index
    %c0_173 = arith.constant 0 : index
    %c0_174 = arith.constant 0 : index
    %335 = vector.load %arg12[%c1_172, %c0_173, %c0_174] : memref<2x1x512xf32, #tpu.memory_space<vmem>>, vector<1x1x512xf32>
    %336 = vector.shape_cast %335 : vector<1x1x512xf32> to vector<1x512xf32>
    %337 = vector.broadcast %336 : vector<1x512xf32> to vector<64x512xf32>
    %338 = arith.addf %334, %337 : vector<64x512xf32>
    %cst_175 = arith.constant 0.000000e+00 : f32
    %339 = vector.broadcast %cst_175 : f32 to vector<64x512xf32>
    %340 = arith.maximumf %338, %339 : vector<64x512xf32>
    %c1_176 = arith.constant 1 : index
    %c0_177 = arith.constant 0 : index
    %c0_178 = arith.constant 0 : index
    %341 = vector.load %arg13[%c1_176, %c0_177, %c0_178] : memref<2x512x128xf32, #tpu.memory_space<vmem>>, vector<1x512x128xf32>
    %342 = vector.shape_cast %341 : vector<1x512x128xf32> to vector<512x128xf32>
    %cst_179 = arith.constant dense<0.000000e+00> : vector<64x128xf32>
    %343 = tpu.matmul %340, %342, %cst_179 {dimension_numbers = #tpu.dot_dimension_numbers<[1], [0], [0], [1], [0, 0, 1, 1], [], []>} : vector<64x512xf32>, vector<512x128xf32>, vector<64x128xf32> -> vector<64x128xf32>
    %c1_180 = arith.constant 1 : index
    %c0_181 = arith.constant 0 : index
    %c0_182 = arith.constant 0 : index
    %344 = vector.load %arg14[%c1_180, %c0_181, %c0_182] : memref<2x1x128xf32, #tpu.memory_space<vmem>>, vector<1x1x128xf32>
    %345 = vector.shape_cast %344 : vector<1x1x128xf32> to vector<1x128xf32>
    %346 = vector.broadcast %345 : vector<1x128xf32> to vector<64x128xf32>
    %347 = arith.addf %343, %346 : vector<64x128xf32>
    %348 = arith.addf %307, %347 : vector<64x128xf32>
    %c0_183 = arith.constant 0 : index
    %c0_184 = arith.constant 0 : index
    %349 = vector.load %arg15[%c0_183, %c0_184] : memref<1x128xf32, #tpu.memory_space<vmem>>, vector<1x128xf32>
    %c0_185 = arith.constant 0 : index
    %c0_186 = arith.constant 0 : index
    %350 = vector.load %arg16[%c0_185, %c0_186] : memref<1x128xf32, #tpu.memory_space<vmem>>, vector<1x128xf32>
    %cst_187 = arith.constant dense<0.000000e+00> : vector<64xf32>
    %351 = vector.multi_reduction <add>, %348, %cst_187 [1] : vector<64x128xf32> to vector<64xf32>
    %352 = vector.shape_cast %351 : vector<64xf32> to vector<64x1xf32>
    %cst_188 = arith.constant 1.280000e+02 : f32
    %353 = vector.broadcast %cst_188 : f32 to vector<64x1xf32>
    %354 = arith.divf %352, %353 : vector<64x1xf32>
    %355 = vector.broadcast %354 : vector<64x1xf32> to vector<64x128xf32>
    %356 = arith.subf %348, %355 : vector<64x128xf32>
    %357 = arith.mulf %356, %356 : vector<64x128xf32>
    %cst_189 = arith.constant dense<0.000000e+00> : vector<64xf32>
    %358 = vector.multi_reduction <add>, %357, %cst_189 [1] : vector<64x128xf32> to vector<64xf32>
    %359 = vector.shape_cast %358 : vector<64xf32> to vector<64x1xf32>
    %cst_190 = arith.constant 1.280000e+02 : f32
    %360 = vector.broadcast %cst_190 : f32 to vector<64x1xf32>
    %361 = arith.divf %359, %360 : vector<64x1xf32>
    %cst_191 = arith.constant 9.99999974E-6 : f32
    %362 = vector.broadcast %cst_191 : f32 to vector<64x1xf32>
    %363 = arith.addf %361, %362 : vector<64x1xf32>
    %364 = math.rsqrt %363 : vector<64x1xf32>
    %365 = vector.broadcast %364 : vector<64x1xf32> to vector<64x128xf32>
    %366 = arith.mulf %356, %365 : vector<64x128xf32>
    %367 = vector.broadcast %349 : vector<1x128xf32> to vector<64x128xf32>
    %368 = arith.mulf %366, %367 : vector<64x128xf32>
    %369 = vector.broadcast %350 : vector<1x128xf32> to vector<64x128xf32>
    %370 = arith.addf %368, %369 : vector<64x128xf32>
    %c0_192 = arith.constant 0 : index
    %c0_193 = arith.constant 0 : index
    %371 = vector.load %arg17[%c0_192, %c0_193] : memref<128x128xf32, #tpu.memory_space<vmem>>, vector<128x128xf32>
    %cst_194 = arith.constant dense<0.000000e+00> : vector<64x128xf32>
    %372 = tpu.matmul %370, %371, %cst_194 {dimension_numbers = #tpu.dot_dimension_numbers<[1], [0], [0], [1], [0, 0, 1, 1], [], []>} : vector<64x128xf32>, vector<128x128xf32>, vector<64x128xf32> -> vector<64x128xf32>
    %c0_195 = arith.constant 0 : index
    %c0_196 = arith.constant 0 : index
    %373 = vector.load %arg18[%c0_195, %c0_196] : memref<1x128xf32, #tpu.memory_space<vmem>>, vector<1x128xf32>
    %374 = vector.broadcast %373 : vector<1x128xf32> to vector<64x128xf32>
    %375 = arith.addf %372, %374 : vector<64x128xf32>
    %c0_197 = arith.constant 0 : index
    %c0_198 = arith.constant 0 : index
    %c0_199 = arith.constant 0 : index
    %376 = vector.load %arg19[%c0_197, %c0_198, %c0_199] : memref<1x64x128xf32, #tpu.memory_space<vmem>>, vector<1x64x128xf32>
    %377 = vector.shape_cast %376 : vector<1x64x128xf32> to vector<64x128xf32>
    %378 = vector.shape_cast %375 : vector<64x128xf32> to vector<1x64x128xf32>
    tpu.vector_store %arg19[%c0_197, %c0_198, %c0_199], %378 {strides = array<i32>} : memref<1x64x128xf32, #tpu.memory_space<vmem>>, vector<1x64x128xf32>,
    return
  }
  func.func @transform_0(%arg0: i32) -> (i32, i32, i32) {
    %c0_i32 = arith.constant 0 : i32
    %c0_i32_0 = arith.constant 0 : i32
    %c0_i32_1 = arith.constant 0 : i32
    return %arg0, %c0_i32, %c0_i32_0 : i32, i32, i32
  }
  func.func @transform_1(%arg0: i32) -> (i32, i32, i32) {
    %c0_i32 = arith.constant 0 : i32
    %c0_i32_0 = arith.constant 0 : i32
    %c0_i32_1 = arith.constant 0 : i32
    %c0_i32_2 = arith.constant 0 : i32
    return %c0_i32, %c0_i32_0, %c0_i32_1 : i32, i32, i32
  }
  func.func @transform_2(%arg0: i32) -> (i32, i32, i32) {
    %c0_i32 = arith.constant 0 : i32
    %c0_i32_0 = arith.constant 0 : i32
    %c0_i32_1 = arith.constant 0 : i32
    %c0_i32_2 = arith.constant 0 : i32
    return %c0_i32, %c0_i32_0, %c0_i32_1 : i32, i32, i32
  }
  func.func @transform_3(%arg0: i32) -> (i32, i32, i32) {
    %c0_i32 = arith.constant 0 : i32
    %c0_i32_0 = arith.constant 0 : i32
    %c0_i32_1 = arith.constant 0 : i32
    %c0_i32_2 = arith.constant 0 : i32
    return %c0_i32, %c0_i32_0, %c0_i32_1 : i32, i32, i32
  }
  func.func @transform_4(%arg0: i32) -> (i32, i32, i32) {
    %c0_i32 = arith.constant 0 : i32
    %c0_i32_0 = arith.constant 0 : i32
    %c0_i32_1 = arith.constant 0 : i32
    %c0_i32_2 = arith.constant 0 : i32
    return %c0_i32, %c0_i32_0, %c0_i32_1 : i32, i32, i32
  }
  func.func @transform_5(%arg0: i32) -> (i32, i32, i32) {
    %c0_i32 = arith.constant 0 : i32
    %c0_i32_0 = arith.constant 0 : i32
    %c0_i32_1 = arith.constant 0 : i32
    %c0_i32_2 = arith.constant 0 : i32
    return %c0_i32, %c0_i32_0, %c0_i32_1 : i32, i32, i32
  }
  func.func @transform_6(%arg0: i32) -> (i32, i32, i32) {
    %c0_i32 = arith.constant 0 : i32
    %c0_i32_0 = arith.constant 0 : i32
    %c0_i32_1 = arith.constant 0 : i32
    %c0_i32_2 = arith.constant 0 : i32
    return %c0_i32, %c0_i32_0, %c0_i32_1 : i32, i32, i32
  }
  func.func @transform_7(%arg0: i32) -> (i32, i32, i32) {
    %c0_i32 = arith.constant 0 : i32
    %c0_i32_0 = arith.constant 0 : i32
    %c0_i32_1 = arith.constant 0 : i32
    %c0_i32_2 = arith.constant 0 : i32
    return %c0_i32, %c0_i32_0, %c0_i32_1 : i32, i32, i32
  }
  func.func @transform_8(%arg0: i32) -> (i32, i32, i32) {
    %c0_i32 = arith.constant 0 : i32
    %c0_i32_0 = arith.constant 0 : i32
    %c0_i32_1 = arith.constant 0 : i32
    %c0_i32_2 = arith.constant 0 : i32
    return %c0_i32, %c0_i32_0, %c0_i32_1 : i32, i32, i32
  }
  func.func @transform_9(%arg0: i32) -> (i32, i32, i32) {
    %c0_i32 = arith.constant 0 : i32
    %c0_i32_0 = arith.constant 0 : i32
    %c0_i32_1 = arith.constant 0 : i32
    %c0_i32_2 = arith.constant 0 : i32
    return %c0_i32, %c0_i32_0, %c0_i32_1 : i32, i32, i32
  }
  func.func @transform_10(%arg0: i32) -> (i32, i32, i32) {
    %c0_i32 = arith.constant 0 : i32
    %c0_i32_0 = arith.constant 0 : i32
    %c0_i32_1 = arith.constant 0 : i32
    %c0_i32_2 = arith.constant 0 : i32
    return %c0_i32, %c0_i32_0, %c0_i32_1 : i32, i32, i32
  }
  func.func @transform_11(%arg0: i32) -> (i32, i32, i32) {
    %c0_i32 = arith.constant 0 : i32
    %c0_i32_0 = arith.constant 0 : i32
    %c0_i32_1 = arith.constant 0 : i32
    %c0_i32_2 = arith.constant 0 : i32
    return %c0_i32, %c0_i32_0, %c0_i32_1 : i32, i32, i32
  }
  func.func @transform_12(%arg0: i32) -> (i32, i32, i32) {
    %c0_i32 = arith.constant 0 : i32
    %c0_i32_0 = arith.constant 0 : i32
    %c0_i32_1 = arith.constant 0 : i32
    %c0_i32_2 = arith.constant 0 : i32
    return %c0_i32, %c0_i32_0, %c0_i32_1 : i32, i32, i32
  }
  func.func @transform_13(%arg0: i32) -> (i32, i32, i32) {
    %c0_i32 = arith.constant 0 : i32
    %c0_i32_0 = arith.constant 0 : i32
    %c0_i32_1 = arith.constant 0 : i32
    %c0_i32_2 = arith.constant 0 : i32
    return %c0_i32, %c0_i32_0, %c0_i32_1 : i32, i32, i32
  }
  func.func @transform_14(%arg0: i32) -> (i32, i32) {
    %c0_i32 = arith.constant 0 : i32
    %c0_i32_0 = arith.constant 0 : i32
    %c0_i32_1 = arith.constant 0 : i32
    return %c0_i32, %c0_i32_0 : i32, i32
  }
  func.func @transform_15(%arg0: i32) -> (i32, i32) {
    %c0_i32 = arith.constant 0 : i32
    %c0_i32_0 = arith.constant 0 : i32
    %c0_i32_1 = arith.constant 0 : i32
    return %c0_i32, %c0_i32_0 : i32, i32
  }
  func.func @transform_16(%arg0: i32) -> (i32, i32) {
    %c0_i32 = arith.constant 0 : i32
    %c0_i32_0 = arith.constant 0 : i32
    %c0_i32_1 = arith.constant 0 : i32
    return %c0_i32, %c0_i32_0 : i32, i32
  }
  func.func @transform_17(%arg0: i32) -> (i32, i32) {
    %c0_i32 = arith.constant 0 : i32
    %c0_i32_0 = arith.constant 0 : i32
    %c0_i32_1 = arith.constant 0 : i32
    return %c0_i32, %c0_i32_0 : i32, i32
  }
  func.func @transform_18(%arg0: i32) -> (i32, i32, i32) {
    %c0_i32 = arith.constant 0 : i32
    %c0_i32_0 = arith.constant 0 : i32
    %c0_i32_1 = arith.constant 0 : i32
    return %arg0, %c0_i32, %c0_i32_0 : i32, i32, i32
  }
}

</mosaic_0001>

<llo_original>
// kernel: bigram_lm_forward.1
$region0: #{bigram_lm_forward.1}
  #allocation0 [shape = 'u32[]', space=smem, size = 0x4, offset = 0x4, fixed_abs, tag = 'smem constant byte address 0x4 - core index']
  #allocation1 [shape = 'u32[72,128]{1,0:T(1,128)}', space=vmem, size = 0x9000, scoped, tag = 'internal scratch']
  %s0 = inlined_call_operand.vmem [shape: f32[2,64,128], index: 0, kind: input, shape index: {}]
  %s1 = inlined_call_operand.vmem [shape: f32[2,1,128], index: 1, kind: input, shape index: {}]
  %s2 = inlined_call_operand.vmem [shape: f32[2,1,128], index: 2, kind: input, shape index: {}]
  %s3 = inlined_call_operand.vmem [shape: f32[2,128,128], index: 3, kind: input, shape index: {}]
  %s4 = inlined_call_operand.hbm [shape: f32[2,128,128], index: 4, kind: input, shape index: {}]
  %s5 = inlined_call_operand.hbm [shape: f32[2,128,128], index: 5, kind: input, shape index: {}]
  %s6 = inlined_call_operand.hbm [shape: f32[2,128,128], index: 6, kind: input, shape index: {}]
  %s7 = inlined_call_operand.vmem [shape: f32[2,1,128], index: 7, kind: input, shape index: {}]
  %s8 = inlined_call_operand.vmem [shape: f32[2,1,128], index: 8, kind: input, shape index: {}]
  %s9 = inlined_call_operand.vmem [shape: f32[2,1,128], index: 9, kind: input, shape index: {}]
  %s10 = inlined_call_operand.vmem [shape: f32[2,128,512], index: 10, kind: input, shape index: {}]
  %s11 = inlined_call_operand.vmem [shape: f32[2,1,512], index: 11, kind: input, shape index: {}]
  %s12 = inlined_call_operand.hbm [shape: f32[2,512,128], index: 12, kind: input, shape index: {}]
  %s13 = inlined_call_operand.vmem [shape: f32[2,1,128], index: 13, kind: input, shape index: {}]
  %s14 = inlined_call_operand.vmem [shape: f32[1,128], index: 14, kind: input, shape index: {}]
  %s15 = inlined_call_operand.vmem [shape: f32[1,128], index: 15, kind: input, shape index: {}]
  %s16 = inlined_call_operand.vmem [shape: f32[128,128], index: 16, kind: input, shape index: {}]
  %s17 = inlined_call_operand.vmem [shape: f32[1,128], index: 17, kind: input, shape index: {}]
  %s18 = inlined_call_operand.hbm [shape: f32[2,64,128], index: 18, kind: output, shape index: {}]
  %s19 = sld [smem:[#allocation0]]
  $region121: #{bigram_lm_forward.1} parent=0
    _
  %s21 = ssub.s32 1, %s19
  %s22 = scalar_select 0, %s21, %s19
  $region1: #{bigram_lm_forward.1} parent=0
    #allocation2 [shape = 'u8[131072]{0}', space=vmem, size = 0x20000, scoped, tag = 'input window, operand 4, single buffered']
    #allocation3 [shape = 's32[2]{0}', space=sflag, size = 0x8, scoped, tag = 'scoped memory for bigram_lm_forward.1']
    #allocation4 [shape = 's32[2]{0}', space=sflag, size = 0x8, scoped, tag = 'scoped memory for bigram_lm_forward.1']
    #allocation5 [shape = 'u8[131072]{0}', space=vmem, size = 0x20000, scoped, tag = 'input window, operand 5, single buffered']
    #allocation6 [shape = 's32[1]{0}', space=sflag, size = 0x4, scoped, tag = 'scoped memory for bigram_lm_forward.1']
    #allocation7 [shape = 'u8[131072]{0}', space=vmem, size = 0x20000, scoped, tag = 'input window, operand 6, single buffered']
    #allocation8 [shape = 'u8[524288]{0}', space=vmem, size = 0x80000, scoped, tag = 'input window, operand 12, single buffered']
    #allocation9 [shape = 's32[1]{0}', space=sflag, size = 0x4, scoped, tag = 'scoped memory for bigram_lm_forward.1']
    #allocation10 [shape = 'u8[65536]{0}', space=vmem, size = 0x10000, scoped, tag = 'output window, operand 0']
    %23 = vsyncpa [#allocation3], 0
    %24 = vsyncpa [#allocation6], 0
    %25 = vsyncpa [#allocation9], 0
    %26 = vsyncpa [#allocation4], 0
    %s27 = scalar_lea.sflag [#allocation4], 1
    %28 = vsyncpa %s27, 0
    loop: start=0, step=1, limit=4
    $region2: #{bigram_lm_forward.1} parent=1 // loop_pre_header
      _
    $region3: #{bigram_lm_forward.1} parent=1 // loop_header
      %s30 = sphi 0, %s34
      %p31 = scmp.ge.s32.totalorder %s30, 4
      %s40 = sphi 0, %s42
      %s43 = sphi 0, %s40
      %s44 = sphi 0, %s43
      %s60 = sphi 0, %s44
      %s64 = sphi 0, %s64
      %s66 = sphi 0, %s64
      %s67 = sphi 0, %s66
      %s81 = sphi 0, %s67
      %s85 = sphi 0, %s85
      %s87 = sphi 0, %s85
      %s88 = sphi 0, %s87
      %s102 = sphi 0, %s88
      %s106 = sphi 0, %s106
      %s108 = sphi 0, %s106
      %s109 = sphi 0, %s108
      %s123 = sphi 0, %s109
      %s127 = sphi 0, %s127
      %s129 = sphi 0, %s127
      %s130 = sphi 0, %s129
      %s144 = sphi 0, %s130
      %s148 = sphi 0, %s148
      %s150 = sphi 0, %s148
      %s151 = sphi 0, %s150
      %s165 = sphi 0, %s151
      %s169 = sphi 0, %s169
      %s171 = sphi 0, %s169
      %s172 = sphi 0, %s171
      %s186 = sphi 0, %s172
      %s190 = sphi 0, %s190
      %s192 = sphi 0, %s190
      %s193 = sphi 0, %s192
      %s207 = sphi 0, %s193
      %s211 = sphi 0, %s211
      %s213 = sphi 0, %s211
      %s214 = sphi 0, %s213
      %s228 = sphi 0, %s214
      %s232 = sphi 0, %s232
      %s234 = sphi 0, %s232
      %s235 = sphi 0, %s234
      %s249 = sphi 0, %s235
      %s253 = sphi 0, %s253
      %s255 = sphi 0, %s253
      %s256 = sphi 0, %s255
      %s270 = sphi 0, %s256
      %s274 = sphi 0, %s274
      %s276 = sphi 0, %s274
      %s277 = sphi 0, %s276
      %s291 = sphi 0, %s277
      %s295 = sphi 0, %s295
      %s297 = sphi 0, %s295
      %s298 = sphi 0, %s297
      %s312 = sphi 0, %s298
      %s316 = sphi 0, %s316
      %s318 = sphi 0, %s316
      %s319 = sphi 0, %s318
      %s333 = sphi 0, %s319
      %s337 = sphi 0, %s337
      %s339 = sphi 0, %s337
      %s340 = sphi 0, %s339
      %s354 = sphi 0, %s340
      %s358 = sphi 0, %s358
      %s360 = sphi 0, %s358
      %s361 = sphi 0, %s360
      %s375 = sphi 0, %s361
      %s379 = sphi 0, %s379
      %s381 = sphi 0, %s379
      %s382 = sphi 0, %s381
      %s396 = sphi 0, %s382
      %s400 = sphi 0, %s400
      %s402 = sphi 0, %s400
      %s403 = sphi 0, %s402
      %s417 = sphi 0, %s403
      %s423 = sphi 0, %s425
      %s426 = sphi 0, %s423
      %s427 = sphi 0, %s426
      %s443 = sphi 0, %s427
    $region4: #{bigram_lm_forward.1} parent=1 // loop_header_branch
      %33 = sbr.rel (%p31) target = $region8
    $region5: #{bigram_lm_forward.1} parent=1 // loop_body
      %s35 = ssub.s32 %s30, 1
      %s36 = ssub.s32 %s30, 2
      %s37 = sadd.s32 %s30, 1
      %s38 = ssub.s32 %s30, %s37
      %p39 = scmp.eq.s32.totalorder %s38, 0
      %s41 = sadd.s32 %s40, 1
      %s42 = scalar_select %p39, %s40, %s41
      %p45 = pneg %p39
      %p46 = scmp.eq.s32.totalorder %s30, 1
      %p47 = por %p45, %p46
      %p48 = scmp.ne.s32.totalorder %s40, %s43
      %p49 = scmp.eq.s32.totalorder %s30, 0
      %p50 = por %p48, %p49
      %p51 = scmp.ne.s32.totalorder %s40, %s43
      %p52 = scmp.eq.s32.totalorder %s35, 1
      %p53 = por %p51, %p52
      %p54 = scmp.ne.s32.totalorder %s43, %s44
      %p55 = scmp.eq.s32.totalorder %s35, 0
      %p56 = por %p54, %p55
      %p57 = scmp.ne.s32.totalorder %s43, %s44
      %p58 = scmp.eq.s32.totalorder %s36, 1
      %p59 = por %p57, %p58
      %p61 = scmp.ne.s32.totalorder %s44, %s60
      %p62 = scmp.eq.s32.totalorder %s36, 0
      %p63 = por %p61, %p62
      %s65 = sadd.s32 %s64, 1
      %p68 = scmp.eq.s32.totalorder %s30, 1
      %p69 = scmp.ne.s32.totalorder %s64, %s66
      %p70 = scmp.eq.s32.totalorder %s30, 0
      %p71 = por %p69, %p70
      %p72 = scmp.ne.s32.totalorder %s64, %s66
      %p73 = scmp.eq.s32.totalorder %s35, 1
      %p74 = por %p72, %p73
      %p75 = scmp.ne.s32.totalorder %s66, %s67
      %p76 = scmp.eq.s32.totalorder %s35, 0
      %p77 = por %p75, %p76
      %p78 = scmp.ne.s32.totalorder %s66, %s67
      %p79 = scmp.eq.s32.totalorder %s36, 1
      %p80 = por %p78, %p79
      %p82 = scmp.ne.s32.totalorder %s67, %s81
      %p83 = scmp.eq.s32.totalorder %s36, 0
      %p84 = por %p82, %p83
      %s86 = sadd.s32 %s85, 1
      %p89 = scmp.eq.s32.totalorder %s30, 1
      %p90 = scmp.ne.s32.totalorder %s85, %s87
      %p91 = scmp.eq.s32.totalorder %s30, 0
      %p92 = por %p90, %p91
      %p93 = scmp.ne.s32.totalorder %s85, %s87
      %p94 = scmp.eq.s32.totalorder %s35, 1
      %p95 = por %p93, %p94
      %p96 = scmp.ne.s32.totalorder %s87, %s88
      %p97 = scmp.eq.s32.totalorder %s35, 0
      %p98 = por %p96, %p97
      %p99 = scmp.ne.s32.totalorder %s87, %s88
      %p100 = scmp.eq.s32.totalorder %s36, 1
      %p101 = por %p99, %p100
      %p103 = scmp.ne.s32.totalorder %s88, %s102
      %p104 = scmp.eq.s32.totalorder %s36, 0
      %p105 = por %p103, %p104
      %s107 = sadd.s32 %s106, 1
      %p110 = scmp.eq.s32.totalorder %s30, 1
      %p111 = scmp.ne.s32.totalorder %s106, %s108
      %p112 = scmp.eq.s32.totalorder %s30, 0
      %p113 = por %p111, %p112
      %p114 = scmp.ne.s32.totalorder %s106, %s108
      %p115 = scmp.eq.s32.totalorder %s35, 1
      %p116 = por %p114, %p115
      %p117 = scmp.ne.s32.totalorder %s108, %s109
      %p118 = scmp.eq.s32.totalorder %s35, 0
      %p119 = por %p117, %p118
      %p120 = scmp.ne.s32.totalorder %s108, %s109
      %p121 = scmp.eq.s32.totalorder %s36, 1
      %p122 = por %p120, %p121
      %p124 = scmp.ne.s32.totalorder %s109, %s123
      %p125 = scmp.eq.s32.totalorder %s36, 0
      %p126 = por %p124, %p125
      %s128 = sadd.s32 %s127, 1
      %p131 = scmp.eq.s32.totalorder %s30, 1
      %p132 = scmp.ne.s32.totalorder %s127, %s129
      %p133 = scmp.eq.s32.totalorder %s30, 0
      %p134 = por %p132, %p133
      %p135 = scmp.ne.s32.totalorder %s127, %s129
      %p136 = scmp.eq.s32.totalorder %s35, 1
      %p137 = por %p135, %p136
      %p138 = scmp.ne.s32.totalorder %s129, %s130
      %p139 = scmp.eq.s32.totalorder %s35, 0
      %p140 = por %p138, %p139
      %p141 = scmp.ne.s32.totalorder %s129, %s130
      %p142 = scmp.eq.s32.totalorder %s36, 1
      %p143 = por %p141, %p142
      %p145 = scmp.ne.s32.totalorder %s130, %s144
      %p146 = scmp.eq.s32.totalorder %s36, 0
      %p147 = por %p145, %p146
      %s149 = sadd.s32 %s148, 1
      %p152 = scmp.eq.s32.totalorder %s30, 1
      %p153 = scmp.ne.s32.totalorder %s148, %s150
      %p154 = scmp.eq.s32.totalorder %s30, 0
      %p155 = por %p153, %p154
      %p156 = scmp.ne.s32.totalorder %s148, %s150
      %p157 = scmp.eq.s32.totalorder %s35, 1
      %p158 = por %p156, %p157
      %p159 = scmp.ne.s32.totalorder %s150, %s151
      %p160 = scmp.eq.s32.totalorder %s35, 0
      %p161 = por %p159, %p160
      %p162 = scmp.ne.s32.totalorder %s150, %s151
      %p163 = scmp.eq.s32.totalorder %s36, 1
      %p164 = por %p162, %p163
      %p166 = scmp.ne.s32.totalorder %s151, %s165
      %p167 = scmp.eq.s32.totalorder %s36, 0
      %p168 = por %p166, %p167
      %s170 = sadd.s32 %s169, 1
      %p173 = scmp.eq.s32.totalorder %s30, 1
      %p174 = scmp.ne.s32.totalorder %s169, %s171
      %p175 = scmp.eq.s32.totalorder %s30, 0
      %p176 = por %p174, %p175
      %p177 = scmp.ne.s32.totalorder %s169, %s171
      %p178 = scmp.eq.s32.totalorder %s35, 1
      %p179 = por %p177, %p178
      %p180 = scmp.ne.s32.totalorder %s171, %s172
      %p181 = scmp.eq.s32.totalorder %s35, 0
      %p182 = por %p180, %p181
      %p183 = scmp.ne.s32.totalorder %s171, %s172
      %p184 = scmp.eq.s32.totalorder %s36, 1
      %p185 = por %p183, %p184
      %p187 = scmp.ne.s32.totalorder %s172, %s186
      %p188 = scmp.eq.s32.totalorder %s36, 0
      %p189 = por %p187, %p188
      %s191 = sadd.s32 %s190, 1
      %p194 = scmp.eq.s32.totalorder %s30, 1
      %p195 = scmp.ne.s32.totalorder %s190, %s192
      %p196 = scmp.eq.s32.totalorder %s30, 0
      %p197 = por %p195, %p196
      %p198 = scmp.ne.s32.totalorder %s190, %s192
      %p199 = scmp.eq.s32.totalorder %s35, 1
      %p200 = por %p198, %p199
      %p201 = scmp.ne.s32.totalorder %s192, %s193
      %p202 = scmp.eq.s32.totalorder %s35, 0
      %p203 = por %p201, %p202
      %p204 = scmp.ne.s32.totalorder %s192, %s193
      %p205 = scmp.eq.s32.totalorder %s36, 1
      %p206 = por %p204, %p205
      %p208 = scmp.ne.s32.totalorder %s193, %s207
      %p209 = scmp.eq.s32.totalorder %s36, 0
      %p210 = por %p208, %p209
      %s212 = sadd.s32 %s211, 1
      %p215 = scmp.eq.s32.totalorder %s30, 1
      %p216 = scmp.ne.s32.totalorder %s211, %s213
      %p217 = scmp.eq.s32.totalorder %s30, 0
      %p218 = por %p216, %p217
      %p219 = scmp.ne.s32.totalorder %s211, %s213
      %p220 = scmp.eq.s32.totalorder %s35, 1
      %p221 = por %p219, %p220
      %p222 = scmp.ne.s32.totalorder %s213, %s214
      %p223 = scmp.eq.s32.totalorder %s35, 0
      %p224 = por %p222, %p223
      %p225 = scmp.ne.s32.totalorder %s213, %s214
      %p226 = scmp.eq.s32.totalorder %s36, 1
      %p227 = por %p225, %p226
      %p229 = scmp.ne.s32.totalorder %s214, %s228
      %p230 = scmp.eq.s32.totalorder %s36, 0
      %p231 = por %p229, %p230
      %s233 = sadd.s32 %s232, 1
      %p236 = scmp.eq.s32.totalorder %s30, 1
      %p237 = scmp.ne.s32.totalorder %s232, %s234
      %p238 = scmp.eq.s32.totalorder %s30, 0
      %p239 = por %p237, %p238
      %p240 = scmp.ne.s32.totalorder %s232, %s234
      %p241 = scmp.eq.s32.totalorder %s35, 1
      %p242 = por %p240, %p241
      %p243 = scmp.ne.s32.totalorder %s234, %s235
      %p244 = scmp.eq.s32.totalorder %s35, 0
      %p245 = por %p243, %p244
      %p246 = scmp.ne.s32.totalorder %s234, %s235
      %p247 = scmp.eq.s32.totalorder %s36, 1
      %p248 = por %p246, %p247
      %p250 = scmp.ne.s32.totalorder %s235, %s249
      %p251 = scmp.eq.s32.totalorder %s36, 0
      %p252 = por %p250, %p251
      %s254 = sadd.s32 %s253, 1
      %p257 = scmp.eq.s32.totalorder %s30, 1
      %p258 = scmp.ne.s32.totalorder %s253, %s255
      %p259 = scmp.eq.s32.totalorder %s30, 0
      %p260 = por %p258, %p259
      %p261 = scmp.ne.s32.totalorder %s253, %s255
      %p262 = scmp.eq.s32.totalorder %s35, 1
      %p263 = por %p261, %p262
      %p264 = scmp.ne.s32.totalorder %s255, %s256
      %p265 = scmp.eq.s32.totalorder %s35, 0
      %p266 = por %p264, %p265
      %p267 = scmp.ne.s32.totalorder %s255, %s256
      %p268 = scmp.eq.s32.totalorder %s36, 1
      %p269 = por %p267, %p268
      %p271 = scmp.ne.s32.totalorder %s256, %s270
      %p272 = scmp.eq.s32.totalorder %s36, 0
      %p273 = por %p271, %p272
      %s275 = sadd.s32 %s274, 1
      %p278 = scmp.eq.s32.totalorder %s30, 1
      %p279 = scmp.ne.s32.totalorder %s274, %s276
      %p280 = scmp.eq.s32.totalorder %s30, 0
      %p281 = por %p279, %p280
      %p282 = scmp.ne.s32.totalorder %s274, %s276
      %p283 = scmp.eq.s32.totalorder %s35, 1
      %p284 = por %p282, %p283
      %p285 = scmp.ne.s32.totalorder %s276, %s277
      %p286 = scmp.eq.s32.totalorder %s35, 0
      %p287 = por %p285, %p286
      %p288 = scmp.ne.s32.totalorder %s276, %s277
      %p289 = scmp.eq.s32.totalorder %s36, 1
      %p290 = por %p288, %p289
      %p292 = scmp.ne.s32.totalorder %s277, %s291
      %p293 = scmp.eq.s32.totalorder %s36, 0
      %p294 = por %p292, %p293
      %s296 = sadd.s32 %s295, 1
      %p299 = scmp.eq.s32.totalorder %s30, 1
      %p300 = scmp.ne.s32.totalorder %s295, %s297
      %p301 = scmp.eq.s32.totalorder %s30, 0
      %p302 = por %p300, %p301
      %p303 = scmp.ne.s32.totalorder %s295, %s297
      %p304 = scmp.eq.s32.totalorder %s35, 1
      %p305 = por %p303, %p304
      %p306 = scmp.ne.s32.totalorder %s297, %s298
      %p307 = scmp.eq.s32.totalorder %s35, 0
      %p308 = por %p306, %p307
      %p309 = scmp.ne.s32.totalorder %s297, %s298
      %p310 = scmp.eq.s32.totalorder %s36, 1
      %p311 = por %p309, %p310
      %p313 = scmp.ne.s32.totalorder %s298, %s312
      %p314 = scmp.eq.s32.totalorder %s36, 0
      %p315 = por %p313, %p314
      %s317 = sadd.s32 %s316, 1
      %p320 = scmp.eq.s32.totalorder %s30, 1
      %p321 = scmp.ne.s32.totalorder %s316, %s318
      %p322 = scmp.eq.s32.totalorder %s30, 0
      %p323 = por %p321, %p322
      %p324 = scmp.ne.s32.totalorder %s316, %s318
      %p325 = scmp.eq.s32.totalorder %s35, 1
      %p326 = por %p324, %p325
      %p327 = scmp.ne.s32.totalorder %s318, %s319
      %p328 = scmp.eq.s32.totalorder %s35, 0
      %p329 = por %p327, %p328
      %p330 = scmp.ne.s32.totalorder %s318, %s319
      %p331 = scmp.eq.s32.totalorder %s36, 1
      %p332 = por %p330, %p331
      %p334 = scmp.ne.s32.totalorder %s319, %s333
      %p335 = scmp.eq.s32.totalorder %s36, 0
      %p336 = por %p334, %p335
      %s338 = sadd.s32 %s337, 1
      %p341 = scmp.eq.s32.totalorder %s30, 1
      %p342 = scmp.ne.s32.totalorder %s337, %s339
      %p343 = scmp.eq.s32.totalorder %s30, 0
      %p344 = por %p342, %p343
      %p345 = scmp.ne.s32.totalorder %s337, %s339
      %p346 = scmp.eq.s32.totalorder %s35, 1
      %p347 = por %p345, %p346
      %p348 = scmp.ne.s32.totalorder %s339, %s340
      %p349 = scmp.eq.s32.totalorder %s35, 0
      %p350 = por %p348, %p349
      %p351 = scmp.ne.s32.totalorder %s339, %s340
      %p352 = scmp.eq.s32.totalorder %s36, 1
      %p353 = por %p351, %p352
      %p355 = scmp.ne.s32.totalorder %s340, %s354
      %p356 = scmp.eq.s32.totalorder %s36, 0
      %p357 = por %p355, %p356
      %s359 = sadd.s32 %s358, 1
      %p362 = scmp.eq.s32.totalorder %s30, 1
      %p363 = scmp.ne.s32.totalorder %s358, %s360
      %p364 = scmp.eq.s32.totalorder %s30, 0
      %p365 = por %p363, %p364
      %p366 = scmp.ne.s32.totalorder %s358, %s360
      %p367 = scmp.eq.s32.totalorder %s35, 1
      %p368 = por %p366, %p367
      %p369 = scmp.ne.s32.totalorder %s360, %s361
      %p370 = scmp.eq.s32.totalorder %s35, 0
      %p371 = por %p369, %p370
      %p372 = scmp.ne.s32.totalorder %s360, %s361
      %p373 = scmp.eq.s32.totalorder %s36, 1
      %p374 = por %p372, %p373
      %p376 = scmp.ne.s32.totalorder %s361, %s375
      %p377 = scmp.eq.s32.totalorder %s36, 0
      %p378 = por %p376, %p377
      %s380 = sadd.s32 %s379, 1
      %p383 = scmp.eq.s32.totalorder %s30, 1
      %p384 = scmp.ne.s32.totalorder %s379, %s381
      %p385 = scmp.eq.s32.totalorder %s30, 0
      %p386 = por %p384, %p385
      %p387 = scmp.ne.s32.totalorder %s379, %s381
      %p388 = scmp.eq.s32.totalorder %s35, 1
      %p389 = por %p387, %p388
      %p390 = scmp.ne.s32.totalorder %s381, %s382
      %p391 = scmp.eq.s32.totalorder %s35, 0
      %p392 = por %p390, %p391
      %p393 = scmp.ne.s32.totalorder %s381, %s382
      %p394 = scmp.eq.s32.totalorder %s36, 1
      %p395 = por %p393, %p394
      %p397 = scmp.ne.s32.totalorder %s382, %s396
      %p398 = scmp.eq.s32.totalorder %s36, 0
      %p399 = por %p397, %p398
      %s401 = sadd.s32 %s400, 1
      %p404 = scmp.eq.s32.totalorder %s30, 1
      %p405 = scmp.ne.s32.totalorder %s400, %s402
      %p406 = scmp.eq.s32.totalorder %s30, 0
      %p407 = por %p405, %p406
      %p408 = scmp.ne.s32.totalorder %s400, %s402
      %p409 = scmp.eq.s32.totalorder %s35, 1
      %p410 = por %p408, %p409
      %p411 = scmp.ne.s32.totalorder %s402, %s403
      %p412 = scmp.eq.s32.totalorder %s35, 0
      %p413 = por %p411, %p412
      %p414 = scmp.ne.s32.totalorder %s402, %s403
      %p415 = scmp.eq.s32.totalorder %s36, 1
      %p416 = por %p414, %p415
      %p418 = scmp.ne.s32.totalorder %s403, %s417
      %p419 = scmp.eq.s32.totalorder %s36, 0
      %p420 = por %p418, %p419
      %s421 = ssub.s32 %s30, %s37
      %p422 = scmp.eq.s32.totalorder %s421, 0
      %s424 = sadd.s32 %s423, 1
      %s425 = scalar_select %p422, %s423, %s424
      %p428 = pneg %p422
      %p429 = scmp.eq.s32.totalorder %s30, 1
      %p430 = por %p428, %p429
      %p431 = scmp.ne.s32.totalorder %s423, %s426
      %p432 = scmp.eq.s32.totalorder %s30, 0
      %p433 = por %p431, %p432
      %p434 = scmp.ne.s32.totalorder %s423, %s426
      %p435 = scmp.eq.s32.totalorder %s35, 1
      %p436 = por %p434, %p435
      %p437 = scmp.ne.s32.totalorder %s426, %s427
      %p438 = scmp.eq.s32.totalorder %s35, 0
      %p439 = por %p437, %p438
      %p440 = scmp.ne.s32.totalorder %s426, %s427
      %p441 = scmp.eq.s32.totalorder %s36, 1
      %p442 = por %p440, %p441
      %p444 = scmp.ne.s32.totalorder %s427, %s443
      %p445 = scmp.eq.s32.totalorder %s36, 0
      %p446 = por %p444, %p445
      %p447 = scmp.le.s32.totalorder 1, %s30
      %p448 = scmp.lt.s32.totalorder %s30, 3
      %p449 = pnand %p447, %p448
      %p450 = pneg %p449
      // Predicated region
      $region9: #{bigram_lm_forward.1} parent=5 // pred_check
        _
      $region10: #{bigram_lm_forward.1} parent=5 // pred_check_branch
        %452 = sbr.rel (%p449) target = $region12
      $region11: #{bigram_lm_forward.1} parent=5 // pred_region
        %s453 = ssub.s32 %s30, 1
        // Predicated region
        $region13: #{bigram_lm_forward.1} parent=11 // pred_check
          %p454 = pneg %p77
        $region14: #{bigram_lm_forward.1} parent=11 // pred_check_branch
          %456 = sbr.rel (%p454) target = $region16
        $region15: #{bigram_lm_forward.1} parent=11 // pred_region
          _
        $region16: #{bigram_lm_forward.1} parent=11 // pred_fallthru
          _
        // Predicated region
        $region17: #{bigram_lm_forward.1} parent=11 // pred_check
          %p457 = pneg %p98
        $region18: #{bigram_lm_forward.1} parent=11 // pred_check_branch
          %459 = sbr.rel (%p457) target = $region20
        $region19: #{bigram_lm_forward.1} parent=11 // pred_region
          _
        $region20: #{bigram_lm_forward.1} parent=11 // pred_fallthru
          _
        // Predicated region
        $region21: #{bigram_lm_forward.1} parent=11 // pred_check
          %p460 = pneg %p119
        $region22: #{bigram_lm_forward.1} parent=11 // pred_check_branch
          %462 = sbr.rel (%p460) target = $region24
        $region23: #{bigram_lm_forward.1} parent=11 // pred_region
          _
        $region24: #{bigram_lm_forward.1} parent=11 // pred_fallthru
          _
        // Predicated region
        $region25: #{bigram_lm_forward.1} parent=11 // pred_check
          %p463 = pneg %p140
        $region26: #{bigram_lm_forward.1} parent=11 // pred_check_branch
          %465 = sbr.rel (%p463) target = $region28
        $region27: #{bigram_lm_forward.1} parent=11 // pred_region
          %467 = vsyncadd [#allocation3], 0
          %s468 = sshll.u32 %s4, 4
          %s469 = int_to_ptr.hbm [resolvable:$true] %s468
          %s470 = sshll.u32 [#allocation2], 4
          %s471 = int_to_ptr.vmem [resolvable:$true] %s470
          %476 = dma.hbm_to_vmem [thread:$0]  %s469, 4096, %s471, [#allocation3], 128, 128, 8
        $region28: #{bigram_lm_forward.1} parent=11 // pred_fallthru
          _
        // Predicated region
        $region29: #{bigram_lm_forward.1} parent=11 // pred_check
          %p477 = pneg %p161
        $region30: #{bigram_lm_forward.1} parent=11 // pred_check_branch
          %479 = sbr.rel (%p477) target = $region32
        $region31: #{bigram_lm_forward.1} parent=11 // pred_region
          %481 = vsyncadd [#allocation6], 0
          %s482 = sshll.u32 %s5, 4
          %s483 = int_to_ptr.hbm [resolvable:$true] %s482
          %s484 = sshll.u32 [#allocation5], 4
          %s485 = int_to_ptr.vmem [resolvable:$true] %s484
          %490 = dma.hbm_to_vmem [thread:$0]  %s483, 4096, %s485, [#allocation6], 128, 128, 8
        $region32: #{bigram_lm_forward.1} parent=11 // pred_fallthru
          _
        // Predicated region
        $region33: #{bigram_lm_forward.1} parent=11 // pred_check
          %p491 = pneg %p182
        $region34: #{bigram_lm_forward.1} parent=11 // pred_check_branch
          %493 = sbr.rel (%p491) target = $region36
        $region35: #{bigram_lm_forward.1} parent=11 // pred_region
          %495 = vsyncadd [#allocation6], 0
          %s496 = sshll.u32 %s6, 4
          %s497 = int_to_ptr.hbm [resolvable:$true] %s496
          %s498 = sshll.u32 [#allocation7], 4
          %s499 = int_to_ptr.vmem [resolvable:$true] %s498
          %504 = dma.hbm_to_vmem [thread:$0]  %s497, 4096, %s499, [#allocation6], 128, 128, 8
        $region36: #{bigram_lm_forward.1} parent=11 // pred_fallthru
          _
        // Predicated region
        $region37: #{bigram_lm_forward.1} parent=11 // pred_check
          %p505 = pneg %p203
        $region38: #{bigram_lm_forward.1} parent=11 // pred_check_branch
          %507 = sbr.rel (%p505) target = $region40
        $region39: #{bigram_lm_forward.1} parent=11 // pred_region
          _
        $region40: #{bigram_lm_forward.1} parent=11 // pred_fallthru
          _
        // Predicated region
        $region41: #{bigram_lm_forward.1} parent=11 // pred_check
          %p508 = pneg %p224
        $region42: #{bigram_lm_forward.1} parent=11 // pred_check_branch
          %510 = sbr.rel (%p508) target = $region44
        $region43: #{bigram_lm_forward.1} parent=11 // pred_region
          _
        $region44: #{bigram_lm_forward.1} parent=11 // pred_fallthru
          _
        // Predicated region
        $region45: #{bigram_lm_forward.1} parent=11 // pred_check
          %p511 = pneg %p245
        $region46: #{bigram_lm_forward.1} parent=11 // pred_check_branch
          %513 = sbr.rel (%p511) target = $region48
        $region47: #{bigram_lm_forward.1} parent=11 // pred_region
          _
        $region48: #{bigram_lm_forward.1} parent=11 // pred_fallthru
          _
        // Predicated region
        $region49: #{bigram_lm_forward.1} parent=11 // pred_check
          %p514 = pneg %p266
        $region50: #{bigram_lm_forward.1} parent=11 // pred_check_branch
          %516 = sbr.rel (%p514) target = $region52
        $region51: #{bigram_lm_forward.1} parent=11 // pred_region
          _
        $region52: #{bigram_lm_forward.1} parent=11 // pred_fallthru
          _
        // Predicated region
        $region53: #{bigram_lm_forward.1} parent=11 // pred_check
          %p517 = pneg %p287
        $region54: #{bigram_lm_forward.1} parent=11 // pred_check_branch
          %519 = sbr.rel (%p517) target = $region56
        $region55: #{bigram_lm_forward.1} parent=11 // pred_region
          _
        $region56: #{bigram_lm_forward.1} parent=11 // pred_fallthru
          _
        // Predicated region
        $region57: #{bigram_lm_forward.1} parent=11 // pred_check
          %p520 = pneg %p308
        $region58: #{bigram_lm_forward.1} parent=11 // pred_check_branch
          %522 = sbr.rel (%p520) target = $region60
        $region59: #{bigram_lm_forward.1} parent=11 // pred_region
          %524 = vsyncadd [#allocation9], 0
          %s525 = sshll.u32 %s12, 4
          %s526 = int_to_ptr.hbm [resolvable:$true] %s525
          %s527 = sshll.u32 [#allocation8], 4
          %s528 = int_to_ptr.vmem [resolvable:$true] %s527
          %533 = dma.hbm_to_vmem [thread:$0]  %s526, 16384, %s528, [#allocation9], 128, 128, 8
        $region60: #{bigram_lm_forward.1} parent=11 // pred_fallthru
          _
        // Predicated region
        $region61: #{bigram_lm_forward.1} parent=11 // pred_check
          %p534 = pneg %p329
        $region62: #{bigram_lm_forward.1} parent=11 // pred_check_branch
          %536 = sbr.rel (%p534) target = $region64
        $region63: #{bigram_lm_forward.1} parent=11 // pred_region
          _
        $region64: #{bigram_lm_forward.1} parent=11 // pred_fallthru
          _
        // Predicated region
        $region65: #{bigram_lm_forward.1} parent=11 // pred_check
          %p537 = pneg %p350
        $region66: #{bigram_lm_forward.1} parent=11 // pred_check_branch
          %539 = sbr.rel (%p537) target = $region68
        $region67: #{bigram_lm_forward.1} parent=11 // pred_region
          _
        $region68: #{bigram_lm_forward.1} parent=11 // pred_fallthru
          _
        // Predicated region
        $region69: #{bigram_lm_forward.1} parent=11 // pred_check
          %p540 = pneg %p371
        $region70: #{bigram_lm_forward.1} parent=11 // pred_check_branch
          %542 = sbr.rel (%p540) target = $region72
        $region71: #{bigram_lm_forward.1} parent=11 // pred_region
          _
        $region72: #{bigram_lm_forward.1} parent=11 // pred_fallthru
          _
        // Predicated region
        $region73: #{bigram_lm_forward.1} parent=11 // pred_check
          %p543 = pneg %p392
        $region74: #{bigram_lm_forward.1} parent=11 // pred_check_branch
          %545 = sbr.rel (%p543) target = $region76
        $region75: #{bigram_lm_forward.1} parent=11 // pred_region
          _
        $region76: #{bigram_lm_forward.1} parent=11 // pred_fallthru
          _
        // Predicated region
        $region77: #{bigram_lm_forward.1} parent=11 // pred_check
          %p546 = pneg %p413
        $region78: #{bigram_lm_forward.1} parent=11 // pred_check_branch
          %548 = sbr.rel (%p546) target = $region80
        $region79: #{bigram_lm_forward.1} parent=11 // pred_region
          _
        $region80: #{bigram_lm_forward.1} parent=11 // pred_fallthru
          _
      $region12: #{bigram_lm_forward.1} parent=5 // pred_fallthru
        _
      %p549 = scmp.lt.s32.totalorder %s30, 2
      // Predicated region
      $region81: #{bigram_lm_forward.1} parent=5 // pred_check
        %p550 = pneg %p549
      $region82: #{bigram_lm_forward.1} parent=5 // pred_check_branch
        %552 = sbr.rel (%p550) target = $region84
      $region83: #{bigram_lm_forward.1} parent=5 // pred_region
        // Predicated region
        $region85: #{bigram_lm_forward.1} parent=83 // pred_check
          %p553 = pneg %p50
        $region86: #{bigram_lm_forward.1} parent=83 // pred_check_branch
          %555 = sbr.rel (%p553) target = $region88
        $region87: #{bigram_lm_forward.1} parent=83 // pred_region
          %p556 = scmp.lt.s32.totalorder %s30, 1
          %s557 = scalar_select %p556, %s30, 1
          %s558 = smul.addr %s557, 8
          %s559 = smul.addr %s558, 8
          %s560 = scalar_lea.vmem %s0, %s559
        $region88: #{bigram_lm_forward.1} parent=83 // pred_fallthru
          _
      $region84: #{bigram_lm_forward.1} parent=5 // pred_fallthru
        _
      %p561 = scmp.le.s32.totalorder 1, %s30
      %p562 = scmp.lt.s32.totalorder %s30, 3
      %p563 = pnand %p561, %p562
      %p564 = pneg %p563
      // Predicated region
      $region89: #{bigram_lm_forward.1} parent=5 // pred_check
        _
      $region90: #{bigram_lm_forward.1} parent=5 // pred_check_branch
        %566 = sbr.rel (%p563) target = $region92
      $region91: #{bigram_lm_forward.1} parent=5 // pred_region
        %s567 = ssub.s32 %s30, 1
        // Predicated region
        $region93: #{bigram_lm_forward.1} parent=91 // pred_check
          %p568 = pneg %p140
        $region94: #{bigram_lm_forward.1} parent=91 // pred_check_branch
          %570 = sbr.rel (%p568) target = $region96
        $region95: #{bigram_lm_forward.1} parent=91 // pred_region
          %572 = dma.done [#allocation3], 4096
        $region96: #{bigram_lm_forward.1} parent=91 // pred_fallthru
          _
        // Predicated region
        $region97: #{bigram_lm_forward.1} parent=91 // pred_check
          %p573 = pneg %p161
        $region98: #{bigram_lm_forward.1} parent=91 // pred_check_branch
          %575 = sbr.rel (%p573) target = $region100
        $region99: #{bigram_lm_forward.1} parent=91 // pred_region
          %577 = dma.done [#allocation6], 4096
        $region100: #{bigram_lm_forward.1} parent=91 // pred_fallthru
          _
        // Predicated region
        $region101: #{bigram_lm_forward.1} parent=91 // pred_check
          %p578 = pneg %p182
        $region102: #{bigram_lm_forward.1} parent=91 // pred_check_branch
          %580 = sbr.rel (%p578) target = $region104
        $region103: #{bigram_lm_forward.1} parent=91 // pred_region
          %582 = dma.done [#allocation6], 4096
        $region104: #{bigram_lm_forward.1} parent=91 // pred_fallthru
          _
        // Predicated region
        $region105: #{bigram_lm_forward.1} parent=91 // pred_check
          %p583 = pneg %p308
        $region106: #{bigram_lm_forward.1} parent=91 // pred_check_branch
          %585 = sbr.rel (%p583) target = $region108
        $region107: #{bigram_lm_forward.1} parent=91 // pred_region
          %587 = dma.done [#allocation9], 16384
        $region108: #{bigram_lm_forward.1} parent=91 // pred_fallthru
          _
        %p588 = scmp.lt.s32.totalorder %s35, 1
        %s589 = scalar_select %p588, %s35, 1
        %s590 = smul.addr %s589, 8
        %s591 = smul.addr %s590, 8
        %s592 = scalar_lea.vmem %s0, %s591
        %p593 = pneg %p56
        %p594 = pneg %p53
        %p595 = pneg %p77
        %p596 = pneg %p74
        %p597 = pneg %p98
        %p598 = pneg %p95
        %p599 = pneg %p119
        %p600 = pneg %p116
        %p601 = pneg %p140
        %p602 = pneg %p137
        %p603 = pneg %p161
        %p604 = pneg %p158
        %p605 = pneg %p182
        %p606 = pneg %p179
        %p607 = pneg %p203
        %p608 = pneg %p200
        %p609 = pneg %p224
        %p610 = pneg %p221
        %p611 = pneg %p245
        %p612 = pneg %p242
        %p613 = pneg %p266
        %p614 = pneg %p263
        %p615 = pneg %p287
        %p616 = pneg %p284
        %p617 = pneg %p308
        %p618 = pneg %p305
        %p619 = pneg %p329
        %p620 = pneg %p326
        %p621 = pneg %p350
        %p622 = pneg %p347
        %p623 = pneg %p371
        %p624 = pneg %p368
        %p625 = pneg %p392
        %p626 = pneg %p389
        %p627 = pneg %p413
        %p628 = pneg %p410
        %p629 = pneg %p439
        %p630 = pneg %p436
        %s631 = sand.u32 %s426, 1
        %s632 = scalar_lea.sflag [#allocation4], %s631
        %s633 = sand.u32 %s426, 1
        %s634 = smul.addr %s633, 64
        %s635 = scalar_lea.vmem [#allocation10], %s634
        %p636 = scmp.lt.s32.totalorder %s35, 1
        %s637 = scalar_select %p636, %s35, 1
        %s638 = smul.addr %s637, 8
        %s639 = smul.addr %s638, 8
        %s640 = scalar_lea.vmem %s0, %s639
        %v641 = vld [vmem:[%s640] sm:$0xff]
        %v642 = vld [vmem:[%s640 + $0x8] sm:$0xff]
        %v643 = vld [vmem:[%s640 + $0x10] sm:$0xff]
        %v644 = vld [vmem:[%s640 + $0x18] sm:$0xff]
        %v645 = vld [vmem:[%s640 + $0x20] sm:$0xff]
        %v646 = vld [vmem:[%s640 + $0x28] sm:$0xff]
        %v647 = vld [vmem:[%s640 + $0x30] sm:$0xff]
        %v648 = vld [vmem:[%s640 + $0x38] sm:$0xff]
        %v649 = vlaneseq
        %v650 = vshrl.u32 %v649, 7
        %v651 = vadd.s32 %v650, 8
        %v652 = vadd.s32 %v650, 16
        %v653 = vadd.s32 %v650, 24
        %v654 = vadd.s32 %v650, 32
        %v655 = vadd.s32 %v650, 40
        %v656 = vadd.s32 %v650, 48
        %v657 = vadd.s32 %v650, 56
        %v658 = vlaneseq
        %v659 = vand.u32 %v658, 127
        %vm660 = vcmp.le.s32.totalorder %v659, %v650
        %vm661 = vcmp.le.s32.totalorder %v659, %v651
        %vm662 = vcmp.le.s32.totalorder %v659, %v652
        %vm663 = vcmp.le.s32.totalorder %v659, %v653
        %vm664 = vcmp.le.s32.totalorder %v659, %v654
        %vm665 = vcmp.le.s32.totalorder %v659, %v655
        %vm666 = vcmp.le.s32.totalorder %v659, %v656
        %vm667 = vcmp.le.s32.totalorder %v659, %v657
        %v668 = vld [vmem:[%s1] sm:$0x1]
        %v669 = vld [vmem:[%s2] sm:$0x1]
        %670 = vadd.xlane.f32.xlu0 %v641
        %v671 = vpop.xlane.xlu0 %670
        %672 = vadd.xlane.f32.xlu0 %v642
        %v673 = vpop.xlane.xlu0 %672
        %674 = vadd.xlane.f32.xlu0 %v643
        %v675 = vpop.xlane.xlu0 %674
        %676 = vadd.xlane.f32.xlu0 %v644
        %v677 = vpop.xlane.xlu0 %676
        %678 = vadd.xlane.f32.xlu0 %v645
        %v679 = vpop.xlane.xlu0 %678
        %680 = vadd.xlane.f32.xlu0 %v646
        %v681 = vpop.xlane.xlu0 %680
        %682 = vadd.xlane.f32.xlu0 %v647
        %v683 = vpop.xlane.xlu0 %682
        %684 = vadd.xlane.f32.xlu0 %v648
        %v685 = vpop.xlane.xlu0 %684
        %v686 = vrcp.pop 128.0
        %v687 = vmul.f32 128.0, %v686
        %v688 = vsub.f32 1.0, %v687
        %v689 = vmul.f32 %v686, %v688
        %v690 = vadd.f32 %v686, %v689
        %vm691 = vweird.f32 %v686
        %v692 = vsel %vm691, %v686, %v690
        %v693 = vmul.f32 %v671, %v692
        %v694 = vmul.f32 %v673, %v692
        %v695 = vmul.f32 %v675, %v692
        %v696 = vmul.f32 %v677, %v692
        %v697 = vmul.f32 %v679, %v692
        %v698 = vmul.f32 %v681, %v692
        %v699 = vmul.f32 %v683, %v692
        %v700 = vmul.f32 %v685, %v692
        %v701 = vsub.f32 %v641, %v693
        %v702 = vsub.f32 %v642, %v694
        %v703 = vsub.f32 %v643, %v695
        %v704 = vsub.f32 %v644, %v696
        %v705 = vsub.f32 %v645, %v697
        %v706 = vsub.f32 %v646, %v698
        %v707 = vsub.f32 %v647, %v699
        %v708 = vsub.f32 %v648, %v700
        %v709 = vmul.f32 %v701, %v701
        %v710 = vmul.f32 %v702, %v702
        %v711 = vmul.f32 %v703, %v703
        %v712 = vmul.f32 %v704, %v704
        %v713 = vmul.f32 %v705, %v705
        %v714 = vmul.f32 %v706, %v706
        %v715 = vmul.f32 %v707, %v707
        %v716 = vmul.f32 %v708, %v708
        %717 = vadd.xlane.f32.xlu0 %v709
        %v718 = vpop.xlane.xlu0 %717
        %719 = vadd.xlane.f32.xlu0 %v710
        %v720 = vpop.xlane.xlu0 %719
        %721 = vadd.xlane.f32.xlu0 %v711
        %v722 = vpop.xlane.xlu0 %721
        %723 = vadd.xlane.f32.xlu0 %v712
        %v724 = vpop.xlane.xlu0 %723
        %725 = vadd.xlane.f32.xlu0 %v713
        %v726 = vpop.xlane.xlu0 %725
        %727 = vadd.xlane.f32.xlu0 %v714
        %v728 = vpop.xlane.xlu0 %727
        %729 = vadd.xlane.f32.xlu0 %v715
        %v730 = vpop.xlane.xlu0 %729
        %731 = vadd.xlane.f32.xlu0 %v716
        %v732 = vpop.xlane.xlu0 %731
        %v733 = vmul.f32 %v718, %v692
        %v734 = vmul.f32 %v720, %v692
        %v735 = vmul.f32 %v722, %v692
        %v736 = vmul.f32 %v724, %v692
        %v737 = vmul.f32 %v726, %v692
        %v738 = vmul.f32 %v728, %v692
        %v739 = vmul.f32 %v730, %v692
        %v740 = vmul.f32 %v732, %v692
        %v741 = vadd.f32 %v733, 1e-05
        %v742 = vadd.f32 %v734, 1e-05
        %v743 = vadd.f32 %v735, 1e-05
        %v744 = vadd.f32 %v736, 1e-05
        %v745 = vadd.f32 %v737, 1e-05
        %v746 = vadd.f32 %v738, 1e-05
        %v747 = vadd.f32 %v739, 1e-05
        %v748 = vadd.f32 %v740, 1e-05
        %v749 = vrsqrt.pop %v741
        %v750 = vmul.f32 %v749, %v741
        %v751 = vmul.f32 %v750, %v749
        %v752 = vmul.f32 0.5, %v751
        %v753 = vsub.f32 1.5, %v752
        %v754 = vmul.f32 %v749, %v753
        %vm755 = vweird.f32 %v741
        %vm756 = vweird.f32 %v749
        %vm757 = vmor %vm755, %vm756
        %v758 = vsel %vm757, %v749, %v754
        %v759 = vrsqrt.pop %v742
        %v760 = vmul.f32 %v759, %v742
        %v761 = vmul.f32 %v760, %v759
        %v762 = vmul.f32 0.5, %v761
        %v763 = vsub.f32 1.5, %v762
        %v764 = vmul.f32 %v759, %v763
        %vm765 = vweird.f32 %v742
        %vm766 = vweird.f32 %v759
        %vm767 = vmor %vm765, %vm766
        %v768 = vsel %vm767, %v759, %v764
        %v769 = vrsqrt.pop %v743
        %v770 = vmul.f32 %v769, %v743
        %v771 = vmul.f32 %v770, %v769
        %v772 = vmul.f32 0.5, %v771
        %v773 = vsub.f32 1.5, %v772
        %v774 = vmul.f32 %v769, %v773
        %vm775 = vweird.f32 %v743
        %vm776 = vweird.f32 %v769
        %vm777 = vmor %vm775, %vm776
        %v778 = vsel %vm777, %v769, %v774
        %v779 = vrsqrt.pop %v744
        %v780 = vmul.f32 %v779, %v744
        %v781 = vmul.f32 %v780, %v779
        %v782 = vmul.f32 0.5, %v781
        %v783 = vsub.f32 1.5, %v782
        %v784 = vmul.f32 %v779, %v783
        %vm785 = vweird.f32 %v744
        %vm786 = vweird.f32 %v779
        %vm787 = vmor %vm785, %vm786
        %v788 = vsel %vm787, %v779, %v784
        %v789 = vrsqrt.pop %v745
        %v790 = vmul.f32 %v789, %v745
        %v791 = vmul.f32 %v790, %v789
        %v792 = vmul.f32 0.5, %v791
        %v793 = vsub.f32 1.5, %v792
        %v794 = vmul.f32 %v789, %v793
        %vm795 = vweird.f32 %v745
        %vm796 = vweird.f32 %v789
        %vm797 = vmor %vm795, %vm796
        %v798 = vsel %vm797, %v789, %v794
        %v799 = vrsqrt.pop %v746
        %v800 = vmul.f32 %v799, %v746
        %v801 = vmul.f32 %v800, %v799
        %v802 = vmul.f32 0.5, %v801
        %v803 = vsub.f32 1.5, %v802
        %v804 = vmul.f32 %v799, %v803
        %vm805 = vweird.f32 %v746
        %vm806 = vweird.f32 %v799
        %vm807 = vmor %vm805, %vm806
        %v808 = vsel %vm807, %v799, %v804
        %v809 = vrsqrt.pop %v747
        %v810 = vmul.f32 %v809, %v747
        %v811 = vmul.f32 %v810, %v809
        %v812 = vmul.f32 0.5, %v811
        %v813 = vsub.f32 1.5, %v812
        %v814 = vmul.f32 %v809, %v813
        %vm815 = vweird.f32 %v747
        %vm816 = vweird.f32 %v809
        %vm817 = vmor %vm815, %vm816
        %v818 = vsel %vm817, %v809, %v814
        %v819 = vrsqrt.pop %v748
        %v820 = vmul.f32 %v819, %v748
        %v821 = vmul.f32 %v820, %v819
        %v822 = vmul.f32 0.5, %v821
        %v823 = vsub.f32 1.5, %v822
        %v824 = vmul.f32 %v819, %v823
        %vm825 = vweird.f32 %v748
        %vm826 = vweird.f32 %v819
        %vm827 = vmor %vm825, %vm826
        %v828 = vsel %vm827, %v819, %v824
        %v829 = vmul.f32 %v701, %v758
        %v830 = vmul.f32 %v702, %v768
        %v831 = vmul.f32 %v703, %v778
        %v832 = vmul.f32 %v704, %v788
        %v833 = vmul.f32 %v705, %v798
        %v834 = vmul.f32 %v706, %v808
        %v835 = vmul.f32 %v707, %v818
        %v836 = vmul.f32 %v708, %v828
        %v838 = vperm.slane %v668, 0
        %v840 = vmul.f32 %v829, %v838
        %v841 = vmul.f32 %v830, %v838
        %v842 = vmul.f32 %v831, %v838
        %v843 = vmul.f32 %v832, %v838
        %v844 = vmul.f32 %v833, %v838
        %v845 = vmul.f32 %v834, %v838
        %v846 = vmul.f32 %v835, %v838
        %v847 = vmul.f32 %v836, %v838
        %v849 = vperm.slane %v669, 0
        %v851 = vadd.f32 %v840, %v849
        %v852 = vadd.f32 %v841, %v849
        %v853 = vadd.f32 %v842, %v849
        %v854 = vadd.f32 %v843, %v849
        %v855 = vadd.f32 %v844, %v849
        %v856 = vadd.f32 %v845, %v849
        %v857 = vadd.f32 %v846, %v849
        %v858 = vadd.f32 %v847, %v849
        %v859 = vld [vmem:[%s3] sm:$0xff]
        %v860 = vld [vmem:[%s3 + $0x8] sm:$0xff]
        %v861 = vld [vmem:[%s3 + $0x10] sm:$0xff]
        %v862 = vld [vmem:[%s3 + $0x18] sm:$0xff]
        %v863 = vld [vmem:[%s3 + $0x20] sm:$0xff]
        %v864 = vld [vmem:[%s3 + $0x28] sm:$0xff]
        %v865 = vld [vmem:[%s3 + $0x30] sm:$0xff]
        %v866 = vld [vmem:[%s3 + $0x38] sm:$0xff]
        %v867 = vld [vmem:[%s3 + $0x40] sm:$0xff]
        %v868 = vld [vmem:[%s3 + $0x48] sm:$0xff]
        %v869 = vld [vmem:[%s3 + $0x50] sm:$0xff]
        %v870 = vld [vmem:[%s3 + $0x58] sm:$0xff]
        %v871 = vld [vmem:[%s3 + $0x60] sm:$0xff]
        %v872 = vld [vmem:[%s3 + $0x68] sm:$0xff]
        %v873 = vld [vmem:[%s3 + $0x70] sm:$0xff]
        %v874 = vld [vmem:[%s3 + $0x78] sm:$0xff]
        %875 = vmatpush.msra.mxu0 %v874
        %876 = vmatpush.msra.mxu0 %v873
        %877 = vmatpush.msra.mxu0 %v872
        %878 = vmatpush.msra.mxu0 %v871
        %879 = vmatpush.msra.mxu0 %v870
        %880 = vmatpush.msra.mxu0 %v869
        %881 = vmatpush.msra.mxu0 %v868
        %882 = vmatpush.msra.mxu0 %v867
        %883 = vmatpush.msra.mxu0 %v866
        %884 = vmatpush.msra.mxu0 %v865
        %885 = vmatpush.msra.mxu0 %v864
        %886 = vmatpush.msra.mxu0 %v863
        %887 = vmatpush.msra.mxu0 %v862
        %888 = vmatpush.msra.mxu0 %v861
        %889 = vmatpush.msra.mxu0 %v860
        %890 = vmatpush.msra.mxu0 %v859
        %891 = vmatmul.f32.gmra.mxu0 %v851
        %v892 = vpop.f32.mrf.mxu0
        %v893 = vadd.f32 0.0, %v892
        %894 = vmatmul.f32.gmra.mxu0 %v852
        %v895 = vpop.f32.mrf.mxu0
        %v896 = vadd.f32 0.0, %v895
        %897 = vmatmul.f32.gmra.mxu0 %v853
        %v898 = vpop.f32.mrf.mxu0
        %v899 = vadd.f32 0.0, %v898
        %900 = vmatmul.f32.gmra.mxu0 %v854
        %v901 = vpop.f32.mrf.mxu0
        %v902 = vadd.f32 0.0, %v901
        %903 = vmatmul.f32.gmra.mxu0 %v855
        %v904 = vpop.f32.mrf.mxu0
        %v905 = vadd.f32 0.0, %v904
        %906 = vmatmul.f32.gmra.mxu0 %v856
        %v907 = vpop.f32.mrf.mxu0
        %v908 = vadd.f32 0.0, %v907
        %909 = vmatmul.f32.gmra.mxu0 %v857
        %v910 = vpop.f32.mrf.mxu0
        %v911 = vadd.f32 0.0, %v910
        %912 = vmatmul.f32.gmra.mxu0 %v858
        %v913 = vpop.f32.mrf.mxu0
        %v914 = vadd.f32 0.0, %v913
        %915 = vdwg.mxu0
        %v916 = vld [vmem:[#allocation2] sm:$0xff]
        %v917 = vld [vmem:[#allocation2 + $0x8] sm:$0xff]
        %v918 = vld [vmem:[#allocation2 + $0x10] sm:$0xff]
        %v919 = vld [vmem:[#allocation2 + $0x18] sm:$0xff]
        %v920 = vld [vmem:[#allocation2 + $0x20] sm:$0xff]
        %v921 = vld [vmem:[#allocation2 + $0x28] sm:$0xff]
        %v922 = vld [vmem:[#allocation2 + $0x30] sm:$0xff]
        %v923 = vld [vmem:[#allocation2 + $0x38] sm:$0xff]
        %v924 = vld [vmem:[#allocation2 + $0x40] sm:$0xff]
        %v925 = vld [vmem:[#allocation2 + $0x48] sm:$0xff]
        %v926 = vld [vmem:[#allocation2 + $0x50] sm:$0xff]
        %v927 = vld [vmem:[#allocation2 + $0x58] sm:$0xff]
        %v928 = vld [vmem:[#allocation2 + $0x60] sm:$0xff]
        %v929 = vld [vmem:[#allocation2 + $0x68] sm:$0xff]
        %v930 = vld [vmem:[#allocation2 + $0x70] sm:$0xff]
        %v931 = vld [vmem:[#allocation2 + $0x78] sm:$0xff]
        %932 = vmatpush.msra.mxu0 %v931
        %933 = vmatpush.msra.mxu0 %v930
        %934 = vmatpush.msra.mxu0 %v929
        %935 = vmatpush.msra.mxu0 %v928
        %936 = vmatpush.msra.mxu0 %v927
        %937 = vmatpush.msra.mxu0 %v926
        %938 = vmatpush.msra.mxu0 %v925
        %939 = vmatpush.msra.mxu0 %v924
        %940 = vmatpush.msra.mxu0 %v923
        %941 = vmatpush.msra.mxu0 %v922
        %942 = vmatpush.msra.mxu0 %v921
        %943 = vmatpush.msra.mxu0 %v920
        %944 = vmatpush.msra.mxu0 %v919
        %945 = vmatpush.msra.mxu0 %v918
        %946 = vmatpush.msra.mxu0 %v917
        %947 = vmatpush.msra.mxu0 %v916
        %948 = vmatmul.f32.gmra.mxu0 %v851
        %v949 = vpop.f32.mrf.mxu0
        %v950 = vadd.f32 0.0, %v949
        %951 = vmatmul.f32.gmra.mxu0 %v852
        %v952 = vpop.f32.mrf.mxu0
        %v953 = vadd.f32 0.0, %v952
        %954 = vmatmul.f32.gmra.mxu0 %v853
        %v955 = vpop.f32.mrf.mxu0
        %v956 = vadd.f32 0.0, %v955
        %957 = vmatmul.f32.gmra.mxu0 %v854
        %v958 = vpop.f32.mrf.mxu0
        %v959 = vadd.f32 0.0, %v958
        %960 = vmatmul.f32.gmra.mxu0 %v855
        %v961 = vpop.f32.mrf.mxu0
        %v962 = vadd.f32 0.0, %v961
        %963 = vmatmul.f32.gmra.mxu0 %v856
        %v964 = vpop.f32.mrf.mxu0
        %v965 = vadd.f32 0.0, %v964
        %966 = vmatmul.f32.gmra.mxu0 %v857
        %v967 = vpop.f32.mrf.mxu0
        %v968 = vadd.f32 0.0, %v967
        %969 = vmatmul.f32.gmra.mxu0 %v858
        %v970 = vpop.f32.mrf.mxu0
        %v971 = vadd.f32 0.0, %v970
        %972 = vdwg.mxu0
        %v973 = vld [vmem:[#allocation5] sm:$0xff]
        %v974 = vld [vmem:[#allocation5 + $0x8] sm:$0xff]
        %v975 = vld [vmem:[#allocation5 + $0x10] sm:$0xff]
        %v976 = vld [vmem:[#allocation5 + $0x18] sm:$0xff]
        %v977 = vld [vmem:[#allocation5 + $0x20] sm:$0xff]
        %v978 = vld [vmem:[#allocation5 + $0x28] sm:$0xff]
        %v979 = vld [vmem:[#allocation5 + $0x30] sm:$0xff]
        %v980 = vld [vmem:[#allocation5 + $0x38] sm:$0xff]
        %v981 = vld [vmem:[#allocation5 + $0x40] sm:$0xff]
        %v982 = vld [vmem:[#allocation5 + $0x48] sm:$0xff]
        %v983 = vld [vmem:[#allocation5 + $0x50] sm:$0xff]
        %v984 = vld [vmem:[#allocation5 + $0x58] sm:$0xff]
        %v985 = vld [vmem:[#allocation5 + $0x60] sm:$0xff]
        %v986 = vld [vmem:[#allocation5 + $0x68] sm:$0xff]
        %v987 = vld [vmem:[#allocation5 + $0x70] sm:$0xff]
        %v988 = vld [vmem:[#allocation5 + $0x78] sm:$0xff]
        %989 = vmatpush.msra.mxu0 %v988
        %990 = vmatpush.msra.mxu0 %v987
        %991 = vmatpush.msra.mxu0 %v986
        %992 = vmatpush.msra.mxu0 %v985
        %993 = vmatpush.msra.mxu0 %v984
        %994 = vmatpush.msra.mxu0 %v983
        %995 = vmatpush.msra.mxu0 %v982
        %996 = vmatpush.msra.mxu0 %v981
        %997 = vmatpush.msra.mxu0 %v980
        %998 = vmatpush.msra.mxu0 %v979
        %999 = vmatpush.msra.mxu0 %v978
        %1000 = vmatpush.msra.mxu0 %v977
        %1001 = vmatpush.msra.mxu0 %v976
        %1002 = vmatpush.msra.mxu0 %v975
        %1003 = vmatpush.msra.mxu0 %v974
        %1004 = vmatpush.msra.mxu0 %v973
        %1005 = vmatmul.f32.gmra.mxu0 %v851
        %v1006 = vpop.f32.mrf.mxu0
        %v1007 = vadd.f32 0.0, %v1006
        %1008 = vmatmul.f32.gmra.mxu0 %v852
        %v1009 = vpop.f32.mrf.mxu0
        %v1010 = vadd.f32 0.0, %v1009
        %1011 = vmatmul.f32.gmra.mxu0 %v853
        %v1012 = vpop.f32.mrf.mxu0
        %v1013 = vadd.f32 0.0, %v1012
        %1014 = vmatmul.f32.gmra.mxu0 %v854
        %v1015 = vpop.f32.mrf.mxu0
        %v1016 = vadd.f32 0.0, %v1015
        %1017 = vmatmul.f32.gmra.mxu0 %v855
        %v1018 = vpop.f32.mrf.mxu0
        %v1019 = vadd.f32 0.0, %v1018
        %1020 = vmatmul.f32.gmra.mxu0 %v856
        %v1021 = vpop.f32.mrf.mxu0
        %v1022 = vadd.f32 0.0, %v1021
        %1023 = vmatmul.f32.gmra.mxu0 %v857
        %v1024 = vpop.f32.mrf.mxu0
        %v1025 = vadd.f32 0.0, %v1024
        %1026 = vmatmul.f32.gmra.mxu0 %v858
        %v1027 = vpop.f32.mrf.mxu0
        %v1028 = vadd.f32 0.0, %v1027
        %1029 = vdwg.mxu0
        %vm1030 = vcmask 261120
        %v1032 = vsel %vm1030, %v893, 0
        %v1035 = vsel %vm1030, %v896, 0
        %v1038 = vsel %vm1030, %v899, 0
        %v1041 = vsel %vm1030, %v902, 0
        %v1044 = vsel %vm1030, %v905, 0
        %v1047 = vsel %vm1030, %v908, 0
        %v1050 = vsel %vm1030, %v911, 0
        %v1053 = vsel %vm1030, %v914, 0
        %v1056 = vsel %vm1030, %v950, 0
        %v1059 = vsel %vm1030, %v953, 0
        %v1062 = vsel %vm1030, %v956, 0
        %v1065 = vsel %vm1030, %v959, 0
        %v1068 = vsel %vm1030, %v962, 0
        %v1071 = vsel %vm1030, %v965, 0
        %v1074 = vsel %vm1030, %v968, 0
        %v1077 = vsel %vm1030, %v971, 0
        %1079 = vmatpush.xpose.msra.mxu0 0.0
        %1080 = vmatpush.xpose.msra.mxu0 0.0
        %1081 = vmatpush.xpose.msra.mxu0 0.0
        %1082 = vmatpush.xpose.msra.mxu0 0.0
        %1083 = vmatpush.xpose.msra.mxu0 0.0
        %1084 = vmatpush.xpose.msra.mxu0 0.0
        %1085 = vmatpush.xpose.msra.mxu0 0.0
        %1086 = vmatpush.xpose.msra.mxu0 0.0
        %1087 = vmatpush.xpose.msra.mxu0 %v1077
        %1088 = vmatpush.xpose.msra.mxu0 %v1074
        %1089 = vmatpush.xpose.msra.mxu0 %v1071
        %1090 = vmatpush.xpose.msra.mxu0 %v1068
        %1091 = vmatpush.xpose.msra.mxu0 %v1065
        %1092 = vmatpush.xpose.msra.mxu0 %v1062
        %1093 = vmatpush.xpose.msra.mxu0 %v1059
        %1094 = vmatpush.xpose.msra.mxu0 %v1056
        %1095 = vmatmul.f32.gmra.mxu0 %v1032
        %v1096 = vpop.f32.mrf.mxu0
        %v1097 = vadd.f32 0.0, %v1096
        %1098 = vmatmul.f32.gmra.mxu0 %v1035
        %v1099 = vpop.f32.mrf.mxu0
        %v1100 = vadd.f32 0.0, %v1099
        %1101 = vmatmul.f32.gmra.mxu0 %v1038
        %v1102 = vpop.f32.mrf.mxu0
        %v1103 = vadd.f32 0.0, %v1102
        %1104 = vmatmul.f32.gmra.mxu0 %v1041
        %v1105 = vpop.f32.mrf.mxu0
        %v1106 = vadd.f32 0.0, %v1105
        %1107 = vmatmul.f32.gmra.mxu0 %v1044
        %v1108 = vpop.f32.mrf.mxu0
        %v1109 = vadd.f32 0.0, %v1108
        %1110 = vmatmul.f32.gmra.mxu0 %v1047
        %v1111 = vpop.f32.mrf.mxu0
        %v1112 = vadd.f32 0.0, %v1111
        %1113 = vmatmul.f32.gmra.mxu0 %v1050
        %v1114 = vpop.f32.mrf.mxu0
        %v1115 = vadd.f32 0.0, %v1114
        %1116 = vmatmul.f32.gmra.mxu0 %v1053
        %v1117 = vpop.f32.mrf.mxu0
        %v1118 = vadd.f32 0.0, %v1117
        %1119 = vdwg.mxu0
        %v1120 = vmul.f32 %v1097, 0.088388346
        %v1121 = vmul.f32 %v1100, 0.088388346
        %v1122 = vmul.f32 %v1103, 0.088388346
        %v1123 = vmul.f32 %v1106, 0.088388346
        %v1124 = vmul.f32 %v1109, 0.088388346
        %v1125 = vmul.f32 %v1112, 0.088388346
        %v1126 = vmul.f32 %v1115, 0.088388346
        %v1127 = vmul.f32 %v1118, 0.088388346
        %v1128 = vsel %vm660, %v1120, -inf
        %v1129 = vsel %vm661, %v1121, -inf
        %v1130 = vsel %vm662, %v1122, -inf
        %v1131 = vsel %vm663, %v1123, -inf
        %v1132 = vsel %vm664, %v1124, -inf
        %v1133 = vsel %vm665, %v1125, -inf
        %v1134 = vsel %vm666, %v1126, -inf
        %v1135 = vsel %vm667, %v1127, -inf
        %vm1136 = vcmask 523264
        %v1137 = vsel %vm1136, %v1128, -inf
        %1138 = vmax.xlane.f32.xlu0 %v1137
        %v1139 = vpop.xlane.xlu0 %1138
        %v1140 = vsel %vm1136, %v1129, -inf
        %1141 = vmax.xlane.f32.xlu0 %v1140
        %v1142 = vpop.xlane.xlu0 %1141
        %v1143 = vsel %vm1136, %v1130, -inf
        %1144 = vmax.xlane.f32.xlu0 %v1143
        %v1145 = vpop.xlane.xlu0 %1144
        %v1146 = vsel %vm1136, %v1131, -inf
        %1147 = vmax.xlane.f32.xlu0 %v1146
        %v1148 = vpop.xlane.xlu0 %1147
        %v1149 = vsel %vm1136, %v1132, -inf
        %1150 = vmax.xlane.f32.xlu0 %v1149
        %v1151 = vpop.xlane.xlu0 %1150
        %v1152 = vsel %vm1136, %v1133, -inf
        %1153 = vmax.xlane.f32.xlu0 %v1152
        %v1154 = vpop.xlane.xlu0 %1153
        %v1155 = vsel %vm1136, %v1134, -inf
        %1156 = vmax.xlane.f32.xlu0 %v1155
        %v1157 = vpop.xlane.xlu0 %1156
        %v1158 = vsel %vm1136, %v1135, -inf
        %1159 = vmax.xlane.f32.xlu0 %v1158
        %v1160 = vpop.xlane.xlu0 %1159
        %v1161 = vsub.f32 %v1128, %v1139
        %v1162 = vsub.f32 %v1129, %v1142
        %v1163 = vsub.f32 %v1130, %v1145
        %v1164 = vsub.f32 %v1131, %v1148
        %v1165 = vsub.f32 %v1132, %v1151
        %v1166 = vsub.f32 %v1133, %v1154
        %v1167 = vsub.f32 %v1134, %v1157
        %v1168 = vsub.f32 %v1135, %v1160
        %v1169 = vmul.f32 %v1161, 1.442695
        %v1170 = vpow.pop %v1169
        %v1171 = vmul.f32 %v1162, 1.442695
        %v1172 = vpow.pop %v1171
        %v1173 = vmul.f32 %v1163, 1.442695
        %v1174 = vpow.pop %v1173
        %v1175 = vmul.f32 %v1164, 1.442695
        %v1176 = vpow.pop %v1175
        %v1177 = vmul.f32 %v1165, 1.442695
        %v1178 = vpow.pop %v1177
        %v1179 = vmul.f32 %v1166, 1.442695
        %v1180 = vpow.pop %v1179
        %v1181 = vmul.f32 %v1167, 1.442695
        %v1182 = vpow.pop %v1181
        %v1183 = vmul.f32 %v1168, 1.442695
        %v1184 = vpow.pop %v1183
        %v1185 = vsel %vm1136, %v1170, 0.0
        %1186 = vadd.xlane.f32.xlu0 %v1185
        %v1187 = vpop.xlane.xlu0 %1186
        %v1188 = vsel %vm1136, %v1172, 0.0
        %1189 = vadd.xlane.f32.xlu0 %v1188
        %v1190 = vpop.xlane.xlu0 %1189
        %v1191 = vsel %vm1136, %v1174, 0.0
        %1192 = vadd.xlane.f32.xlu0 %v1191
        %v1193 = vpop.xlane.xlu0 %1192
        %v1194 = vsel %vm1136, %v1176, 0.0
        %1195 = vadd.xlane.f32.xlu0 %v1194
        %v1196 = vpop.xlane.xlu0 %1195
        %v1197 = vsel %vm1136, %v1178, 0.0
        %1198 = vadd.xlane.f32.xlu0 %v1197
        %v1199 = vpop.xlane.xlu0 %1198
        %v1200 = vsel %vm1136, %v1180, 0.0
        %1201 = vadd.xlane.f32.xlu0 %v1200
        %v1202 = vpop.xlane.xlu0 %1201
        %v1203 = vsel %vm1136, %v1182, 0.0
        %1204 = vadd.xlane.f32.xlu0 %v1203
        %v1205 = vpop.xlane.xlu0 %1204
        %v1206 = vsel %vm1136, %v1184, 0.0
        %1207 = vadd.xlane.f32.xlu0 %v1206
        %v1208 = vpop.xlane.xlu0 %1207
        %v1209 = vrcp.pop %v1187
        %v1210 = vrcp.pop %v1190
        %v1211 = vrcp.pop %v1193
        %v1212 = vrcp.pop %v1196
        %v1213 = vrcp.pop %v1199
        %v1214 = vrcp.pop %v1202
        %v1215 = vrcp.pop %v1205
        %v1216 = vrcp.pop %v1208
        %v1217 = vmul.f32 %v1170, %v1209
        %v1218 = vmul.f32 %v1172, %v1210
        %v1219 = vmul.f32 %v1174, %v1211
        %v1220 = vmul.f32 %v1176, %v1212
        %v1221 = vmul.f32 %v1178, %v1213
        %v1222 = vmul.f32 %v1180, %v1214
        %v1223 = vmul.f32 %v1182, %v1215
        %v1224 = vmul.f32 %v1184, %v1216
        %v1226 = vsel %vm1136, %v1217, 0
        %v1229 = vsel %vm1136, %v1218, 0
        %v1232 = vsel %vm1136, %v1219, 0
        %v1235 = vsel %vm1136, %v1220, 0
        %v1238 = vsel %vm1136, %v1221, 0
        %v1241 = vsel %vm1136, %v1222, 0
        %v1244 = vsel %vm1136, %v1223, 0
        %v1247 = vsel %vm1136, %v1224, 0
        %1249 = vmatpush.msra.mxu0 0.0
        %1250 = vmatpush.msra.mxu0 0.0
        %1251 = vmatpush.msra.mxu0 0.0
        %1252 = vmatpush.msra.mxu0 0.0
        %1253 = vmatpush.msra.mxu0 0.0
        %1254 = vmatpush.msra.mxu0 0.0
        %1255 = vmatpush.msra.mxu0 0.0
        %1256 = vmatpush.msra.mxu0 0.0
        %1257 = vmatpush.msra.mxu0 %v1028
        %1258 = vmatpush.msra.mxu0 %v1025
        %1259 = vmatpush.msra.mxu0 %v1022
        %1260 = vmatpush.msra.mxu0 %v1019
        %1261 = vmatpush.msra.mxu0 %v1016
        %1262 = vmatpush.msra.mxu0 %v1013
        %1263 = vmatpush.msra.mxu0 %v1010
        %1264 = vmatpush.msra.mxu0 %v1007
        %1265 = vmatmul.f32.gmra.mxu0 %v1226
        %v1266 = vpop.f32.mrf.mxu0
        %v1267 = vadd.f32 0.0, %v1266
        %1268 = vmatmul.f32.gmra.mxu0 %v1229
        %v1269 = vpop.f32.mrf.mxu0
        %v1270 = vadd.f32 0.0, %v1269
        %1271 = vmatmul.f32.gmra.mxu0 %v1232
        %v1272 = vpop.f32.mrf.mxu0
        %v1273 = vadd.f32 0.0, %v1272
        %1274 = vmatmul.f32.gmra.mxu0 %v1235
        %v1275 = vpop.f32.mrf.mxu0
        %v1276 = vadd.f32 0.0, %v1275
        %1277 = vmatmul.f32.gmra.mxu0 %v1238
        %v1278 = vpop.f32.mrf.mxu0
        %v1279 = vadd.f32 0.0, %v1278
        %1280 = vmatmul.f32.gmra.mxu0 %v1241
        %v1281 = vpop.f32.mrf.mxu0
        %v1282 = vadd.f32 0.0, %v1281
        %1283 = vmatmul.f32.gmra.mxu0 %v1244
        %v1284 = vpop.f32.mrf.mxu0
        %v1285 = vadd.f32 0.0, %v1284
        %1286 = vmatmul.f32.gmra.mxu0 %v1247
        %v1287 = vpop.f32.mrf.mxu0
        %v1288 = vadd.f32 0.0, %v1287
        %1289 = vdwg.mxu0
        %v1290 = vld [vmem:[#allocation7] sm:$0xff]
        %v1291 = vld [vmem:[#allocation7 + $0x8] sm:$0xff]
        %v1292 = vld [vmem:[#allocation7 + $0x10] sm:$0xff]
        %v1293 = vld [vmem:[#allocation7 + $0x18] sm:$0xff]
        %1294 = vrot.lane.b32.xlu0 %v893, 96
        %v1295 = vpop.permute.xlu0 %1294
        %1296 = vrot.lane.b32.xlu0 %v896, 96
        %v1297 = vpop.permute.xlu0 %1296
        %1298 = vrot.lane.b32.xlu0 %v899, 96
        %v1299 = vpop.permute.xlu0 %1298
        %1300 = vrot.lane.b32.xlu0 %v902, 96
        %v1301 = vpop.permute.xlu0 %1300
        %1302 = vrot.lane.b32.xlu0 %v905, 96
        %v1303 = vpop.permute.xlu0 %1302
        %1304 = vrot.lane.b32.xlu0 %v908, 96
        %v1305 = vpop.permute.xlu0 %1304
        %1306 = vrot.lane.b32.xlu0 %v911, 96
        %v1307 = vpop.permute.xlu0 %1306
        %1308 = vrot.lane.b32.xlu0 %v914, 96
        %v1309 = vpop.permute.xlu0 %1308
        %1310 = vrot.lane.b32.xlu0 %v950, 96
        %v1311 = vpop.permute.xlu0 %1310
        %1312 = vrot.lane.b32.xlu0 %v953, 96
        %v1313 = vpop.permute.xlu0 %1312
        %1314 = vrot.lane.b32.xlu0 %v956, 96
        %v1315 = vpop.permute.xlu0 %1314
        %1316 = vrot.lane.b32.xlu0 %v959, 96
        %v1317 = vpop.permute.xlu0 %1316
        %1318 = vrot.lane.b32.xlu0 %v962, 96
        %v1319 = vpop.permute.xlu0 %1318
        %1320 = vrot.lane.b32.xlu0 %v965, 96
        %v1321 = vpop.permute.xlu0 %1320
        %1322 = vrot.lane.b32.xlu0 %v968, 96
        %v1323 = vpop.permute.xlu0 %1322
        %1324 = vrot.lane.b32.xlu0 %v971, 96
        %v1325 = vpop.permute.xlu0 %1324
        %v1326 = vsel %vm1030, %v1295, 0
        %v1328 = vsel %vm1030, %v1297, 0
        %v1330 = vsel %vm1030, %v1299, 0
        %v1332 = vsel %vm1030, %v1301, 0
        %v1334 = vsel %vm1030, %v1303, 0
        %v1336 = vsel %vm1030, %v1305, 0
        %v1338 = vsel %vm1030, %v1307, 0
        %v1340 = vsel %vm1030, %v1309, 0
        %v1342 = vsel %vm1030, %v1311, 0
        %v1344 = vsel %vm1030, %v1313, 0
        %v1346 = vsel %vm1030, %v1315, 0
        %v1348 = vsel %vm1030, %v1317, 0
        %v1350 = vsel %vm1030, %v1319, 0
        %v1352 = vsel %vm1030, %v1321, 0
        %v1354 = vsel %vm1030, %v1323, 0
        %v1356 = vsel %vm1030, %v1325, 0
        %1358 = vmatpush.xpose.msra.mxu0 0.0
        %1359 = vmatpush.xpose.msra.mxu0 0.0
        %1360 = vmatpush.xpose.msra.mxu0 0.0
        %1361 = vmatpush.xpose.msra.mxu0 0.0
        %1362 = vmatpush.xpose.msra.mxu0 0.0
        %1363 = vmatpush.xpose.msra.mxu0 0.0
        %1364 = vmatpush.xpose.msra.mxu0 0.0
        %1365 = vmatpush.xpose.msra.mxu0 0.0
        %1366 = vmatpush.xpose.msra.mxu0 %v1356
        %1367 = vmatpush.xpose.msra.mxu0 %v1354
        %1368 = vmatpush.xpose.msra.mxu0 %v1352
        %1369 = vmatpush.xpose.msra.mxu0 %v1350
        %1370 = vmatpush.xpose.msra.mxu0 %v1348
        %1371 = vmatpush.xpose.msra.mxu0 %v1346
        %1372 = vmatpush.xpose.msra.mxu0 %v1344
        %1373 = vmatpush.xpose.msra.mxu0 %v1342
        %1374 = vmatmul.f32.gmra.mxu0 %v1326
        %v1375 = vpop.f32.mrf.mxu0
        %v1376 = vadd.f32 0.0, %v1375
        %1377 = vmatmul.f32.gmra.mxu0 %v1328
        %v1378 = vpop.f32.mrf.mxu0
        %v1379 = vadd.f32 0.0, %v1378
        %1380 = vmatmul.f32.gmra.mxu0 %v1330
        %v1381 = vpop.f32.mrf.mxu0
        %v1382 = vadd.f32 0.0, %v1381
        %1383 = vmatmul.f32.gmra.mxu0 %v1332
        %v1384 = vpop.f32.mrf.mxu0
        %v1385 = vadd.f32 0.0, %v1384
        %1386 = vmatmul.f32.gmra.mxu0 %v1334
        %v1387 = vpop.f32.mrf.mxu0
        %v1388 = vadd.f32 0.0, %v1387
        %1389 = vmatmul.f32.gmra.mxu0 %v1336
        %v1390 = vpop.f32.mrf.mxu0
        %v1391 = vadd.f32 0.0, %v1390
        %1392 = vmatmul.f32.gmra.mxu0 %v1338
        %v1393 = vpop.f32.mrf.mxu0
        %v1394 = vadd.f32 0.0, %v1393
        %1395 = vmatmul.f32.gmra.mxu0 %v1340
        %v1396 = vpop.f32.mrf.mxu0
        %v1397 = vadd.f32 0.0, %v1396
        %1398 = vdwg.mxu0
        %v1399 = vmul.f32 %v1376, 0.088388346
        %v1400 = vmul.f32 %v1379, 0.088388346
        %v1401 = vmul.f32 %v1382, 0.088388346
        %v1402 = vmul.f32 %v1385, 0.088388346
        %v1403 = vmul.f32 %v1388, 0.088388346
        %v1404 = vmul.f32 %v1391, 0.088388346
        %v1405 = vmul.f32 %v1394, 0.088388346
        %v1406 = vmul.f32 %v1397, 0.088388346
        %v1407 = vsel %vm660, %v1399, -inf
        %v1408 = vsel %vm661, %v1400, -inf
        %v1409 = vsel %vm662, %v1401, -inf
        %v1410 = vsel %vm663, %v1402, -inf
        %v1411 = vsel %vm664, %v1403, -inf
        %v1412 = vsel %vm665, %v1404, -inf
        %v1413 = vsel %vm666, %v1405, -inf
        %v1414 = vsel %vm667, %v1406, -inf
        %v1415 = vsel %vm1136, %v1407, -inf
        %1416 = vmax.xlane.f32.xlu0 %v1415
        %v1417 = vpop.xlane.xlu0 %1416
        %v1418 = vsel %vm1136, %v1408, -inf
        %1419 = vmax.xlane.f32.xlu0 %v1418
        %v1420 = vpop.xlane.xlu0 %1419
        %v1421 = vsel %vm1136, %v1409, -inf
        %1422 = vmax.xlane.f32.xlu0 %v1421
        %v1423 = vpop.xlane.xlu0 %1422
        %v1424 = vsel %vm1136, %v1410, -inf
        %1425 = vmax.xlane.f32.xlu0 %v1424
        %v1426 = vpop.xlane.xlu0 %1425
        %v1427 = vsel %vm1136, %v1411, -inf
        %1428 = vmax.xlane.f32.xlu0 %v1427
        %v1429 = vpop.xlane.xlu0 %1428
        %v1430 = vsel %vm1136, %v1412, -inf
        %1431 = vmax.xlane.f32.xlu0 %v1430
        %v1432 = vpop.xlane.xlu0 %1431
        %v1433 = vsel %vm1136, %v1413, -inf
        %1434 = vmax.xlane.f32.xlu0 %v1433
        %v1435 = vpop.xlane.xlu0 %1434
        %v1436 = vsel %vm1136, %v1414, -inf
        %1437 = vmax.xlane.f32.xlu0 %v1436
        %v1438 = vpop.xlane.xlu0 %1437
        %v1439 = vsub.f32 %v1407, %v1417
        %v1440 = vsub.f32 %v1408, %v1420
        %v1441 = vsub.f32 %v1409, %v1423
        %v1442 = vsub.f32 %v1410, %v1426
        %v1443 = vsub.f32 %v1411, %v1429
        %v1444 = vsub.f32 %v1412, %v1432
        %v1445 = vsub.f32 %v1413, %v1435
        %v1446 = vsub.f32 %v1414, %v1438
        %v1447 = vmul.f32 %v1439, 1.442695
        %v1448 = vpow.pop %v1447
        %v1449 = vmul.f32 %v1440, 1.442695
        %v1450 = vpow.pop %v1449
        %v1451 = vmul.f32 %v1441, 1.442695
        %v1452 = vpow.pop %v1451
        %v1453 = vmul.f32 %v1442, 1.442695
        %v1454 = vpow.pop %v1453
        %v1455 = vmul.f32 %v1443, 1.442695
        %v1456 = vpow.pop %v1455
        %v1457 = vmul.f32 %v1444, 1.442695
        %v1458 = vpow.pop %v1457
        %v1459 = vmul.f32 %v1445, 1.442695
        %v1460 = vpow.pop %v1459
        %v1461 = vmul.f32 %v1446, 1.442695
        %v1462 = vpow.pop %v1461
        %v1463 = vsel %vm1136, %v1448, 0.0
        %1464 = vadd.xlane.f32.xlu0 %v1463
        %v1465 = vpop.xlane.xlu0 %1464
        %v1466 = vsel %vm1136, %v1450, 0.0
        %1467 = vadd.xlane.f32.xlu0 %v1466
        %v1468 = vpop.xlane.xlu0 %1467
        %v1469 = vsel %vm1136, %v1452, 0.0
        %1470 = vadd.xlane.f32.xlu0 %v1469
        %v1471 = vpop.xlane.xlu0 %1470
        %v1472 = vsel %vm1136, %v1454, 0.0
        %1473 = vadd.xlane.f32.xlu0 %v1472
        %v1474 = vpop.xlane.xlu0 %1473
        %v1475 = vsel %vm1136, %v1456, 0.0
        %1476 = vadd.xlane.f32.xlu0 %v1475
        %v1477 = vpop.xlane.xlu0 %1476
        %v1478 = vsel %vm1136, %v1458, 0.0
        %1479 = vadd.xlane.f32.xlu0 %v1478
        %v1480 = vpop.xlane.xlu0 %1479
        %v1481 = vsel %vm1136, %v1460, 0.0
        %1482 = vadd.xlane.f32.xlu0 %v1481
        %v1483 = vpop.xlane.xlu0 %1482
        %v1484 = vsel %vm1136, %v1462, 0.0
        %1485 = vadd.xlane.f32.xlu0 %v1484
        %v1486 = vpop.xlane.xlu0 %1485
        %v1487 = vrcp.pop %v1465
        %v1488 = vrcp.pop %v1468
        %v1489 = vrcp.pop %v1471
        %v1490 = vrcp.pop %v1474
        %v1491 = vrcp.pop %v1477
        %v1492 = vrcp.pop %v1480
        %v1493 = vrcp.pop %v1483
        %v1494 = vrcp.pop %v1486
        %v1495 = vmul.f32 %v1448, %v1487
        %v1496 = vmul.f32 %v1450, %v1488
        %v1497 = vmul.f32 %v1452, %v1489
        %v1498 = vmul.f32 %v1454, %v1490
        %v1499 = vmul.f32 %v1456, %v1491
        %v1500 = vmul.f32 %v1458, %v1492
        %v1501 = vmul.f32 %v1460, %v1493
        %v1502 = vmul.f32 %v1462, %v1494
        %1511 = vrot.lane.b32.xlu0 %v1007, 96
        %v1512 = vpop.permute.xlu0 %1511
        %1513 = vrot.lane.b32.xlu0 %v1010, 96
        %v1514 = vpop.permute.xlu0 %1513
        %1515 = vrot.lane.b32.xlu0 %v1013, 96
        %v1516 = vpop.permute.xlu0 %1515
        %1517 = vrot.lane.b32.xlu0 %v1016, 96
        %v1518 = vpop.permute.xlu0 %1517
        %1519 = vrot.lane.b32.xlu0 %v1019, 96
        %v1520 = vpop.permute.xlu0 %1519
        %1521 = vrot.lane.b32.xlu0 %v1022, 96
        %v1522 = vpop.permute.xlu0 %1521
        %1523 = vrot.lane.b32.xlu0 %v1025, 96
        %v1524 = vpop.permute.xlu0 %1523
        %1525 = vrot.lane.b32.xlu0 %v1028, 96
        %v1526 = vpop.permute.xlu0 %1525
        %v1536 = vsel %vm1136, %v1495, 0
        %v1539 = vsel %vm1136, %v1496, 0
        %v1542 = vsel %vm1136, %v1497, 0
        %v1545 = vsel %vm1136, %v1498, 0
        %v1548 = vsel %vm1136, %v1499, 0
        %v1551 = vsel %vm1136, %v1500, 0
        %v1554 = vsel %vm1136, %v1501, 0
        %v1557 = vsel %vm1136, %v1502, 0
        %1559 = vmatpush.msra.mxu0 0.0
        %1560 = vmatpush.msra.mxu0 0.0
        %1561 = vmatpush.msra.mxu0 0.0
        %1562 = vmatpush.msra.mxu0 0.0
        %1563 = vmatpush.msra.mxu0 0.0
        %1564 = vmatpush.msra.mxu0 0.0
        %1565 = vmatpush.msra.mxu0 0.0
        %1566 = vmatpush.msra.mxu0 0.0
        %1567 = vmatpush.msra.mxu0 %v1526
        %1568 = vmatpush.msra.mxu0 %v1524
        %1569 = vmatpush.msra.mxu0 %v1522
        %1570 = vmatpush.msra.mxu0 %v1520
        %1571 = vmatpush.msra.mxu0 %v1518
        %1572 = vmatpush.msra.mxu0 %v1516
        %1573 = vmatpush.msra.mxu0 %v1514
        %1574 = vmatpush.msra.mxu0 %v1512
        %1575 = vmatmul.f32.gmra.mxu0 %v1536
        %v1576 = vpop.f32.mrf.mxu0
        %v1577 = vadd.f32 0.0, %v1576
        %1578 = vmatmul.f32.gmra.mxu0 %v1539
        %v1579 = vpop.f32.mrf.mxu0
        %v1580 = vadd.f32 0.0, %v1579
        %1581 = vmatmul.f32.gmra.mxu0 %v1542
        %v1582 = vpop.f32.mrf.mxu0
        %v1583 = vadd.f32 0.0, %v1582
        %1584 = vmatmul.f32.gmra.mxu0 %v1545
        %v1585 = vpop.f32.mrf.mxu0
        %v1586 = vadd.f32 0.0, %v1585
        %1587 = vmatmul.f32.gmra.mxu0 %v1548
        %v1588 = vpop.f32.mrf.mxu0
        %v1589 = vadd.f32 0.0, %v1588
        %1590 = vmatmul.f32.gmra.mxu0 %v1551
        %v1591 = vpop.f32.mrf.mxu0
        %v1592 = vadd.f32 0.0, %v1591
        %1593 = vmatmul.f32.gmra.mxu0 %v1554
        %v1594 = vpop.f32.mrf.mxu0
        %v1595 = vadd.f32 0.0, %v1594
        %1596 = vmatmul.f32.gmra.mxu0 %v1557
        %v1597 = vpop.f32.mrf.mxu0
        %v1598 = vadd.f32 0.0, %v1597
        %1599 = vdwg.mxu0
        %v1600 = vld [vmem:[#allocation7 + $0x20] sm:$0xff]
        %v1601 = vld [vmem:[#allocation7 + $0x28] sm:$0xff]
        %v1602 = vld [vmem:[#allocation7 + $0x30] sm:$0xff]
        %v1603 = vld [vmem:[#allocation7 + $0x38] sm:$0xff]
        %v1605 = vsel %vm1030, %v1577, 0
        %v1608 = vsel %vm1030, %v1580, 0
        %v1611 = vsel %vm1030, %v1583, 0
        %v1614 = vsel %vm1030, %v1586, 0
        %v1617 = vsel %vm1030, %v1589, 0
        %v1620 = vsel %vm1030, %v1592, 0
        %v1623 = vsel %vm1030, %v1595, 0
        %v1626 = vsel %vm1030, %v1598, 0
        %1628 = vmatpush.msra.mxu0 0.0
        %1629 = vmatpush.msra.mxu0 0.0
        %1630 = vmatpush.msra.mxu0 0.0
        %1631 = vmatpush.msra.mxu0 0.0
        %1632 = vmatpush.msra.mxu0 0.0
        %1633 = vmatpush.msra.mxu0 0.0
        %1634 = vmatpush.msra.mxu0 0.0
        %1635 = vmatpush.msra.mxu0 0.0
        %1636 = vmatpush.msra.mxu0 0.0
        %1637 = vmatpush.msra.mxu0 0.0
        %1638 = vmatpush.msra.mxu0 0.0
        %1639 = vmatpush.msra.mxu0 0.0
        %1640 = vmatpush.msra.mxu0 %v1603
        %1641 = vmatpush.msra.mxu0 %v1602
        %1642 = vmatpush.msra.mxu0 %v1601
        %1643 = vmatpush.msra.mxu0 %v1600
        %1644 = vmatmul.f32.gmra.mxu0 %v1605
        %v1645 = vpop.f32.mrf.mxu0
        %v1646 = vadd.f32 0.0, %v1645
        %1647 = vmatmul.f32.gmra.mxu0 %v1608
        %v1648 = vpop.f32.mrf.mxu0
        %v1649 = vadd.f32 0.0, %v1648
        %1650 = vmatmul.f32.gmra.mxu0 %v1611
        %v1651 = vpop.f32.mrf.mxu0
        %v1652 = vadd.f32 0.0, %v1651
        %1653 = vmatmul.f32.gmra.mxu0 %v1614
        %v1654 = vpop.f32.mrf.mxu0
        %v1655 = vadd.f32 0.0, %v1654
        %1656 = vmatmul.f32.gmra.mxu0 %v1617
        %v1657 = vpop.f32.mrf.mxu0
        %v1658 = vadd.f32 0.0, %v1657
        %1659 = vmatmul.f32.gmra.mxu0 %v1620
        %v1660 = vpop.f32.mrf.mxu0
        %v1661 = vadd.f32 0.0, %v1660
        %1662 = vmatmul.f32.gmra.mxu0 %v1623
        %v1663 = vpop.f32.mrf.mxu0
        %v1664 = vadd.f32 0.0, %v1663
        %1665 = vmatmul.f32.gmra.mxu0 %v1626
        %v1666 = vpop.f32.mrf.mxu0
        %v1667 = vadd.f32 0.0, %v1666
        %1668 = vdwg.mxu0
        %v1670 = vsel %vm1030, %v1267, 0
        %v1673 = vsel %vm1030, %v1270, 0
        %v1676 = vsel %vm1030, %v1273, 0
        %v1679 = vsel %vm1030, %v1276, 0
        %v1682 = vsel %vm1030, %v1279, 0
        %v1685 = vsel %vm1030, %v1282, 0
        %v1688 = vsel %vm1030, %v1285, 0
        %v1691 = vsel %vm1030, %v1288, 0
        %1693 = vmatpush.msra.mxu0 0.0
        %1694 = vmatpush.msra.mxu0 0.0
        %1695 = vmatpush.msra.mxu0 0.0
        %1696 = vmatpush.msra.mxu0 0.0
        %1697 = vmatpush.msra.mxu0 0.0
        %1698 = vmatpush.msra.mxu0 0.0
        %1699 = vmatpush.msra.mxu0 0.0
        %1700 = vmatpush.msra.mxu0 0.0
        %1701 = vmatpush.msra.mxu0 0.0
        %1702 = vmatpush.msra.mxu0 0.0
        %1703 = vmatpush.msra.mxu0 0.0
        %1704 = vmatpush.msra.mxu0 0.0
        %1705 = vmatpush.msra.mxu0 %v1293
        %1706 = vmatpush.msra.mxu0 %v1292
        %1707 = vmatpush.msra.mxu0 %v1291
        %1708 = vmatpush.msra.mxu0 %v1290
        %1709 = vmatmul.f32.gmra.mxu0 %v1670
        %v1710 = vpop.f32.mrf.mxu0
        %v1711 = vadd.f32 %v1646, %v1710
        %1712 = vmatmul.f32.gmra.mxu0 %v1673
        %v1713 = vpop.f32.mrf.mxu0
        %v1714 = vadd.f32 %v1649, %v1713
        %1715 = vmatmul.f32.gmra.mxu0 %v1676
        %v1716 = vpop.f32.mrf.mxu0
        %v1717 = vadd.f32 %v1652, %v1716
        %1718 = vmatmul.f32.gmra.mxu0 %v1679
        %v1719 = vpop.f32.mrf.mxu0
        %v1720 = vadd.f32 %v1655, %v1719
        %1721 = vmatmul.f32.gmra.mxu0 %v1682
        %v1722 = vpop.f32.mrf.mxu0
        %v1723 = vadd.f32 %v1658, %v1722
        %1724 = vmatmul.f32.gmra.mxu0 %v1685
        %v1725 = vpop.f32.mrf.mxu0
        %v1726 = vadd.f32 %v1661, %v1725
        %1727 = vmatmul.f32.gmra.mxu0 %v1688
        %v1728 = vpop.f32.mrf.mxu0
        %v1729 = vadd.f32 %v1664, %v1728
        %1730 = vmatmul.f32.gmra.mxu0 %v1691
        %v1731 = vpop.f32.mrf.mxu0
        %v1732 = vadd.f32 %v1667, %v1731
        %1733 = vdwg.mxu0
        %1734 = vrot.lane.b32.xlu0 %v893, 64
        %v1735 = vpop.permute.xlu0 %1734
        %1736 = vrot.lane.b32.xlu0 %v896, 64
        %v1737 = vpop.permute.xlu0 %1736
        %1738 = vrot.lane.b32.xlu0 %v899, 64
        %v1739 = vpop.permute.xlu0 %1738
        %1740 = vrot.lane.b32.xlu0 %v902, 64
        %v1741 = vpop.permute.xlu0 %1740
        %1742 = vrot.lane.b32.xlu0 %v905, 64
        %v1743 = vpop.permute.xlu0 %1742
        %1744 = vrot.lane.b32.xlu0 %v908, 64
        %v1745 = vpop.permute.xlu0 %1744
        %1746 = vrot.lane.b32.xlu0 %v911, 64
        %v1747 = vpop.permute.xlu0 %1746
        %1748 = vrot.lane.b32.xlu0 %v914, 64
        %v1749 = vpop.permute.xlu0 %1748
        %1750 = vrot.lane.b32.xlu0 %v950, 64
        %v1751 = vpop.permute.xlu0 %1750
        %1752 = vrot.lane.b32.xlu0 %v953, 64
        %v1753 = vpop.permute.xlu0 %1752
        %1754 = vrot.lane.b32.xlu0 %v956, 64
        %v1755 = vpop.permute.xlu0 %1754
        %1756 = vrot.lane.b32.xlu0 %v959, 64
        %v1757 = vpop.permute.xlu0 %1756
        %1758 = vrot.lane.b32.xlu0 %v962, 64
        %v1759 = vpop.permute.xlu0 %1758
        %1760 = vrot.lane.b32.xlu0 %v965, 64
        %v1761 = vpop.permute.xlu0 %1760
        %1762 = vrot.lane.b32.xlu0 %v968, 64
        %v1763 = vpop.permute.xlu0 %1762
        %1764 = vrot.lane.b32.xlu0 %v971, 64
        %v1765 = vpop.permute.xlu0 %1764
        %v1766 = vsel %vm1030, %v1735, 0
        %v1768 = vsel %vm1030, %v1737, 0
        %v1770 = vsel %vm1030, %v1739, 0
        %v1772 = vsel %vm1030, %v1741, 0
        %v1774 = vsel %vm1030, %v1743, 0
        %v1776 = vsel %vm1030, %v1745, 0
        %v1778 = vsel %vm1030, %v1747, 0
        %v1780 = vsel %vm1030, %v1749, 0
        %v1782 = vsel %vm1030, %v1751, 0
        %v1784 = vsel %vm1030, %v1753, 0
        %v1786 = vsel %vm1030, %v1755, 0
        %v1788 = vsel %vm1030, %v1757, 0
        %v1790 = vsel %vm1030, %v1759, 0
        %v1792 = vsel %vm1030, %v1761, 0
        %v1794 = vsel %vm1030, %v1763, 0
        %v1796 = vsel %vm1030, %v1765, 0
        %1798 = vmatpush.xpose.msra.mxu0 0.0
        %1799 = vmatpush.xpose.msra.mxu0 0.0
        %1800 = vmatpush.xpose.msra.mxu0 0.0
        %1801 = vmatpush.xpose.msra.mxu0 0.0
        %1802 = vmatpush.xpose.msra.mxu0 0.0
        %1803 = vmatpush.xpose.msra.mxu0 0.0
        %1804 = vmatpush.xpose.msra.mxu0 0.0
        %1805 = vmatpush.xpose.msra.mxu0 0.0
        %1806 = vmatpush.xpose.msra.mxu0 %v1796
        %1807 = vmatpush.xpose.msra.mxu0 %v1794
        %1808 = vmatpush.xpose.msra.mxu0 %v1792
        %1809 = vmatpush.xpose.msra.mxu0 %v1790
        %1810 = vmatpush.xpose.msra.mxu0 %v1788
        %1811 = vmatpush.xpose.msra.mxu0 %v1786
        %1812 = vmatpush.xpose.msra.mxu0 %v1784
        %1813 = vmatpush.xpose.msra.mxu0 %v1782
        %1814 = vmatmul.f32.gmra.mxu0 %v1766
        %v1815 = vpop.f32.mrf.mxu0
        %v1816 = vadd.f32 0.0, %v1815
        %1817 = vmatmul.f32.gmra.mxu0 %v1768
        %v1818 = vpop.f32.mrf.mxu0
        %v1819 = vadd.f32 0.0, %v1818
        %1820 = vmatmul.f32.gmra.mxu0 %v1770
        %v1821 = vpop.f32.mrf.mxu0
        %v1822 = vadd.f32 0.0, %v1821
        %1823 = vmatmul.f32.gmra.mxu0 %v1772
        %v1824 = vpop.f32.mrf.mxu0
        %v1825 = vadd.f32 0.0, %v1824
        %1826 = vmatmul.f32.gmra.mxu0 %v1774
        %v1827 = vpop.f32.mrf.mxu0
        %v1828 = vadd.f32 0.0, %v1827
        %1829 = vmatmul.f32.gmra.mxu0 %v1776
        %v1830 = vpop.f32.mrf.mxu0
        %v1831 = vadd.f32 0.0, %v1830
        %1832 = vmatmul.f32.gmra.mxu0 %v1778
        %v1833 = vpop.f32.mrf.mxu0
        %v1834 = vadd.f32 0.0, %v1833
        %1835 = vmatmul.f32.gmra.mxu0 %v1780
        %v1836 = vpop.f32.mrf.mxu0
        %v1837 = vadd.f32 0.0, %v1836
        %1838 = vdwg.mxu0
        %v1839 = vmul.f32 %v1816, 0.088388346
        %v1840 = vmul.f32 %v1819, 0.088388346
        %v1841 = vmul.f32 %v1822, 0.088388346
        %v1842 = vmul.f32 %v1825, 0.088388346
        %v1843 = vmul.f32 %v1828, 0.088388346
        %v1844 = vmul.f32 %v1831, 0.088388346
        %v1845 = vmul.f32 %v1834, 0.088388346
        %v1846 = vmul.f32 %v1837, 0.088388346
        %v1847 = vsel %vm660, %v1839, -inf
        %v1848 = vsel %vm661, %v1840, -inf
        %v1849 = vsel %vm662, %v1841, -inf
        %v1850 = vsel %vm663, %v1842, -inf
        %v1851 = vsel %vm664, %v1843, -inf
        %v1852 = vsel %vm665, %v1844, -inf
        %v1853 = vsel %vm666, %v1845, -inf
        %v1854 = vsel %vm667, %v1846, -inf
        %v1855 = vsel %vm1136, %v1847, -inf
        %1856 = vmax.xlane.f32.xlu0 %v1855
        %v1857 = vpop.xlane.xlu0 %1856
        %v1858 = vsel %vm1136, %v1848, -inf
        %1859 = vmax.xlane.f32.xlu0 %v1858
        %v1860 = vpop.xlane.xlu0 %1859
        %v1861 = vsel %vm1136, %v1849, -inf
        %1862 = vmax.xlane.f32.xlu0 %v1861
        %v1863 = vpop.xlane.xlu0 %1862
        %v1864 = vsel %vm1136, %v1850, -inf
        %1865 = vmax.xlane.f32.xlu0 %v1864
        %v1866 = vpop.xlane.xlu0 %1865
        %v1867 = vsel %vm1136, %v1851, -inf
        %1868 = vmax.xlane.f32.xlu0 %v1867
        %v1869 = vpop.xlane.xlu0 %1868
        %v1870 = vsel %vm1136, %v1852, -inf
        %1871 = vmax.xlane.f32.xlu0 %v1870
        %v1872 = vpop.xlane.xlu0 %1871
        %v1873 = vsel %vm1136, %v1853, -inf
        %1874 = vmax.xlane.f32.xlu0 %v1873
        %v1875 = vpop.xlane.xlu0 %1874
        %v1876 = vsel %vm1136, %v1854, -inf
        %1877 = vmax.xlane.f32.xlu0 %v1876
        %v1878 = vpop.xlane.xlu0 %1877
        %v1879 = vsub.f32 %v1847, %v1857
        %v1880 = vsub.f32 %v1848, %v1860
        %v1881 = vsub.f32 %v1849, %v1863
        %v1882 = vsub.f32 %v1850, %v1866
        %v1883 = vsub.f32 %v1851, %v1869
        %v1884 = vsub.f32 %v1852, %v1872
        %v1885 = vsub.f32 %v1853, %v1875
        %v1886 = vsub.f32 %v1854, %v1878
        %v1887 = vmul.f32 %v1879, 1.442695
        %v1888 = vpow.pop %v1887
        %v1889 = vmul.f32 %v1880, 1.442695
        %v1890 = vpow.pop %v1889
        %v1891 = vmul.f32 %v1881, 1.442695
        %v1892 = vpow.pop %v1891
        %v1893 = vmul.f32 %v1882, 1.442695
        %v1894 = vpow.pop %v1893
        %v1895 = vmul.f32 %v1883, 1.442695
        %v1896 = vpow.pop %v1895
        %v1897 = vmul.f32 %v1884, 1.442695
        %v1898 = vpow.pop %v1897
        %v1899 = vmul.f32 %v1885, 1.442695
        %v1900 = vpow.pop %v1899
        %v1901 = vmul.f32 %v1886, 1.442695
        %v1902 = vpow.pop %v1901
        %v1903 = vsel %vm1136, %v1888, 0.0
        %1904 = vadd.xlane.f32.xlu0 %v1903
        %v1905 = vpop.xlane.xlu0 %1904
        %v1906 = vsel %vm1136, %v1890, 0.0
        %1907 = vadd.xlane.f32.xlu0 %v1906
        %v1908 = vpop.xlane.xlu0 %1907
        %v1909 = vsel %vm1136, %v1892, 0.0
        %1910 = vadd.xlane.f32.xlu0 %v1909
        %v1911 = vpop.xlane.xlu0 %1910
        %v1912 = vsel %vm1136, %v1894, 0.0
        %1913 = vadd.xlane.f32.xlu0 %v1912
        %v1914 = vpop.xlane.xlu0 %1913
        %v1915 = vsel %vm1136, %v1896, 0.0
        %1916 = vadd.xlane.f32.xlu0 %v1915
        %v1917 = vpop.xlane.xlu0 %1916
        %v1918 = vsel %vm1136, %v1898, 0.0
        %1919 = vadd.xlane.f32.xlu0 %v1918
        %v1920 = vpop.xlane.xlu0 %1919
        %v1921 = vsel %vm1136, %v1900, 0.0
        %1922 = vadd.xlane.f32.xlu0 %v1921
        %v1923 = vpop.xlane.xlu0 %1922
        %v1924 = vsel %vm1136, %v1902, 0.0
        %1925 = vadd.xlane.f32.xlu0 %v1924
        %v1926 = vpop.xlane.xlu0 %1925
        %v1927 = vrcp.pop %v1905
        %v1928 = vrcp.pop %v1908
        %v1929 = vrcp.pop %v1911
        %v1930 = vrcp.pop %v1914
        %v1931 = vrcp.pop %v1917
        %v1932 = vrcp.pop %v1920
        %v1933 = vrcp.pop %v1923
        %v1934 = vrcp.pop %v1926
        %v1935 = vmul.f32 %v1888, %v1927
        %v1936 = vmul.f32 %v1890, %v1928
        %v1937 = vmul.f32 %v1892, %v1929
        %v1938 = vmul.f32 %v1894, %v1930
        %v1939 = vmul.f32 %v1896, %v1931
        %v1940 = vmul.f32 %v1898, %v1932
        %v1941 = vmul.f32 %v1900, %v1933
        %v1942 = vmul.f32 %v1902, %v1934
        %1943 = vrot.lane.b32.xlu0 %v1007, 64
        %v1944 = vpop.permute.xlu0 %1943
        %1945 = vrot.lane.b32.xlu0 %v1010, 64
        %v1946 = vpop.permute.xlu0 %1945
        %1947 = vrot.lane.b32.xlu0 %v1013, 64
        %v1948 = vpop.permute.xlu0 %1947
        %1949 = vrot.lane.b32.xlu0 %v1016, 64
        %v1950 = vpop.permute.xlu0 %1949
        %1951 = vrot.lane.b32.xlu0 %v1019, 64
        %v1952 = vpop.permute.xlu0 %1951
        %1953 = vrot.lane.b32.xlu0 %v1022, 64
        %v1954 = vpop.permute.xlu0 %1953
        %1955 = vrot.lane.b32.xlu0 %v1025, 64
        %v1956 = vpop.permute.xlu0 %1955
        %1957 = vrot.lane.b32.xlu0 %v1028, 64
        %v1958 = vpop.permute.xlu0 %1957
        %v1968 = vsel %vm1136, %v1935, 0
        %v1971 = vsel %vm1136, %v1936, 0
        %v1974 = vsel %vm1136, %v1937, 0
        %v1977 = vsel %vm1136, %v1938, 0
        %v1980 = vsel %vm1136, %v1939, 0
        %v1983 = vsel %vm1136, %v1940, 0
        %v1986 = vsel %vm1136, %v1941, 0
        %v1989 = vsel %vm1136, %v1942, 0
        %1991 = vmatpush.msra.mxu0 0.0
        %1992 = vmatpush.msra.mxu0 0.0
        %1993 = vmatpush.msra.mxu0 0.0
        %1994 = vmatpush.msra.mxu0 0.0
        %1995 = vmatpush.msra.mxu0 0.0
        %1996 = vmatpush.msra.mxu0 0.0
        %1997 = vmatpush.msra.mxu0 0.0
        %1998 = vmatpush.msra.mxu0 0.0
        %1999 = vmatpush.msra.mxu0 %v1958
        %2000 = vmatpush.msra.mxu0 %v1956
        %2001 = vmatpush.msra.mxu0 %v1954
        %2002 = vmatpush.msra.mxu0 %v1952
        %2003 = vmatpush.msra.mxu0 %v1950
        %2004 = vmatpush.msra.mxu0 %v1948
        %2005 = vmatpush.msra.mxu0 %v1946
        %2006 = vmatpush.msra.mxu0 %v1944
        %2007 = vmatmul.f32.gmra.mxu0 %v1968
        %v2008 = vpop.f32.mrf.mxu0
        %v2009 = vadd.f32 0.0, %v2008
        %2010 = vmatmul.f32.gmra.mxu0 %v1971
        %v2011 = vpop.f32.mrf.mxu0
        %v2012 = vadd.f32 0.0, %v2011
        %2013 = vmatmul.f32.gmra.mxu0 %v1974
        %v2014 = vpop.f32.mrf.mxu0
        %v2015 = vadd.f32 0.0, %v2014
        %2016 = vmatmul.f32.gmra.mxu0 %v1977
        %v2017 = vpop.f32.mrf.mxu0
        %v2018 = vadd.f32 0.0, %v2017
        %2019 = vmatmul.f32.gmra.mxu0 %v1980
        %v2020 = vpop.f32.mrf.mxu0
        %v2021 = vadd.f32 0.0, %v2020
        %2022 = vmatmul.f32.gmra.mxu0 %v1983
        %v2023 = vpop.f32.mrf.mxu0
        %v2024 = vadd.f32 0.0, %v2023
        %2025 = vmatmul.f32.gmra.mxu0 %v1986
        %v2026 = vpop.f32.mrf.mxu0
        %v2027 = vadd.f32 0.0, %v2026
        %2028 = vmatmul.f32.gmra.mxu0 %v1989
        %v2029 = vpop.f32.mrf.mxu0
        %v2030 = vadd.f32 0.0, %v2029
        %2031 = vdwg.mxu0
        %v2032 = vld [vmem:[#allocation7 + $0x40] sm:$0xff]
        %v2033 = vld [vmem:[#allocation7 + $0x48] sm:$0xff]
        %v2034 = vld [vmem:[#allocation7 + $0x50] sm:$0xff]
        %v2035 = vld [vmem:[#allocation7 + $0x58] sm:$0xff]
        %v2037 = vsel %vm1030, %v2009, 0
        %v2040 = vsel %vm1030, %v2012, 0
        %v2043 = vsel %vm1030, %v2015, 0
        %v2046 = vsel %vm1030, %v2018, 0
        %v2049 = vsel %vm1030, %v2021, 0
        %v2052 = vsel %vm1030, %v2024, 0
        %v2055 = vsel %vm1030, %v2027, 0
        %v2058 = vsel %vm1030, %v2030, 0
        %2060 = vmatpush.msra.mxu0 0.0
        %2061 = vmatpush.msra.mxu0 0.0
        %2062 = vmatpush.msra.mxu0 0.0
        %2063 = vmatpush.msra.mxu0 0.0
        %2064 = vmatpush.msra.mxu0 0.0
        %2065 = vmatpush.msra.mxu0 0.0
        %2066 = vmatpush.msra.mxu0 0.0
        %2067 = vmatpush.msra.mxu0 0.0
        %2068 = vmatpush.msra.mxu0 0.0
        %2069 = vmatpush.msra.mxu0 0.0
        %2070 = vmatpush.msra.mxu0 0.0
        %2071 = vmatpush.msra.mxu0 0.0
        %2072 = vmatpush.msra.mxu0 %v2035
        %2073 = vmatpush.msra.mxu0 %v2034
        %2074 = vmatpush.msra.mxu0 %v2033
        %2075 = vmatpush.msra.mxu0 %v2032
        %2076 = vmatmul.f32.gmra.mxu0 %v2037
        %v2077 = vpop.f32.mrf.mxu0
        %v2078 = vadd.f32 0.0, %v2077
        %2079 = vmatmul.f32.gmra.mxu0 %v2040
        %v2080 = vpop.f32.mrf.mxu0
        %v2081 = vadd.f32 0.0, %v2080
        %2082 = vmatmul.f32.gmra.mxu0 %v2043
        %v2083 = vpop.f32.mrf.mxu0
        %v2084 = vadd.f32 0.0, %v2083
        %2085 = vmatmul.f32.gmra.mxu0 %v2046
        %v2086 = vpop.f32.mrf.mxu0
        %v2087 = vadd.f32 0.0, %v2086
        %2088 = vmatmul.f32.gmra.mxu0 %v2049
        %v2089 = vpop.f32.mrf.mxu0
        %v2090 = vadd.f32 0.0, %v2089
        %2091 = vmatmul.f32.gmra.mxu0 %v2052
        %v2092 = vpop.f32.mrf.mxu0
        %v2093 = vadd.f32 0.0, %v2092
        %2094 = vmatmul.f32.gmra.mxu0 %v2055
        %v2095 = vpop.f32.mrf.mxu0
        %v2096 = vadd.f32 0.0, %v2095
        %2097 = vmatmul.f32.gmra.mxu0 %v2058
        %v2098 = vpop.f32.mrf.mxu0
        %v2099 = vadd.f32 0.0, %v2098
        %2100 = vdwg.mxu0
        %v2101 = vadd.f32 %v1711, %v2078
        %v2102 = vadd.f32 %v1714, %v2081
        %v2103 = vadd.f32 %v1717, %v2084
        %v2104 = vadd.f32 %v1720, %v2087
        %v2105 = vadd.f32 %v1723, %v2090
        %v2106 = vadd.f32 %v1726, %v2093
        %v2107 = vadd.f32 %v1729, %v2096
        %v2108 = vadd.f32 %v1732, %v2099
        %2109 = vrot.lane.b32.xlu0 %v893, 32
        %v2110 = vpop.permute.xlu0 %2109
        %2111 = vrot.lane.b32.xlu0 %v896, 32
        %v2112 = vpop.permute.xlu0 %2111
        %2113 = vrot.lane.b32.xlu0 %v899, 32
        %v2114 = vpop.permute.xlu0 %2113
        %2115 = vrot.lane.b32.xlu0 %v902, 32
        %v2116 = vpop.permute.xlu0 %2115
        %2117 = vrot.lane.b32.xlu0 %v905, 32
        %v2118 = vpop.permute.xlu0 %2117
        %2119 = vrot.lane.b32.xlu0 %v908, 32
        %v2120 = vpop.permute.xlu0 %2119
        %2121 = vrot.lane.b32.xlu0 %v911, 32
        %v2122 = vpop.permute.xlu0 %2121
        %2123 = vrot.lane.b32.xlu0 %v914, 32
        %v2124 = vpop.permute.xlu0 %2123
        %2125 = vrot.lane.b32.xlu0 %v950, 32
        %v2126 = vpop.permute.xlu0 %2125
        %2127 = vrot.lane.b32.xlu0 %v953, 32
        %v2128 = vpop.permute.xlu0 %2127
        %2129 = vrot.lane.b32.xlu0 %v956, 32
        %v2130 = vpop.permute.xlu0 %2129
        %2131 = vrot.lane.b32.xlu0 %v959, 32
        %v2132 = vpop.permute.xlu0 %2131
        %2133 = vrot.lane.b32.xlu0 %v962, 32
        %v2134 = vpop.permute.xlu0 %2133
        %2135 = vrot.lane.b32.xlu0 %v965, 32
        %v2136 = vpop.permute.xlu0 %2135
        %2137 = vrot.lane.b32.xlu0 %v968, 32
        %v2138 = vpop.permute.xlu0 %2137
        %2139 = vrot.lane.b32.xlu0 %v971, 32
        %v2140 = vpop.permute.xlu0 %2139
        %v2141 = vsel %vm1030, %v2110, 0
        %v2143 = vsel %vm1030, %v2112, 0
        %v2145 = vsel %vm1030, %v2114, 0
        %v2147 = vsel %vm1030, %v2116, 0
        %v2149 = vsel %vm1030, %v2118, 0
        %v2151 = vsel %vm1030, %v2120, 0
        %v2153 = vsel %vm1030, %v2122, 0
        %v2155 = vsel %vm1030, %v2124, 0
        %v2157 = vsel %vm1030, %v2126, 0
        %v2159 = vsel %vm1030, %v2128, 0
        %v2161 = vsel %vm1030, %v2130, 0
        %v2163 = vsel %vm1030, %v2132, 0
        %v2165 = vsel %vm1030, %v2134, 0
        %v2167 = vsel %vm1030, %v2136, 0
        %v2169 = vsel %vm1030, %v2138, 0
        %v2171 = vsel %vm1030, %v2140, 0
        %2173 = vmatpush.xpose.msra.mxu0 0.0
        %2174 = vmatpush.xpose.msra.mxu0 0.0
        %2175 = vmatpush.xpose.msra.mxu0 0.0
        %2176 = vmatpush.xpose.msra.mxu0 0.0
        %2177 = vmatpush.xpose.msra.mxu0 0.0
        %2178 = vmatpush.xpose.msra.mxu0 0.0
        %2179 = vmatpush.xpose.msra.mxu0 0.0
        %2180 = vmatpush.xpose.msra.mxu0 0.0
        %2181 = vmatpush.xpose.msra.mxu0 %v2171
        %2182 = vmatpush.xpose.msra.mxu0 %v2169
        %2183 = vmatpush.xpose.msra.mxu0 %v2167
        %2184 = vmatpush.xpose.msra.mxu0 %v2165
        %2185 = vmatpush.xpose.msra.mxu0 %v2163
        %2186 = vmatpush.xpose.msra.mxu0 %v2161
        %2187 = vmatpush.xpose.msra.mxu0 %v2159
        %2188 = vmatpush.xpose.msra.mxu0 %v2157
        %2189 = vmatmul.f32.gmra.mxu0 %v2141
        %v2190 = vpop.f32.mrf.mxu0
        %v2191 = vadd.f32 0.0, %v2190
        %2192 = vmatmul.f32.gmra.mxu0 %v2143
        %v2193 = vpop.f32.mrf.mxu0
        %v2194 = vadd.f32 0.0, %v2193
        %2195 = vmatmul.f32.gmra.mxu0 %v2145
        %v2196 = vpop.f32.mrf.mxu0
        %v2197 = vadd.f32 0.0, %v2196
        %2198 = vmatmul.f32.gmra.mxu0 %v2147
        %v2199 = vpop.f32.mrf.mxu0
        %v2200 = vadd.f32 0.0, %v2199
        %2201 = vmatmul.f32.gmra.mxu0 %v2149
        %v2202 = vpop.f32.mrf.mxu0
        %v2203 = vadd.f32 0.0, %v2202
        %2204 = vmatmul.f32.gmra.mxu0 %v2151
        %v2205 = vpop.f32.mrf.mxu0
        %v2206 = vadd.f32 0.0, %v2205
        %2207 = vmatmul.f32.gmra.mxu0 %v2153
        %v2208 = vpop.f32.mrf.mxu0
        %v2209 = vadd.f32 0.0, %v2208
        %2210 = vmatmul.f32.gmra.mxu0 %v2155
        %v2211 = vpop.f32.mrf.mxu0
        %v2212 = vadd.f32 0.0, %v2211
        %2213 = vdwg.mxu0
        %v2214 = vmul.f32 %v2191, 0.088388346
        %v2215 = vmul.f32 %v2194, 0.088388346
        %v2216 = vmul.f32 %v2197, 0.088388346
        %v2217 = vmul.f32 %v2200, 0.088388346
        %v2218 = vmul.f32 %v2203, 0.088388346
        %v2219 = vmul.f32 %v2206, 0.088388346
        %v2220 = vmul.f32 %v2209, 0.088388346
        %v2221 = vmul.f32 %v2212, 0.088388346
        %v2222 = vsel %vm660, %v2214, -inf
        %v2223 = vsel %vm661, %v2215, -inf
        %v2224 = vsel %vm662, %v2216, -inf
        %v2225 = vsel %vm663, %v2217, -inf
        %v2226 = vsel %vm664, %v2218, -inf
        %v2227 = vsel %vm665, %v2219, -inf
        %v2228 = vsel %vm666, %v2220, -inf
        %v2229 = vsel %vm667, %v2221, -inf
        %v2230 = vsel %vm1136, %v2222, -inf
        %2231 = vmax.xlane.f32.xlu0 %v2230
        %v2232 = vpop.xlane.xlu0 %2231
        %v2233 = vsel %vm1136, %v2223, -inf
        %2234 = vmax.xlane.f32.xlu0 %v2233
        %v2235 = vpop.xlane.xlu0 %2234
        %v2236 = vsel %vm1136, %v2224, -inf
        %2237 = vmax.xlane.f32.xlu0 %v2236
        %v2238 = vpop.xlane.xlu0 %2237
        %v2239 = vsel %vm1136, %v2225, -inf
        %2240 = vmax.xlane.f32.xlu0 %v2239
        %v2241 = vpop.xlane.xlu0 %2240
        %v2242 = vsel %vm1136, %v2226, -inf
        %2243 = vmax.xlane.f32.xlu0 %v2242
        %v2244 = vpop.xlane.xlu0 %2243
        %v2245 = vsel %vm1136, %v2227, -inf
        %2246 = vmax.xlane.f32.xlu0 %v2245
        %v2247 = vpop.xlane.xlu0 %2246
        %v2248 = vsel %vm1136, %v2228, -inf
        %2249 = vmax.xlane.f32.xlu0 %v2248
        %v2250 = vpop.xlane.xlu0 %2249
        %v2251 = vsel %vm1136, %v2229, -inf
        %2252 = vmax.xlane.f32.xlu0 %v2251
        %v2253 = vpop.xlane.xlu0 %2252
        %v2254 = vsub.f32 %v2222, %v2232
        %v2255 = vsub.f32 %v2223, %v2235
        %v2256 = vsub.f32 %v2224, %v2238
        %v2257 = vsub.f32 %v2225, %v2241
        %v2258 = vsub.f32 %v2226, %v2244
        %v2259 = vsub.f32 %v2227, %v2247
        %v2260 = vsub.f32 %v2228, %v2250
        %v2261 = vsub.f32 %v2229, %v2253
        %v2262 = vmul.f32 %v2254, 1.442695
        %v2263 = vpow.pop %v2262
        %v2264 = vmul.f32 %v2255, 1.442695
        %v2265 = vpow.pop %v2264
        %v2266 = vmul.f32 %v2256, 1.442695
        %v2267 = vpow.pop %v2266
        %v2268 = vmul.f32 %v2257, 1.442695
        %v2269 = vpow.pop %v2268
        %v2270 = vmul.f32 %v2258, 1.442695
        %v2271 = vpow.pop %v2270
        %v2272 = vmul.f32 %v2259, 1.442695
        %v2273 = vpow.pop %v2272
        %v2274 = vmul.f32 %v2260, 1.442695
        %v2275 = vpow.pop %v2274
        %v2276 = vmul.f32 %v2261, 1.442695
        %v2277 = vpow.pop %v2276
        %v2278 = vsel %vm1136, %v2263, 0.0
        %2279 = vadd.xlane.f32.xlu0 %v2278
        %v2280 = vpop.xlane.xlu0 %2279
        %v2281 = vsel %vm1136, %v2265, 0.0
        %2282 = vadd.xlane.f32.xlu0 %v2281
        %v2283 = vpop.xlane.xlu0 %2282
        %v2284 = vsel %vm1136, %v2267, 0.0
        %2285 = vadd.xlane.f32.xlu0 %v2284
        %v2286 = vpop.xlane.xlu0 %2285
        %v2287 = vsel %vm1136, %v2269, 0.0
        %2288 = vadd.xlane.f32.xlu0 %v2287
        %v2289 = vpop.xlane.xlu0 %2288
        %v2290 = vsel %vm1136, %v2271, 0.0
        %2291 = vadd.xlane.f32.xlu0 %v2290
        %v2292 = vpop.xlane.xlu0 %2291
        %v2293 = vsel %vm1136, %v2273, 0.0
        %2294 = vadd.xlane.f32.xlu0 %v2293
        %v2295 = vpop.xlane.xlu0 %2294
        %v2296 = vsel %vm1136, %v2275, 0.0
        %2297 = vadd.xlane.f32.xlu0 %v2296
        %v2298 = vpop.xlane.xlu0 %2297
        %v2299 = vsel %vm1136, %v2277, 0.0
        %2300 = vadd.xlane.f32.xlu0 %v2299
        %v2301 = vpop.xlane.xlu0 %2300
        %v2302 = vrcp.pop %v2280
        %v2303 = vrcp.pop %v2283
        %v2304 = vrcp.pop %v2286
        %v2305 = vrcp.pop %v2289
        %v2306 = vrcp.pop %v2292
        %v2307 = vrcp.pop %v2295
        %v2308 = vrcp.pop %v2298
        %v2309 = vrcp.pop %v2301
        %v2310 = vmul.f32 %v2263, %v2302
        %v2311 = vmul.f32 %v2265, %v2303
        %v2312 = vmul.f32 %v2267, %v2304
        %v2313 = vmul.f32 %v2269, %v2305
        %v2314 = vmul.f32 %v2271, %v2306
        %v2315 = vmul.f32 %v2273, %v2307
        %v2316 = vmul.f32 %v2275, %v2308
        %v2317 = vmul.f32 %v2277, %v2309
        %2318 = vrot.lane.b32.xlu0 %v1007, 32
        %v2319 = vpop.permute.xlu0 %2318
        %2320 = vrot.lane.b32.xlu0 %v1010, 32
        %v2321 = vpop.permute.xlu0 %2320
        %2322 = vrot.lane.b32.xlu0 %v1013, 32
        %v2323 = vpop.permute.xlu0 %2322
        %2324 = vrot.lane.b32.xlu0 %v1016, 32
        %v2325 = vpop.permute.xlu0 %2324
        %2326 = vrot.lane.b32.xlu0 %v1019, 32
        %v2327 = vpop.permute.xlu0 %2326
        %2328 = vrot.lane.b32.xlu0 %v1022, 32
        %v2329 = vpop.permute.xlu0 %2328
        %2330 = vrot.lane.b32.xlu0 %v1025, 32
        %v2331 = vpop.permute.xlu0 %2330
        %2332 = vrot.lane.b32.xlu0 %v1028, 32
        %v2333 = vpop.permute.xlu0 %2332
        %v2343 = vsel %vm1136, %v2310, 0
        %v2346 = vsel %vm1136, %v2311, 0
        %v2349 = vsel %vm1136, %v2312, 0
        %v2352 = vsel %vm1136, %v2313, 0
        %v2355 = vsel %vm1136, %v2314, 0
        %v2358 = vsel %vm1136, %v2315, 0
        %v2361 = vsel %vm1136, %v2316, 0
        %v2364 = vsel %vm1136, %v2317, 0
        %2366 = vmatpush.msra.mxu0 0.0
        %2367 = vmatpush.msra.mxu0 0.0
        %2368 = vmatpush.msra.mxu0 0.0
        %2369 = vmatpush.msra.mxu0 0.0
        %2370 = vmatpush.msra.mxu0 0.0
        %2371 = vmatpush.msra.mxu0 0.0
        %2372 = vmatpush.msra.mxu0 0.0
        %2373 = vmatpush.msra.mxu0 0.0
        %2374 = vmatpush.msra.mxu0 %v2333
        %2375 = vmatpush.msra.mxu0 %v2331
        %2376 = vmatpush.msra.mxu0 %v2329
        %2377 = vmatpush.msra.mxu0 %v2327
        %2378 = vmatpush.msra.mxu0 %v2325
        %2379 = vmatpush.msra.mxu0 %v2323
        %2380 = vmatpush.msra.mxu0 %v2321
        %2381 = vmatpush.msra.mxu0 %v2319
        %2382 = vmatmul.f32.gmra.mxu0 %v2343
        %v2383 = vpop.f32.mrf.mxu0
        %v2384 = vadd.f32 0.0, %v2383
        %2385 = vmatmul.f32.gmra.mxu0 %v2346
        %v2386 = vpop.f32.mrf.mxu0
        %v2387 = vadd.f32 0.0, %v2386
        %2388 = vmatmul.f32.gmra.mxu0 %v2349
        %v2389 = vpop.f32.mrf.mxu0
        %v2390 = vadd.f32 0.0, %v2389
        %2391 = vmatmul.f32.gmra.mxu0 %v2352
        %v2392 = vpop.f32.mrf.mxu0
        %v2393 = vadd.f32 0.0, %v2392
        %2394 = vmatmul.f32.gmra.mxu0 %v2355
        %v2395 = vpop.f32.mrf.mxu0
        %v2396 = vadd.f32 0.0, %v2395
        %2397 = vmatmul.f32.gmra.mxu0 %v2358
        %v2398 = vpop.f32.mrf.mxu0
        %v2399 = vadd.f32 0.0, %v2398
        %2400 = vmatmul.f32.gmra.mxu0 %v2361
        %v2401 = vpop.f32.mrf.mxu0
        %v2402 = vadd.f32 0.0, %v2401
        %2403 = vmatmul.f32.gmra.mxu0 %v2364
        %v2404 = vpop.f32.mrf.mxu0
        %v2405 = vadd.f32 0.0, %v2404
        %2406 = vdwg.mxu0
        %v2407 = vld [vmem:[#allocation7 + $0x60] sm:$0xff]
        %v2408 = vld [vmem:[#allocation7 + $0x68] sm:$0xff]
        %v2409 = vld [vmem:[#allocation7 + $0x70] sm:$0xff]
        %v2410 = vld [vmem:[#allocation7 + $0x78] sm:$0xff]
        %v2412 = vsel %vm1030, %v2384, 0
        %v2415 = vsel %vm1030, %v2387, 0
        %v2418 = vsel %vm1030, %v2390, 0
        %v2421 = vsel %vm1030, %v2393, 0
        %v2424 = vsel %vm1030, %v2396, 0
        %v2427 = vsel %vm1030, %v2399, 0
        %v2430 = vsel %vm1030, %v2402, 0
        %v2433 = vsel %vm1030, %v2405, 0
        %2435 = vmatpush.msra.mxu0 0.0
        %2436 = vmatpush.msra.mxu0 0.0
        %2437 = vmatpush.msra.mxu0 0.0
        %2438 = vmatpush.msra.mxu0 0.0
        %2439 = vmatpush.msra.mxu0 0.0
        %2440 = vmatpush.msra.mxu0 0.0
        %2441 = vmatpush.msra.mxu0 0.0
        %2442 = vmatpush.msra.mxu0 0.0
        %2443 = vmatpush.msra.mxu0 0.0
        %2444 = vmatpush.msra.mxu0 0.0
        %2445 = vmatpush.msra.mxu0 0.0
        %2446 = vmatpush.msra.mxu0 0.0
        %2447 = vmatpush.msra.mxu0 %v2410
        %2448 = vmatpush.msra.mxu0 %v2409
        %2449 = vmatpush.msra.mxu0 %v2408
        %2450 = vmatpush.msra.mxu0 %v2407
        %2451 = vmatmul.f32.gmra.mxu0 %v2412
        %v2452 = vpop.f32.mrf.mxu0
        %v2453 = vadd.f32 0.0, %v2452
        %2454 = vmatmul.f32.gmra.mxu0 %v2415
        %v2455 = vpop.f32.mrf.mxu0
        %v2456 = vadd.f32 0.0, %v2455
        %2457 = vmatmul.f32.gmra.mxu0 %v2418
        %v2458 = vpop.f32.mrf.mxu0
        %v2459 = vadd.f32 0.0, %v2458
        %2460 = vmatmul.f32.gmra.mxu0 %v2421
        %v2461 = vpop.f32.mrf.mxu0
        %v2462 = vadd.f32 0.0, %v2461
        %2463 = vmatmul.f32.gmra.mxu0 %v2424
        %v2464 = vpop.f32.mrf.mxu0
        %v2465 = vadd.f32 0.0, %v2464
        %2466 = vmatmul.f32.gmra.mxu0 %v2427
        %v2467 = vpop.f32.mrf.mxu0
        %v2468 = vadd.f32 0.0, %v2467
        %2469 = vmatmul.f32.gmra.mxu0 %v2430
        %v2470 = vpop.f32.mrf.mxu0
        %v2471 = vadd.f32 0.0, %v2470
        %2472 = vmatmul.f32.gmra.mxu0 %v2433
        %v2473 = vpop.f32.mrf.mxu0
        %v2474 = vadd.f32 0.0, %v2473
        %2475 = vdwg.mxu0
        %v2476 = vadd.f32 %v2101, %v2453
        %v2477 = vadd.f32 %v2102, %v2456
        %v2478 = vadd.f32 %v2103, %v2459
        %v2479 = vadd.f32 %v2104, %v2462
        %v2480 = vadd.f32 %v2105, %v2465
        %v2481 = vadd.f32 %v2106, %v2468
        %v2482 = vadd.f32 %v2107, %v2471
        %v2483 = vadd.f32 %v2108, %v2474
        %v2484 = vadd.f32 %v641, %v2476
        %v2485 = vadd.f32 %v642, %v2477
        %v2486 = vadd.f32 %v643, %v2478
        %v2487 = vadd.f32 %v644, %v2479
        %v2488 = vadd.f32 %v645, %v2480
        %v2489 = vadd.f32 %v646, %v2481
        %v2490 = vadd.f32 %v647, %v2482
        %v2491 = vadd.f32 %v648, %v2483
        %v2492 = vld [vmem:[%s7] sm:$0x1]
        %v2494 = vperm.slane %v2492, 0
        %v2496 = vadd.f32 %v2484, %v2494
        %v2497 = vadd.f32 %v2485, %v2494
        %v2498 = vadd.f32 %v2486, %v2494
        %v2499 = vadd.f32 %v2487, %v2494
        %v2500 = vadd.f32 %v2488, %v2494
        %v2501 = vadd.f32 %v2489, %v2494
        %v2502 = vadd.f32 %v2490, %v2494
        %v2503 = vadd.f32 %v2491, %v2494
        %v2504 = vld [vmem:[%s8] sm:$0x1]
        %v2505 = vld [vmem:[%s9] sm:$0x1]
        %2506 = vadd.xlane.f32.xlu0 %v2496
        %v2507 = vpop.xlane.xlu0 %2506
        %2508 = vadd.xlane.f32.xlu0 %v2497
        %v2509 = vpop.xlane.xlu0 %2508
        %2510 = vadd.xlane.f32.xlu0 %v2498
        %v2511 = vpop.xlane.xlu0 %2510
        %2512 = vadd.xlane.f32.xlu0 %v2499
        %v2513 = vpop.xlane.xlu0 %2512
        %2514 = vadd.xlane.f32.xlu0 %v2500
        %v2515 = vpop.xlane.xlu0 %2514
        %2516 = vadd.xlane.f32.xlu0 %v2501
        %v2517 = vpop.xlane.xlu0 %2516
        %2518 = vadd.xlane.f32.xlu0 %v2502
        %v2519 = vpop.xlane.xlu0 %2518
        %2520 = vadd.xlane.f32.xlu0 %v2503
        %v2521 = vpop.xlane.xlu0 %2520
        %v2522 = vmul.f32 %v2507, %v692
        %v2523 = vmul.f32 %v2509, %v692
        %v2524 = vmul.f32 %v2511, %v692
        %v2525 = vmul.f32 %v2513, %v692
        %v2526 = vmul.f32 %v2515, %v692
        %v2527 = vmul.f32 %v2517, %v692
        %v2528 = vmul.f32 %v2519, %v692
        %v2529 = vmul.f32 %v2521, %v692
        %v2530 = vsub.f32 %v2496, %v2522
        %v2531 = vsub.f32 %v2497, %v2523
        %v2532 = vsub.f32 %v2498, %v2524
        %v2533 = vsub.f32 %v2499, %v2525
        %v2534 = vsub.f32 %v2500, %v2526
        %v2535 = vsub.f32 %v2501, %v2527
        %v2536 = vsub.f32 %v2502, %v2528
        %v2537 = vsub.f32 %v2503, %v2529
        %v2538 = vmul.f32 %v2530, %v2530
        %v2539 = vmul.f32 %v2531, %v2531
        %v2540 = vmul.f32 %v2532, %v2532
        %v2541 = vmul.f32 %v2533, %v2533
        %v2542 = vmul.f32 %v2534, %v2534
        %v2543 = vmul.f32 %v2535, %v2535
        %v2544 = vmul.f32 %v2536, %v2536
        %v2545 = vmul.f32 %v2537, %v2537
        %2546 = vadd.xlane.f32.xlu0 %v2538
        %v2547 = vpop.xlane.xlu0 %2546
        %2548 = vadd.xlane.f32.xlu0 %v2539
        %v2549 = vpop.xlane.xlu0 %2548
        %2550 = vadd.xlane.f32.xlu0 %v2540
        %v2551 = vpop.xlane.xlu0 %2550
        %2552 = vadd.xlane.f32.xlu0 %v2541
        %v2553 = vpop.xlane.xlu0 %2552
        %2554 = vadd.xlane.f32.xlu0 %v2542
        %v2555 = vpop.xlane.xlu0 %2554
        %2556 = vadd.xlane.f32.xlu0 %v2543
        %v2557 = vpop.xlane.xlu0 %2556
        %2558 = vadd.xlane.f32.xlu0 %v2544
        %v2559 = vpop.xlane.xlu0 %2558
        %2560 = vadd.xlane.f32.xlu0 %v2545
        %v2561 = vpop.xlane.xlu0 %2560
        %v2562 = vmul.f32 %v2547, %v692
        %v2563 = vmul.f32 %v2549, %v692
        %v2564 = vmul.f32 %v2551, %v692
        %v2565 = vmul.f32 %v2553, %v692
        %v2566 = vmul.f32 %v2555, %v692
        %v2567 = vmul.f32 %v2557, %v692
        %v2568 = vmul.f32 %v2559, %v692
        %v2569 = vmul.f32 %v2561, %v692
        %v2570 = vadd.f32 %v2562, 1e-05
        %v2571 = vadd.f32 %v2563, 1e-05
        %v2572 = vadd.f32 %v2564, 1e-05
        %v2573 = vadd.f32 %v2565, 1e-05
        %v2574 = vadd.f32 %v2566, 1e-05
        %v2575 = vadd.f32 %v2567, 1e-05
        %v2576 = vadd.f32 %v2568, 1e-05
        %v2577 = vadd.f32 %v2569, 1e-05
        %v2578 = vrsqrt.pop %v2570
        %v2579 = vmul.f32 %v2578, %v2570
        %v2580 = vmul.f32 %v2579, %v2578
        %v2581 = vmul.f32 0.5, %v2580
        %v2582 = vsub.f32 1.5, %v2581
        %v2583 = vmul.f32 %v2578, %v2582
        %vm2584 = vweird.f32 %v2570
        %vm2585 = vweird.f32 %v2578
        %vm2586 = vmor %vm2584, %vm2585
        %v2587 = vsel %vm2586, %v2578, %v2583
        %v2588 = vrsqrt.pop %v2571
        %v2589 = vmul.f32 %v2588, %v2571
        %v2590 = vmul.f32 %v2589, %v2588
        %v2591 = vmul.f32 0.5, %v2590
        %v2592 = vsub.f32 1.5, %v2591
        %v2593 = vmul.f32 %v2588, %v2592
        %vm2594 = vweird.f32 %v2571
        %vm2595 = vweird.f32 %v2588
        %vm2596 = vmor %vm2594, %vm2595
        %v2597 = vsel %vm2596, %v2588, %v2593
        %v2598 = vrsqrt.pop %v2572
        %v2599 = vmul.f32 %v2598, %v2572
        %v2600 = vmul.f32 %v2599, %v2598
        %v2601 = vmul.f32 0.5, %v2600
        %v2602 = vsub.f32 1.5, %v2601
        %v2603 = vmul.f32 %v2598, %v2602
        %vm2604 = vweird.f32 %v2572
        %vm2605 = vweird.f32 %v2598
        %vm2606 = vmor %vm2604, %vm2605
        %v2607 = vsel %vm2606, %v2598, %v2603
        %v2608 = vrsqrt.pop %v2573
        %v2609 = vmul.f32 %v2608, %v2573
        %v2610 = vmul.f32 %v2609, %v2608
        %v2611 = vmul.f32 0.5, %v2610
        %v2612 = vsub.f32 1.5, %v2611
        %v2613 = vmul.f32 %v2608, %v2612
        %vm2614 = vweird.f32 %v2573
        %vm2615 = vweird.f32 %v2608
        %vm2616 = vmor %vm2614, %vm2615
        %v2617 = vsel %vm2616, %v2608, %v2613
        %v2618 = vrsqrt.pop %v2574
        %v2619 = vmul.f32 %v2618, %v2574
        %v2620 = vmul.f32 %v2619, %v2618
        %v2621 = vmul.f32 0.5, %v2620
        %v2622 = vsub.f32 1.5, %v2621
        %v2623 = vmul.f32 %v2618, %v2622
        %vm2624 = vweird.f32 %v2574
        %vm2625 = vweird.f32 %v2618
        %vm2626 = vmor %vm2624, %vm2625
        %v2627 = vsel %vm2626, %v2618, %v2623
        %v2628 = vrsqrt.pop %v2575
        %v2629 = vmul.f32 %v2628, %v2575
        %v2630 = vmul.f32 %v2629, %v2628
        %v2631 = vmul.f32 0.5, %v2630
        %v2632 = vsub.f32 1.5, %v2631
        %v2633 = vmul.f32 %v2628, %v2632
        %vm2634 = vweird.f32 %v2575
        %vm2635 = vweird.f32 %v2628
        %vm2636 = vmor %vm2634, %vm2635
        %v2637 = vsel %vm2636, %v2628, %v2633
        %v2638 = vrsqrt.pop %v2576
        %v2639 = vmul.f32 %v2638, %v2576
        %v2640 = vmul.f32 %v2639, %v2638
        %v2641 = vmul.f32 0.5, %v2640
        %v2642 = vsub.f32 1.5, %v2641
        %v2643 = vmul.f32 %v2638, %v2642
        %vm2644 = vweird.f32 %v2576
        %vm2645 = vweird.f32 %v2638
        %vm2646 = vmor %vm2644, %vm2645
        %v2647 = vsel %vm2646, %v2638, %v2643
        %v2648 = vrsqrt.pop %v2577
        %v2649 = vmul.f32 %v2648, %v2577
        %v2650 = vmul.f32 %v2649, %v2648
        %v2651 = vmul.f32 0.5, %v2650
        %v2652 = vsub.f32 1.5, %v2651
        %v2653 = vmul.f32 %v2648, %v2652
        %vm2654 = vweird.f32 %v2577
        %vm2655 = vweird.f32 %v2648
        %vm2656 = vmor %vm2654, %vm2655
        %v2657 = vsel %vm2656, %v2648, %v2653
        %v2658 = vmul.f32 %v2530, %v2587
        %v2659 = vmul.f32 %v2531, %v2597
        %v2660 = vmul.f32 %v2532, %v2607
        %v2661 = vmul.f32 %v2533, %v2617
        %v2662 = vmul.f32 %v2534, %v2627
        %v2663 = vmul.f32 %v2535, %v2637
        %v2664 = vmul.f32 %v2536, %v2647
        %v2665 = vmul.f32 %v2537, %v2657
        %v2667 = vperm.slane %v2504, 0
        %v2669 = vmul.f32 %v2658, %v2667
        %v2670 = vmul.f32 %v2659, %v2667
        %v2671 = vmul.f32 %v2660, %v2667
        %v2672 = vmul.f32 %v2661, %v2667
        %v2673 = vmul.f32 %v2662, %v2667
        %v2674 = vmul.f32 %v2663, %v2667
        %v2675 = vmul.f32 %v2664, %v2667
        %v2676 = vmul.f32 %v2665, %v2667
        %v2678 = vperm.slane %v2505, 0
        %v2680 = vadd.f32 %v2669, %v2678
        %v2681 = vadd.f32 %v2670, %v2678
        %v2682 = vadd.f32 %v2671, %v2678
        %v2683 = vadd.f32 %v2672, %v2678
        %v2684 = vadd.f32 %v2673, %v2678
        %v2685 = vadd.f32 %v2674, %v2678
        %v2686 = vadd.f32 %v2675, %v2678
        %v2687 = vadd.f32 %v2676, %v2678
        %v2688 = vld [vmem:[%s10] sm:$0xff]
        %v2689 = vld [vmem:[%s10 + $0x8] sm:$0xff]
        %v2690 = vld [vmem:[%s10 + $0x10] sm:$0xff]
        %v2691 = vld [vmem:[%s10 + $0x18] sm:$0xff]
        %v2692 = vld [vmem:[%s10 + $0x20] sm:$0xff]
        %v2693 = vld [vmem:[%s10 + $0x28] sm:$0xff]
        %v2694 = vld [vmem:[%s10 + $0x30] sm:$0xff]
        %v2695 = vld [vmem:[%s10 + $0x38] sm:$0xff]
        %v2696 = vld [vmem:[%s10 + $0x40] sm:$0xff]
        %v2697 = vld [vmem:[%s10 + $0x48] sm:$0xff]
        %v2698 = vld [vmem:[%s10 + $0x50] sm:$0xff]
        %v2699 = vld [vmem:[%s10 + $0x58] sm:$0xff]
        %v2700 = vld [vmem:[%s10 + $0x60] sm:$0xff]
        %v2701 = vld [vmem:[%s10 + $0x68] sm:$0xff]
        %v2702 = vld [vmem:[%s10 + $0x70] sm:$0xff]
        %v2703 = vld [vmem:[%s10 + $0x78] sm:$0xff]
        %v2704 = vld [vmem:[%s10 + $0x80] sm:$0xff]
        %v2705 = vld [vmem:[%s10 + $0x88] sm:$0xff]
        %v2706 = vld [vmem:[%s10 + $0x90] sm:$0xff]
        %v2707 = vld [vmem:[%s10 + $0x98] sm:$0xff]
        %v2708 = vld [vmem:[%s10 + $0xa0] sm:$0xff]
        %v2709 = vld [vmem:[%s10 + $0xa8] sm:$0xff]
        %v2710 = vld [vmem:[%s10 + $0xb0] sm:$0xff]
        %v2711 = vld [vmem:[%s10 + $0xb8] sm:$0xff]
        %v2712 = vld [vmem:[%s10 + $0xc0] sm:$0xff]
        %v2713 = vld [vmem:[%s10 + $0xc8] sm:$0xff]
        %v2714 = vld [vmem:[%s10 + $0xd0] sm:$0xff]
        %v2715 = vld [vmem:[%s10 + $0xd8] sm:$0xff]
        %v2716 = vld [vmem:[%s10 + $0xe0] sm:$0xff]
        %v2717 = vld [vmem:[%s10 + $0xe8] sm:$0xff]
        %v2718 = vld [vmem:[%s10 + $0xf0] sm:$0xff]
        %v2719 = vld [vmem:[%s10 + $0xf8] sm:$0xff]
        %v2720 = vld [vmem:[%s10 + $0x100] sm:$0xff]
        %v2721 = vld [vmem:[%s10 + $0x108] sm:$0xff]
        %v2722 = vld [vmem:[%s10 + $0x110] sm:$0xff]
        %v2723 = vld [vmem:[%s10 + $0x118] sm:$0xff]
        %v2724 = vld [vmem:[%s10 + $0x120] sm:$0xff]
        %v2725 = vld [vmem:[%s10 + $0x128] sm:$0xff]
        %v2726 = vld [vmem:[%s10 + $0x130] sm:$0xff]
        %v2727 = vld [vmem:[%s10 + $0x138] sm:$0xff]
        %v2728 = vld [vmem:[%s10 + $0x140] sm:$0xff]
        %v2729 = vld [vmem:[%s10 + $0x148] sm:$0xff]
        %v2730 = vld [vmem:[%s10 + $0x150] sm:$0xff]
        %v2731 = vld [vmem:[%s10 + $0x158] sm:$0xff]
        %v2732 = vld [vmem:[%s10 + $0x160] sm:$0xff]
        %v2733 = vld [vmem:[%s10 + $0x168] sm:$0xff]
        %v2734 = vld [vmem:[%s10 + $0x170] sm:$0xff]
        %v2735 = vld [vmem:[%s10 + $0x178] sm:$0xff]
        %v2736 = vld [vmem:[%s10 + $0x180] sm:$0xff]
        %v2737 = vld [vmem:[%s10 + $0x188] sm:$0xff]
        %v2738 = vld [vmem:[%s10 + $0x190] sm:$0xff]
        %v2739 = vld [vmem:[%s10 + $0x198] sm:$0xff]
        %v2740 = vld [vmem:[%s10 + $0x1a0] sm:$0xff]
        %v2741 = vld [vmem:[%s10 + $0x1a8] sm:$0xff]
        %v2742 = vld [vmem:[%s10 + $0x1b0] sm:$0xff]
        %v2743 = vld [vmem:[%s10 + $0x1b8] sm:$0xff]
        %v2744 = vld [vmem:[%s10 + $0x1c0] sm:$0xff]
        %v2745 = vld [vmem:[%s10 + $0x1c8] sm:$0xff]
        %v2746 = vld [vmem:[%s10 + $0x1d0] sm:$0xff]
        %v2747 = vld [vmem:[%s10 + $0x1d8] sm:$0xff]
        %v2748 = vld [vmem:[%s10 + $0x1e0] sm:$0xff]
        %v2749 = vld [vmem:[%s10 + $0x1e8] sm:$0xff]
        %v2750 = vld [vmem:[%s10 + $0x1f0] sm:$0xff]
        %v2751 = vld [vmem:[%s10 + $0x1f8] sm:$0xff]
        %v2752 = vld [vmem:[%s11] sm:$0xf]
        %v2754 = vperm.slane %v2752, 0
        %v2755 = vperm.slane %v2752, 1
        %v2756 = vperm.slane %v2752, 2
        %v2757 = vperm.slane %v2752, 3
        %2762 = vmatpush.msra.mxu0 %v2748
        %2763 = vmatpush.msra.mxu0 %v2744
        %2764 = vmatpush.msra.mxu0 %v2740
        %2765 = vmatpush.msra.mxu0 %v2736
        %2766 = vmatpush.msra.mxu0 %v2732
        %2767 = vmatpush.msra.mxu0 %v2728
        %2768 = vmatpush.msra.mxu0 %v2724
        %2769 = vmatpush.msra.mxu0 %v2720
        %2770 = vmatpush.msra.mxu0 %v2716
        %2771 = vmatpush.msra.mxu0 %v2712
        %2772 = vmatpush.msra.mxu0 %v2708
        %2773 = vmatpush.msra.mxu0 %v2704
        %2774 = vmatpush.msra.mxu0 %v2700
        %2775 = vmatpush.msra.mxu0 %v2696
        %2776 = vmatpush.msra.mxu0 %v2692
        %2777 = vmatpush.msra.mxu0 %v2688
        %2778 = vmatmul.f32.gmra.mxu0 %v2680
        %v2779 = vpop.f32.mrf.mxu0
        %v2780 = vadd.f32 %v2754, %v2779
        %2781 = vmatmul.f32.gmra.mxu0 %v2681
        %v2782 = vpop.f32.mrf.mxu0
        %v2783 = vadd.f32 %v2754, %v2782
        %2784 = vmatmul.f32.gmra.mxu0 %v2682
        %v2785 = vpop.f32.mrf.mxu0
        %v2786 = vadd.f32 %v2754, %v2785
        %2787 = vmatmul.f32.gmra.mxu0 %v2683
        %v2788 = vpop.f32.mrf.mxu0
        %v2789 = vadd.f32 %v2754, %v2788
        %2790 = vmatmul.f32.gmra.mxu0 %v2684
        %v2791 = vpop.f32.mrf.mxu0
        %v2792 = vadd.f32 %v2754, %v2791
        %2793 = vmatmul.f32.gmra.mxu0 %v2685
        %v2794 = vpop.f32.mrf.mxu0
        %v2795 = vadd.f32 %v2754, %v2794
        %2796 = vmatmul.f32.gmra.mxu0 %v2686
        %v2797 = vpop.f32.mrf.mxu0
        %v2798 = vadd.f32 %v2754, %v2797
        %2799 = vmatmul.f32.gmra.mxu0 %v2687
        %v2800 = vpop.f32.mrf.mxu0
        %v2801 = vadd.f32 %v2754, %v2800
        %2802 = vdwg.mxu0
        %2803 = vmatpush.msra.mxu0 %v2749
        %2804 = vmatpush.msra.mxu0 %v2745
        %2805 = vmatpush.msra.mxu0 %v2741
        %2806 = vmatpush.msra.mxu0 %v2737
        %2807 = vmatpush.msra.mxu0 %v2733
        %2808 = vmatpush.msra.mxu0 %v2729
        %2809 = vmatpush.msra.mxu0 %v2725
        %2810 = vmatpush.msra.mxu0 %v2721
        %2811 = vmatpush.msra.mxu0 %v2717
        %2812 = vmatpush.msra.mxu0 %v2713
        %2813 = vmatpush.msra.mxu0 %v2709
        %2814 = vmatpush.msra.mxu0 %v2705
        %2815 = vmatpush.msra.mxu0 %v2701
        %2816 = vmatpush.msra.mxu0 %v2697
        %2817 = vmatpush.msra.mxu0 %v2693
        %2818 = vmatpush.msra.mxu0 %v2689
        %2819 = vmatmul.f32.gmra.mxu0 %v2680
        %v2820 = vpop.f32.mrf.mxu0
        %v2821 = vadd.f32 %v2755, %v2820
        %2822 = vmatmul.f32.gmra.mxu0 %v2681
        %v2823 = vpop.f32.mrf.mxu0
        %v2824 = vadd.f32 %v2755, %v2823
        %2825 = vmatmul.f32.gmra.mxu0 %v2682
        %v2826 = vpop.f32.mrf.mxu0
        %v2827 = vadd.f32 %v2755, %v2826
        %2828 = vmatmul.f32.gmra.mxu0 %v2683
        %v2829 = vpop.f32.mrf.mxu0
        %v2830 = vadd.f32 %v2755, %v2829
        %2831 = vmatmul.f32.gmra.mxu0 %v2684
        %v2832 = vpop.f32.mrf.mxu0
        %v2833 = vadd.f32 %v2755, %v2832
        %2834 = vmatmul.f32.gmra.mxu0 %v2685
        %v2835 = vpop.f32.mrf.mxu0
        %v2836 = vadd.f32 %v2755, %v2835
        %2837 = vmatmul.f32.gmra.mxu0 %v2686
        %v2838 = vpop.f32.mrf.mxu0
        %v2839 = vadd.f32 %v2755, %v2838
        %2840 = vmatmul.f32.gmra.mxu0 %v2687
        %v2841 = vpop.f32.mrf.mxu0
        %v2842 = vadd.f32 %v2755, %v2841
        %2843 = vdwg.mxu0
        %2844 = vmatpush.msra.mxu0 %v2750
        %2845 = vmatpush.msra.mxu0 %v2746
        %2846 = vmatpush.msra.mxu0 %v2742
        %2847 = vmatpush.msra.mxu0 %v2738
        %2848 = vmatpush.msra.mxu0 %v2734
        %2849 = vmatpush.msra.mxu0 %v2730
        %2850 = vmatpush.msra.mxu0 %v2726
        %2851 = vmatpush.msra.mxu0 %v2722
        %2852 = vmatpush.msra.mxu0 %v2718
        %2853 = vmatpush.msra.mxu0 %v2714
        %2854 = vmatpush.msra.mxu0 %v2710
        %2855 = vmatpush.msra.mxu0 %v2706
        %2856 = vmatpush.msra.mxu0 %v2702
        %2857 = vmatpush.msra.mxu0 %v2698
        %2858 = vmatpush.msra.mxu0 %v2694
        %2859 = vmatpush.msra.mxu0 %v2690
        %2860 = vmatmul.f32.gmra.mxu0 %v2680
        %v2861 = vpop.f32.mrf.mxu0
        %v2862 = vadd.f32 %v2756, %v2861
        %2863 = vmatmul.f32.gmra.mxu0 %v2681
        %v2864 = vpop.f32.mrf.mxu0
        %v2865 = vadd.f32 %v2756, %v2864
        %2866 = vmatmul.f32.gmra.mxu0 %v2682
        %v2867 = vpop.f32.mrf.mxu0
        %v2868 = vadd.f32 %v2756, %v2867
        %2869 = vmatmul.f32.gmra.mxu0 %v2683
        %v2870 = vpop.f32.mrf.mxu0
        %v2871 = vadd.f32 %v2756, %v2870
        %2872 = vmatmul.f32.gmra.mxu0 %v2684
        %v2873 = vpop.f32.mrf.mxu0
        %v2874 = vadd.f32 %v2756, %v2873
        %2875 = vmatmul.f32.gmra.mxu0 %v2685
        %v2876 = vpop.f32.mrf.mxu0
        %v2877 = vadd.f32 %v2756, %v2876
        %2878 = vmatmul.f32.gmra.mxu0 %v2686
        %v2879 = vpop.f32.mrf.mxu0
        %v2880 = vadd.f32 %v2756, %v2879
        %2881 = vmatmul.f32.gmra.mxu0 %v2687
        %v2882 = vpop.f32.mrf.mxu0
        %v2883 = vadd.f32 %v2756, %v2882
        %2884 = vdwg.mxu0
        %2885 = vmatpush.msra.mxu0 %v2751
        %2886 = vmatpush.msra.mxu0 %v2747
        %2887 = vmatpush.msra.mxu0 %v2743
        %2888 = vmatpush.msra.mxu0 %v2739
        %2889 = vmatpush.msra.mxu0 %v2735
        %2890 = vmatpush.msra.mxu0 %v2731
        %2891 = vmatpush.msra.mxu0 %v2727
        %2892 = vmatpush.msra.mxu0 %v2723
        %2893 = vmatpush.msra.mxu0 %v2719
        %2894 = vmatpush.msra.mxu0 %v2715
        %2895 = vmatpush.msra.mxu0 %v2711
        %2896 = vmatpush.msra.mxu0 %v2707
        %2897 = vmatpush.msra.mxu0 %v2703
        %2898 = vmatpush.msra.mxu0 %v2699
        %2899 = vmatpush.msra.mxu0 %v2695
        %2900 = vmatpush.msra.mxu0 %v2691
        %2901 = vmatmul.f32.gmra.mxu0 %v2680
        %v2902 = vpop.f32.mrf.mxu0
        %v2903 = vadd.f32 %v2757, %v2902
        %2904 = vmatmul.f32.gmra.mxu0 %v2681
        %v2905 = vpop.f32.mrf.mxu0
        %v2906 = vadd.f32 %v2757, %v2905
        %2907 = vmatmul.f32.gmra.mxu0 %v2682
        %v2908 = vpop.f32.mrf.mxu0
        %v2909 = vadd.f32 %v2757, %v2908
        %2910 = vmatmul.f32.gmra.mxu0 %v2683
        %v2911 = vpop.f32.mrf.mxu0
        %v2912 = vadd.f32 %v2757, %v2911
        %2913 = vmatmul.f32.gmra.mxu0 %v2684
        %v2914 = vpop.f32.mrf.mxu0
        %v2915 = vadd.f32 %v2757, %v2914
        %2916 = vmatmul.f32.gmra.mxu0 %v2685
        %v2917 = vpop.f32.mrf.mxu0
        %v2918 = vadd.f32 %v2757, %v2917
        %2919 = vmatmul.f32.gmra.mxu0 %v2686
        %v2920 = vpop.f32.mrf.mxu0
        %v2921 = vadd.f32 %v2757, %v2920
        %2922 = vmatmul.f32.gmra.mxu0 %v2687
        %v2923 = vpop.f32.mrf.mxu0
        %v2924 = vadd.f32 %v2757, %v2923
        %2925 = vdwg.mxu0
        %v2926 = vmax.f32 %v2780, 0.0
        %v2927 = vmax.f32 %v2821, 0.0
        %v2928 = vmax.f32 %v2862, 0.0
        %v2929 = vmax.f32 %v2903, 0.0
        %v2930 = vmax.f32 %v2783, 0.0
        %v2931 = vmax.f32 %v2824, 0.0
        %v2932 = vmax.f32 %v2865, 0.0
        %v2933 = vmax.f32 %v2906, 0.0
        %v2934 = vmax.f32 %v2786, 0.0
        %v2935 = vmax.f32 %v2827, 0.0
        %v2936 = vmax.f32 %v2868, 0.0
        %v2937 = vmax.f32 %v2909, 0.0
        %v2938 = vmax.f32 %v2789, 0.0
        %v2939 = vmax.f32 %v2830, 0.0
        %v2940 = vmax.f32 %v2871, 0.0
        %v2941 = vmax.f32 %v2912, 0.0
        %v2942 = vmax.f32 %v2792, 0.0
        %v2943 = vmax.f32 %v2833, 0.0
        %v2944 = vmax.f32 %v2874, 0.0
        %v2945 = vmax.f32 %v2915, 0.0
        %v2946 = vmax.f32 %v2795, 0.0
        %v2947 = vmax.f32 %v2836, 0.0
        %v2948 = vmax.f32 %v2877, 0.0
        %v2949 = vmax.f32 %v2918, 0.0
        %v2950 = vmax.f32 %v2798, 0.0
        %v2951 = vmax.f32 %v2839, 0.0
        %v2952 = vmax.f32 %v2880, 0.0
        %v2953 = vmax.f32 %v2921, 0.0
        %v2954 = vmax.f32 %v2801, 0.0
        %v2955 = vmax.f32 %v2842, 0.0
        %v2956 = vmax.f32 %v2883, 0.0
        %v2957 = vmax.f32 %v2924, 0.0
        %v2958 = vld [vmem:[#allocation8] sm:$0xff]
        %v2959 = vld [vmem:[#allocation8 + $0x8] sm:$0xff]
        %v2960 = vld [vmem:[#allocation8 + $0x10] sm:$0xff]
        %v2961 = vld [vmem:[#allocation8 + $0x18] sm:$0xff]
        %v2962 = vld [vmem:[#allocation8 + $0x20] sm:$0xff]
        %v2963 = vld [vmem:[#allocation8 + $0x28] sm:$0xff]
        %v2964 = vld [vmem:[#allocation8 + $0x30] sm:$0xff]
        %v2965 = vld [vmem:[#allocation8 + $0x38] sm:$0xff]
        %v2966 = vld [vmem:[#allocation8 + $0x40] sm:$0xff]
        %v2967 = vld [vmem:[#allocation8 + $0x48] sm:$0xff]
        %v2968 = vld [vmem:[#allocation8 + $0x50] sm:$0xff]
        %v2969 = vld [vmem:[#allocation8 + $0x58] sm:$0xff]
        %v2970 = vld [vmem:[#allocation8 + $0x60] sm:$0xff]
        %v2971 = vld [vmem:[#allocation8 + $0x68] sm:$0xff]
        %v2972 = vld [vmem:[#allocation8 + $0x70] sm:$0xff]
        %v2973 = vld [vmem:[#allocation8 + $0x78] sm:$0xff]
        %v2974 = vld [vmem:[#allocation8 + $0x80] sm:$0xff]
        %v2975 = vld [vmem:[#allocation8 + $0x88] sm:$0xff]
        %v2976 = vld [vmem:[#allocation8 + $0x90] sm:$0xff]
        %v2977 = vld [vmem:[#allocation8 + $0x98] sm:$0xff]
        %v2978 = vld [vmem:[#allocation8 + $0xa0] sm:$0xff]
        %v2979 = vld [vmem:[#allocation8 + $0xa8] sm:$0xff]
        %v2980 = vld [vmem:[#allocation8 + $0xb0] sm:$0xff]
        %v2981 = vld [vmem:[#allocation8 + $0xb8] sm:$0xff]
        %v2982 = vld [vmem:[#allocation8 + $0xc0] sm:$0xff]
        %v2983 = vld [vmem:[#allocation8 + $0xc8] sm:$0xff]
        %v2984 = vld [vmem:[#allocation8 + $0xd0] sm:$0xff]
        %v2985 = vld [vmem:[#allocation8 + $0xd8] sm:$0xff]
        %v2986 = vld [vmem:[#allocation8 + $0xe0] sm:$0xff]
        %v2987 = vld [vmem:[#allocation8 + $0xe8] sm:$0xff]
        %v2988 = vld [vmem:[#allocation8 + $0xf0] sm:$0xff]
        %v2989 = vld [vmem:[#allocation8 + $0xf8] sm:$0xff]
        %v2990 = vld [vmem:[#allocation8 + $0x100] sm:$0xff]
        %v2991 = vld [vmem:[#allocation8 + $0x108] sm:$0xff]
        %v2992 = vld [vmem:[#allocation8 + $0x110] sm:$0xff]
        %v2993 = vld [vmem:[#allocation8 + $0x118] sm:$0xff]
        %v2994 = vld [vmem:[#allocation8 + $0x120] sm:$0xff]
        %v2995 = vld [vmem:[#allocation8 + $0x128] sm:$0xff]
        %v2996 = vld [vmem:[#allocation8 + $0x130] sm:$0xff]
        %v2997 = vld [vmem:[#allocation8 + $0x138] sm:$0xff]
        %v2998 = vld [vmem:[#allocation8 + $0x140] sm:$0xff]
        %v2999 = vld [vmem:[#allocation8 + $0x148] sm:$0xff]
        %v3000 = vld [vmem:[#allocation8 + $0x150] sm:$0xff]
        %v3001 = vld [vmem:[#allocation8 + $0x158] sm:$0xff]
        %v3002 = vld [vmem:[#allocation8 + $0x160] sm:$0xff]
        %v3003 = vld [vmem:[#allocation8 + $0x168] sm:$0xff]
        %v3004 = vld [vmem:[#allocation8 + $0x170] sm:$0xff]
        %v3005 = vld [vmem:[#allocation8 + $0x178] sm:$0xff]
        %v3006 = vld [vmem:[#allocation8 + $0x180] sm:$0xff]
        %v3007 = vld [vmem:[#allocation8 + $0x188] sm:$0xff]
        %v3008 = vld [vmem:[#allocation8 + $0x190] sm:$0xff]
        %v3009 = vld [vmem:[#allocation8 + $0x198] sm:$0xff]
        %v3010 = vld [vmem:[#allocation8 + $0x1a0] sm:$0xff]
        %v3011 = vld [vmem:[#allocation8 + $0x1a8] sm:$0xff]
        %v3012 = vld [vmem:[#allocation8 + $0x1b0] sm:$0xff]
        %v3013 = vld [vmem:[#allocation8 + $0x1b8] sm:$0xff]
        %v3014 = vld [vmem:[#allocation8 + $0x1c0] sm:$0xff]
        %v3015 = vld [vmem:[#allocation8 + $0x1c8] sm:$0xff]
        %v3016 = vld [vmem:[#allocation8 + $0x1d0] sm:$0xff]
        %v3017 = vld [vmem:[#allocation8 + $0x1d8] sm:$0xff]
        %v3018 = vld [vmem:[#allocation8 + $0x1e0] sm:$0xff]
        %v3019 = vld [vmem:[#allocation8 + $0x1e8] sm:$0xff]
        %v3020 = vld [vmem:[#allocation8 + $0x1f0] sm:$0xff]
        %v3021 = vld [vmem:[#allocation8 + $0x1f8] sm:$0xff]
        %v3022 = vld [vmem:[%s13] sm:$0x1]
        %v3024 = vperm.slane %v3022, 0
        %3026 = vmatpush.msra.mxu0 %v2973
        %3027 = vmatpush.msra.mxu0 %v2972
        %3028 = vmatpush.msra.mxu0 %v2971
        %3029 = vmatpush.msra.mxu0 %v2970
        %3030 = vmatpush.msra.mxu0 %v2969
        %3031 = vmatpush.msra.mxu0 %v2968
        %3032 = vmatpush.msra.mxu0 %v2967
        %3033 = vmatpush.msra.mxu0 %v2966
        %3034 = vmatpush.msra.mxu0 %v2965
        %3035 = vmatpush.msra.mxu0 %v2964
        %3036 = vmatpush.msra.mxu0 %v2963
        %3037 = vmatpush.msra.mxu0 %v2962
        %3038 = vmatpush.msra.mxu0 %v2961
        %3039 = vmatpush.msra.mxu0 %v2960
        %3040 = vmatpush.msra.mxu0 %v2959
        %3041 = vmatpush.msra.mxu0 %v2958
        %3042 = vmatmul.f32.gmra.mxu0 %v2926
        %v3043 = vpop.f32.mrf.mxu0
        %v3044 = vadd.f32 %v3024, %v3043
        %3045 = vmatmul.f32.gmra.mxu0 %v2930
        %v3046 = vpop.f32.mrf.mxu0
        %v3047 = vadd.f32 %v3024, %v3046
        %3048 = vmatmul.f32.gmra.mxu0 %v2934
        %v3049 = vpop.f32.mrf.mxu0
        %v3050 = vadd.f32 %v3024, %v3049
        %3051 = vmatmul.f32.gmra.mxu0 %v2938
        %v3052 = vpop.f32.mrf.mxu0
        %v3053 = vadd.f32 %v3024, %v3052
        %3054 = vmatmul.f32.gmra.mxu0 %v2942
        %v3055 = vpop.f32.mrf.mxu0
        %v3056 = vadd.f32 %v3024, %v3055
        %3057 = vmatmul.f32.gmra.mxu0 %v2946
        %v3058 = vpop.f32.mrf.mxu0
        %v3059 = vadd.f32 %v3024, %v3058
        %3060 = vmatmul.f32.gmra.mxu0 %v2950
        %v3061 = vpop.f32.mrf.mxu0
        %v3062 = vadd.f32 %v3024, %v3061
        %3063 = vmatmul.f32.gmra.mxu0 %v2954
        %v3064 = vpop.f32.mrf.mxu0
        %v3065 = vadd.f32 %v3024, %v3064
        %3066 = vdwg.mxu0
        %3067 = vmatpush.msra.mxu0 %v2989
        %3068 = vmatpush.msra.mxu0 %v2988
        %3069 = vmatpush.msra.mxu0 %v2987
        %3070 = vmatpush.msra.mxu0 %v2986
        %3071 = vmatpush.msra.mxu0 %v2985
        %3072 = vmatpush.msra.mxu0 %v2984
        %3073 = vmatpush.msra.mxu0 %v2983
        %3074 = vmatpush.msra.mxu0 %v2982
        %3075 = vmatpush.msra.mxu0 %v2981
        %3076 = vmatpush.msra.mxu0 %v2980
        %3077 = vmatpush.msra.mxu0 %v2979
        %3078 = vmatpush.msra.mxu0 %v2978
        %3079 = vmatpush.msra.mxu0 %v2977
        %3080 = vmatpush.msra.mxu0 %v2976
        %3081 = vmatpush.msra.mxu0 %v2975
        %3082 = vmatpush.msra.mxu0 %v2974
        %3083 = vmatmul.f32.gmra.mxu0 %v2927
        %v3084 = vpop.f32.mrf.mxu0
        %v3085 = vadd.f32 %v3044, %v3084
        %3086 = vmatmul.f32.gmra.mxu0 %v2931
        %v3087 = vpop.f32.mrf.mxu0
        %v3088 = vadd.f32 %v3047, %v3087
        %3089 = vmatmul.f32.gmra.mxu0 %v2935
        %v3090 = vpop.f32.mrf.mxu0
        %v3091 = vadd.f32 %v3050, %v3090
        %3092 = vmatmul.f32.gmra.mxu0 %v2939
        %v3093 = vpop.f32.mrf.mxu0
        %v3094 = vadd.f32 %v3053, %v3093
        %3095 = vmatmul.f32.gmra.mxu0 %v2943
        %v3096 = vpop.f32.mrf.mxu0
        %v3097 = vadd.f32 %v3056, %v3096
        %3098 = vmatmul.f32.gmra.mxu0 %v2947
        %v3099 = vpop.f32.mrf.mxu0
        %v3100 = vadd.f32 %v3059, %v3099
        %3101 = vmatmul.f32.gmra.mxu0 %v2951
        %v3102 = vpop.f32.mrf.mxu0
        %v3103 = vadd.f32 %v3062, %v3102
        %3104 = vmatmul.f32.gmra.mxu0 %v2955
        %v3105 = vpop.f32.mrf.mxu0
        %v3106 = vadd.f32 %v3065, %v3105
        %3107 = vdwg.mxu0
        %3108 = vmatpush.msra.mxu0 %v3005
        %3109 = vmatpush.msra.mxu0 %v3004
        %3110 = vmatpush.msra.mxu0 %v3003
        %3111 = vmatpush.msra.mxu0 %v3002
        %3112 = vmatpush.msra.mxu0 %v3001
        %3113 = vmatpush.msra.mxu0 %v3000
        %3114 = vmatpush.msra.mxu0 %v2999
        %3115 = vmatpush.msra.mxu0 %v2998
        %3116 = vmatpush.msra.mxu0 %v2997
        %3117 = vmatpush.msra.mxu0 %v2996
        %3118 = vmatpush.msra.mxu0 %v2995
        %3119 = vmatpush.msra.mxu0 %v2994
        %3120 = vmatpush.msra.mxu0 %v2993
        %3121 = vmatpush.msra.mxu0 %v2992
        %3122 = vmatpush.msra.mxu0 %v2991
        %3123 = vmatpush.msra.mxu0 %v2990
        %3124 = vmatmul.f32.gmra.mxu0 %v2928
        %v3125 = vpop.f32.mrf.mxu0
        %v3126 = vadd.f32 %v3085, %v3125
        %3127 = vmatmul.f32.gmra.mxu0 %v2932
        %v3128 = vpop.f32.mrf.mxu0
        %v3129 = vadd.f32 %v3088, %v3128
        %3130 = vmatmul.f32.gmra.mxu0 %v2936
        %v3131 = vpop.f32.mrf.mxu0
        %v3132 = vadd.f32 %v3091, %v3131
        %3133 = vmatmul.f32.gmra.mxu0 %v2940
        %v3134 = vpop.f32.mrf.mxu0
        %v3135 = vadd.f32 %v3094, %v3134
        %3136 = vmatmul.f32.gmra.mxu0 %v2944
        %v3137 = vpop.f32.mrf.mxu0
        %v3138 = vadd.f32 %v3097, %v3137
        %3139 = vmatmul.f32.gmra.mxu0 %v2948
        %v3140 = vpop.f32.mrf.mxu0
        %v3141 = vadd.f32 %v3100, %v3140
        %3142 = vmatmul.f32.gmra.mxu0 %v2952
        %v3143 = vpop.f32.mrf.mxu0
        %v3144 = vadd.f32 %v3103, %v3143
        %3145 = vmatmul.f32.gmra.mxu0 %v2956
        %v3146 = vpop.f32.mrf.mxu0
        %v3147 = vadd.f32 %v3106, %v3146
        %3148 = vdwg.mxu0
        %3149 = vmatpush.msra.mxu0 %v3021
        %3150 = vmatpush.msra.mxu0 %v3020
        %3151 = vmatpush.msra.mxu0 %v3019
        %3152 = vmatpush.msra.mxu0 %v3018
        %3153 = vmatpush.msra.mxu0 %v3017
        %3154 = vmatpush.msra.mxu0 %v3016
        %3155 = vmatpush.msra.mxu0 %v3015
        %3156 = vmatpush.msra.mxu0 %v3014
        %3157 = vmatpush.msra.mxu0 %v3013
        %3158 = vmatpush.msra.mxu0 %v3012
        %3159 = vmatpush.msra.mxu0 %v3011
        %3160 = vmatpush.msra.mxu0 %v3010
        %3161 = vmatpush.msra.mxu0 %v3009
        %3162 = vmatpush.msra.mxu0 %v3008
        %3163 = vmatpush.msra.mxu0 %v3007
        %3164 = vmatpush.msra.mxu0 %v3006
        %3165 = vmatmul.f32.gmra.mxu0 %v2929
        %v3166 = vpop.f32.mrf.mxu0
        %v3167 = vadd.f32 %v3126, %v3166
        %3168 = vmatmul.f32.gmra.mxu0 %v2933
        %v3169 = vpop.f32.mrf.mxu0
        %v3170 = vadd.f32 %v3129, %v3169
        %3171 = vmatmul.f32.gmra.mxu0 %v2937
        %v3172 = vpop.f32.mrf.mxu0
        %v3173 = vadd.f32 %v3132, %v3172
        %3174 = vmatmul.f32.gmra.mxu0 %v2941
        %v3175 = vpop.f32.mrf.mxu0
        %v3176 = vadd.f32 %v3135, %v3175
        %3177 = vmatmul.f32.gmra.mxu0 %v2945
        %v3178 = vpop.f32.mrf.mxu0
        %v3179 = vadd.f32 %v3138, %v3178
        %3180 = vmatmul.f32.gmra.mxu0 %v2949
        %v3181 = vpop.f32.mrf.mxu0
        %v3182 = vadd.f32 %v3141, %v3181
        %3183 = vmatmul.f32.gmra.mxu0 %v2953
        %v3184 = vpop.f32.mrf.mxu0
        %v3185 = vadd.f32 %v3144, %v3184
        %3186 = vmatmul.f32.gmra.mxu0 %v2957
        %v3187 = vpop.f32.mrf.mxu0
        %v3188 = vadd.f32 %v3147, %v3187
        %3189 = vdwg.mxu0
        %v3190 = vadd.f32 %v2496, %v3167
        %v3191 = vadd.f32 %v2497, %v3170
        %v3192 = vadd.f32 %v2498, %v3173
        %v3193 = vadd.f32 %v2499, %v3176
        %v3194 = vadd.f32 %v2500, %v3179
        %v3195 = vadd.f32 %v2501, %v3182
        %v3196 = vadd.f32 %v2502, %v3185
        %v3197 = vadd.f32 %v2503, %v3188
        %s3198 = scalar_lea.vmem %s1, 1
        %v3199 = vld [vmem:[%s3198] sm:$0x1]
        %s3200 = scalar_lea.vmem %s2, 1
        %v3201 = vld [vmem:[%s3200] sm:$0x1]
        %3202 = vadd.xlane.f32.xlu0 %v3190
        %v3203 = vpop.xlane.xlu0 %3202
        %3204 = vadd.xlane.f32.xlu0 %v3191
        %v3205 = vpop.xlane.xlu0 %3204
        %3206 = vadd.xlane.f32.xlu0 %v3192
        %v3207 = vpop.xlane.xlu0 %3206
        %3208 = vadd.xlane.f32.xlu0 %v3193
        %v3209 = vpop.xlane.xlu0 %3208
        %3210 = vadd.xlane.f32.xlu0 %v3194
        %v3211 = vpop.xlane.xlu0 %3210
        %3212 = vadd.xlane.f32.xlu0 %v3195
        %v3213 = vpop.xlane.xlu0 %3212
        %3214 = vadd.xlane.f32.xlu0 %v3196
        %v3215 = vpop.xlane.xlu0 %3214
        %3216 = vadd.xlane.f32.xlu0 %v3197
        %v3217 = vpop.xlane.xlu0 %3216
        %v3218 = vmul.f32 %v3203, %v692
        %v3219 = vmul.f32 %v3205, %v692
        %v3220 = vmul.f32 %v3207, %v692
        %v3221 = vmul.f32 %v3209, %v692
        %v3222 = vmul.f32 %v3211, %v692
        %v3223 = vmul.f32 %v3213, %v692
        %v3224 = vmul.f32 %v3215, %v692
        %v3225 = vmul.f32 %v3217, %v692
        %v3226 = vsub.f32 %v3190, %v3218
        %v3227 = vsub.f32 %v3191, %v3219
        %v3228 = vsub.f32 %v3192, %v3220
        %v3229 = vsub.f32 %v3193, %v3221
        %v3230 = vsub.f32 %v3194, %v3222
        %v3231 = vsub.f32 %v3195, %v3223
        %v3232 = vsub.f32 %v3196, %v3224
        %v3233 = vsub.f32 %v3197, %v3225
        %v3234 = vmul.f32 %v3226, %v3226
        %v3235 = vmul.f32 %v3227, %v3227
        %v3236 = vmul.f32 %v3228, %v3228
        %v3237 = vmul.f32 %v3229, %v3229
        %v3238 = vmul.f32 %v3230, %v3230
        %v3239 = vmul.f32 %v3231, %v3231
        %v3240 = vmul.f32 %v3232, %v3232
        %v3241 = vmul.f32 %v3233, %v3233
        %3242 = vadd.xlane.f32.xlu0 %v3234
        %v3243 = vpop.xlane.xlu0 %3242
        %3244 = vadd.xlane.f32.xlu0 %v3235
        %v3245 = vpop.xlane.xlu0 %3244
        %3246 = vadd.xlane.f32.xlu0 %v3236
        %v3247 = vpop.xlane.xlu0 %3246
        %3248 = vadd.xlane.f32.xlu0 %v3237
        %v3249 = vpop.xlane.xlu0 %3248
        %3250 = vadd.xlane.f32.xlu0 %v3238
        %v3251 = vpop.xlane.xlu0 %3250
        %3252 = vadd.xlane.f32.xlu0 %v3239
        %v3253 = vpop.xlane.xlu0 %3252
        %3254 = vadd.xlane.f32.xlu0 %v3240
        %v3255 = vpop.xlane.xlu0 %3254
        %3256 = vadd.xlane.f32.xlu0 %v3241
        %v3257 = vpop.xlane.xlu0 %3256
        %v3258 = vmul.f32 %v3243, %v692
        %v3259 = vmul.f32 %v3245, %v692
        %v3260 = vmul.f32 %v3247, %v692
        %v3261 = vmul.f32 %v3249, %v692
        %v3262 = vmul.f32 %v3251, %v692
        %v3263 = vmul.f32 %v3253, %v692
        %v3264 = vmul.f32 %v3255, %v692
        %v3265 = vmul.f32 %v3257, %v692
        %v3266 = vadd.f32 %v3258, 1e-05
        %v3267 = vadd.f32 %v3259, 1e-05
        %v3268 = vadd.f32 %v3260, 1e-05
        %v3269 = vadd.f32 %v3261, 1e-05
        %v3270 = vadd.f32 %v3262, 1e-05
        %v3271 = vadd.f32 %v3263, 1e-05
        %v3272 = vadd.f32 %v3264, 1e-05
        %v3273 = vadd.f32 %v3265, 1e-05
        %v3274 = vrsqrt.pop %v3266
        %v3275 = vmul.f32 %v3274, %v3266
        %v3276 = vmul.f32 %v3275, %v3274
        %v3277 = vmul.f32 0.5, %v3276
        %v3278 = vsub.f32 1.5, %v3277
        %v3279 = vmul.f32 %v3274, %v3278
        %vm3280 = vweird.f32 %v3266
        %vm3281 = vweird.f32 %v3274
        %vm3282 = vmor %vm3280, %vm3281
        %v3283 = vsel %vm3282, %v3274, %v3279
        %v3284 = vrsqrt.pop %v3267
        %v3285 = vmul.f32 %v3284, %v3267
        %v3286 = vmul.f32 %v3285, %v3284
        %v3287 = vmul.f32 0.5, %v3286
        %v3288 = vsub.f32 1.5, %v3287
        %v3289 = vmul.f32 %v3284, %v3288
        %vm3290 = vweird.f32 %v3267
        %vm3291 = vweird.f32 %v3284
        %vm3292 = vmor %vm3290, %vm3291
        %v3293 = vsel %vm3292, %v3284, %v3289
        %v3294 = vrsqrt.pop %v3268
        %v3295 = vmul.f32 %v3294, %v3268
        %v3296 = vmul.f32 %v3295, %v3294
        %v3297 = vmul.f32 0.5, %v3296
        %v3298 = vsub.f32 1.5, %v3297
        %v3299 = vmul.f32 %v3294, %v3298
        %vm3300 = vweird.f32 %v3268
        %vm3301 = vweird.f32 %v3294
        %vm3302 = vmor %vm3300, %vm3301
        %v3303 = vsel %vm3302, %v3294, %v3299
        %v3304 = vrsqrt.pop %v3269
        %v3305 = vmul.f32 %v3304, %v3269
        %v3306 = vmul.f32 %v3305, %v3304
        %v3307 = vmul.f32 0.5, %v3306
        %v3308 = vsub.f32 1.5, %v3307
        %v3309 = vmul.f32 %v3304, %v3308
        %vm3310 = vweird.f32 %v3269
        %vm3311 = vweird.f32 %v3304
        %vm3312 = vmor %vm3310, %vm3311
        %v3313 = vsel %vm3312, %v3304, %v3309
        %v3314 = vrsqrt.pop %v3270
        %v3315 = vmul.f32 %v3314, %v3270
        %v3316 = vmul.f32 %v3315, %v3314
        %v3317 = vmul.f32 0.5, %v3316
        %v3318 = vsub.f32 1.5, %v3317
        %v3319 = vmul.f32 %v3314, %v3318
        %vm3320 = vweird.f32 %v3270
        %vm3321 = vweird.f32 %v3314
        %vm3322 = vmor %vm3320, %vm3321
        %v3323 = vsel %vm3322, %v3314, %v3319
        %v3324 = vrsqrt.pop %v3271
        %v3325 = vmul.f32 %v3324, %v3271
        %v3326 = vmul.f32 %v3325, %v3324
        %v3327 = vmul.f32 0.5, %v3326
        %v3328 = vsub.f32 1.5, %v3327
        %v3329 = vmul.f32 %v3324, %v3328
        %vm3330 = vweird.f32 %v3271
        %vm3331 = vweird.f32 %v3324
        %vm3332 = vmor %vm3330, %vm3331
        %v3333 = vsel %vm3332, %v3324, %v3329
        %v3334 = vrsqrt.pop %v3272
        %v3335 = vmul.f32 %v3334, %v3272
        %v3336 = vmul.f32 %v3335, %v3334
        %v3337 = vmul.f32 0.5, %v3336
        %v3338 = vsub.f32 1.5, %v3337
        %v3339 = vmul.f32 %v3334, %v3338
        %vm3340 = vweird.f32 %v3272
        %vm3341 = vweird.f32 %v3334
        %vm3342 = vmor %vm3340, %vm3341
        %v3343 = vsel %vm3342, %v3334, %v3339
        %v3344 = vrsqrt.pop %v3273
        %v3345 = vmul.f32 %v3344, %v3273
        %v3346 = vmul.f32 %v3345, %v3344
        %v3347 = vmul.f32 0.5, %v3346
        %v3348 = vsub.f32 1.5, %v3347
        %v3349 = vmul.f32 %v3344, %v3348
        %vm3350 = vweird.f32 %v3273
        %vm3351 = vweird.f32 %v3344
        %vm3352 = vmor %vm3350, %vm3351
        %v3353 = vsel %vm3352, %v3344, %v3349
        %v3354 = vmul.f32 %v3226, %v3283
        %v3355 = vmul.f32 %v3227, %v3293
        %v3356 = vmul.f32 %v3228, %v3303
        %v3357 = vmul.f32 %v3229, %v3313
        %v3358 = vmul.f32 %v3230, %v3323
        %v3359 = vmul.f32 %v3231, %v3333
        %v3360 = vmul.f32 %v3232, %v3343
        %v3361 = vmul.f32 %v3233, %v3353
        %v3363 = vperm.slane %v3199, 0
        %v3365 = vmul.f32 %v3354, %v3363
        %v3366 = vmul.f32 %v3355, %v3363
        %v3367 = vmul.f32 %v3356, %v3363
        %v3368 = vmul.f32 %v3357, %v3363
        %v3369 = vmul.f32 %v3358, %v3363
        %v3370 = vmul.f32 %v3359, %v3363
        %v3371 = vmul.f32 %v3360, %v3363
        %v3372 = vmul.f32 %v3361, %v3363
        %v3374 = vperm.slane %v3201, 0
        %v3376 = vadd.f32 %v3365, %v3374
        %v3377 = vadd.f32 %v3366, %v3374
        %v3378 = vadd.f32 %v3367, %v3374
        %v3379 = vadd.f32 %v3368, %v3374
        %v3380 = vadd.f32 %v3369, %v3374
        %v3381 = vadd.f32 %v3370, %v3374
        %v3382 = vadd.f32 %v3371, %v3374
        %v3383 = vadd.f32 %v3372, %v3374
        %s3384 = scalar_lea.vmem %s3, 128
        %v3385 = vld [vmem:[%s3384] sm:$0xff]
        %v3386 = vld [vmem:[%s3384 + $0x8] sm:$0xff]
        %v3387 = vld [vmem:[%s3384 + $0x10] sm:$0xff]
        %v3388 = vld [vmem:[%s3384 + $0x18] sm:$0xff]
        %v3389 = vld [vmem:[%s3384 + $0x20] sm:$0xff]
        %v3390 = vld [vmem:[%s3384 + $0x28] sm:$0xff]
        %v3391 = vld [vmem:[%s3384 + $0x30] sm:$0xff]
        %v3392 = vld [vmem:[%s3384 + $0x38] sm:$0xff]
        %v3393 = vld [vmem:[%s3384 + $0x40] sm:$0xff]
        %v3394 = vld [vmem:[%s3384 + $0x48] sm:$0xff]
        %v3395 = vld [vmem:[%s3384 + $0x50] sm:$0xff]
        %v3396 = vld [vmem:[%s3384 + $0x58] sm:$0xff]
        %v3397 = vld [vmem:[%s3384 + $0x60] sm:$0xff]
        %v3398 = vld [vmem:[%s3384 + $0x68] sm:$0xff]
        %v3399 = vld [vmem:[%s3384 + $0x70] sm:$0xff]
        %v3400 = vld [vmem:[%s3384 + $0x78] sm:$0xff]
        %3401 = vmatpush.msra.mxu0 %v3400
        %3402 = vmatpush.msra.mxu0 %v3399
        %3403 = vmatpush.msra.mxu0 %v3398
        %3404 = vmatpush.msra.mxu0 %v3397
        %3405 = vmatpush.msra.mxu0 %v3396
        %3406 = vmatpush.msra.mxu0 %v3395
        %3407 = vmatpush.msra.mxu0 %v3394
        %3408 = vmatpush.msra.mxu0 %v3393
        %3409 = vmatpush.msra.mxu0 %v3392
        %3410 = vmatpush.msra.mxu0 %v3391
        %3411 = vmatpush.msra.mxu0 %v3390
        %3412 = vmatpush.msra.mxu0 %v3389
        %3413 = vmatpush.msra.mxu0 %v3388
        %3414 = vmatpush.msra.mxu0 %v3387
        %3415 = vmatpush.msra.mxu0 %v3386
        %3416 = vmatpush.msra.mxu0 %v3385
        %3417 = vmatmul.f32.gmra.mxu0 %v3376
        %v3418 = vpop.f32.mrf.mxu0
        %v3419 = vadd.f32 0.0, %v3418
        %3420 = vmatmul.f32.gmra.mxu0 %v3377
        %v3421 = vpop.f32.mrf.mxu0
        %v3422 = vadd.f32 0.0, %v3421
        %3423 = vmatmul.f32.gmra.mxu0 %v3378
        %v3424 = vpop.f32.mrf.mxu0
        %v3425 = vadd.f32 0.0, %v3424
        %3426 = vmatmul.f32.gmra.mxu0 %v3379
        %v3427 = vpop.f32.mrf.mxu0
        %v3428 = vadd.f32 0.0, %v3427
        %3429 = vmatmul.f32.gmra.mxu0 %v3380
        %v3430 = vpop.f32.mrf.mxu0
        %v3431 = vadd.f32 0.0, %v3430
        %3432 = vmatmul.f32.gmra.mxu0 %v3381
        %v3433 = vpop.f32.mrf.mxu0
        %v3434 = vadd.f32 0.0, %v3433
        %3435 = vmatmul.f32.gmra.mxu0 %v3382
        %v3436 = vpop.f32.mrf.mxu0
        %v3437 = vadd.f32 0.0, %v3436
        %3438 = vmatmul.f32.gmra.mxu0 %v3383
        %v3439 = vpop.f32.mrf.mxu0
        %v3440 = vadd.f32 0.0, %v3439
        %3441 = vdwg.mxu0
        %s3442 = scalar_lea.vmem [#allocation2], 128
        %v3443 = vld [vmem:[%s3442] sm:$0xff]
        %v3444 = vld [vmem:[%s3442 + $0x8] sm:$0xff]
        %v3445 = vld [vmem:[%s3442 + $0x10] sm:$0xff]
        %v3446 = vld [vmem:[%s3442 + $0x18] sm:$0xff]
        %v3447 = vld [vmem:[%s3442 + $0x20] sm:$0xff]
        %v3448 = vld [vmem:[%s3442 + $0x28] sm:$0xff]
        %v3449 = vld [vmem:[%s3442 + $0x30] sm:$0xff]
        %v3450 = vld [vmem:[%s3442 + $0x38] sm:$0xff]
        %v3451 = vld [vmem:[%s3442 + $0x40] sm:$0xff]
        %v3452 = vld [vmem:[%s3442 + $0x48] sm:$0xff]
        %v3453 = vld [vmem:[%s3442 + $0x50] sm:$0xff]
        %v3454 = vld [vmem:[%s3442 + $0x58] sm:$0xff]
        %v3455 = vld [vmem:[%s3442 + $0x60] sm:$0xff]
        %v3456 = vld [vmem:[%s3442 + $0x68] sm:$0xff]
        %v3457 = vld [vmem:[%s3442 + $0x70] sm:$0xff]
        %v3458 = vld [vmem:[%s3442 + $0x78] sm:$0xff]
        %3459 = vmatpush.msra.mxu0 %v3458
        %3460 = vmatpush.msra.mxu0 %v3457
        %3461 = vmatpush.msra.mxu0 %v3456
        %3462 = vmatpush.msra.mxu0 %v3455
        %3463 = vmatpush.msra.mxu0 %v3454
        %3464 = vmatpush.msra.mxu0 %v3453
        %3465 = vmatpush.msra.mxu0 %v3452
        %3466 = vmatpush.msra.mxu0 %v3451
        %3467 = vmatpush.msra.mxu0 %v3450
        %3468 = vmatpush.msra.mxu0 %v3449
        %3469 = vmatpush.msra.mxu0 %v3448
        %3470 = vmatpush.msra.mxu0 %v3447
        %3471 = vmatpush.msra.mxu0 %v3446
        %3472 = vmatpush.msra.mxu0 %v3445
        %3473 = vmatpush.msra.mxu0 %v3444
        %3474 = vmatpush.msra.mxu0 %v3443
        %3475 = vmatmul.f32.gmra.mxu0 %v3376
        %v3476 = vpop.f32.mrf.mxu0
        %v3477 = vadd.f32 0.0, %v3476
        %3478 = vmatmul.f32.gmra.mxu0 %v3377
        %v3479 = vpop.f32.mrf.mxu0
        %v3480 = vadd.f32 0.0, %v3479
        %3481 = vmatmul.f32.gmra.mxu0 %v3378
        %v3482 = vpop.f32.mrf.mxu0
        %v3483 = vadd.f32 0.0, %v3482
        %3484 = vmatmul.f32.gmra.mxu0 %v3379
        %v3485 = vpop.f32.mrf.mxu0
        %v3486 = vadd.f32 0.0, %v3485
        %3487 = vmatmul.f32.gmra.mxu0 %v3380
        %v3488 = vpop.f32.mrf.mxu0
        %v3489 = vadd.f32 0.0, %v3488
        %3490 = vmatmul.f32.gmra.mxu0 %v3381
        %v3491 = vpop.f32.mrf.mxu0
        %v3492 = vadd.f32 0.0, %v3491
        %3493 = vmatmul.f32.gmra.mxu0 %v3382
        %v3494 = vpop.f32.mrf.mxu0
        %v3495 = vadd.f32 0.0, %v3494
        %3496 = vmatmul.f32.gmra.mxu0 %v3383
        %v3497 = vpop.f32.mrf.mxu0
        %v3498 = vadd.f32 0.0, %v3497
        %3499 = vdwg.mxu0
        %s3500 = scalar_lea.vmem [#allocation5], 128
        %v3501 = vld [vmem:[%s3500] sm:$0xff]
        %v3502 = vld [vmem:[%s3500 + $0x8] sm:$0xff]
        %v3503 = vld [vmem:[%s3500 + $0x10] sm:$0xff]
        %v3504 = vld [vmem:[%s3500 + $0x18] sm:$0xff]
        %v3505 = vld [vmem:[%s3500 + $0x20] sm:$0xff]
        %v3506 = vld [vmem:[%s3500 + $0x28] sm:$0xff]
        %v3507 = vld [vmem:[%s3500 + $0x30] sm:$0xff]
        %v3508 = vld [vmem:[%s3500 + $0x38] sm:$0xff]
        %v3509 = vld [vmem:[%s3500 + $0x40] sm:$0xff]
        %v3510 = vld [vmem:[%s3500 + $0x48] sm:$0xff]
        %v3511 = vld [vmem:[%s3500 + $0x50] sm:$0xff]
        %v3512 = vld [vmem:[%s3500 + $0x58] sm:$0xff]
        %v3513 = vld [vmem:[%s3500 + $0x60] sm:$0xff]
        %v3514 = vld [vmem:[%s3500 + $0x68] sm:$0xff]
        %v3515 = vld [vmem:[%s3500 + $0x70] sm:$0xff]
        %v3516 = vld [vmem:[%s3500 + $0x78] sm:$0xff]
        %3517 = vmatpush.msra.mxu0 %v3516
        %3518 = vmatpush.msra.mxu0 %v3515
        %3519 = vmatpush.msra.mxu0 %v3514
        %3520 = vmatpush.msra.mxu0 %v3513
        %3521 = vmatpush.msra.mxu0 %v3512
        %3522 = vmatpush.msra.mxu0 %v3511
        %3523 = vmatpush.msra.mxu0 %v3510
        %3524 = vmatpush.msra.mxu0 %v3509
        %3525 = vmatpush.msra.mxu0 %v3508
        %3526 = vmatpush.msra.mxu0 %v3507
        %3527 = vmatpush.msra.mxu0 %v3506
        %3528 = vmatpush.msra.mxu0 %v3505
        %3529 = vmatpush.msra.mxu0 %v3504
        %3530 = vmatpush.msra.mxu0 %v3503
        %3531 = vmatpush.msra.mxu0 %v3502
        %3532 = vmatpush.msra.mxu0 %v3501
        %3533 = vmatmul.f32.gmra.mxu0 %v3376
        %v3534 = vpop.f32.mrf.mxu0
        %v3535 = vadd.f32 0.0, %v3534
        %3536 = vmatmul.f32.gmra.mxu0 %v3377
        %v3537 = vpop.f32.mrf.mxu0
        %v3538 = vadd.f32 0.0, %v3537
        %3539 = vmatmul.f32.gmra.mxu0 %v3378
        %v3540 = vpop.f32.mrf.mxu0
        %v3541 = vadd.f32 0.0, %v3540
        %3542 = vmatmul.f32.gmra.mxu0 %v3379
        %v3543 = vpop.f32.mrf.mxu0
        %v3544 = vadd.f32 0.0, %v3543
        %3545 = vmatmul.f32.gmra.mxu0 %v3380
        %v3546 = vpop.f32.mrf.mxu0
        %v3547 = vadd.f32 0.0, %v3546
        %3548 = vmatmul.f32.gmra.mxu0 %v3381
        %v3549 = vpop.f32.mrf.mxu0
        %v3550 = vadd.f32 0.0, %v3549
        %3551 = vmatmul.f32.gmra.mxu0 %v3382
        %v3552 = vpop.f32.mrf.mxu0
        %v3553 = vadd.f32 0.0, %v3552
        %3554 = vmatmul.f32.gmra.mxu0 %v3383
        %v3555 = vpop.f32.mrf.mxu0
        %v3556 = vadd.f32 0.0, %v3555
        %3557 = vdwg.mxu0
        %v3559 = vsel %vm1030, %v3419, 0
        %v3562 = vsel %vm1030, %v3422, 0
        %v3565 = vsel %vm1030, %v3425, 0
        %v3568 = vsel %vm1030, %v3428, 0
        %v3571 = vsel %vm1030, %v3431, 0
        %v3574 = vsel %vm1030, %v3434, 0
        %v3577 = vsel %vm1030, %v3437, 0
        %v3580 = vsel %vm1030, %v3440, 0
        %v3583 = vsel %vm1030, %v3477, 0
        %v3586 = vsel %vm1030, %v3480, 0
        %v3589 = vsel %vm1030, %v3483, 0
        %v3592 = vsel %vm1030, %v3486, 0
        %v3595 = vsel %vm1030, %v3489, 0
        %v3598 = vsel %vm1030, %v3492, 0
        %v3601 = vsel %vm1030, %v3495, 0
        %v3604 = vsel %vm1030, %v3498, 0
        %3606 = vmatpush.xpose.msra.mxu0 0.0
        %3607 = vmatpush.xpose.msra.mxu0 0.0
        %3608 = vmatpush.xpose.msra.mxu0 0.0
        %3609 = vmatpush.xpose.msra.mxu0 0.0
        %3610 = vmatpush.xpose.msra.mxu0 0.0
        %3611 = vmatpush.xpose.msra.mxu0 0.0
        %3612 = vmatpush.xpose.msra.mxu0 0.0
        %3613 = vmatpush.xpose.msra.mxu0 0.0
        %3614 = vmatpush.xpose.msra.mxu0 %v3604
        %3615 = vmatpush.xpose.msra.mxu0 %v3601
        %3616 = vmatpush.xpose.msra.mxu0 %v3598
        %3617 = vmatpush.xpose.msra.mxu0 %v3595
        %3618 = vmatpush.xpose.msra.mxu0 %v3592
        %3619 = vmatpush.xpose.msra.mxu0 %v3589
        %3620 = vmatpush.xpose.msra.mxu0 %v3586
        %3621 = vmatpush.xpose.msra.mxu0 %v3583
        %3622 = vmatmul.f32.gmra.mxu0 %v3559
        %v3623 = vpop.f32.mrf.mxu0
        %v3624 = vadd.f32 0.0, %v3623
        %3625 = vmatmul.f32.gmra.mxu0 %v3562
        %v3626 = vpop.f32.mrf.mxu0
        %v3627 = vadd.f32 0.0, %v3626
        %3628 = vmatmul.f32.gmra.mxu0 %v3565
        %v3629 = vpop.f32.mrf.mxu0
        %v3630 = vadd.f32 0.0, %v3629
        %3631 = vmatmul.f32.gmra.mxu0 %v3568
        %v3632 = vpop.f32.mrf.mxu0
        %v3633 = vadd.f32 0.0, %v3632
        %3634 = vmatmul.f32.gmra.mxu0 %v3571
        %v3635 = vpop.f32.mrf.mxu0
        %v3636 = vadd.f32 0.0, %v3635
        %3637 = vmatmul.f32.gmra.mxu0 %v3574
        %v3638 = vpop.f32.mrf.mxu0
        %v3639 = vadd.f32 0.0, %v3638
        %3640 = vmatmul.f32.gmra.mxu0 %v3577
        %v3641 = vpop.f32.mrf.mxu0
        %v3642 = vadd.f32 0.0, %v3641
        %3643 = vmatmul.f32.gmra.mxu0 %v3580
        %v3644 = vpop.f32.mrf.mxu0
        %v3645 = vadd.f32 0.0, %v3644
        %3646 = vdwg.mxu0
        %v3647 = vmul.f32 %v3624, 0.088388346
        %v3648 = vmul.f32 %v3627, 0.088388346
        %v3649 = vmul.f32 %v3630, 0.088388346
        %v3650 = vmul.f32 %v3633, 0.088388346
        %v3651 = vmul.f32 %v3636, 0.088388346
        %v3652 = vmul.f32 %v3639, 0.088388346
        %v3653 = vmul.f32 %v3642, 0.088388346
        %v3654 = vmul.f32 %v3645, 0.088388346
        %v3655 = vsel %vm660, %v3647, -inf
        %v3656 = vsel %vm661, %v3648, -inf
        %v3657 = vsel %vm662, %v3649, -inf
        %v3658 = vsel %vm663, %v3650, -inf
        %v3659 = vsel %vm664, %v3651, -inf
        %v3660 = vsel %vm665, %v3652, -inf
        %v3661 = vsel %vm666, %v3653, -inf
        %v3662 = vsel %vm667, %v3654, -inf
        %v3663 = vsel %vm1136, %v3655, -inf
        %3664 = vmax.xlane.f32.xlu0 %v3663
        %v3665 = vpop.xlane.xlu0 %3664
        %v3666 = vsel %vm1136, %v3656, -inf
        %3667 = vmax.xlane.f32.xlu0 %v3666
        %v3668 = vpop.xlane.xlu0 %3667
        %v3669 = vsel %vm1136, %v3657, -inf
        %3670 = vmax.xlane.f32.xlu0 %v3669
        %v3671 = vpop.xlane.xlu0 %3670
        %v3672 = vsel %vm1136, %v3658, -inf
        %3673 = vmax.xlane.f32.xlu0 %v3672
        %v3674 = vpop.xlane.xlu0 %3673
        %v3675 = vsel %vm1136, %v3659, -inf
        %3676 = vmax.xlane.f32.xlu0 %v3675
        %v3677 = vpop.xlane.xlu0 %3676
        %v3678 = vsel %vm1136, %v3660, -inf
        %3679 = vmax.xlane.f32.xlu0 %v3678
        %v3680 = vpop.xlane.xlu0 %3679
        %v3681 = vsel %vm1136, %v3661, -inf
        %3682 = vmax.xlane.f32.xlu0 %v3681
        %v3683 = vpop.xlane.xlu0 %3682
        %v3684 = vsel %vm1136, %v3662, -inf
        %3685 = vmax.xlane.f32.xlu0 %v3684
        %v3686 = vpop.xlane.xlu0 %3685
        %v3687 = vsub.f32 %v3655, %v3665
        %v3688 = vsub.f32 %v3656, %v3668
        %v3689 = vsub.f32 %v3657, %v3671
        %v3690 = vsub.f32 %v3658, %v3674
        %v3691 = vsub.f32 %v3659, %v3677
        %v3692 = vsub.f32 %v3660, %v3680
        %v3693 = vsub.f32 %v3661, %v3683
        %v3694 = vsub.f32 %v3662, %v3686
        %v3695 = vmul.f32 %v3687, 1.442695
        %v3696 = vpow.pop %v3695
        %v3697 = vmul.f32 %v3688, 1.442695
        %v3698 = vpow.pop %v3697
        %v3699 = vmul.f32 %v3689, 1.442695
        %v3700 = vpow.pop %v3699
        %v3701 = vmul.f32 %v3690, 1.442695
        %v3702 = vpow.pop %v3701
        %v3703 = vmul.f32 %v3691, 1.442695
        %v3704 = vpow.pop %v3703
        %v3705 = vmul.f32 %v3692, 1.442695
        %v3706 = vpow.pop %v3705
        %v3707 = vmul.f32 %v3693, 1.442695
        %v3708 = vpow.pop %v3707
        %v3709 = vmul.f32 %v3694, 1.442695
        %v3710 = vpow.pop %v3709
        %v3711 = vsel %vm1136, %v3696, 0.0
        %3712 = vadd.xlane.f32.xlu0 %v3711
        %v3713 = vpop.xlane.xlu0 %3712
        %v3714 = vsel %vm1136, %v3698, 0.0
        %3715 = vadd.xlane.f32.xlu0 %v3714
        %v3716 = vpop.xlane.xlu0 %3715
        %v3717 = vsel %vm1136, %v3700, 0.0
        %3718 = vadd.xlane.f32.xlu0 %v3717
        %v3719 = vpop.xlane.xlu0 %3718
        %v3720 = vsel %vm1136, %v3702, 0.0
        %3721 = vadd.xlane.f32.xlu0 %v3720
        %v3722 = vpop.xlane.xlu0 %3721
        %v3723 = vsel %vm1136, %v3704, 0.0
        %3724 = vadd.xlane.f32.xlu0 %v3723
        %v3725 = vpop.xlane.xlu0 %3724
        %v3726 = vsel %vm1136, %v3706, 0.0
        %3727 = vadd.xlane.f32.xlu0 %v3726
        %v3728 = vpop.xlane.xlu0 %3727
        %v3729 = vsel %vm1136, %v3708, 0.0
        %3730 = vadd.xlane.f32.xlu0 %v3729
        %v3731 = vpop.xlane.xlu0 %3730
        %v3732 = vsel %vm1136, %v3710, 0.0
        %3733 = vadd.xlane.f32.xlu0 %v3732
        %v3734 = vpop.xlane.xlu0 %3733
        %v3735 = vrcp.pop %v3713
        %v3736 = vrcp.pop %v3716
        %v3737 = vrcp.pop %v3719
        %v3738 = vrcp.pop %v3722
        %v3739 = vrcp.pop %v3725
        %v3740 = vrcp.pop %v3728
        %v3741 = vrcp.pop %v3731
        %v3742 = vrcp.pop %v3734
        %v3743 = vmul.f32 %v3696, %v3735
        %v3744 = vmul.f32 %v3698, %v3736
        %v3745 = vmul.f32 %v3700, %v3737
        %v3746 = vmul.f32 %v3702, %v3738
        %v3747 = vmul.f32 %v3704, %v3739
        %v3748 = vmul.f32 %v3706, %v3740
        %v3749 = vmul.f32 %v3708, %v3741
        %v3750 = vmul.f32 %v3710, %v3742
        %v3752 = vsel %vm1136, %v3743, 0
        %v3755 = vsel %vm1136, %v3744, 0
        %v3758 = vsel %vm1136, %v3745, 0
        %v3761 = vsel %vm1136, %v3746, 0
        %v3764 = vsel %vm1136, %v3747, 0
        %v3767 = vsel %vm1136, %v3748, 0
        %v3770 = vsel %vm1136, %v3749, 0
        %v3773 = vsel %vm1136, %v3750, 0
        %3775 = vmatpush.msra.mxu0 0.0
        %3776 = vmatpush.msra.mxu0 0.0
        %3777 = vmatpush.msra.mxu0 0.0
        %3778 = vmatpush.msra.mxu0 0.0
        %3779 = vmatpush.msra.mxu0 0.0
        %3780 = vmatpush.msra.mxu0 0.0
        %3781 = vmatpush.msra.mxu0 0.0
        %3782 = vmatpush.msra.mxu0 0.0
        %3783 = vmatpush.msra.mxu0 %v3556
        %3784 = vmatpush.msra.mxu0 %v3553
        %3785 = vmatpush.msra.mxu0 %v3550
        %3786 = vmatpush.msra.mxu0 %v3547
        %3787 = vmatpush.msra.mxu0 %v3544
        %3788 = vmatpush.msra.mxu0 %v3541
        %3789 = vmatpush.msra.mxu0 %v3538
        %3790 = vmatpush.msra.mxu0 %v3535
        %3791 = vmatmul.f32.gmra.mxu0 %v3752
        %v3792 = vpop.f32.mrf.mxu0
        %v3793 = vadd.f32 0.0, %v3792
        %3794 = vmatmul.f32.gmra.mxu0 %v3755
        %v3795 = vpop.f32.mrf.mxu0
        %v3796 = vadd.f32 0.0, %v3795
        %3797 = vmatmul.f32.gmra.mxu0 %v3758
        %v3798 = vpop.f32.mrf.mxu0
        %v3799 = vadd.f32 0.0, %v3798
        %3800 = vmatmul.f32.gmra.mxu0 %v3761
        %v3801 = vpop.f32.mrf.mxu0
        %v3802 = vadd.f32 0.0, %v3801
        %3803 = vmatmul.f32.gmra.mxu0 %v3764
        %v3804 = vpop.f32.mrf.mxu0
        %v3805 = vadd.f32 0.0, %v3804
        %3806 = vmatmul.f32.gmra.mxu0 %v3767
        %v3807 = vpop.f32.mrf.mxu0
        %v3808 = vadd.f32 0.0, %v3807
        %3809 = vmatmul.f32.gmra.mxu0 %v3770
        %v3810 = vpop.f32.mrf.mxu0
        %v3811 = vadd.f32 0.0, %v3810
        %3812 = vmatmul.f32.gmra.mxu0 %v3773
        %v3813 = vpop.f32.mrf.mxu0
        %v3814 = vadd.f32 0.0, %v3813
        %3815 = vdwg.mxu0
        %s3816 = scalar_lea.vmem [#allocation7], 128
        %v3817 = vld [vmem:[%s3816] sm:$0xff]
        %v3818 = vld [vmem:[%s3816 + $0x8] sm:$0xff]
        %v3819 = vld [vmem:[%s3816 + $0x10] sm:$0xff]
        %v3820 = vld [vmem:[%s3816 + $0x18] sm:$0xff]
        %3821 = vrot.lane.b32.xlu0 %v3419, 96
        %v3822 = vpop.permute.xlu0 %3821
        %3823 = vrot.lane.b32.xlu0 %v3422, 96
        %v3824 = vpop.permute.xlu0 %3823
        %3825 = vrot.lane.b32.xlu0 %v3425, 96
        %v3826 = vpop.permute.xlu0 %3825
        %3827 = vrot.lane.b32.xlu0 %v3428, 96
        %v3828 = vpop.permute.xlu0 %3827
        %3829 = vrot.lane.b32.xlu0 %v3431, 96
        %v3830 = vpop.permute.xlu0 %3829
        %3831 = vrot.lane.b32.xlu0 %v3434, 96
        %v3832 = vpop.permute.xlu0 %3831
        %3833 = vrot.lane.b32.xlu0 %v3437, 96
        %v3834 = vpop.permute.xlu0 %3833
        %3835 = vrot.lane.b32.xlu0 %v3440, 96
        %v3836 = vpop.permute.xlu0 %3835
        %3837 = vrot.lane.b32.xlu0 %v3477, 96
        %v3838 = vpop.permute.xlu0 %3837
        %3839 = vrot.lane.b32.xlu0 %v3480, 96
        %v3840 = vpop.permute.xlu0 %3839
        %3841 = vrot.lane.b32.xlu0 %v3483, 96
        %v3842 = vpop.permute.xlu0 %3841
        %3843 = vrot.lane.b32.xlu0 %v3486, 96
        %v3844 = vpop.permute.xlu0 %3843
        %3845 = vrot.lane.b32.xlu0 %v3489, 96
        %v3846 = vpop.permute.xlu0 %3845
        %3847 = vrot.lane.b32.xlu0 %v3492, 96
        %v3848 = vpop.permute.xlu0 %3847
        %3849 = vrot.lane.b32.xlu0 %v3495, 96
        %v3850 = vpop.permute.xlu0 %3849
        %3851 = vrot.lane.b32.xlu0 %v3498, 96
        %v3852 = vpop.permute.xlu0 %3851
        %v3853 = vsel %vm1030, %v3822, 0
        %v3855 = vsel %vm1030, %v3824, 0
        %v3857 = vsel %vm1030, %v3826, 0
        %v3859 = vsel %vm1030, %v3828, 0
        %v3861 = vsel %vm1030, %v3830, 0
        %v3863 = vsel %vm1030, %v3832, 0
        %v3865 = vsel %vm1030, %v3834, 0
        %v3867 = vsel %vm1030, %v3836, 0
        %v3869 = vsel %vm1030, %v3838, 0
        %v3871 = vsel %vm1030, %v3840, 0
        %v3873 = vsel %vm1030, %v3842, 0
        %v3875 = vsel %vm1030, %v3844, 0
        %v3877 = vsel %vm1030, %v3846, 0
        %v3879 = vsel %vm1030, %v3848, 0
        %v3881 = vsel %vm1030, %v3850, 0
        %v3883 = vsel %vm1030, %v3852, 0
        %3885 = vmatpush.xpose.msra.mxu0 0.0
        %3886 = vmatpush.xpose.msra.mxu0 0.0
        %3887 = vmatpush.xpose.msra.mxu0 0.0
        %3888 = vmatpush.xpose.msra.mxu0 0.0
        %3889 = vmatpush.xpose.msra.mxu0 0.0
        %3890 = vmatpush.xpose.msra.mxu0 0.0
        %3891 = vmatpush.xpose.msra.mxu0 0.0
        %3892 = vmatpush.xpose.msra.mxu0 0.0
        %3893 = vmatpush.xpose.msra.mxu0 %v3883
        %3894 = vmatpush.xpose.msra.mxu0 %v3881
        %3895 = vmatpush.xpose.msra.mxu0 %v3879
        %3896 = vmatpush.xpose.msra.mxu0 %v3877
        %3897 = vmatpush.xpose.msra.mxu0 %v3875
        %3898 = vmatpush.xpose.msra.mxu0 %v3873
        %3899 = vmatpush.xpose.msra.mxu0 %v3871
        %3900 = vmatpush.xpose.msra.mxu0 %v3869
        %3901 = vmatmul.f32.gmra.mxu0 %v3853
        %v3902 = vpop.f32.mrf.mxu0
        %v3903 = vadd.f32 0.0, %v3902
        %3904 = vmatmul.f32.gmra.mxu0 %v3855
        %v3905 = vpop.f32.mrf.mxu0
        %v3906 = vadd.f32 0.0, %v3905
        %3907 = vmatmul.f32.gmra.mxu0 %v3857
        %v3908 = vpop.f32.mrf.mxu0
        %v3909 = vadd.f32 0.0, %v3908
        %3910 = vmatmul.f32.gmra.mxu0 %v3859
        %v3911 = vpop.f32.mrf.mxu0
        %v3912 = vadd.f32 0.0, %v3911
        %3913 = vmatmul.f32.gmra.mxu0 %v3861
        %v3914 = vpop.f32.mrf.mxu0
        %v3915 = vadd.f32 0.0, %v3914
        %3916 = vmatmul.f32.gmra.mxu0 %v3863
        %v3917 = vpop.f32.mrf.mxu0
        %v3918 = vadd.f32 0.0, %v3917
        %3919 = vmatmul.f32.gmra.mxu0 %v3865
        %v3920 = vpop.f32.mrf.mxu0
        %v3921 = vadd.f32 0.0, %v3920
        %3922 = vmatmul.f32.gmra.mxu0 %v3867
        %v3923 = vpop.f32.mrf.mxu0
        %v3924 = vadd.f32 0.0, %v3923
        %3925 = vdwg.mxu0
        %v3926 = vmul.f32 %v3903, 0.088388346
        %v3927 = vmul.f32 %v3906, 0.088388346
        %v3928 = vmul.f32 %v3909, 0.088388346
        %v3929 = vmul.f32 %v3912, 0.088388346
        %v3930 = vmul.f32 %v3915, 0.088388346
        %v3931 = vmul.f32 %v3918, 0.088388346
        %v3932 = vmul.f32 %v3921, 0.088388346
        %v3933 = vmul.f32 %v3924, 0.088388346
        %v3934 = vsel %vm660, %v3926, -inf
        %v3935 = vsel %vm661, %v3927, -inf
        %v3936 = vsel %vm662, %v3928, -inf
        %v3937 = vsel %vm663, %v3929, -inf
        %v3938 = vsel %vm664, %v3930, -inf
        %v3939 = vsel %vm665, %v3931, -inf
        %v3940 = vsel %vm666, %v3932, -inf
        %v3941 = vsel %vm667, %v3933, -inf
        %v3942 = vsel %vm1136, %v3934, -inf
        %3943 = vmax.xlane.f32.xlu0 %v3942
        %v3944 = vpop.xlane.xlu0 %3943
        %v3945 = vsel %vm1136, %v3935, -inf
        %3946 = vmax.xlane.f32.xlu0 %v3945
        %v3947 = vpop.xlane.xlu0 %3946
        %v3948 = vsel %vm1136, %v3936, -inf
        %3949 = vmax.xlane.f32.xlu0 %v3948
        %v3950 = vpop.xlane.xlu0 %3949
        %v3951 = vsel %vm1136, %v3937, -inf
        %3952 = vmax.xlane.f32.xlu0 %v3951
        %v3953 = vpop.xlane.xlu0 %3952
        %v3954 = vsel %vm1136, %v3938, -inf
        %3955 = vmax.xlane.f32.xlu0 %v3954
        %v3956 = vpop.xlane.xlu0 %3955
        %v3957 = vsel %vm1136, %v3939, -inf
        %3958 = vmax.xlane.f32.xlu0 %v3957
        %v3959 = vpop.xlane.xlu0 %3958
        %v3960 = vsel %vm1136, %v3940, -inf
        %3961 = vmax.xlane.f32.xlu0 %v3960
        %v3962 = vpop.xlane.xlu0 %3961
        %v3963 = vsel %vm1136, %v3941, -inf
        %3964 = vmax.xlane.f32.xlu0 %v3963
        %v3965 = vpop.xlane.xlu0 %3964
        %v3966 = vsub.f32 %v3934, %v3944
        %v3967 = vsub.f32 %v3935, %v3947
        %v3968 = vsub.f32 %v3936, %v3950
        %v3969 = vsub.f32 %v3937, %v3953
        %v3970 = vsub.f32 %v3938, %v3956
        %v3971 = vsub.f32 %v3939, %v3959
        %v3972 = vsub.f32 %v3940, %v3962
        %v3973 = vsub.f32 %v3941, %v3965
        %v3974 = vmul.f32 %v3966, 1.442695
        %v3975 = vpow.pop %v3974
        %v3976 = vmul.f32 %v3967, 1.442695
        %v3977 = vpow.pop %v3976
        %v3978 = vmul.f32 %v3968, 1.442695
        %v3979 = vpow.pop %v3978
        %v3980 = vmul.f32 %v3969, 1.442695
        %v3981 = vpow.pop %v3980
        %v3982 = vmul.f32 %v3970, 1.442695
        %v3983 = vpow.pop %v3982
        %v3984 = vmul.f32 %v3971, 1.442695
        %v3985 = vpow.pop %v3984
        %v3986 = vmul.f32 %v3972, 1.442695
        %v3987 = vpow.pop %v3986
        %v3988 = vmul.f32 %v3973, 1.442695
        %v3989 = vpow.pop %v3988
        %v3990 = vsel %vm1136, %v3975, 0.0
        %3991 = vadd.xlane.f32.xlu0 %v3990
        %v3992 = vpop.xlane.xlu0 %3991
        %v3993 = vsel %vm1136, %v3977, 0.0
        %3994 = vadd.xlane.f32.xlu0 %v3993
        %v3995 = vpop.xlane.xlu0 %3994
        %v3996 = vsel %vm1136, %v3979, 0.0
        %3997 = vadd.xlane.f32.xlu0 %v3996
        %v3998 = vpop.xlane.xlu0 %3997
        %v3999 = vsel %vm1136, %v3981, 0.0
        %4000 = vadd.xlane.f32.xlu0 %v3999
        %v4001 = vpop.xlane.xlu0 %4000
        %v4002 = vsel %vm1136, %v3983, 0.0
        %4003 = vadd.xlane.f32.xlu0 %v4002
        %v4004 = vpop.xlane.xlu0 %4003
        %v4005 = vsel %vm1136, %v3985, 0.0
        %4006 = vadd.xlane.f32.xlu0 %v4005
        %v4007 = vpop.xlane.xlu0 %4006
        %v4008 = vsel %vm1136, %v3987, 0.0
        %4009 = vadd.xlane.f32.xlu0 %v4008
        %v4010 = vpop.xlane.xlu0 %4009
        %v4011 = vsel %vm1136, %v3989, 0.0
        %4012 = vadd.xlane.f32.xlu0 %v4011
        %v4013 = vpop.xlane.xlu0 %4012
        %v4014 = vrcp.pop %v3992
        %v4015 = vrcp.pop %v3995
        %v4016 = vrcp.pop %v3998
        %v4017 = vrcp.pop %v4001
        %v4018 = vrcp.pop %v4004
        %v4019 = vrcp.pop %v4007
        %v4020 = vrcp.pop %v4010
        %v4021 = vrcp.pop %v4013
        %v4022 = vmul.f32 %v3975, %v4014
        %v4023 = vmul.f32 %v3977, %v4015
        %v4024 = vmul.f32 %v3979, %v4016
        %v4025 = vmul.f32 %v3981, %v4017
        %v4026 = vmul.f32 %v3983, %v4018
        %v4027 = vmul.f32 %v3985, %v4019
        %v4028 = vmul.f32 %v3987, %v4020
        %v4029 = vmul.f32 %v3989, %v4021
        %4038 = vrot.lane.b32.xlu0 %v3535, 96
        %v4039 = vpop.permute.xlu0 %4038
        %4040 = vrot.lane.b32.xlu0 %v3538, 96
        %v4041 = vpop.permute.xlu0 %4040
        %4042 = vrot.lane.b32.xlu0 %v3541, 96
        %v4043 = vpop.permute.xlu0 %4042
        %4044 = vrot.lane.b32.xlu0 %v3544, 96
        %v4045 = vpop.permute.xlu0 %4044
        %4046 = vrot.lane.b32.xlu0 %v3547, 96
        %v4047 = vpop.permute.xlu0 %4046
        %4048 = vrot.lane.b32.xlu0 %v3550, 96
        %v4049 = vpop.permute.xlu0 %4048
        %4050 = vrot.lane.b32.xlu0 %v3553, 96
        %v4051 = vpop.permute.xlu0 %4050
        %4052 = vrot.lane.b32.xlu0 %v3556, 96
        %v4053 = vpop.permute.xlu0 %4052
        %v4063 = vsel %vm1136, %v4022, 0
        %v4066 = vsel %vm1136, %v4023, 0
        %v4069 = vsel %vm1136, %v4024, 0
        %v4072 = vsel %vm1136, %v4025, 0
        %v4075 = vsel %vm1136, %v4026, 0
        %v4078 = vsel %vm1136, %v4027, 0
        %v4081 = vsel %vm1136, %v4028, 0
        %v4084 = vsel %vm1136, %v4029, 0
        %4086 = vmatpush.msra.mxu0 0.0
        %4087 = vmatpush.msra.mxu0 0.0
        %4088 = vmatpush.msra.mxu0 0.0
        %4089 = vmatpush.msra.mxu0 0.0
        %4090 = vmatpush.msra.mxu0 0.0
        %4091 = vmatpush.msra.mxu0 0.0
        %4092 = vmatpush.msra.mxu0 0.0
        %4093 = vmatpush.msra.mxu0 0.0
        %4094 = vmatpush.msra.mxu0 %v4053
        %4095 = vmatpush.msra.mxu0 %v4051
        %4096 = vmatpush.msra.mxu0 %v4049
        %4097 = vmatpush.msra.mxu0 %v4047
        %4098 = vmatpush.msra.mxu0 %v4045
        %4099 = vmatpush.msra.mxu0 %v4043
        %4100 = vmatpush.msra.mxu0 %v4041
        %4101 = vmatpush.msra.mxu0 %v4039
        %4102 = vmatmul.f32.gmra.mxu0 %v4063
        %v4103 = vpop.f32.mrf.mxu0
        %v4104 = vadd.f32 0.0, %v4103
        %4105 = vmatmul.f32.gmra.mxu0 %v4066
        %v4106 = vpop.f32.mrf.mxu0
        %v4107 = vadd.f32 0.0, %v4106
        %4108 = vmatmul.f32.gmra.mxu0 %v4069
        %v4109 = vpop.f32.mrf.mxu0
        %v4110 = vadd.f32 0.0, %v4109
        %4111 = vmatmul.f32.gmra.mxu0 %v4072
        %v4112 = vpop.f32.mrf.mxu0
        %v4113 = vadd.f32 0.0, %v4112
        %4114 = vmatmul.f32.gmra.mxu0 %v4075
        %v4115 = vpop.f32.mrf.mxu0
        %v4116 = vadd.f32 0.0, %v4115
        %4117 = vmatmul.f32.gmra.mxu0 %v4078
        %v4118 = vpop.f32.mrf.mxu0
        %v4119 = vadd.f32 0.0, %v4118
        %4120 = vmatmul.f32.gmra.mxu0 %v4081
        %v4121 = vpop.f32.mrf.mxu0
        %v4122 = vadd.f32 0.0, %v4121
        %4123 = vmatmul.f32.gmra.mxu0 %v4084
        %v4124 = vpop.f32.mrf.mxu0
        %v4125 = vadd.f32 0.0, %v4124
        %4126 = vdwg.mxu0
        %v4127 = vld [vmem:[%s3816 + $0x20] sm:$0xff]
        %v4128 = vld [vmem:[%s3816 + $0x28] sm:$0xff]
        %v4129 = vld [vmem:[%s3816 + $0x30] sm:$0xff]
        %v4130 = vld [vmem:[%s3816 + $0x38] sm:$0xff]
        %v4132 = vsel %vm1030, %v4104, 0
        %v4135 = vsel %vm1030, %v4107, 0
        %v4138 = vsel %vm1030, %v4110, 0
        %v4141 = vsel %vm1030, %v4113, 0
        %v4144 = vsel %vm1030, %v4116, 0
        %v4147 = vsel %vm1030, %v4119, 0
        %v4150 = vsel %vm1030, %v4122, 0
        %v4153 = vsel %vm1030, %v4125, 0
        %4155 = vmatpush.msra.mxu0 0.0
        %4156 = vmatpush.msra.mxu0 0.0
        %4157 = vmatpush.msra.mxu0 0.0
        %4158 = vmatpush.msra.mxu0 0.0
        %4159 = vmatpush.msra.mxu0 0.0
        %4160 = vmatpush.msra.mxu0 0.0
        %4161 = vmatpush.msra.mxu0 0.0
        %4162 = vmatpush.msra.mxu0 0.0
        %4163 = vmatpush.msra.mxu0 0.0
        %4164 = vmatpush.msra.mxu0 0.0
        %4165 = vmatpush.msra.mxu0 0.0
        %4166 = vmatpush.msra.mxu0 0.0
        %4167 = vmatpush.msra.mxu0 %v4130
        %4168 = vmatpush.msra.mxu0 %v4129
        %4169 = vmatpush.msra.mxu0 %v4128
        %4170 = vmatpush.msra.mxu0 %v4127
        %4171 = vmatmul.f32.gmra.mxu0 %v4132
        %v4172 = vpop.f32.mrf.mxu0
        %v4173 = vadd.f32 0.0, %v4172
        %4174 = vmatmul.f32.gmra.mxu0 %v4135
        %v4175 = vpop.f32.mrf.mxu0
        %v4176 = vadd.f32 0.0, %v4175
        %4177 = vmatmul.f32.gmra.mxu0 %v4138
        %v4178 = vpop.f32.mrf.mxu0
        %v4179 = vadd.f32 0.0, %v4178
        %4180 = vmatmul.f32.gmra.mxu0 %v4141
        %v4181 = vpop.f32.mrf.mxu0
        %v4182 = vadd.f32 0.0, %v4181
        %4183 = vmatmul.f32.gmra.mxu0 %v4144
        %v4184 = vpop.f32.mrf.mxu0
        %v4185 = vadd.f32 0.0, %v4184
        %4186 = vmatmul.f32.gmra.mxu0 %v4147
        %v4187 = vpop.f32.mrf.mxu0
        %v4188 = vadd.f32 0.0, %v4187
        %4189 = vmatmul.f32.gmra.mxu0 %v4150
        %v4190 = vpop.f32.mrf.mxu0
        %v4191 = vadd.f32 0.0, %v4190
        %4192 = vmatmul.f32.gmra.mxu0 %v4153
        %v4193 = vpop.f32.mrf.mxu0
        %v4194 = vadd.f32 0.0, %v4193
        %4195 = vdwg.mxu0
        %v4197 = vsel %vm1030, %v3793, 0
        %v4200 = vsel %vm1030, %v3796, 0
        %v4203 = vsel %vm1030, %v3799, 0
        %v4206 = vsel %vm1030, %v3802, 0
        %v4209 = vsel %vm1030, %v3805, 0
        %v4212 = vsel %vm1030, %v3808, 0
        %v4215 = vsel %vm1030, %v3811, 0
        %v4218 = vsel %vm1030, %v3814, 0
        %4220 = vmatpush.msra.mxu0 0.0
        %4221 = vmatpush.msra.mxu0 0.0
        %4222 = vmatpush.msra.mxu0 0.0
        %4223 = vmatpush.msra.mxu0 0.0
        %4224 = vmatpush.msra.mxu0 0.0
        %4225 = vmatpush.msra.mxu0 0.0
        %4226 = vmatpush.msra.mxu0 0.0
        %4227 = vmatpush.msra.mxu0 0.0
        %4228 = vmatpush.msra.mxu0 0.0
        %4229 = vmatpush.msra.mxu0 0.0
        %4230 = vmatpush.msra.mxu0 0.0
        %4231 = vmatpush.msra.mxu0 0.0
        %4232 = vmatpush.msra.mxu0 %v3820
        %4233 = vmatpush.msra.mxu0 %v3819
        %4234 = vmatpush.msra.mxu0 %v3818
        %4235 = vmatpush.msra.mxu0 %v3817
        %4236 = vmatmul.f32.gmra.mxu0 %v4197
        %v4237 = vpop.f32.mrf.mxu0
        %v4238 = vadd.f32 %v4173, %v4237
        %4239 = vmatmul.f32.gmra.mxu0 %v4200
        %v4240 = vpop.f32.mrf.mxu0
        %v4241 = vadd.f32 %v4176, %v4240
        %4242 = vmatmul.f32.gmra.mxu0 %v4203
        %v4243 = vpop.f32.mrf.mxu0
        %v4244 = vadd.f32 %v4179, %v4243
        %4245 = vmatmul.f32.gmra.mxu0 %v4206
        %v4246 = vpop.f32.mrf.mxu0
        %v4247 = vadd.f32 %v4182, %v4246
        %4248 = vmatmul.f32.gmra.mxu0 %v4209
        %v4249 = vpop.f32.mrf.mxu0
        %v4250 = vadd.f32 %v4185, %v4249
        %4251 = vmatmul.f32.gmra.mxu0 %v4212
        %v4252 = vpop.f32.mrf.mxu0
        %v4253 = vadd.f32 %v4188, %v4252
        %4254 = vmatmul.f32.gmra.mxu0 %v4215
        %v4255 = vpop.f32.mrf.mxu0
        %v4256 = vadd.f32 %v4191, %v4255
        %4257 = vmatmul.f32.gmra.mxu0 %v4218
        %v4258 = vpop.f32.mrf.mxu0
        %v4259 = vadd.f32 %v4194, %v4258
        %4260 = vdwg.mxu0
        %4261 = vrot.lane.b32.xlu0 %v3419, 64
        %v4262 = vpop.permute.xlu0 %4261
        %4263 = vrot.lane.b32.xlu0 %v3422, 64
        %v4264 = vpop.permute.xlu0 %4263
        %4265 = vrot.lane.b32.xlu0 %v3425, 64
        %v4266 = vpop.permute.xlu0 %4265
        %4267 = vrot.lane.b32.xlu0 %v3428, 64
        %v4268 = vpop.permute.xlu0 %4267
        %4269 = vrot.lane.b32.xlu0 %v3431, 64
        %v4270 = vpop.permute.xlu0 %4269
        %4271 = vrot.lane.b32.xlu0 %v3434, 64
        %v4272 = vpop.permute.xlu0 %4271
        %4273 = vrot.lane.b32.xlu0 %v3437, 64
        %v4274 = vpop.permute.xlu0 %4273
        %4275 = vrot.lane.b32.xlu0 %v3440, 64
        %v4276 = vpop.permute.xlu0 %4275
        %4277 = vrot.lane.b32.xlu0 %v3477, 64
        %v4278 = vpop.permute.xlu0 %4277
        %4279 = vrot.lane.b32.xlu0 %v3480, 64
        %v4280 = vpop.permute.xlu0 %4279
        %4281 = vrot.lane.b32.xlu0 %v3483, 64
        %v4282 = vpop.permute.xlu0 %4281
        %4283 = vrot.lane.b32.xlu0 %v3486, 64
        %v4284 = vpop.permute.xlu0 %4283
        %4285 = vrot.lane.b32.xlu0 %v3489, 64
        %v4286 = vpop.permute.xlu0 %4285
        %4287 = vrot.lane.b32.xlu0 %v3492, 64
        %v4288 = vpop.permute.xlu0 %4287
        %4289 = vrot.lane.b32.xlu0 %v3495, 64
        %v4290 = vpop.permute.xlu0 %4289
        %4291 = vrot.lane.b32.xlu0 %v3498, 64
        %v4292 = vpop.permute.xlu0 %4291
        %v4293 = vsel %vm1030, %v4262, 0
        %v4295 = vsel %vm1030, %v4264, 0
        %v4297 = vsel %vm1030, %v4266, 0
        %v4299 = vsel %vm1030, %v4268, 0
        %v4301 = vsel %vm1030, %v4270, 0
        %v4303 = vsel %vm1030, %v4272, 0
        %v4305 = vsel %vm1030, %v4274, 0
        %v4307 = vsel %vm1030, %v4276, 0
        %v4309 = vsel %vm1030, %v4278, 0
        %v4311 = vsel %vm1030, %v4280, 0
        %v4313 = vsel %vm1030, %v4282, 0
        %v4315 = vsel %vm1030, %v4284, 0
        %v4317 = vsel %vm1030, %v4286, 0
        %v4319 = vsel %vm1030, %v4288, 0
        %v4321 = vsel %vm1030, %v4290, 0
        %v4323 = vsel %vm1030, %v4292, 0
        %4325 = vmatpush.xpose.msra.mxu0 0.0
        %4326 = vmatpush.xpose.msra.mxu0 0.0
        %4327 = vmatpush.xpose.msra.mxu0 0.0
        %4328 = vmatpush.xpose.msra.mxu0 0.0
        %4329 = vmatpush.xpose.msra.mxu0 0.0
        %4330 = vmatpush.xpose.msra.mxu0 0.0
        %4331 = vmatpush.xpose.msra.mxu0 0.0
        %4332 = vmatpush.xpose.msra.mxu0 0.0
        %4333 = vmatpush.xpose.msra.mxu0 %v4323
        %4334 = vmatpush.xpose.msra.mxu0 %v4321
        %4335 = vmatpush.xpose.msra.mxu0 %v4319
        %4336 = vmatpush.xpose.msra.mxu0 %v4317
        %4337 = vmatpush.xpose.msra.mxu0 %v4315
        %4338 = vmatpush.xpose.msra.mxu0 %v4313
        %4339 = vmatpush.xpose.msra.mxu0 %v4311
        %4340 = vmatpush.xpose.msra.mxu0 %v4309
        %4341 = vmatmul.f32.gmra.mxu0 %v4293
        %v4342 = vpop.f32.mrf.mxu0
        %v4343 = vadd.f32 0.0, %v4342
        %4344 = vmatmul.f32.gmra.mxu0 %v4295
        %v4345 = vpop.f32.mrf.mxu0
        %v4346 = vadd.f32 0.0, %v4345
        %4347 = vmatmul.f32.gmra.mxu0 %v4297
        %v4348 = vpop.f32.mrf.mxu0
        %v4349 = vadd.f32 0.0, %v4348
        %4350 = vmatmul.f32.gmra.mxu0 %v4299
        %v4351 = vpop.f32.mrf.mxu0
        %v4352 = vadd.f32 0.0, %v4351
        %4353 = vmatmul.f32.gmra.mxu0 %v4301
        %v4354 = vpop.f32.mrf.mxu0
        %v4355 = vadd.f32 0.0, %v4354
        %4356 = vmatmul.f32.gmra.mxu0 %v4303
        %v4357 = vpop.f32.mrf.mxu0
        %v4358 = vadd.f32 0.0, %v4357
        %4359 = vmatmul.f32.gmra.mxu0 %v4305
        %v4360 = vpop.f32.mrf.mxu0
        %v4361 = vadd.f32 0.0, %v4360
        %4362 = vmatmul.f32.gmra.mxu0 %v4307
        %v4363 = vpop.f32.mrf.mxu0
        %v4364 = vadd.f32 0.0, %v4363
        %4365 = vdwg.mxu0
        %v4366 = vmul.f32 %v4343, 0.088388346
        %v4367 = vmul.f32 %v4346, 0.088388346
        %v4368 = vmul.f32 %v4349, 0.088388346
        %v4369 = vmul.f32 %v4352, 0.088388346
        %v4370 = vmul.f32 %v4355, 0.088388346
        %v4371 = vmul.f32 %v4358, 0.088388346
        %v4372 = vmul.f32 %v4361, 0.088388346
        %v4373 = vmul.f32 %v4364, 0.088388346
        %v4374 = vsel %vm660, %v4366, -inf
        %v4375 = vsel %vm661, %v4367, -inf
        %v4376 = vsel %vm662, %v4368, -inf
        %v4377 = vsel %vm663, %v4369, -inf
        %v4378 = vsel %vm664, %v4370, -inf
        %v4379 = vsel %vm665, %v4371, -inf
        %v4380 = vsel %vm666, %v4372, -inf
        %v4381 = vsel %vm667, %v4373, -inf
        %v4382 = vsel %vm1136, %v4374, -inf
        %4383 = vmax.xlane.f32.xlu0 %v4382
        %v4384 = vpop.xlane.xlu0 %4383
        %v4385 = vsel %vm1136, %v4375, -inf
        %4386 = vmax.xlane.f32.xlu0 %v4385
        %v4387 = vpop.xlane.xlu0 %4386
        %v4388 = vsel %vm1136, %v4376, -inf
        %4389 = vmax.xlane.f32.xlu0 %v4388
        %v4390 = vpop.xlane.xlu0 %4389
        %v4391 = vsel %vm1136, %v4377, -inf
        %4392 = vmax.xlane.f32.xlu0 %v4391
        %v4393 = vpop.xlane.xlu0 %4392
        %v4394 = vsel %vm1136, %v4378, -inf
        %4395 = vmax.xlane.f32.xlu0 %v4394
        %v4396 = vpop.xlane.xlu0 %4395
        %v4397 = vsel %vm1136, %v4379, -inf
        %4398 = vmax.xlane.f32.xlu0 %v4397
        %v4399 = vpop.xlane.xlu0 %4398
        %v4400 = vsel %vm1136, %v4380, -inf
        %4401 = vmax.xlane.f32.xlu0 %v4400
        %v4402 = vpop.xlane.xlu0 %4401
        %v4403 = vsel %vm1136, %v4381, -inf
        %4404 = vmax.xlane.f32.xlu0 %v4403
        %v4405 = vpop.xlane.xlu0 %4404
        %v4406 = vsub.f32 %v4374, %v4384
        %v4407 = vsub.f32 %v4375, %v4387
        %v4408 = vsub.f32 %v4376, %v4390
        %v4409 = vsub.f32 %v4377, %v4393
        %v4410 = vsub.f32 %v4378, %v4396
        %v4411 = vsub.f32 %v4379, %v4399
        %v4412 = vsub.f32 %v4380, %v4402
        %v4413 = vsub.f32 %v4381, %v4405
        %v4414 = vmul.f32 %v4406, 1.442695
        %v4415 = vpow.pop %v4414
        %v4416 = vmul.f32 %v4407, 1.442695
        %v4417 = vpow.pop %v4416
        %v4418 = vmul.f32 %v4408, 1.442695
        %v4419 = vpow.pop %v4418
        %v4420 = vmul.f32 %v4409, 1.442695
        %v4421 = vpow.pop %v4420
        %v4422 = vmul.f32 %v4410, 1.442695
        %v4423 = vpow.pop %v4422
        %v4424 = vmul.f32 %v4411, 1.442695
        %v4425 = vpow.pop %v4424
        %v4426 = vmul.f32 %v4412, 1.442695
        %v4427 = vpow.pop %v4426
        %v4428 = vmul.f32 %v4413, 1.442695
        %v4429 = vpow.pop %v4428
        %v4430 = vsel %vm1136, %v4415, 0.0
        %4431 = vadd.xlane.f32.xlu0 %v4430
        %v4432 = vpop.xlane.xlu0 %4431
        %v4433 = vsel %vm1136, %v4417, 0.0
        %4434 = vadd.xlane.f32.xlu0 %v4433
        %v4435 = vpop.xlane.xlu0 %4434
        %v4436 = vsel %vm1136, %v4419, 0.0
        %4437 = vadd.xlane.f32.xlu0 %v4436
        %v4438 = vpop.xlane.xlu0 %4437
        %v4439 = vsel %vm1136, %v4421, 0.0
        %4440 = vadd.xlane.f32.xlu0 %v4439
        %v4441 = vpop.xlane.xlu0 %4440
        %v4442 = vsel %vm1136, %v4423, 0.0
        %4443 = vadd.xlane.f32.xlu0 %v4442
        %v4444 = vpop.xlane.xlu0 %4443
        %v4445 = vsel %vm1136, %v4425, 0.0
        %4446 = vadd.xlane.f32.xlu0 %v4445
        %v4447 = vpop.xlane.xlu0 %4446
        %v4448 = vsel %vm1136, %v4427, 0.0
        %4449 = vadd.xlane.f32.xlu0 %v4448
        %v4450 = vpop.xlane.xlu0 %4449
        %v4451 = vsel %vm1136, %v4429, 0.0
        %4452 = vadd.xlane.f32.xlu0 %v4451
        %v4453 = vpop.xlane.xlu0 %4452
        %v4454 = vrcp.pop %v4432
        %v4455 = vrcp.pop %v4435
        %v4456 = vrcp.pop %v4438
        %v4457 = vrcp.pop %v4441
        %v4458 = vrcp.pop %v4444
        %v4459 = vrcp.pop %v4447
        %v4460 = vrcp.pop %v4450
        %v4461 = vrcp.pop %v4453
        %v4462 = vmul.f32 %v4415, %v4454
        %v4463 = vmul.f32 %v4417, %v4455
        %v4464 = vmul.f32 %v4419, %v4456
        %v4465 = vmul.f32 %v4421, %v4457
        %v4466 = vmul.f32 %v4423, %v4458
        %v4467 = vmul.f32 %v4425, %v4459
        %v4468 = vmul.f32 %v4427, %v4460
        %v4469 = vmul.f32 %v4429, %v4461
        %4470 = vrot.lane.b32.xlu0 %v3535, 64
        %v4471 = vpop.permute.xlu0 %4470
        %4472 = vrot.lane.b32.xlu0 %v3538, 64
        %v4473 = vpop.permute.xlu0 %4472
        %4474 = vrot.lane.b32.xlu0 %v3541, 64
        %v4475 = vpop.permute.xlu0 %4474
        %4476 = vrot.lane.b32.xlu0 %v3544, 64
        %v4477 = vpop.permute.xlu0 %4476
        %4478 = vrot.lane.b32.xlu0 %v3547, 64
        %v4479 = vpop.permute.xlu0 %4478
        %4480 = vrot.lane.b32.xlu0 %v3550, 64
        %v4481 = vpop.permute.xlu0 %4480
        %4482 = vrot.lane.b32.xlu0 %v3553, 64
        %v4483 = vpop.permute.xlu0 %4482
        %4484 = vrot.lane.b32.xlu0 %v3556, 64
        %v4485 = vpop.permute.xlu0 %4484
        %v4495 = vsel %vm1136, %v4462, 0
        %v4498 = vsel %vm1136, %v4463, 0
        %v4501 = vsel %vm1136, %v4464, 0
        %v4504 = vsel %vm1136, %v4465, 0
        %v4507 = vsel %vm1136, %v4466, 0
        %v4510 = vsel %vm1136, %v4467, 0
        %v4513 = vsel %vm1136, %v4468, 0
        %v4516 = vsel %vm1136, %v4469, 0
        %4518 = vmatpush.msra.mxu0 0.0
        %4519 = vmatpush.msra.mxu0 0.0
        %4520 = vmatpush.msra.mxu0 0.0
        %4521 = vmatpush.msra.mxu0 0.0
        %4522 = vmatpush.msra.mxu0 0.0
        %4523 = vmatpush.msra.mxu0 0.0
        %4524 = vmatpush.msra.mxu0 0.0
        %4525 = vmatpush.msra.mxu0 0.0
        %4526 = vmatpush.msra.mxu0 %v4485
        %4527 = vmatpush.msra.mxu0 %v4483
        %4528 = vmatpush.msra.mxu0 %v4481
        %4529 = vmatpush.msra.mxu0 %v4479
        %4530 = vmatpush.msra.mxu0 %v4477
        %4531 = vmatpush.msra.mxu0 %v4475
        %4532 = vmatpush.msra.mxu0 %v4473
        %4533 = vmatpush.msra.mxu0 %v4471
        %4534 = vmatmul.f32.gmra.mxu0 %v4495
        %v4535 = vpop.f32.mrf.mxu0
        %v4536 = vadd.f32 0.0, %v4535
        %4537 = vmatmul.f32.gmra.mxu0 %v4498
        %v4538 = vpop.f32.mrf.mxu0
        %v4539 = vadd.f32 0.0, %v4538
        %4540 = vmatmul.f32.gmra.mxu0 %v4501
        %v4541 = vpop.f32.mrf.mxu0
        %v4542 = vadd.f32 0.0, %v4541
        %4543 = vmatmul.f32.gmra.mxu0 %v4504
        %v4544 = vpop.f32.mrf.mxu0
        %v4545 = vadd.f32 0.0, %v4544
        %4546 = vmatmul.f32.gmra.mxu0 %v4507
        %v4547 = vpop.f32.mrf.mxu0
        %v4548 = vadd.f32 0.0, %v4547
        %4549 = vmatmul.f32.gmra.mxu0 %v4510
        %v4550 = vpop.f32.mrf.mxu0
        %v4551 = vadd.f32 0.0, %v4550
        %4552 = vmatmul.f32.gmra.mxu0 %v4513
        %v4553 = vpop.f32.mrf.mxu0
        %v4554 = vadd.f32 0.0, %v4553
        %4555 = vmatmul.f32.gmra.mxu0 %v4516
        %v4556 = vpop.f32.mrf.mxu0
        %v4557 = vadd.f32 0.0, %v4556
        %4558 = vdwg.mxu0
        %v4559 = vld [vmem:[%s3816 + $0x40] sm:$0xff]
        %v4560 = vld [vmem:[%s3816 + $0x48] sm:$0xff]
        %v4561 = vld [vmem:[%s3816 + $0x50] sm:$0xff]
        %v4562 = vld [vmem:[%s3816 + $0x58] sm:$0xff]
        %v4564 = vsel %vm1030, %v4536, 0
        %v4567 = vsel %vm1030, %v4539, 0
        %v4570 = vsel %vm1030, %v4542, 0
        %v4573 = vsel %vm1030, %v4545, 0
        %v4576 = vsel %vm1030, %v4548, 0
        %v4579 = vsel %vm1030, %v4551, 0
        %v4582 = vsel %vm1030, %v4554, 0
        %v4585 = vsel %vm1030, %v4557, 0
        %4587 = vmatpush.msra.mxu0 0.0
        %4588 = vmatpush.msra.mxu0 0.0
        %4589 = vmatpush.msra.mxu0 0.0
        %4590 = vmatpush.msra.mxu0 0.0
        %4591 = vmatpush.msra.mxu0 0.0
        %4592 = vmatpush.msra.mxu0 0.0
        %4593 = vmatpush.msra.mxu0 0.0
        %4594 = vmatpush.msra.mxu0 0.0
        %4595 = vmatpush.msra.mxu0 0.0
        %4596 = vmatpush.msra.mxu0 0.0
        %4597 = vmatpush.msra.mxu0 0.0
        %4598 = vmatpush.msra.mxu0 0.0
        %4599 = vmatpush.msra.mxu0 %v4562
        %4600 = vmatpush.msra.mxu0 %v4561
        %4601 = vmatpush.msra.mxu0 %v4560
        %4602 = vmatpush.msra.mxu0 %v4559
        %4603 = vmatmul.f32.gmra.mxu0 %v4564
        %v4604 = vpop.f32.mrf.mxu0
        %v4605 = vadd.f32 0.0, %v4604
        %4606 = vmatmul.f32.gmra.mxu0 %v4567
        %v4607 = vpop.f32.mrf.mxu0
        %v4608 = vadd.f32 0.0, %v4607
        %4609 = vmatmul.f32.gmra.mxu0 %v4570
        %v4610 = vpop.f32.mrf.mxu0
        %v4611 = vadd.f32 0.0, %v4610
        %4612 = vmatmul.f32.gmra.mxu0 %v4573
        %v4613 = vpop.f32.mrf.mxu0
        %v4614 = vadd.f32 0.0, %v4613
        %4615 = vmatmul.f32.gmra.mxu0 %v4576
        %v4616 = vpop.f32.mrf.mxu0
        %v4617 = vadd.f32 0.0, %v4616
        %4618 = vmatmul.f32.gmra.mxu0 %v4579
        %v4619 = vpop.f32.mrf.mxu0
        %v4620 = vadd.f32 0.0, %v4619
        %4621 = vmatmul.f32.gmra.mxu0 %v4582
        %v4622 = vpop.f32.mrf.mxu0
        %v4623 = vadd.f32 0.0, %v4622
        %4624 = vmatmul.f32.gmra.mxu0 %v4585
        %v4625 = vpop.f32.mrf.mxu0
        %v4626 = vadd.f32 0.0, %v4625
        %4627 = vdwg.mxu0
        %v4628 = vadd.f32 %v4238, %v4605
        %v4629 = vadd.f32 %v4241, %v4608
        %v4630 = vadd.f32 %v4244, %v4611
        %v4631 = vadd.f32 %v4247, %v4614
        %v4632 = vadd.f32 %v4250, %v4617
        %v4633 = vadd.f32 %v4253, %v4620
        %v4634 = vadd.f32 %v4256, %v4623
        %v4635 = vadd.f32 %v4259, %v4626
        %4636 = vrot.lane.b32.xlu0 %v3419, 32
        %v4637 = vpop.permute.xlu0 %4636
        %4638 = vrot.lane.b32.xlu0 %v3422, 32
        %v4639 = vpop.permute.xlu0 %4638
        %4640 = vrot.lane.b32.xlu0 %v3425, 32
        %v4641 = vpop.permute.xlu0 %4640
        %4642 = vrot.lane.b32.xlu0 %v3428, 32
        %v4643 = vpop.permute.xlu0 %4642
        %4644 = vrot.lane.b32.xlu0 %v3431, 32
        %v4645 = vpop.permute.xlu0 %4644
        %4646 = vrot.lane.b32.xlu0 %v3434, 32
        %v4647 = vpop.permute.xlu0 %4646
        %4648 = vrot.lane.b32.xlu0 %v3437, 32
        %v4649 = vpop.permute.xlu0 %4648
        %4650 = vrot.lane.b32.xlu0 %v3440, 32
        %v4651 = vpop.permute.xlu0 %4650
        %4652 = vrot.lane.b32.xlu0 %v3477, 32
        %v4653 = vpop.permute.xlu0 %4652
        %4654 = vrot.lane.b32.xlu0 %v3480, 32
        %v4655 = vpop.permute.xlu0 %4654
        %4656 = vrot.lane.b32.xlu0 %v3483, 32
        %v4657 = vpop.permute.xlu0 %4656
        %4658 = vrot.lane.b32.xlu0 %v3486, 32
        %v4659 = vpop.permute.xlu0 %4658
        %4660 = vrot.lane.b32.xlu0 %v3489, 32
        %v4661 = vpop.permute.xlu0 %4660
        %4662 = vrot.lane.b32.xlu0 %v3492, 32
        %v4663 = vpop.permute.xlu0 %4662
        %4664 = vrot.lane.b32.xlu0 %v3495, 32
        %v4665 = vpop.permute.xlu0 %4664
        %4666 = vrot.lane.b32.xlu0 %v3498, 32
        %v4667 = vpop.permute.xlu0 %4666
        %v4668 = vsel %vm1030, %v4637, 0
        %v4670 = vsel %vm1030, %v4639, 0
        %v4672 = vsel %vm1030, %v4641, 0
        %v4674 = vsel %vm1030, %v4643, 0
        %v4676 = vsel %vm1030, %v4645, 0
        %v4678 = vsel %vm1030, %v4647, 0
        %v4680 = vsel %vm1030, %v4649, 0
        %v4682 = vsel %vm1030, %v4651, 0
        %v4684 = vsel %vm1030, %v4653, 0
        %v4686 = vsel %vm1030, %v4655, 0
        %v4688 = vsel %vm1030, %v4657, 0
        %v4690 = vsel %vm1030, %v4659, 0
        %v4692 = vsel %vm1030, %v4661, 0
        %v4694 = vsel %vm1030, %v4663, 0
        %v4696 = vsel %vm1030, %v4665, 0
        %v4698 = vsel %vm1030, %v4667, 0
        %4700 = vmatpush.xpose.msra.mxu0 0.0
        %4701 = vmatpush.xpose.msra.mxu0 0.0
        %4702 = vmatpush.xpose.msra.mxu0 0.0
        %4703 = vmatpush.xpose.msra.mxu0 0.0
        %4704 = vmatpush.xpose.msra.mxu0 0.0
        %4705 = vmatpush.xpose.msra.mxu0 0.0
        %4706 = vmatpush.xpose.msra.mxu0 0.0
        %4707 = vmatpush.xpose.msra.mxu0 0.0
        %4708 = vmatpush.xpose.msra.mxu0 %v4698
        %4709 = vmatpush.xpose.msra.mxu0 %v4696
        %4710 = vmatpush.xpose.msra.mxu0 %v4694
        %4711 = vmatpush.xpose.msra.mxu0 %v4692
        %4712 = vmatpush.xpose.msra.mxu0 %v4690
        %4713 = vmatpush.xpose.msra.mxu0 %v4688
        %4714 = vmatpush.xpose.msra.mxu0 %v4686
        %4715 = vmatpush.xpose.msra.mxu0 %v4684
        %4716 = vmatmul.f32.gmra.mxu0 %v4668
        %v4717 = vpop.f32.mrf.mxu0
        %v4718 = vadd.f32 0.0, %v4717
        %4719 = vmatmul.f32.gmra.mxu0 %v4670
        %v4720 = vpop.f32.mrf.mxu0
        %v4721 = vadd.f32 0.0, %v4720
        %4722 = vmatmul.f32.gmra.mxu0 %v4672
        %v4723 = vpop.f32.mrf.mxu0
        %v4724 = vadd.f32 0.0, %v4723
        %4725 = vmatmul.f32.gmra.mxu0 %v4674
        %v4726 = vpop.f32.mrf.mxu0
        %v4727 = vadd.f32 0.0, %v4726
        %4728 = vmatmul.f32.gmra.mxu0 %v4676
        %v4729 = vpop.f32.mrf.mxu0
        %v4730 = vadd.f32 0.0, %v4729
        %4731 = vmatmul.f32.gmra.mxu0 %v4678
        %v4732 = vpop.f32.mrf.mxu0
        %v4733 = vadd.f32 0.0, %v4732
        %4734 = vmatmul.f32.gmra.mxu0 %v4680
        %v4735 = vpop.f32.mrf.mxu0
        %v4736 = vadd.f32 0.0, %v4735
        %4737 = vmatmul.f32.gmra.mxu0 %v4682
        %v4738 = vpop.f32.mrf.mxu0
        %v4739 = vadd.f32 0.0, %v4738
        %4740 = vdwg.mxu0
        %v4741 = vmul.f32 %v4718, 0.088388346
        %v4742 = vmul.f32 %v4721, 0.088388346
        %v4743 = vmul.f32 %v4724, 0.088388346
        %v4744 = vmul.f32 %v4727, 0.088388346
        %v4745 = vmul.f32 %v4730, 0.088388346
        %v4746 = vmul.f32 %v4733, 0.088388346
        %v4747 = vmul.f32 %v4736, 0.088388346
        %v4748 = vmul.f32 %v4739, 0.088388346
        %v4749 = vsel %vm660, %v4741, -inf
        %v4750 = vsel %vm661, %v4742, -inf
        %v4751 = vsel %vm662, %v4743, -inf
        %v4752 = vsel %vm663, %v4744, -inf
        %v4753 = vsel %vm664, %v4745, -inf
        %v4754 = vsel %vm665, %v4746, -inf
        %v4755 = vsel %vm666, %v4747, -inf
        %v4756 = vsel %vm667, %v4748, -inf
        %v4757 = vsel %vm1136, %v4749, -inf
        %4758 = vmax.xlane.f32.xlu0 %v4757
        %v4759 = vpop.xlane.xlu0 %4758
        %v4760 = vsel %vm1136, %v4750, -inf
        %4761 = vmax.xlane.f32.xlu0 %v4760
        %v4762 = vpop.xlane.xlu0 %4761
        %v4763 = vsel %vm1136, %v4751, -inf
        %4764 = vmax.xlane.f32.xlu0 %v4763
        %v4765 = vpop.xlane.xlu0 %4764
        %v4766 = vsel %vm1136, %v4752, -inf
        %4767 = vmax.xlane.f32.xlu0 %v4766
        %v4768 = vpop.xlane.xlu0 %4767
        %v4769 = vsel %vm1136, %v4753, -inf
        %4770 = vmax.xlane.f32.xlu0 %v4769
        %v4771 = vpop.xlane.xlu0 %4770
        %v4772 = vsel %vm1136, %v4754, -inf
        %4773 = vmax.xlane.f32.xlu0 %v4772
        %v4774 = vpop.xlane.xlu0 %4773
        %v4775 = vsel %vm1136, %v4755, -inf
        %4776 = vmax.xlane.f32.xlu0 %v4775
        %v4777 = vpop.xlane.xlu0 %4776
        %v4778 = vsel %vm1136, %v4756, -inf
        %4779 = vmax.xlane.f32.xlu0 %v4778
        %v4780 = vpop.xlane.xlu0 %4779
        %v4781 = vsub.f32 %v4749, %v4759
        %v4782 = vsub.f32 %v4750, %v4762
        %v4783 = vsub.f32 %v4751, %v4765
        %v4784 = vsub.f32 %v4752, %v4768
        %v4785 = vsub.f32 %v4753, %v4771
        %v4786 = vsub.f32 %v4754, %v4774
        %v4787 = vsub.f32 %v4755, %v4777
        %v4788 = vsub.f32 %v4756, %v4780
        %v4789 = vmul.f32 %v4781, 1.442695
        %v4790 = vpow.pop %v4789
        %v4791 = vmul.f32 %v4782, 1.442695
        %v4792 = vpow.pop %v4791
        %v4793 = vmul.f32 %v4783, 1.442695
        %v4794 = vpow.pop %v4793
        %v4795 = vmul.f32 %v4784, 1.442695
        %v4796 = vpow.pop %v4795
        %v4797 = vmul.f32 %v4785, 1.442695
        %v4798 = vpow.pop %v4797
        %v4799 = vmul.f32 %v4786, 1.442695
        %v4800 = vpow.pop %v4799
        %v4801 = vmul.f32 %v4787, 1.442695
        %v4802 = vpow.pop %v4801
        %v4803 = vmul.f32 %v4788, 1.442695
        %v4804 = vpow.pop %v4803
        %v4805 = vsel %vm1136, %v4790, 0.0
        %4806 = vadd.xlane.f32.xlu0 %v4805
        %v4807 = vpop.xlane.xlu0 %4806
        %v4808 = vsel %vm1136, %v4792, 0.0
        %4809 = vadd.xlane.f32.xlu0 %v4808
        %v4810 = vpop.xlane.xlu0 %4809
        %v4811 = vsel %vm1136, %v4794, 0.0
        %4812 = vadd.xlane.f32.xlu0 %v4811
        %v4813 = vpop.xlane.xlu0 %4812
        %v4814 = vsel %vm1136, %v4796, 0.0
        %4815 = vadd.xlane.f32.xlu0 %v4814
        %v4816 = vpop.xlane.xlu0 %4815
        %v4817 = vsel %vm1136, %v4798, 0.0
        %4818 = vadd.xlane.f32.xlu0 %v4817
        %v4819 = vpop.xlane.xlu0 %4818
        %v4820 = vsel %vm1136, %v4800, 0.0
        %4821 = vadd.xlane.f32.xlu0 %v4820
        %v4822 = vpop.xlane.xlu0 %4821
        %v4823 = vsel %vm1136, %v4802, 0.0
        %4824 = vadd.xlane.f32.xlu0 %v4823
        %v4825 = vpop.xlane.xlu0 %4824
        %v4826 = vsel %vm1136, %v4804, 0.0
        %4827 = vadd.xlane.f32.xlu0 %v4826
        %v4828 = vpop.xlane.xlu0 %4827
        %v4829 = vrcp.pop %v4807
        %v4830 = vrcp.pop %v4810
        %v4831 = vrcp.pop %v4813
        %v4832 = vrcp.pop %v4816
        %v4833 = vrcp.pop %v4819
        %v4834 = vrcp.pop %v4822
        %v4835 = vrcp.pop %v4825
        %v4836 = vrcp.pop %v4828
        %v4837 = vmul.f32 %v4790, %v4829
        %v4838 = vmul.f32 %v4792, %v4830
        %v4839 = vmul.f32 %v4794, %v4831
        %v4840 = vmul.f32 %v4796, %v4832
        %v4841 = vmul.f32 %v4798, %v4833
        %v4842 = vmul.f32 %v4800, %v4834
        %v4843 = vmul.f32 %v4802, %v4835
        %v4844 = vmul.f32 %v4804, %v4836
        %4845 = vrot.lane.b32.xlu0 %v3535, 32
        %v4846 = vpop.permute.xlu0 %4845
        %4847 = vrot.lane.b32.xlu0 %v3538, 32
        %v4848 = vpop.permute.xlu0 %4847
        %4849 = vrot.lane.b32.xlu0 %v3541, 32
        %v4850 = vpop.permute.xlu0 %4849
        %4851 = vrot.lane.b32.xlu0 %v3544, 32
        %v4852 = vpop.permute.xlu0 %4851
        %4853 = vrot.lane.b32.xlu0 %v3547, 32
        %v4854 = vpop.permute.xlu0 %4853
        %4855 = vrot.lane.b32.xlu0 %v3550, 32
        %v4856 = vpop.permute.xlu0 %4855
        %4857 = vrot.lane.b32.xlu0 %v3553, 32
        %v4858 = vpop.permute.xlu0 %4857
        %4859 = vrot.lane.b32.xlu0 %v3556, 32
        %v4860 = vpop.permute.xlu0 %4859
        %v4870 = vsel %vm1136, %v4837, 0
        %v4873 = vsel %vm1136, %v4838, 0
        %v4876 = vsel %vm1136, %v4839, 0
        %v4879 = vsel %vm1136, %v4840, 0
        %v4882 = vsel %vm1136, %v4841, 0
        %v4885 = vsel %vm1136, %v4842, 0
        %v4888 = vsel %vm1136, %v4843, 0
        %v4891 = vsel %vm1136, %v4844, 0
        %4893 = vmatpush.msra.mxu0 0.0
        %4894 = vmatpush.msra.mxu0 0.0
        %4895 = vmatpush.msra.mxu0 0.0
        %4896 = vmatpush.msra.mxu0 0.0
        %4897 = vmatpush.msra.mxu0 0.0
        %4898 = vmatpush.msra.mxu0 0.0
        %4899 = vmatpush.msra.mxu0 0.0
        %4900 = vmatpush.msra.mxu0 0.0
        %4901 = vmatpush.msra.mxu0 %v4860
        %4902 = vmatpush.msra.mxu0 %v4858
        %4903 = vmatpush.msra.mxu0 %v4856
        %4904 = vmatpush.msra.mxu0 %v4854
        %4905 = vmatpush.msra.mxu0 %v4852
        %4906 = vmatpush.msra.mxu0 %v4850
        %4907 = vmatpush.msra.mxu0 %v4848
        %4908 = vmatpush.msra.mxu0 %v4846
        %4909 = vmatmul.f32.gmra.mxu0 %v4870
        %v4910 = vpop.f32.mrf.mxu0
        %v4911 = vadd.f32 0.0, %v4910
        %4912 = vmatmul.f32.gmra.mxu0 %v4873
        %v4913 = vpop.f32.mrf.mxu0
        %v4914 = vadd.f32 0.0, %v4913
        %4915 = vmatmul.f32.gmra.mxu0 %v4876
        %v4916 = vpop.f32.mrf.mxu0
        %v4917 = vadd.f32 0.0, %v4916
        %4918 = vmatmul.f32.gmra.mxu0 %v4879
        %v4919 = vpop.f32.mrf.mxu0
        %v4920 = vadd.f32 0.0, %v4919
        %4921 = vmatmul.f32.gmra.mxu0 %v4882
        %v4922 = vpop.f32.mrf.mxu0
        %v4923 = vadd.f32 0.0, %v4922
        %4924 = vmatmul.f32.gmra.mxu0 %v4885
        %v4925 = vpop.f32.mrf.mxu0
        %v4926 = vadd.f32 0.0, %v4925
        %4927 = vmatmul.f32.gmra.mxu0 %v4888
        %v4928 = vpop.f32.mrf.mxu0
        %v4929 = vadd.f32 0.0, %v4928
        %4930 = vmatmul.f32.gmra.mxu0 %v4891
        %v4931 = vpop.f32.mrf.mxu0
        %v4932 = vadd.f32 0.0, %v4931
        %4933 = vdwg.mxu0
        %v4934 = vld [vmem:[%s3816 + $0x60] sm:$0xff]
        %v4935 = vld [vmem:[%s3816 + $0x68] sm:$0xff]
        %v4936 = vld [vmem:[%s3816 + $0x70] sm:$0xff]
        %v4937 = vld [vmem:[%s3816 + $0x78] sm:$0xff]
        %v4939 = vsel %vm1030, %v4911, 0
        %v4942 = vsel %vm1030, %v4914, 0
        %v4945 = vsel %vm1030, %v4917, 0
        %v4948 = vsel %vm1030, %v4920, 0
        %v4951 = vsel %vm1030, %v4923, 0
        %v4954 = vsel %vm1030, %v4926, 0
        %v4957 = vsel %vm1030, %v4929, 0
        %v4960 = vsel %vm1030, %v4932, 0
        %4962 = vmatpush.msra.mxu0 0.0
        %4963 = vmatpush.msra.mxu0 0.0
        %4964 = vmatpush.msra.mxu0 0.0
        %4965 = vmatpush.msra.mxu0 0.0
        %4966 = vmatpush.msra.mxu0 0.0
        %4967 = vmatpush.msra.mxu0 0.0
        %4968 = vmatpush.msra.mxu0 0.0
        %4969 = vmatpush.msra.mxu0 0.0
        %4970 = vmatpush.msra.mxu0 0.0
        %4971 = vmatpush.msra.mxu0 0.0
        %4972 = vmatpush.msra.mxu0 0.0
        %4973 = vmatpush.msra.mxu0 0.0
        %4974 = vmatpush.msra.mxu0 %v4937
        %4975 = vmatpush.msra.mxu0 %v4936
        %4976 = vmatpush.msra.mxu0 %v4935
        %4977 = vmatpush.msra.mxu0 %v4934
        %4978 = vmatmul.f32.gmra.mxu0 %v4939
        %v4979 = vpop.f32.mrf.mxu0
        %v4980 = vadd.f32 0.0, %v4979
        %4981 = vmatmul.f32.gmra.mxu0 %v4942
        %v4982 = vpop.f32.mrf.mxu0
        %v4983 = vadd.f32 0.0, %v4982
        %4984 = vmatmul.f32.gmra.mxu0 %v4945
        %v4985 = vpop.f32.mrf.mxu0
        %v4986 = vadd.f32 0.0, %v4985
        %4987 = vmatmul.f32.gmra.mxu0 %v4948
        %v4988 = vpop.f32.mrf.mxu0
        %v4989 = vadd.f32 0.0, %v4988
        %4990 = vmatmul.f32.gmra.mxu0 %v4951
        %v4991 = vpop.f32.mrf.mxu0
        %v4992 = vadd.f32 0.0, %v4991
        %4993 = vmatmul.f32.gmra.mxu0 %v4954
        %v4994 = vpop.f32.mrf.mxu0
        %v4995 = vadd.f32 0.0, %v4994
        %4996 = vmatmul.f32.gmra.mxu0 %v4957
        %v4997 = vpop.f32.mrf.mxu0
        %v4998 = vadd.f32 0.0, %v4997
        %4999 = vmatmul.f32.gmra.mxu0 %v4960
        %v5000 = vpop.f32.mrf.mxu0
        %v5001 = vadd.f32 0.0, %v5000
        %5002 = vdwg.mxu0
        %v5003 = vadd.f32 %v4628, %v4980
        %v5004 = vadd.f32 %v4629, %v4983
        %v5005 = vadd.f32 %v4630, %v4986
        %v5006 = vadd.f32 %v4631, %v4989
        %v5007 = vadd.f32 %v4632, %v4992
        %v5008 = vadd.f32 %v4633, %v4995
        %v5009 = vadd.f32 %v4634, %v4998
        %v5010 = vadd.f32 %v4635, %v5001
        %v5011 = vadd.f32 %v3190, %v5003
        %v5012 = vadd.f32 %v3191, %v5004
        %v5013 = vadd.f32 %v3192, %v5005
        %v5014 = vadd.f32 %v3193, %v5006
        %v5015 = vadd.f32 %v3194, %v5007
        %v5016 = vadd.f32 %v3195, %v5008
        %v5017 = vadd.f32 %v3196, %v5009
        %v5018 = vadd.f32 %v3197, %v5010
        %s5019 = scalar_lea.vmem %s7, 1
        %v5020 = vld [vmem:[%s5019] sm:$0x1]
        %v5022 = vperm.slane %v5020, 0
        %v5024 = vadd.f32 %v5011, %v5022
        %v5025 = vadd.f32 %v5012, %v5022
        %v5026 = vadd.f32 %v5013, %v5022
        %v5027 = vadd.f32 %v5014, %v5022
        %v5028 = vadd.f32 %v5015, %v5022
        %v5029 = vadd.f32 %v5016, %v5022
        %v5030 = vadd.f32 %v5017, %v5022
        %v5031 = vadd.f32 %v5018, %v5022
        %s5032 = scalar_lea.vmem %s8, 1
        %v5033 = vld [vmem:[%s5032] sm:$0x1]
        %s5034 = scalar_lea.vmem %s9, 1
        %v5035 = vld [vmem:[%s5034] sm:$0x1]
        %5036 = vadd.xlane.f32.xlu0 %v5024
        %v5037 = vpop.xlane.xlu0 %5036
        %5038 = vadd.xlane.f32.xlu0 %v5025
        %v5039 = vpop.xlane.xlu0 %5038
        %5040 = vadd.xlane.f32.xlu0 %v5026
        %v5041 = vpop.xlane.xlu0 %5040
        %5042 = vadd.xlane.f32.xlu0 %v5027
        %v5043 = vpop.xlane.xlu0 %5042
        %5044 = vadd.xlane.f32.xlu0 %v5028
        %v5045 = vpop.xlane.xlu0 %5044
        %5046 = vadd.xlane.f32.xlu0 %v5029
        %v5047 = vpop.xlane.xlu0 %5046
        %5048 = vadd.xlane.f32.xlu0 %v5030
        %v5049 = vpop.xlane.xlu0 %5048
        %5050 = vadd.xlane.f32.xlu0 %v5031
        %v5051 = vpop.xlane.xlu0 %5050
        %v5052 = vmul.f32 %v5037, %v692
        %v5053 = vmul.f32 %v5039, %v692
        %v5054 = vmul.f32 %v5041, %v692
        %v5055 = vmul.f32 %v5043, %v692
        %v5056 = vmul.f32 %v5045, %v692
        %v5057 = vmul.f32 %v5047, %v692
        %v5058 = vmul.f32 %v5049, %v692
        %v5059 = vmul.f32 %v5051, %v692
        %v5060 = vsub.f32 %v5024, %v5052
        %v5061 = vsub.f32 %v5025, %v5053
        %v5062 = vsub.f32 %v5026, %v5054
        %v5063 = vsub.f32 %v5027, %v5055
        %v5064 = vsub.f32 %v5028, %v5056
        %v5065 = vsub.f32 %v5029, %v5057
        %v5066 = vsub.f32 %v5030, %v5058
        %v5067 = vsub.f32 %v5031, %v5059
        %v5068 = vmul.f32 %v5060, %v5060
        %v5069 = vmul.f32 %v5061, %v5061
        %v5070 = vmul.f32 %v5062, %v5062
        %v5071 = vmul.f32 %v5063, %v5063
        %v5072 = vmul.f32 %v5064, %v5064
        %v5073 = vmul.f32 %v5065, %v5065
        %v5074 = vmul.f32 %v5066, %v5066
        %v5075 = vmul.f32 %v5067, %v5067
        %5076 = vadd.xlane.f32.xlu0 %v5068
        %v5077 = vpop.xlane.xlu0 %5076
        %5078 = vadd.xlane.f32.xlu0 %v5069
        %v5079 = vpop.xlane.xlu0 %5078
        %5080 = vadd.xlane.f32.xlu0 %v5070
        %v5081 = vpop.xlane.xlu0 %5080
        %5082 = vadd.xlane.f32.xlu0 %v5071
        %v5083 = vpop.xlane.xlu0 %5082
        %5084 = vadd.xlane.f32.xlu0 %v5072
        %v5085 = vpop.xlane.xlu0 %5084
        %5086 = vadd.xlane.f32.xlu0 %v5073
        %v5087 = vpop.xlane.xlu0 %5086
        %5088 = vadd.xlane.f32.xlu0 %v5074
        %v5089 = vpop.xlane.xlu0 %5088
        %5090 = vadd.xlane.f32.xlu0 %v5075
        %v5091 = vpop.xlane.xlu0 %5090
        %v5092 = vmul.f32 %v5077, %v692
        %v5093 = vmul.f32 %v5079, %v692
        %v5094 = vmul.f32 %v5081, %v692
        %v5095 = vmul.f32 %v5083, %v692
        %v5096 = vmul.f32 %v5085, %v692
        %v5097 = vmul.f32 %v5087, %v692
        %v5098 = vmul.f32 %v5089, %v692
        %v5099 = vmul.f32 %v5091, %v692
        %v5100 = vadd.f32 %v5092, 1e-05
        %v5101 = vadd.f32 %v5093, 1e-05
        %v5102 = vadd.f32 %v5094, 1e-05
        %v5103 = vadd.f32 %v5095, 1e-05
        %v5104 = vadd.f32 %v5096, 1e-05
        %v5105 = vadd.f32 %v5097, 1e-05
        %v5106 = vadd.f32 %v5098, 1e-05
        %v5107 = vadd.f32 %v5099, 1e-05
        %v5108 = vrsqrt.pop %v5100
        %v5109 = vmul.f32 %v5108, %v5100
        %v5110 = vmul.f32 %v5109, %v5108
        %v5111 = vmul.f32 0.5, %v5110
        %v5112 = vsub.f32 1.5, %v5111
        %v5113 = vmul.f32 %v5108, %v5112
        %vm5114 = vweird.f32 %v5100
        %vm5115 = vweird.f32 %v5108
        %vm5116 = vmor %vm5114, %vm5115
        %v5117 = vsel %vm5116, %v5108, %v5113
        %v5118 = vrsqrt.pop %v5101
        %v5119 = vmul.f32 %v5118, %v5101
        %v5120 = vmul.f32 %v5119, %v5118
        %v5121 = vmul.f32 0.5, %v5120
        %v5122 = vsub.f32 1.5, %v5121
        %v5123 = vmul.f32 %v5118, %v5122
        %vm5124 = vweird.f32 %v5101
        %vm5125 = vweird.f32 %v5118
        %vm5126 = vmor %vm5124, %vm5125
        %v5127 = vsel %vm5126, %v5118, %v5123
        %v5128 = vrsqrt.pop %v5102
        %v5129 = vmul.f32 %v5128, %v5102
        %v5130 = vmul.f32 %v5129, %v5128
        %v5131 = vmul.f32 0.5, %v5130
        %v5132 = vsub.f32 1.5, %v5131
        %v5133 = vmul.f32 %v5128, %v5132
        %vm5134 = vweird.f32 %v5102
        %vm5135 = vweird.f32 %v5128
        %vm5136 = vmor %vm5134, %vm5135
        %v5137 = vsel %vm5136, %v5128, %v5133
        %v5138 = vrsqrt.pop %v5103
        %v5139 = vmul.f32 %v5138, %v5103
        %v5140 = vmul.f32 %v5139, %v5138
        %v5141 = vmul.f32 0.5, %v5140
        %v5142 = vsub.f32 1.5, %v5141
        %v5143 = vmul.f32 %v5138, %v5142
        %vm5144 = vweird.f32 %v5103
        %vm5145 = vweird.f32 %v5138
        %vm5146 = vmor %vm5144, %vm5145
        %v5147 = vsel %vm5146, %v5138, %v5143
        %v5148 = vrsqrt.pop %v5104
        %v5149 = vmul.f32 %v5148, %v5104
        %v5150 = vmul.f32 %v5149, %v5148
        %v5151 = vmul.f32 0.5, %v5150
        %v5152 = vsub.f32 1.5, %v5151
        %v5153 = vmul.f32 %v5148, %v5152
        %vm5154 = vweird.f32 %v5104
        %vm5155 = vweird.f32 %v5148
        %vm5156 = vmor %vm5154, %vm5155
        %v5157 = vsel %vm5156, %v5148, %v5153
        %v5158 = vrsqrt.pop %v5105
        %v5159 = vmul.f32 %v5158, %v5105
        %v5160 = vmul.f32 %v5159, %v5158
        %v5161 = vmul.f32 0.5, %v5160
        %v5162 = vsub.f32 1.5, %v5161
        %v5163 = vmul.f32 %v5158, %v5162
        %vm5164 = vweird.f32 %v5105
        %vm5165 = vweird.f32 %v5158
        %vm5166 = vmor %vm5164, %vm5165
        %v5167 = vsel %vm5166, %v5158, %v5163
        %v5168 = vrsqrt.pop %v5106
        %v5169 = vmul.f32 %v5168, %v5106
        %v5170 = vmul.f32 %v5169, %v5168
        %v5171 = vmul.f32 0.5, %v5170
        %v5172 = vsub.f32 1.5, %v5171
        %v5173 = vmul.f32 %v5168, %v5172
        %vm5174 = vweird.f32 %v5106
        %vm5175 = vweird.f32 %v5168
        %vm5176 = vmor %vm5174, %vm5175
        %v5177 = vsel %vm5176, %v5168, %v5173
        %v5178 = vrsqrt.pop %v5107
        %v5179 = vmul.f32 %v5178, %v5107
        %v5180 = vmul.f32 %v5179, %v5178
        %v5181 = vmul.f32 0.5, %v5180
        %v5182 = vsub.f32 1.5, %v5181
        %v5183 = vmul.f32 %v5178, %v5182
        %vm5184 = vweird.f32 %v5107
        %vm5185 = vweird.f32 %v5178
        %vm5186 = vmor %vm5184, %vm5185
        %v5187 = vsel %vm5186, %v5178, %v5183
        %v5188 = vmul.f32 %v5060, %v5117
        %v5189 = vmul.f32 %v5061, %v5127
        %v5190 = vmul.f32 %v5062, %v5137
        %v5191 = vmul.f32 %v5063, %v5147
        %v5192 = vmul.f32 %v5064, %v5157
        %v5193 = vmul.f32 %v5065, %v5167
        %v5194 = vmul.f32 %v5066, %v5177
        %v5195 = vmul.f32 %v5067, %v5187
        %v5197 = vperm.slane %v5033, 0
        %v5199 = vmul.f32 %v5188, %v5197
        %v5200 = vmul.f32 %v5189, %v5197
        %v5201 = vmul.f32 %v5190, %v5197
        %v5202 = vmul.f32 %v5191, %v5197
        %v5203 = vmul.f32 %v5192, %v5197
        %v5204 = vmul.f32 %v5193, %v5197
        %v5205 = vmul.f32 %v5194, %v5197
        %v5206 = vmul.f32 %v5195, %v5197
        %v5208 = vperm.slane %v5035, 0
        %v5210 = vadd.f32 %v5199, %v5208
        %v5211 = vadd.f32 %v5200, %v5208
        %v5212 = vadd.f32 %v5201, %v5208
        %v5213 = vadd.f32 %v5202, %v5208
        %v5214 = vadd.f32 %v5203, %v5208
        %v5215 = vadd.f32 %v5204, %v5208
        %v5216 = vadd.f32 %v5205, %v5208
        %v5217 = vadd.f32 %v5206, %v5208
        %s5218 = scalar_lea.vmem %s10, 512
        %v5219 = vld [vmem:[%s5218] sm:$0xff]
        %v5220 = vld [vmem:[%s5218 + $0x8] sm:$0xff]
        %v5221 = vld [vmem:[%s5218 + $0x10] sm:$0xff]
        %v5222 = vld [vmem:[%s5218 + $0x18] sm:$0xff]
        %v5223 = vld [vmem:[%s5218 + $0x20] sm:$0xff]
        %v5224 = vld [vmem:[%s5218 + $0x28] sm:$0xff]
        %v5225 = vld [vmem:[%s5218 + $0x30] sm:$0xff]
        %v5226 = vld [vmem:[%s5218 + $0x38] sm:$0xff]
        %v5227 = vld [vmem:[%s5218 + $0x40] sm:$0xff]
        %v5228 = vld [vmem:[%s5218 + $0x48] sm:$0xff]
        %v5229 = vld [vmem:[%s5218 + $0x50] sm:$0xff]
        %v5230 = vld [vmem:[%s5218 + $0x58] sm:$0xff]
        %v5231 = vld [vmem:[%s5218 + $0x60] sm:$0xff]
        %v5232 = vld [vmem:[%s5218 + $0x68] sm:$0xff]
        %v5233 = vld [vmem:[%s5218 + $0x70] sm:$0xff]
        %v5234 = vld [vmem:[%s5218 + $0x78] sm:$0xff]
        %v5235 = vld [vmem:[%s5218 + $0x80] sm:$0xff]
        %v5236 = vld [vmem:[%s5218 + $0x88] sm:$0xff]
        %v5237 = vld [vmem:[%s5218 + $0x90] sm:$0xff]
        %v5238 = vld [vmem:[%s5218 + $0x98] sm:$0xff]
        %v5239 = vld [vmem:[%s5218 + $0xa0] sm:$0xff]
        %v5240 = vld [vmem:[%s5218 + $0xa8] sm:$0xff]
        %v5241 = vld [vmem:[%s5218 + $0xb0] sm:$0xff]
        %v5242 = vld [vmem:[%s5218 + $0xb8] sm:$0xff]
        %v5243 = vld [vmem:[%s5218 + $0xc0] sm:$0xff]
        %v5244 = vld [vmem:[%s5218 + $0xc8] sm:$0xff]
        %v5245 = vld [vmem:[%s5218 + $0xd0] sm:$0xff]
        %v5246 = vld [vmem:[%s5218 + $0xd8] sm:$0xff]
        %v5247 = vld [vmem:[%s5218 + $0xe0] sm:$0xff]
        %v5248 = vld [vmem:[%s5218 + $0xe8] sm:$0xff]
        %v5249 = vld [vmem:[%s5218 + $0xf0] sm:$0xff]
        %v5250 = vld [vmem:[%s5218 + $0xf8] sm:$0xff]
        %v5251 = vld [vmem:[%s5218 + $0x100] sm:$0xff]
        %v5252 = vld [vmem:[%s5218 + $0x108] sm:$0xff]
        %v5253 = vld [vmem:[%s5218 + $0x110] sm:$0xff]
        %v5254 = vld [vmem:[%s5218 + $0x118] sm:$0xff]
        %v5255 = vld [vmem:[%s5218 + $0x120] sm:$0xff]
        %v5256 = vld [vmem:[%s5218 + $0x128] sm:$0xff]
        %v5257 = vld [vmem:[%s5218 + $0x130] sm:$0xff]
        %v5258 = vld [vmem:[%s5218 + $0x138] sm:$0xff]
        %v5259 = vld [vmem:[%s5218 + $0x140] sm:$0xff]
        %v5260 = vld [vmem:[%s5218 + $0x148] sm:$0xff]
        %v5261 = vld [vmem:[%s5218 + $0x150] sm:$0xff]
        %v5262 = vld [vmem:[%s5218 + $0x158] sm:$0xff]
        %v5263 = vld [vmem:[%s5218 + $0x160] sm:$0xff]
        %v5264 = vld [vmem:[%s5218 + $0x168] sm:$0xff]
        %v5265 = vld [vmem:[%s5218 + $0x170] sm:$0xff]
        %v5266 = vld [vmem:[%s5218 + $0x178] sm:$0xff]
        %v5267 = vld [vmem:[%s5218 + $0x180] sm:$0xff]
        %v5268 = vld [vmem:[%s5218 + $0x188] sm:$0xff]
        %v5269 = vld [vmem:[%s5218 + $0x190] sm:$0xff]
        %v5270 = vld [vmem:[%s5218 + $0x198] sm:$0xff]
        %v5271 = vld [vmem:[%s5218 + $0x1a0] sm:$0xff]
        %v5272 = vld [vmem:[%s5218 + $0x1a8] sm:$0xff]
        %v5273 = vld [vmem:[%s5218 + $0x1b0] sm:$0xff]
        %v5274 = vld [vmem:[%s5218 + $0x1b8] sm:$0xff]
        %v5275 = vld [vmem:[%s5218 + $0x1c0] sm:$0xff]
        %v5276 = vld [vmem:[%s5218 + $0x1c8] sm:$0xff]
        %v5277 = vld [vmem:[%s5218 + $0x1d0] sm:$0xff]
        %v5278 = vld [vmem:[%s5218 + $0x1d8] sm:$0xff]
        %v5279 = vld [vmem:[%s5218 + $0x1e0] sm:$0xff]
        %v5280 = vld [vmem:[%s5218 + $0x1e8] sm:$0xff]
        %v5281 = vld [vmem:[%s5218 + $0x1f0] sm:$0xff]
        %v5282 = vld [vmem:[%s5218 + $0x1f8] sm:$0xff]
        %s5283 = scalar_lea.vmem %s11, 4
        %v5284 = vld [vmem:[%s5283] sm:$0xf]
        %v5286 = vperm.slane %v5284, 0
        %v5287 = vperm.slane %v5284, 1
        %v5288 = vperm.slane %v5284, 2
        %v5289 = vperm.slane %v5284, 3
        %5294 = vmatpush.msra.mxu0 %v5279
        %5295 = vmatpush.msra.mxu0 %v5275
        %5296 = vmatpush.msra.mxu0 %v5271
        %5297 = vmatpush.msra.mxu0 %v5267
        %5298 = vmatpush.msra.mxu0 %v5263
        %5299 = vmatpush.msra.mxu0 %v5259
        %5300 = vmatpush.msra.mxu0 %v5255
        %5301 = vmatpush.msra.mxu0 %v5251
        %5302 = vmatpush.msra.mxu0 %v5247
        %5303 = vmatpush.msra.mxu0 %v5243
        %5304 = vmatpush.msra.mxu0 %v5239
        %5305 = vmatpush.msra.mxu0 %v5235
        %5306 = vmatpush.msra.mxu0 %v5231
        %5307 = vmatpush.msra.mxu0 %v5227
        %5308 = vmatpush.msra.mxu0 %v5223
        %5309 = vmatpush.msra.mxu0 %v5219
        %5310 = vmatmul.f32.gmra.mxu0 %v5210
        %v5311 = vpop.f32.mrf.mxu0
        %v5312 = vadd.f32 %v5286, %v5311
        %5313 = vmatmul.f32.gmra.mxu0 %v5211
        %v5314 = vpop.f32.mrf.mxu0
        %v5315 = vadd.f32 %v5286, %v5314
        %5316 = vmatmul.f32.gmra.mxu0 %v5212
        %v5317 = vpop.f32.mrf.mxu0
        %v5318 = vadd.f32 %v5286, %v5317
        %5319 = vmatmul.f32.gmra.mxu0 %v5213
        %v5320 = vpop.f32.mrf.mxu0
        %v5321 = vadd.f32 %v5286, %v5320
        %5322 = vmatmul.f32.gmra.mxu0 %v5214
        %v5323 = vpop.f32.mrf.mxu0
        %v5324 = vadd.f32 %v5286, %v5323
        %5325 = vmatmul.f32.gmra.mxu0 %v5215
        %v5326 = vpop.f32.mrf.mxu0
        %v5327 = vadd.f32 %v5286, %v5326
        %5328 = vmatmul.f32.gmra.mxu0 %v5216
        %v5329 = vpop.f32.mrf.mxu0
        %v5330 = vadd.f32 %v5286, %v5329
        %5331 = vmatmul.f32.gmra.mxu0 %v5217
        %v5332 = vpop.f32.mrf.mxu0
        %v5333 = vadd.f32 %v5286, %v5332
        %5334 = vdwg.mxu0
        %5335 = vmatpush.msra.mxu0 %v5280
        %5336 = vmatpush.msra.mxu0 %v5276
        %5337 = vmatpush.msra.mxu0 %v5272
        %5338 = vmatpush.msra.mxu0 %v5268
        %5339 = vmatpush.msra.mxu0 %v5264
        %5340 = vmatpush.msra.mxu0 %v5260
        %5341 = vmatpush.msra.mxu0 %v5256
        %5342 = vmatpush.msra.mxu0 %v5252
        %5343 = vmatpush.msra.mxu0 %v5248
        %5344 = vmatpush.msra.mxu0 %v5244
        %5345 = vmatpush.msra.mxu0 %v5240
        %5346 = vmatpush.msra.mxu0 %v5236
        %5347 = vmatpush.msra.mxu0 %v5232
        %5348 = vmatpush.msra.mxu0 %v5228
        %5349 = vmatpush.msra.mxu0 %v5224
        %5350 = vmatpush.msra.mxu0 %v5220
        %5351 = vmatmul.f32.gmra.mxu0 %v5210
        %v5352 = vpop.f32.mrf.mxu0
        %v5353 = vadd.f32 %v5287, %v5352
        %5354 = vmatmul.f32.gmra.mxu0 %v5211
        %v5355 = vpop.f32.mrf.mxu0
        %v5356 = vadd.f32 %v5287, %v5355
        %5357 = vmatmul.f32.gmra.mxu0 %v5212
        %v5358 = vpop.f32.mrf.mxu0
        %v5359 = vadd.f32 %v5287, %v5358
        %5360 = vmatmul.f32.gmra.mxu0 %v5213
        %v5361 = vpop.f32.mrf.mxu0
        %v5362 = vadd.f32 %v5287, %v5361
        %5363 = vmatmul.f32.gmra.mxu0 %v5214
        %v5364 = vpop.f32.mrf.mxu0
        %v5365 = vadd.f32 %v5287, %v5364
        %5366 = vmatmul.f32.gmra.mxu0 %v5215
        %v5367 = vpop.f32.mrf.mxu0
        %v5368 = vadd.f32 %v5287, %v5367
        %5369 = vmatmul.f32.gmra.mxu0 %v5216
        %v5370 = vpop.f32.mrf.mxu0
        %v5371 = vadd.f32 %v5287, %v5370
        %5372 = vmatmul.f32.gmra.mxu0 %v5217
        %v5373 = vpop.f32.mrf.mxu0
        %v5374 = vadd.f32 %v5287, %v5373
        %5375 = vdwg.mxu0
        %5376 = vmatpush.msra.mxu0 %v5281
        %5377 = vmatpush.msra.mxu0 %v5277
        %5378 = vmatpush.msra.mxu0 %v5273
        %5379 = vmatpush.msra.mxu0 %v5269
        %5380 = vmatpush.msra.mxu0 %v5265
        %5381 = vmatpush.msra.mxu0 %v5261
        %5382 = vmatpush.msra.mxu0 %v5257
        %5383 = vmatpush.msra.mxu0 %v5253
        %5384 = vmatpush.msra.mxu0 %v5249
        %5385 = vmatpush.msra.mxu0 %v5245
        %5386 = vmatpush.msra.mxu0 %v5241
        %5387 = vmatpush.msra.mxu0 %v5237
        %5388 = vmatpush.msra.mxu0 %v5233
        %5389 = vmatpush.msra.mxu0 %v5229
        %5390 = vmatpush.msra.mxu0 %v5225
        %5391 = vmatpush.msra.mxu0 %v5221
        %5392 = vmatmul.f32.gmra.mxu0 %v5210
        %v5393 = vpop.f32.mrf.mxu0
        %v5394 = vadd.f32 %v5288, %v5393
        %5395 = vmatmul.f32.gmra.mxu0 %v5211
        %v5396 = vpop.f32.mrf.mxu0
        %v5397 = vadd.f32 %v5288, %v5396
        %5398 = vmatmul.f32.gmra.mxu0 %v5212
        %v5399 = vpop.f32.mrf.mxu0
        %v5400 = vadd.f32 %v5288, %v5399
        %5401 = vmatmul.f32.gmra.mxu0 %v5213
        %v5402 = vpop.f32.mrf.mxu0
        %v5403 = vadd.f32 %v5288, %v5402
        %5404 = vmatmul.f32.gmra.mxu0 %v5214
        %v5405 = vpop.f32.mrf.mxu0
        %v5406 = vadd.f32 %v5288, %v5405
        %5407 = vmatmul.f32.gmra.mxu0 %v5215
        %v5408 = vpop.f32.mrf.mxu0
        %v5409 = vadd.f32 %v5288, %v5408
        %5410 = vmatmul.f32.gmra.mxu0 %v5216
        %v5411 = vpop.f32.mrf.mxu0
        %v5412 = vadd.f32 %v5288, %v5411
        %5413 = vmatmul.f32.gmra.mxu0 %v5217
        %v5414 = vpop.f32.mrf.mxu0
        %v5415 = vadd.f32 %v5288, %v5414
        %5416 = vdwg.mxu0
        %5417 = vmatpush.msra.mxu0 %v5282
        %5418 = vmatpush.msra.mxu0 %v5278
        %5419 = vmatpush.msra.mxu0 %v5274
        %5420 = vmatpush.msra.mxu0 %v5270
        %5421 = vmatpush.msra.mxu0 %v5266
        %5422 = vmatpush.msra.mxu0 %v5262
        %5423 = vmatpush.msra.mxu0 %v5258
        %5424 = vmatpush.msra.mxu0 %v5254
        %5425 = vmatpush.msra.mxu0 %v5250
        %5426 = vmatpush.msra.mxu0 %v5246
        %5427 = vmatpush.msra.mxu0 %v5242
        %5428 = vmatpush.msra.mxu0 %v5238
        %5429 = vmatpush.msra.mxu0 %v5234
        %5430 = vmatpush.msra.mxu0 %v5230
        %5431 = vmatpush.msra.mxu0 %v5226
        %5432 = vmatpush.msra.mxu0 %v5222
        %5433 = vmatmul.f32.gmra.mxu0 %v5210
        %v5434 = vpop.f32.mrf.mxu0
        %v5435 = vadd.f32 %v5289, %v5434
        %5436 = vmatmul.f32.gmra.mxu0 %v5211
        %v5437 = vpop.f32.mrf.mxu0
        %v5438 = vadd.f32 %v5289, %v5437
        %5439 = vmatmul.f32.gmra.mxu0 %v5212
        %v5440 = vpop.f32.mrf.mxu0
        %v5441 = vadd.f32 %v5289, %v5440
        %5442 = vmatmul.f32.gmra.mxu0 %v5213
        %v5443 = vpop.f32.mrf.mxu0
        %v5444 = vadd.f32 %v5289, %v5443
        %5445 = vmatmul.f32.gmra.mxu0 %v5214
        %v5446 = vpop.f32.mrf.mxu0
        %v5447 = vadd.f32 %v5289, %v5446
        %5448 = vmatmul.f32.gmra.mxu0 %v5215
        %v5449 = vpop.f32.mrf.mxu0
        %v5450 = vadd.f32 %v5289, %v5449
        %5451 = vmatmul.f32.gmra.mxu0 %v5216
        %v5452 = vpop.f32.mrf.mxu0
        %v5453 = vadd.f32 %v5289, %v5452
        %5454 = vmatmul.f32.gmra.mxu0 %v5217
        %v5455 = vpop.f32.mrf.mxu0
        %v5456 = vadd.f32 %v5289, %v5455
        %5457 = vdwg.mxu0
        %v5458 = vmax.f32 %v5312, 0.0
        %v5459 = vmax.f32 %v5353, 0.0
        %v5460 = vmax.f32 %v5394, 0.0
        %v5461 = vmax.f32 %v5435, 0.0
        %v5462 = vmax.f32 %v5315, 0.0
        %v5463 = vmax.f32 %v5356, 0.0
        %v5464 = vmax.f32 %v5397, 0.0
        %v5465 = vmax.f32 %v5438, 0.0
        %v5466 = vmax.f32 %v5318, 0.0
        %v5467 = vmax.f32 %v5359, 0.0
        %v5468 = vmax.f32 %v5400, 0.0
        %v5469 = vmax.f32 %v5441, 0.0
        %v5470 = vmax.f32 %v5321, 0.0
        %v5471 = vmax.f32 %v5362, 0.0
        %v5472 = vmax.f32 %v5403, 0.0
        %v5473 = vmax.f32 %v5444, 0.0
        %v5474 = vmax.f32 %v5324, 0.0
        %v5475 = vmax.f32 %v5365, 0.0
        %v5476 = vmax.f32 %v5406, 0.0
        %v5477 = vmax.f32 %v5447, 0.0
        %v5478 = vmax.f32 %v5327, 0.0
        %v5479 = vmax.f32 %v5368, 0.0
        %v5480 = vmax.f32 %v5409, 0.0
        %v5481 = vmax.f32 %v5450, 0.0
        %v5482 = vmax.f32 %v5330, 0.0
        %v5483 = vmax.f32 %v5371, 0.0
        %v5484 = vmax.f32 %v5412, 0.0
        %v5485 = vmax.f32 %v5453, 0.0
        %v5486 = vmax.f32 %v5333, 0.0
        %v5487 = vmax.f32 %v5374, 0.0
        %v5488 = vmax.f32 %v5415, 0.0
        %v5489 = vmax.f32 %v5456, 0.0
        %s5490 = scalar_lea.vmem [#allocation8], 512
        %v5491 = vld [vmem:[%s5490] sm:$0xff]
        %v5492 = vld [vmem:[%s5490 + $0x8] sm:$0xff]
        %v5493 = vld [vmem:[%s5490 + $0x10] sm:$0xff]
        %v5494 = vld [vmem:[%s5490 + $0x18] sm:$0xff]
        %v5495 = vld [vmem:[%s5490 + $0x20] sm:$0xff]
        %v5496 = vld [vmem:[%s5490 + $0x28] sm:$0xff]
        %v5497 = vld [vmem:[%s5490 + $0x30] sm:$0xff]
        %v5498 = vld [vmem:[%s5490 + $0x38] sm:$0xff]
        %v5499 = vld [vmem:[%s5490 + $0x40] sm:$0xff]
        %v5500 = vld [vmem:[%s5490 + $0x48] sm:$0xff]
        %v5501 = vld [vmem:[%s5490 + $0x50] sm:$0xff]
        %v5502 = vld [vmem:[%s5490 + $0x58] sm:$0xff]
        %v5503 = vld [vmem:[%s5490 + $0x60] sm:$0xff]
        %v5504 = vld [vmem:[%s5490 + $0x68] sm:$0xff]
        %v5505 = vld [vmem:[%s5490 + $0x70] sm:$0xff]
        %v5506 = vld [vmem:[%s5490 + $0x78] sm:$0xff]
        %v5507 = vld [vmem:[%s5490 + $0x80] sm:$0xff]
        %v5508 = vld [vmem:[%s5490 + $0x88] sm:$0xff]
        %v5509 = vld [vmem:[%s5490 + $0x90] sm:$0xff]
        %v5510 = vld [vmem:[%s5490 + $0x98] sm:$0xff]
        %v5511 = vld [vmem:[%s5490 + $0xa0] sm:$0xff]
        %v5512 = vld [vmem:[%s5490 + $0xa8] sm:$0xff]
        %v5513 = vld [vmem:[%s5490 + $0xb0] sm:$0xff]
        %v5514 = vld [vmem:[%s5490 + $0xb8] sm:$0xff]
        %v5515 = vld [vmem:[%s5490 + $0xc0] sm:$0xff]
        %v5516 = vld [vmem:[%s5490 + $0xc8] sm:$0xff]
        %v5517 = vld [vmem:[%s5490 + $0xd0] sm:$0xff]
        %v5518 = vld [vmem:[%s5490 + $0xd8] sm:$0xff]
        %v5519 = vld [vmem:[%s5490 + $0xe0] sm:$0xff]
        %v5520 = vld [vmem:[%s5490 + $0xe8] sm:$0xff]
        %v5521 = vld [vmem:[%s5490 + $0xf0] sm:$0xff]
        %v5522 = vld [vmem:[%s5490 + $0xf8] sm:$0xff]
        %v5523 = vld [vmem:[%s5490 + $0x100] sm:$0xff]
        %v5524 = vld [vmem:[%s5490 + $0x108] sm:$0xff]
        %v5525 = vld [vmem:[%s5490 + $0x110] sm:$0xff]
        %v5526 = vld [vmem:[%s5490 + $0x118] sm:$0xff]
        %v5527 = vld [vmem:[%s5490 + $0x120] sm:$0xff]
        %v5528 = vld [vmem:[%s5490 + $0x128] sm:$0xff]
        %v5529 = vld [vmem:[%s5490 + $0x130] sm:$0xff]
        %v5530 = vld [vmem:[%s5490 + $0x138] sm:$0xff]
        %v5531 = vld [vmem:[%s5490 + $0x140] sm:$0xff]
        %v5532 = vld [vmem:[%s5490 + $0x148] sm:$0xff]
        %v5533 = vld [vmem:[%s5490 + $0x150] sm:$0xff]
        %v5534 = vld [vmem:[%s5490 + $0x158] sm:$0xff]
        %v5535 = vld [vmem:[%s5490 + $0x160] sm:$0xff]
        %v5536 = vld [vmem:[%s5490 + $0x168] sm:$0xff]
        %v5537 = vld [vmem:[%s5490 + $0x170] sm:$0xff]
        %v5538 = vld [vmem:[%s5490 + $0x178] sm:$0xff]
        %v5539 = vld [vmem:[%s5490 + $0x180] sm:$0xff]
        %v5540 = vld [vmem:[%s5490 + $0x188] sm:$0xff]
        %v5541 = vld [vmem:[%s5490 + $0x190] sm:$0xff]
        %v5542 = vld [vmem:[%s5490 + $0x198] sm:$0xff]
        %v5543 = vld [vmem:[%s5490 + $0x1a0] sm:$0xff]
        %v5544 = vld [vmem:[%s5490 + $0x1a8] sm:$0xff]
        %v5545 = vld [vmem:[%s5490 + $0x1b0] sm:$0xff]
        %v5546 = vld [vmem:[%s5490 + $0x1b8] sm:$0xff]
        %v5547 = vld [vmem:[%s5490 + $0x1c0] sm:$0xff]
        %v5548 = vld [vmem:[%s5490 + $0x1c8] sm:$0xff]
        %v5549 = vld [vmem:[%s5490 + $0x1d0] sm:$0xff]
        %v5550 = vld [vmem:[%s5490 + $0x1d8] sm:$0xff]
        %v5551 = vld [vmem:[%s5490 + $0x1e0] sm:$0xff]
        %v5552 = vld [vmem:[%s5490 + $0x1e8] sm:$0xff]
        %v5553 = vld [vmem:[%s5490 + $0x1f0] sm:$0xff]
        %v5554 = vld [vmem:[%s5490 + $0x1f8] sm:$0xff]
        %s5555 = scalar_lea.vmem %s13, 1
        %v5556 = vld [vmem:[%s5555] sm:$0x1]
        %v5558 = vperm.slane %v5556, 0
        %5560 = vmatpush.msra.mxu0 %v5506
        %5561 = vmatpush.msra.mxu0 %v5505
        %5562 = vmatpush.msra.mxu0 %v5504
        %5563 = vmatpush.msra.mxu0 %v5503
        %5564 = vmatpush.msra.mxu0 %v5502
        %5565 = vmatpush.msra.mxu0 %v5501
        %5566 = vmatpush.msra.mxu0 %v5500
        %5567 = vmatpush.msra.mxu0 %v5499
        %5568 = vmatpush.msra.mxu0 %v5498
        %5569 = vmatpush.msra.mxu0 %v5497
        %5570 = vmatpush.msra.mxu0 %v5496
        %5571 = vmatpush.msra.mxu0 %v5495
        %5572 = vmatpush.msra.mxu0 %v5494
        %5573 = vmatpush.msra.mxu0 %v5493
        %5574 = vmatpush.msra.mxu0 %v5492
        %5575 = vmatpush.msra.mxu0 %v5491
        %5576 = vmatmul.f32.gmra.mxu0 %v5458
        %v5577 = vpop.f32.mrf.mxu0
        %v5578 = vadd.f32 %v5558, %v5577
        %5579 = vmatmul.f32.gmra.mxu0 %v5462
        %v5580 = vpop.f32.mrf.mxu0
        %v5581 = vadd.f32 %v5558, %v5580
        %5582 = vmatmul.f32.gmra.mxu0 %v5466
        %v5583 = vpop.f32.mrf.mxu0
        %v5584 = vadd.f32 %v5558, %v5583
        %5585 = vmatmul.f32.gmra.mxu0 %v5470
        %v5586 = vpop.f32.mrf.mxu0
        %v5587 = vadd.f32 %v5558, %v5586
        %5588 = vmatmul.f32.gmra.mxu0 %v5474
        %v5589 = vpop.f32.mrf.mxu0
        %v5590 = vadd.f32 %v5558, %v5589
        %5591 = vmatmul.f32.gmra.mxu0 %v5478
        %v5592 = vpop.f32.mrf.mxu0
        %v5593 = vadd.f32 %v5558, %v5592
        %5594 = vmatmul.f32.gmra.mxu0 %v5482
        %v5595 = vpop.f32.mrf.mxu0
        %v5596 = vadd.f32 %v5558, %v5595
        %5597 = vmatmul.f32.gmra.mxu0 %v5486
        %v5598 = vpop.f32.mrf.mxu0
        %v5599 = vadd.f32 %v5558, %v5598
        %5600 = vdwg.mxu0
        %5601 = vmatpush.msra.mxu0 %v5522
        %5602 = vmatpush.msra.mxu0 %v5521
        %5603 = vmatpush.msra.mxu0 %v5520
        %5604 = vmatpush.msra.mxu0 %v5519
        %5605 = vmatpush.msra.mxu0 %v5518
        %5606 = vmatpush.msra.mxu0 %v5517
        %5607 = vmatpush.msra.mxu0 %v5516
        %5608 = vmatpush.msra.mxu0 %v5515
        %5609 = vmatpush.msra.mxu0 %v5514
        %5610 = vmatpush.msra.mxu0 %v5513
        %5611 = vmatpush.msra.mxu0 %v5512
        %5612 = vmatpush.msra.mxu0 %v5511
        %5613 = vmatpush.msra.mxu0 %v5510
        %5614 = vmatpush.msra.mxu0 %v5509
        %5615 = vmatpush.msra.mxu0 %v5508
        %5616 = vmatpush.msra.mxu0 %v5507
        %5617 = vmatmul.f32.gmra.mxu0 %v5459
        %v5618 = vpop.f32.mrf.mxu0
        %v5619 = vadd.f32 %v5578, %v5618
        %5620 = vmatmul.f32.gmra.mxu0 %v5463
        %v5621 = vpop.f32.mrf.mxu0
        %v5622 = vadd.f32 %v5581, %v5621
        %5623 = vmatmul.f32.gmra.mxu0 %v5467
        %v5624 = vpop.f32.mrf.mxu0
        %v5625 = vadd.f32 %v5584, %v5624
        %5626 = vmatmul.f32.gmra.mxu0 %v5471
        %v5627 = vpop.f32.mrf.mxu0
        %v5628 = vadd.f32 %v5587, %v5627
        %5629 = vmatmul.f32.gmra.mxu0 %v5475
        %v5630 = vpop.f32.mrf.mxu0
        %v5631 = vadd.f32 %v5590, %v5630
        %5632 = vmatmul.f32.gmra.mxu0 %v5479
        %v5633 = vpop.f32.mrf.mxu0
        %v5634 = vadd.f32 %v5593, %v5633
        %5635 = vmatmul.f32.gmra.mxu0 %v5483
        %v5636 = vpop.f32.mrf.mxu0
        %v5637 = vadd.f32 %v5596, %v5636
        %5638 = vmatmul.f32.gmra.mxu0 %v5487
        %v5639 = vpop.f32.mrf.mxu0
        %v5640 = vadd.f32 %v5599, %v5639
        %5641 = vdwg.mxu0
        %5642 = vmatpush.msra.mxu0 %v5538
        %5643 = vmatpush.msra.mxu0 %v5537
        %5644 = vmatpush.msra.mxu0 %v5536
        %5645 = vmatpush.msra.mxu0 %v5535
        %5646 = vmatpush.msra.mxu0 %v5534
        %5647 = vmatpush.msra.mxu0 %v5533
        %5648 = vmatpush.msra.mxu0 %v5532
        %5649 = vmatpush.msra.mxu0 %v5531
        %5650 = vmatpush.msra.mxu0 %v5530
        %5651 = vmatpush.msra.mxu0 %v5529
        %5652 = vmatpush.msra.mxu0 %v5528
        %5653 = vmatpush.msra.mxu0 %v5527
        %5654 = vmatpush.msra.mxu0 %v5526
        %5655 = vmatpush.msra.mxu0 %v5525
        %5656 = vmatpush.msra.mxu0 %v5524
        %5657 = vmatpush.msra.mxu0 %v5523
        %5658 = vmatmul.f32.gmra.mxu0 %v5460
        %v5659 = vpop.f32.mrf.mxu0
        %v5660 = vadd.f32 %v5619, %v5659
        %5661 = vmatmul.f32.gmra.mxu0 %v5464
        %v5662 = vpop.f32.mrf.mxu0
        %v5663 = vadd.f32 %v5622, %v5662
        %5664 = vmatmul.f32.gmra.mxu0 %v5468
        %v5665 = vpop.f32.mrf.mxu0
        %v5666 = vadd.f32 %v5625, %v5665
        %5667 = vmatmul.f32.gmra.mxu0 %v5472
        %v5668 = vpop.f32.mrf.mxu0
        %v5669 = vadd.f32 %v5628, %v5668
        %5670 = vmatmul.f32.gmra.mxu0 %v5476
        %v5671 = vpop.f32.mrf.mxu0
        %v5672 = vadd.f32 %v5631, %v5671
        %5673 = vmatmul.f32.gmra.mxu0 %v5480
        %v5674 = vpop.f32.mrf.mxu0
        %v5675 = vadd.f32 %v5634, %v5674
        %5676 = vmatmul.f32.gmra.mxu0 %v5484
        %v5677 = vpop.f32.mrf.mxu0
        %v5678 = vadd.f32 %v5637, %v5677
        %5679 = vmatmul.f32.gmra.mxu0 %v5488
        %v5680 = vpop.f32.mrf.mxu0
        %v5681 = vadd.f32 %v5640, %v5680
        %5682 = vdwg.mxu0
        %5683 = vmatpush.msra.mxu0 %v5554
        %5684 = vmatpush.msra.mxu0 %v5553
        %5685 = vmatpush.msra.mxu0 %v5552
        %5686 = vmatpush.msra.mxu0 %v5551
        %5687 = vmatpush.msra.mxu0 %v5550
        %5688 = vmatpush.msra.mxu0 %v5549
        %5689 = vmatpush.msra.mxu0 %v5548
        %5690 = vmatpush.msra.mxu0 %v5547
        %5691 = vmatpush.msra.mxu0 %v5546
        %5692 = vmatpush.msra.mxu0 %v5545
        %5693 = vmatpush.msra.mxu0 %v5544
        %5694 = vmatpush.msra.mxu0 %v5543
        %5695 = vmatpush.msra.mxu0 %v5542
        %5696 = vmatpush.msra.mxu0 %v5541
        %5697 = vmatpush.msra.mxu0 %v5540
        %5698 = vmatpush.msra.mxu0 %v5539
        %5699 = vmatmul.f32.gmra.mxu0 %v5461
        %v5700 = vpop.f32.mrf.mxu0
        %v5701 = vadd.f32 %v5660, %v5700
        %5702 = vmatmul.f32.gmra.mxu0 %v5465
        %v5703 = vpop.f32.mrf.mxu0
        %v5704 = vadd.f32 %v5663, %v5703
        %5705 = vmatmul.f32.gmra.mxu0 %v5469
        %v5706 = vpop.f32.mrf.mxu0
        %v5707 = vadd.f32 %v5666, %v5706
        %5708 = vmatmul.f32.gmra.mxu0 %v5473
        %v5709 = vpop.f32.mrf.mxu0
        %v5710 = vadd.f32 %v5669, %v5709
        %5711 = vmatmul.f32.gmra.mxu0 %v5477
        %v5712 = vpop.f32.mrf.mxu0
        %v5713 = vadd.f32 %v5672, %v5712
        %5714 = vmatmul.f32.gmra.mxu0 %v5481
        %v5715 = vpop.f32.mrf.mxu0
        %v5716 = vadd.f32 %v5675, %v5715
        %5717 = vmatmul.f32.gmra.mxu0 %v5485
        %v5718 = vpop.f32.mrf.mxu0
        %v5719 = vadd.f32 %v5678, %v5718
        %5720 = vmatmul.f32.gmra.mxu0 %v5489
        %v5721 = vpop.f32.mrf.mxu0
        %v5722 = vadd.f32 %v5681, %v5721
        %5723 = vdwg.mxu0
        %v5724 = vadd.f32 %v5024, %v5701
        %v5725 = vadd.f32 %v5025, %v5704
        %v5726 = vadd.f32 %v5026, %v5707
        %v5727 = vadd.f32 %v5027, %v5710
        %v5728 = vadd.f32 %v5028, %v5713
        %v5729 = vadd.f32 %v5029, %v5716
        %v5730 = vadd.f32 %v5030, %v5719
        %v5731 = vadd.f32 %v5031, %v5722
        %v5732 = vld [vmem:[%s14] sm:$0x1]
        %v5733 = vld [vmem:[%s15] sm:$0x1]
        %5734 = vadd.xlane.f32.xlu0 %v5724
        %v5735 = vpop.xlane.xlu0 %5734
        %5736 = vadd.xlane.f32.xlu0 %v5725
        %v5737 = vpop.xlane.xlu0 %5736
        %5738 = vadd.xlane.f32.xlu0 %v5726
        %v5739 = vpop.xlane.xlu0 %5738
        %5740 = vadd.xlane.f32.xlu0 %v5727
        %v5741 = vpop.xlane.xlu0 %5740
        %5742 = vadd.xlane.f32.xlu0 %v5728
        %v5743 = vpop.xlane.xlu0 %5742
        %5744 = vadd.xlane.f32.xlu0 %v5729
        %v5745 = vpop.xlane.xlu0 %5744
        %5746 = vadd.xlane.f32.xlu0 %v5730
        %v5747 = vpop.xlane.xlu0 %5746
        %5748 = vadd.xlane.f32.xlu0 %v5731
        %v5749 = vpop.xlane.xlu0 %5748
        %v5750 = vmul.f32 %v5735, %v692
        %v5751 = vmul.f32 %v5737, %v692
        %v5752 = vmul.f32 %v5739, %v692
        %v5753 = vmul.f32 %v5741, %v692
        %v5754 = vmul.f32 %v5743, %v692
        %v5755 = vmul.f32 %v5745, %v692
        %v5756 = vmul.f32 %v5747, %v692
        %v5757 = vmul.f32 %v5749, %v692
        %v5758 = vsub.f32 %v5724, %v5750
        %v5759 = vsub.f32 %v5725, %v5751
        %v5760 = vsub.f32 %v5726, %v5752
        %v5761 = vsub.f32 %v5727, %v5753
        %v5762 = vsub.f32 %v5728, %v5754
        %v5763 = vsub.f32 %v5729, %v5755
        %v5764 = vsub.f32 %v5730, %v5756
        %v5765 = vsub.f32 %v5731, %v5757
        %v5766 = vmul.f32 %v5758, %v5758
        %v5767 = vmul.f32 %v5759, %v5759
        %v5768 = vmul.f32 %v5760, %v5760
        %v5769 = vmul.f32 %v5761, %v5761
        %v5770 = vmul.f32 %v5762, %v5762
        %v5771 = vmul.f32 %v5763, %v5763
        %v5772 = vmul.f32 %v5764, %v5764
        %v5773 = vmul.f32 %v5765, %v5765
        %5774 = vadd.xlane.f32.xlu0 %v5766
        %v5775 = vpop.xlane.xlu0 %5774
        %5776 = vadd.xlane.f32.xlu0 %v5767
        %v5777 = vpop.xlane.xlu0 %5776
        %5778 = vadd.xlane.f32.xlu0 %v5768
        %v5779 = vpop.xlane.xlu0 %5778
        %5780 = vadd.xlane.f32.xlu0 %v5769
        %v5781 = vpop.xlane.xlu0 %5780
        %5782 = vadd.xlane.f32.xlu0 %v5770
        %v5783 = vpop.xlane.xlu0 %5782
        %5784 = vadd.xlane.f32.xlu0 %v5771
        %v5785 = vpop.xlane.xlu0 %5784
        %5786 = vadd.xlane.f32.xlu0 %v5772
        %v5787 = vpop.xlane.xlu0 %5786
        %5788 = vadd.xlane.f32.xlu0 %v5773
        %v5789 = vpop.xlane.xlu0 %5788
        %v5790 = vmul.f32 %v5775, %v692
        %v5791 = vmul.f32 %v5777, %v692
        %v5792 = vmul.f32 %v5779, %v692
        %v5793 = vmul.f32 %v5781, %v692
        %v5794 = vmul.f32 %v5783, %v692
        %v5795 = vmul.f32 %v5785, %v692
        %v5796 = vmul.f32 %v5787, %v692
        %v5797 = vmul.f32 %v5789, %v692
        %v5798 = vadd.f32 %v5790, 1e-05
        %v5799 = vadd.f32 %v5791, 1e-05
        %v5800 = vadd.f32 %v5792, 1e-05
        %v5801 = vadd.f32 %v5793, 1e-05
        %v5802 = vadd.f32 %v5794, 1e-05
        %v5803 = vadd.f32 %v5795, 1e-05
        %v5804 = vadd.f32 %v5796, 1e-05
        %v5805 = vadd.f32 %v5797, 1e-05
        %v5806 = vrsqrt.pop %v5798
        %v5807 = vmul.f32 %v5806, %v5798
        %v5808 = vmul.f32 %v5807, %v5806
        %v5809 = vmul.f32 0.5, %v5808
        %v5810 = vsub.f32 1.5, %v5809
        %v5811 = vmul.f32 %v5806, %v5810
        %vm5812 = vweird.f32 %v5798
        %vm5813 = vweird.f32 %v5806
        %vm5814 = vmor %vm5812, %vm5813
        %v5815 = vsel %vm5814, %v5806, %v5811
        %v5816 = vrsqrt.pop %v5799
        %v5817 = vmul.f32 %v5816, %v5799
        %v5818 = vmul.f32 %v5817, %v5816
        %v5819 = vmul.f32 0.5, %v5818
        %v5820 = vsub.f32 1.5, %v5819
        %v5821 = vmul.f32 %v5816, %v5820
        %vm5822 = vweird.f32 %v5799
        %vm5823 = vweird.f32 %v5816
        %vm5824 = vmor %vm5822, %vm5823
        %v5825 = vsel %vm5824, %v5816, %v5821
        %v5826 = vrsqrt.pop %v5800
        %v5827 = vmul.f32 %v5826, %v5800
        %v5828 = vmul.f32 %v5827, %v5826
        %v5829 = vmul.f32 0.5, %v5828
        %v5830 = vsub.f32 1.5, %v5829
        %v5831 = vmul.f32 %v5826, %v5830
        %vm5832 = vweird.f32 %v5800
        %vm5833 = vweird.f32 %v5826
        %vm5834 = vmor %vm5832, %vm5833
        %v5835 = vsel %vm5834, %v5826, %v5831
        %v5836 = vrsqrt.pop %v5801
        %v5837 = vmul.f32 %v5836, %v5801
        %v5838 = vmul.f32 %v5837, %v5836
        %v5839 = vmul.f32 0.5, %v5838
        %v5840 = vsub.f32 1.5, %v5839
        %v5841 = vmul.f32 %v5836, %v5840
        %vm5842 = vweird.f32 %v5801
        %vm5843 = vweird.f32 %v5836
        %vm5844 = vmor %vm5842, %vm5843
        %v5845 = vsel %vm5844, %v5836, %v5841
        %v5846 = vrsqrt.pop %v5802
        %v5847 = vmul.f32 %v5846, %v5802
        %v5848 = vmul.f32 %v5847, %v5846
        %v5849 = vmul.f32 0.5, %v5848
        %v5850 = vsub.f32 1.5, %v5849
        %v5851 = vmul.f32 %v5846, %v5850
        %vm5852 = vweird.f32 %v5802
        %vm5853 = vweird.f32 %v5846
        %vm5854 = vmor %vm5852, %vm5853
        %v5855 = vsel %vm5854, %v5846, %v5851
        %v5856 = vrsqrt.pop %v5803
        %v5857 = vmul.f32 %v5856, %v5803
        %v5858 = vmul.f32 %v5857, %v5856
        %v5859 = vmul.f32 0.5, %v5858
        %v5860 = vsub.f32 1.5, %v5859
        %v5861 = vmul.f32 %v5856, %v5860
        %vm5862 = vweird.f32 %v5803
        %vm5863 = vweird.f32 %v5856
        %vm5864 = vmor %vm5862, %vm5863
        %v5865 = vsel %vm5864, %v5856, %v5861
        %v5866 = vrsqrt.pop %v5804
        %v5867 = vmul.f32 %v5866, %v5804
        %v5868 = vmul.f32 %v5867, %v5866
        %v5869 = vmul.f32 0.5, %v5868
        %v5870 = vsub.f32 1.5, %v5869
        %v5871 = vmul.f32 %v5866, %v5870
        %vm5872 = vweird.f32 %v5804
        %vm5873 = vweird.f32 %v5866
        %vm5874 = vmor %vm5872, %vm5873
        %v5875 = vsel %vm5874, %v5866, %v5871
        %v5876 = vrsqrt.pop %v5805
        %v5877 = vmul.f32 %v5876, %v5805
        %v5878 = vmul.f32 %v5877, %v5876
        %v5879 = vmul.f32 0.5, %v5878
        %v5880 = vsub.f32 1.5, %v5879
        %v5881 = vmul.f32 %v5876, %v5880
        %vm5882 = vweird.f32 %v5805
        %vm5883 = vweird.f32 %v5876
        %vm5884 = vmor %vm5882, %vm5883
        %v5885 = vsel %vm5884, %v5876, %v5881
        %v5886 = vmul.f32 %v5758, %v5815
        %v5887 = vmul.f32 %v5759, %v5825
        %v5888 = vmul.f32 %v5760, %v5835
        %v5889 = vmul.f32 %v5761, %v5845
        %v5890 = vmul.f32 %v5762, %v5855
        %v5891 = vmul.f32 %v5763, %v5865
        %v5892 = vmul.f32 %v5764, %v5875
        %v5893 = vmul.f32 %v5765, %v5885
        %v5895 = vperm.slane %v5732, 0
        %v5897 = vmul.f32 %v5886, %v5895
        %v5898 = vmul.f32 %v5887, %v5895
        %v5899 = vmul.f32 %v5888, %v5895
        %v5900 = vmul.f32 %v5889, %v5895
        %v5901 = vmul.f32 %v5890, %v5895
        %v5902 = vmul.f32 %v5891, %v5895
        %v5903 = vmul.f32 %v5892, %v5895
        %v5904 = vmul.f32 %v5893, %v5895
        %v5906 = vperm.slane %v5733, 0
        %v5908 = vadd.f32 %v5897, %v5906
        %v5909 = vadd.f32 %v5898, %v5906
        %v5910 = vadd.f32 %v5899, %v5906
        %v5911 = vadd.f32 %v5900, %v5906
        %v5912 = vadd.f32 %v5901, %v5906
        %v5913 = vadd.f32 %v5902, %v5906
        %v5914 = vadd.f32 %v5903, %v5906
        %v5915 = vadd.f32 %v5904, %v5906
        %v5916 = vld [vmem:[%s16] sm:$0xff]
        %v5917 = vld [vmem:[%s16 + $0x8] sm:$0xff]
        %v5918 = vld [vmem:[%s16 + $0x10] sm:$0xff]
        %v5919 = vld [vmem:[%s16 + $0x18] sm:$0xff]
        %v5920 = vld [vmem:[%s16 + $0x20] sm:$0xff]
        %v5921 = vld [vmem:[%s16 + $0x28] sm:$0xff]
        %v5922 = vld [vmem:[%s16 + $0x30] sm:$0xff]
        %v5923 = vld [vmem:[%s16 + $0x38] sm:$0xff]
        %v5924 = vld [vmem:[%s16 + $0x40] sm:$0xff]
        %v5925 = vld [vmem:[%s16 + $0x48] sm:$0xff]
        %v5926 = vld [vmem:[%s16 + $0x50] sm:$0xff]
        %v5927 = vld [vmem:[%s16 + $0x58] sm:$0xff]
        %v5928 = vld [vmem:[%s16 + $0x60] sm:$0xff]
        %v5929 = vld [vmem:[%s16 + $0x68] sm:$0xff]
        %v5930 = vld [vmem:[%s16 + $0x70] sm:$0xff]
        %v5931 = vld [vmem:[%s16 + $0x78] sm:$0xff]
        %v5932 = vld [vmem:[%s17] sm:$0x1]
        %v5934 = vperm.slane %v5932, 0
        %5936 = vmatpush.msra.mxu0 %v5931
        %5937 = vmatpush.msra.mxu0 %v5930
        %5938 = vmatpush.msra.mxu0 %v5929
        %5939 = vmatpush.msra.mxu0 %v5928
        %5940 = vmatpush.msra.mxu0 %v5927
        %5941 = vmatpush.msra.mxu0 %v5926
        %5942 = vmatpush.msra.mxu0 %v5925
        %5943 = vmatpush.msra.mxu0 %v5924
        %5944 = vmatpush.msra.mxu0 %v5923
        %5945 = vmatpush.msra.mxu0 %v5922
        %5946 = vmatpush.msra.mxu0 %v5921
        %5947 = vmatpush.msra.mxu0 %v5920
        %5948 = vmatpush.msra.mxu0 %v5919
        %5949 = vmatpush.msra.mxu0 %v5918
        %5950 = vmatpush.msra.mxu0 %v5917
        %5951 = vmatpush.msra.mxu0 %v5916
        %5952 = vmatmul.f32.gmra.mxu0 %v5908
        %v5953 = vpop.f32.mrf.mxu0
        %v5954 = vadd.f32 %v5934, %v5953
        %5955 = vmatmul.f32.gmra.mxu0 %v5909
        %v5956 = vpop.f32.mrf.mxu0
        %v5957 = vadd.f32 %v5934, %v5956
        %5958 = vmatmul.f32.gmra.mxu0 %v5910
        %v5959 = vpop.f32.mrf.mxu0
        %v5960 = vadd.f32 %v5934, %v5959
        %5961 = vmatmul.f32.gmra.mxu0 %v5911
        %v5962 = vpop.f32.mrf.mxu0
        %v5963 = vadd.f32 %v5934, %v5962
        %5964 = vmatmul.f32.gmra.mxu0 %v5912
        %v5965 = vpop.f32.mrf.mxu0
        %v5966 = vadd.f32 %v5934, %v5965
        %5967 = vmatmul.f32.gmra.mxu0 %v5913
        %v5968 = vpop.f32.mrf.mxu0
        %v5969 = vadd.f32 %v5934, %v5968
        %5970 = vmatmul.f32.gmra.mxu0 %v5914
        %v5971 = vpop.f32.mrf.mxu0
        %v5972 = vadd.f32 %v5934, %v5971
        %5973 = vmatmul.f32.gmra.mxu0 %v5915
        %v5974 = vpop.f32.mrf.mxu0
        %v5975 = vadd.f32 %v5934, %v5974
        %5976 = vdwg.mxu0
        %5977 = vst [vmem:[%s635] sm:$0xff] %v5954
        %5978 = vst [vmem:[%s635 + $0x8] sm:$0xff] %v5957
        %5979 = vst [vmem:[%s635 + $0x10] sm:$0xff] %v5960
        %5980 = vst [vmem:[%s635 + $0x18] sm:$0xff] %v5963
        %5981 = vst [vmem:[%s635 + $0x20] sm:$0xff] %v5966
        %5982 = vst [vmem:[%s635 + $0x28] sm:$0xff] %v5969
        %5983 = vst [vmem:[%s635 + $0x30] sm:$0xff] %v5972
        %5984 = vst [vmem:[%s635 + $0x38] sm:$0xff] %v5975
        %s5985 = sand.u32 %s426, 1
        %s5986 = scalar_lea.sflag [#allocation4], %s5985
        %s5987 = sand.u32 %s426, 1
        %s5988 = smul.addr %s5987, 64
        %s5989 = scalar_lea.vmem [#allocation10], %s5988
        // Predicated region
        $region109: #{bigram_lm_forward.1} parent=91 // pred_check
          %p5990 = pneg %p436
        $region110: #{bigram_lm_forward.1} parent=91 // pred_check_branch
          %5992 = sbr.rel (%p5990) target = $region112
        $region111: #{bigram_lm_forward.1} parent=91 // pred_region
          %5994 = vsyncadd %s5986, 0
          %s5995 = smul.addr %s35, 8
          %s5996 = smul.addr %s5995, 8
          %s5997 = scalar_lea.hbm %s18, %s5996
          %s5998 = sshll.u32 %s5989, 4
          %s5999 = int_to_ptr.vmem [resolvable:$true] %s5998
          %s6000 = sshll.u32 %s5997, 4
          %s6001 = int_to_ptr.hbm [resolvable:$true] %s6000
          %6006 = dma.vmem_to_hbm [thread:$0]  %s5999, 1024, %s6001, %s5986, 128, 128, 8
        $region112: #{bigram_lm_forward.1} parent=91 // pred_fallthru
          _
      $region92: #{bigram_lm_forward.1} parent=5 // pred_fallthru
        _
      %p6007 = scmp.le.s32.totalorder 2, %s30
      // Predicated region
      $region113: #{bigram_lm_forward.1} parent=5 // pred_check
        %p6008 = pneg %p6007
      $region114: #{bigram_lm_forward.1} parent=5 // pred_check_branch
        %6010 = sbr.rel (%p6008) target = $region116
      $region115: #{bigram_lm_forward.1} parent=5 // pred_region
        %s6011 = ssub.s32 %s30, 2
        // Predicated region
        $region117: #{bigram_lm_forward.1} parent=115 // pred_check
          %p6012 = pneg %p442
        $region118: #{bigram_lm_forward.1} parent=115 // pred_check_branch
          %6014 = sbr.rel (%p6012) target = $region120
        $region119: #{bigram_lm_forward.1} parent=115 // pred_region
          %s6015 = sand.u32 %s427, 1
          %s6016 = scalar_lea.sflag [#allocation4], %s6015
          %s6017 = sand.u32 %s427, 1
          %s6018 = smul.addr %s6017, 64
          %s6019 = scalar_lea.vmem [#allocation10], %s6018
          %6021 = dma.done %s6016, 1024
        $region120: #{bigram_lm_forward.1} parent=115 // pred_fallthru
          _
      $region116: #{bigram_lm_forward.1} parent=5 // pred_fallthru
        _
    $region6: #{bigram_lm_forward.1} parent=1 // loop_footer
      %s34 = sadd.s32 1, %s30
    $region7: #{bigram_lm_forward.1} parent=1 // loop_footer_branch
      %29 = sbr.rel target = $region3
    $region8: #{bigram_lm_forward.1} parent=1 // loop_exit
      _
    %6022 = vsyncpa [#allocation3], 1
    %s6023 = scalar_lea.sflag [#allocation3], 1
    %6024 = vsyncpa %s6023, 1
    %6025 = vsyncpa [#allocation6], 1
    %6026 = vsyncpa [#allocation9], 1
    %6027 = vsyncpa [#allocation4], 1
    %s6028 = scalar_lea.sflag [#allocation4], 1
    %6029 = vsyncpa %s6028, 1

</llo_original>
